<compile_context>
chip_gen: v6e
topology: v6e:2x2x1
jax: 0.10.0
libtpu: 0.0.40
codegen_flags: <defaults>
</compile_context>

<pallas_src>
import jax
import jax.numpy as jnp
from jax.experimental import pallas as pl
from jax.experimental.pallas import tpu as pltpu

H_IN = 28            # input spatial
H1 = 26              # conv1 output spatial
H2 = 24              # conv2 output spatial
HP = 12              # pooled spatial
C1 = 32              # conv1 out channels
C2 = 64              # conv2 out channels
FEAT = C2 * HP * HP  # 9216
FC1 = 128
FC2 = 10

PADW = 32                   # padded image row stride (lane friendly)
PADH = 32                   # padded image rows
XLEN = PADH * PADW          # 1024 flattened padded image
W1LEN = H_IN * PADW         # 896  conv1 "wide" output (28 rows x 32 cols)
W2LEN = H2 * PADW           # 768  conv2 "wide" output (24 rows x 32 cols)
POOLW = W2LEN - PADW        # 736  width of the row-pair max
NPOOL = HP * HP             # 144  pooled features per channel
TAP_OFFS = tuple(ki * PADW + kj for ki in range(3) for kj in range(3))


# ----------------------------------------------------------------------------
# Kernel 1: fused conv1 + ReLU + conv2 + ReLU + 2x2 max-pool (B samples/step)
# ----------------------------------------------------------------------------
def _conv_pool_kernel(x_ref, w1_ref, b1_ref, w2_ref, b2_ref, se_ref, so_ref,
                      o_ref, h1_ref):
    # x_ref : (B, 1, 1024) f32  padded 28x28 image, flat index = row*32 + col
    # w1_ref: (32, 9) f32       b1_ref: (32, 1) f32
    # w2_ref: (64, 288) bf16    [co, (ki*3+kj)*32 + c]     b2_ref: (64, 1) f32
    # se/so : (736, 144) bf16   2x2-pool column selectors
    # o_ref : (B, 64, 144) bf16 feat[c, p*12 + wp] (== torch NCHW flatten)
    # h1_ref: (32, 896) bf16    conv1 output scratch (channel, row*32 + col)
    w1 = w1_ref[...]
    b1 = b1_ref[...]
    w2 = w2_ref[...]
    b2 = b2_ref[...]
    se = se_ref[...]
    so = so_ref[...]

    def body(b, carry):
        xs = x_ref[b]                                        # (1, 1024) f32

        # conv1 + ReLU: 9 wide VPU FMAs (cin == 1), 896 lanes each.
        acc = jnp.zeros((C1, W1LEN), jnp.float32)
        for k, off in enumerate(TAP_OFFS):
            acc = acc + w1[:, k:k + 1] * xs[:, off:off + W1LEN]
        h1_ref[...] = jnp.maximum(acc + b1, 0.0).astype(jnp.bfloat16)

        # conv2: ONE (64,288)x(288,768) bf16 MXU dot per sample (im2col built
        # in-register from 9 lane-shifted slabs of the scratch).
        cat = jnp.concatenate(
            [h1_ref[:, off:off + W2LEN] for off in TAP_OFFS], axis=0)
        y = jnp.dot(w2, cat, preferred_element_type=jnp.float32)  # (64, 768)

        # fused 2x2 max-pool; bias + ReLU applied AFTER the pool.
        m = jnp.maximum(y[:, :POOLW], y[:, PADW:]).astype(jnp.bfloat16)
        pe = jnp.dot(m, se, preferred_element_type=jnp.float32)   # even cols
        po = jnp.dot(m, so, preferred_element_type=jnp.float32)   # odd cols
        pooled = jnp.maximum(pe, po)                               # (64, 144)
        o_ref[b] = jnp.maximum(pooled + b2, 0.0).astype(o_ref.dtype)
        return carry

    jax.lax.fori_loop(0, o_ref.shape[0], body, 0)


def conv_pool(xflat, p, block_b):
    n = xflat.shape[0]
    return pl.pallas_call(
        _conv_pool_kernel,
        out_shape=jax.ShapeDtypeStruct((n, C2, NPOOL), jnp.bfloat16),
        grid_spec=pltpu.PrefetchScalarGridSpec(
            num_scalar_prefetch=0,
            grid=(pl.cdiv(n, block_b),),
            in_specs=[
                pl.BlockSpec((block_b, 1, XLEN), lambda i: (i, 0, 0)),
                pl.BlockSpec((C1, 9), lambda i: (0, 0)),
                pl.BlockSpec((C1, 1), lambda i: (0, 0)),
                pl.BlockSpec((C2, 9 * C1), lambda i: (0, 0)),
                pl.BlockSpec((C2, 1), lambda i: (0, 0)),
                pl.BlockSpec((POOLW, NPOOL), lambda i: (0, 0)),
                pl.BlockSpec((POOLW, NPOOL), lambda i: (0, 0)),
            ],
            out_specs=pl.BlockSpec((block_b, C2, NPOOL), lambda i: (i, 0, 0)),
            scratch_shapes=[pltpu.VMEM((C1, W1LEN), jnp.bfloat16)],
        ),
        compiler_params=pltpu.CompilerParams(
            dimension_semantics=("parallel",)),
    )(xflat, p["w1"], p["b1"], p["w2"], p["b2"], p["se"], p["so"])


# ----------------------------------------------------------------------------
# Kernel 2: fused fc1 + ReLU + fc2 (one batch tile per step)
# ----------------------------------------------------------------------------
def _fc_kernel(x_ref, w1_ref, b1_ref, w2_ref, b2_ref, o_ref):
    # x_ref: (TM, 9216) bf16   w1_ref: (9216, 128) bf16   b1_ref: (1, 128) f32
    # w2_ref: (128, 10) bf16   b2_ref: (1, 10) f32        o_ref : (TM, 10) f32
    h = jnp.dot(x_ref[...], w1_ref[...], preferred_element_type=jnp.float32)
    h = jnp.maximum(h + b1_ref[...], 0.0)
    y = jnp.dot(h.astype(jnp.bfloat16), w2_ref[...],
                preferred_element_type=jnp.float32) + b2_ref[...]
    o_ref[...] = y.astype(o_ref.dtype)


def fc_fused(feat2d, p):
    n = feat2d.shape[0]
    tm = n if n <= 256 else 256      # 256 fills the 256-wide MXU on v6e/v7x
    return pl.pallas_call(
        _fc_kernel,
        out_shape=jax.ShapeDtypeStruct((n, FC2), jnp.float32),
        grid_spec=pltpu.PrefetchScalarGridSpec(
            num_scalar_prefetch=0,
            grid=(pl.cdiv(n, tm),),
            in_specs=[
                pl.BlockSpec((tm, FEAT), lambda i: (i, 0)),
                pl.BlockSpec((FEAT, FC1), lambda i: (0, 0)),
                pl.BlockSpec((1, FC1), lambda i: (0, 0)),
                pl.BlockSpec((FC1, FC2), lambda i: (0, 0)),
                pl.BlockSpec((1, FC2), lambda i: (0, 0)),
            ],
            out_specs=pl.BlockSpec((tm, FC2), lambda i: (i, 0)),
        ),
        compiler_params=pltpu.CompilerParams(
            dimension_semantics=("parallel",),
            vmem_limit_bytes=32 * 1024 * 1024),
    )(feat2d, p["wf1"], p["bf1"], p["wf2"], p["bf2"])


# ----------------------------------------------------------------------------
# Forward pass (mirrors SimpleCNN.forward)
# ----------------------------------------------------------------------------
def simple_cnn_forward(x_nchw, p):
    n = x_nchw.shape[0]
    x2 = x_nchw.reshape(n, H_IN, H_IN).astype(jnp.float32)      # cin == 1
    xp = jnp.pad(x2, ((0, 0), (0, PADH - H_IN), (0, PADW - H_IN)))
    xf = xp.reshape(n, 1, XLEN)
    block_b = n if n < 8 else 8                                 # batch tile
    feat = conv_pool(xf, p, block_b)                            # (N, 64, 144)
    return fc_fused(feat.reshape(n, FEAT), p)                   # (N, 10) f32


# ----------------------------------------------------------------------------
# Parameters: torch-layout init + one-time kernel-friendly relayout
# ----------------------------------------------------------------------------
def init_params(key):
    ks = jax.random.split(key, 8)
    s = 0.05
    return {
        "conv1_w": s * jax.random.normal(ks[0], (32, 1, 3, 3), jnp.float32),
        "conv1_b": s * jax.random.normal(ks[1], (32,), jnp.float32),
        "conv2_w": s * jax.random.normal(ks[2], (64, 32, 3, 3), jnp.float32),
        "conv2_b": s * jax.random.normal(ks[3], (64,), jnp.float32),
        "fc1_w": s * jax.random.normal(ks[4], (128, 9216), jnp.float32),
        "fc1_b": s * jax.random.normal(ks[5], (128,), jnp.float32),
        "fc2_w": s * jax.random.normal(ks[6], (10, 128), jnp.float32),
        "fc2_b": s * jax.random.normal(ks[7], (10,), jnp.float32),
    }


def prep_params(tp):
    """One-time (outside jit) weight relayout/casts into kernel layouts."""
    w1 = tp["conv1_w"].reshape(C1, 9)                            # (32, 9) f32
    b1 = tp["conv1_b"].reshape(C1, 1)
    # OIHW -> (O, KH, KW, I) -> (64, 288); column = (ki*3+kj)*32 + c
    w2 = jnp.transpose(tp["conv2_w"], (0, 2, 3, 1)).reshape(C2, 9 * C1)
    b2 = tp["conv2_b"].reshape(C2, 1)
    # Kernel feature order (c, p*12 + wp) == torch NCHW flatten order.
    wf1 = tp["fc1_w"].T                                          # (9216, 128)
    bf1 = tp["fc1_b"].reshape(1, FC1)
    wf2 = tp["fc2_w"].T                                          # (128, 10)
    bf2 = tp["fc2_b"].reshape(1, FC2)
    # 2x2-pool column selectors over the row-pair-max m (columns = 64p + w):
    # se picks column 64p + 2wp, so picks 64p + 2wp + 1, into output 12p + wp.
    rows = jnp.arange(POOLW)[:, None]
    cols = jnp.arange(NPOOL)[None, :]
    pp = cols // HP
    wp = cols % HP
    se = (rows == 2 * PADW * pp + 2 * wp).astype(jnp.bfloat16)   # (736, 144)
    so = (rows == 2 * PADW * pp + 2 * wp + 1).astype(jnp.bfloat16)
    return {
        "w1": w1, "b1": b1,
        "w2": w2.astype(jnp.bfloat16), "b2": b2,
        "se": se, "so": so,
        "wf1": wf1.astype(jnp.bfloat16), "bf1": bf1,
        "wf2": wf2.astype(jnp.bfloat16), "bf2": bf2,
    }


# ----------------------------------------------------------------------------
# Pure-JAX f32 reference (same math as the PyTorch module)
# ----------------------------------------------------------------------------
def reference_forward(x, tp):
    hi = jax.lax.Precision.HIGHEST
    dn = ("NCHW", "OIHW", "NCHW")
    y = jax.lax.conv_general_dilated(x, tp["conv1_w"], (1, 1), "VALID",
                                     dimension_numbers=dn, precision=hi)
    y = jax.nn.relu(y + tp["conv1_b"][None, :, None, None])
    y = jax.lax.conv_general_dilated(y, tp["conv2_w"], (1, 1), "VALID",
                                     dimension_numbers=dn, precision=hi)
    y = jax.nn.relu(y + tp["conv2_b"][None, :, None, None])
    y = jax.lax.reduce_window(y, -jnp.inf, jax.lax.max,
                              (1, 1, 2, 2), (1, 1, 2, 2), "VALID")
    y = y.reshape(y.shape[0], -1)
    y = jax.nn.relu(jnp.dot(y, tp["fc1_w"].T, precision=hi) + tp["fc1_b"])
    return jnp.dot(y, tp["fc2_w"].T, precision=hi) + tp["fc2_b"]


if __name__ == "__main__":
    key = jax.random.PRNGKey(0)
    pkey, xkey = jax.random.split(key)
    torch_params = init_params(pkey)
    params = prep_params(torch_params)
    # fc1 hard-codes 9216 = 64*12*12, so input must be (N, 1, 28, 28).
    x = jax.random.normal(xkey, (2, 1, 28, 28), jnp.float32)

    fwd = jax.jit(simple_cnn_forward)
    out = jax.block_until_ready(fwd(x, params))
    assert out.shape == (2, 10) and out.dtype == jnp.float32

    ref = reference_forward(x, torch_params)
    err = float(jnp.max(jnp.abs(out - ref)))
    assert err < 5e-2, f"kernel vs f32 reference mismatch: max abs err {err}"
    print("KERNEL_OK")
</pallas_src>

<mosaic_0001>
module attributes {stable_mosaic.version = 11 : i64} {
  func.func @_conv_pool_kernel(%arg0: i32, %arg1: memref<2x1x1024xf32, #tpu.memory_space<vmem>>, %arg2: memref<32x9xf32, #tpu.memory_space<vmem>>, %arg3: memref<32x1xf32, #tpu.memory_space<vmem>>, %arg4: memref<64x288xbf16, #tpu.memory_space<vmem>>, %arg5: memref<64x1xf32, #tpu.memory_space<vmem>>, %arg6: memref<736x144xbf16, #tpu.memory_space<vmem>>, %arg7: memref<736x144xbf16, #tpu.memory_space<vmem>>, %arg8: memref<2x64x144xbf16, #tpu.memory_space<vmem>>, %arg9: memref<32x896xbf16, #tpu.memory_space<vmem>>) attributes {dimension_semantics = [#tpu.dimension_semantics<parallel>], iteration_bounds = array<i64: 1>, scalar_prefetch = 0 : i64, scratch_operands = 1 : i64, tpu.core_type = #tpu.core_type<tc>, window_params = [{transform_indices = @transform_0, window_bounds = array<i64: 2, 1, 1024>}, {pipeline_mode = #tpu.pipeline_mode<synchronous>, transform_indices = @transform_1, window_bounds = array<i64: 32, 9>}, {pipeline_mode = #tpu.pipeline_mode<synchronous>, transform_indices = @transform_2, window_bounds = array<i64: 32, 1>}, {pipeline_mode = #tpu.pipeline_mode<synchronous>, transform_indices = @transform_3, window_bounds = array<i64: 64, 288>}, {pipeline_mode = #tpu.pipeline_mode<synchronous>, transform_indices = @transform_4, window_bounds = array<i64: 64, 1>}, {pipeline_mode = #tpu.pipeline_mode<synchronous>, transform_indices = @transform_5, window_bounds = array<i64: 736, 144>}, {pipeline_mode = #tpu.pipeline_mode<synchronous>, transform_indices = @transform_6, window_bounds = array<i64: 736, 144>}, {transform_indices = @transform_7, window_bounds = array<i64: 2, 64, 144>}]} {
    %c0 = arith.constant 0 : index
    %c0_0 = arith.constant 0 : index
    %0 = vector.load %arg2[%c0, %c0_0] : memref<32x9xf32, #tpu.memory_space<vmem>>, vector<32x9xf32>
    %c0_1 = arith.constant 0 : index
    %c0_2 = arith.constant 0 : index
    %1 = vector.load %arg3[%c0_1, %c0_2] : memref<32x1xf32, #tpu.memory_space<vmem>>, vector<32x1xf32>
    %c0_3 = arith.constant 0 : index
    %c0_4 = arith.constant 0 : index
    %2 = vector.load %arg4[%c0_3, %c0_4] : memref<64x288xbf16, #tpu.memory_space<vmem>>, vector<64x288xbf16>
    %c0_5 = arith.constant 0 : index
    %c0_6 = arith.constant 0 : index
    %3 = vector.load %arg5[%c0_5, %c0_6] : memref<64x1xf32, #tpu.memory_space<vmem>>, vector<64x1xf32>
    %c0_7 = arith.constant 0 : index
    %c0_8 = arith.constant 0 : index
    %4 = vector.load %arg6[%c0_7, %c0_8] : memref<736x144xbf16, #tpu.memory_space<vmem>>, vector<736x144xbf16>
    %c0_9 = arith.constant 0 : index
    %c0_10 = arith.constant 0 : index
    %5 = vector.load %arg7[%c0_9, %c0_10] : memref<736x144xbf16, #tpu.memory_space<vmem>>, vector<736x144xbf16>
    %c0_i32 = arith.constant 0 : i32
    %c2_i32 = arith.constant 2 : i32
    %6 = arith.addi %c0_i32, %c2_i32 : i32
    %c1_i32 = arith.constant 1 : i32
    scf.for %arg10 = %c0_i32 to %6 step %c1_i32  : i32 {
      %7 = arith.index_cast %arg10 : i32 to index
      %c0_12 = arith.constant 0 : index
      %c0_13 = arith.constant 0 : index
      %8 = vector.load %arg1[%7, %c0_12, %c0_13] : memref<2x1x1024xf32, #tpu.memory_space<vmem>>, vector<1x1x1024xf32>
      %9 = vector.shape_cast %8 : vector<1x1x1024xf32> to vector<1x1024xf32>
      %cst = arith.constant 0.000000e+00 : f32
      %10 = vector.broadcast %cst : f32 to vector<32x896xf32>
      %11 = vector.extract_strided_slice %0 {offsets = [0, 0], sizes = [32, 1], strides = [1, 1]} : vector<32x9xf32> to vector<32x1xf32>
      %12 = vector.extract_strided_slice %9 {offsets = [0, 0], sizes = [1, 896], strides = [1, 1]} : vector<1x1024xf32> to vector<1x896xf32>
      %13 = vector.broadcast %11 : vector<32x1xf32> to vector<32x896xf32>
      %14 = vector.broadcast %12 : vector<1x896xf32> to vector<32x896xf32>
      %15 = arith.mulf %13, %14 : vector<32x896xf32>
      %16 = arith.addf %10, %15 : vector<32x896xf32>
      %17 = vector.extract_strided_slice %0 {offsets = [0, 1], sizes = [32, 1], strides = [1, 1]} : vector<32x9xf32> to vector<32x1xf32>
      %18 = vector.extract_strided_slice %9 {offsets = [0, 1], sizes = [1, 896], strides = [1, 1]} : vector<1x1024xf32> to vector<1x896xf32>
      %19 = vector.broadcast %17 : vector<32x1xf32> to vector<32x896xf32>
      %20 = vector.broadcast %18 : vector<1x896xf32> to vector<32x896xf32>
      %21 = arith.mulf %19, %20 : vector<32x896xf32>
      %22 = arith.addf %16, %21 : vector<32x896xf32>
      %23 = vector.extract_strided_slice %0 {offsets = [0, 2], sizes = [32, 1], strides = [1, 1]} : vector<32x9xf32> to vector<32x1xf32>
      %24 = vector.extract_strided_slice %9 {offsets = [0, 2], sizes = [1, 896], strides = [1, 1]} : vector<1x1024xf32> to vector<1x896xf32>
      %25 = vector.broadcast %23 : vector<32x1xf32> to vector<32x896xf32>
      %26 = vector.broadcast %24 : vector<1x896xf32> to vector<32x896xf32>
      %27 = arith.mulf %25, %26 : vector<32x896xf32>
      %28 = arith.addf %22, %27 : vector<32x896xf32>
      %29 = vector.extract_strided_slice %0 {offsets = [0, 3], sizes = [32, 1], strides = [1, 1]} : vector<32x9xf32> to vector<32x1xf32>
      %30 = vector.extract_strided_slice %9 {offsets = [0, 32], sizes = [1, 896], strides = [1, 1]} : vector<1x1024xf32> to vector<1x896xf32>
      %31 = vector.broadcast %29 : vector<32x1xf32> to vector<32x896xf32>
      %32 = vector.broadcast %30 : vector<1x896xf32> to vector<32x896xf32>
      %33 = arith.mulf %31, %32 : vector<32x896xf32>
      %34 = arith.addf %28, %33 : vector<32x896xf32>
      %35 = vector.extract_strided_slice %0 {offsets = [0, 4], sizes = [32, 1], strides = [1, 1]} : vector<32x9xf32> to vector<32x1xf32>
      %36 = vector.extract_strided_slice %9 {offsets = [0, 33], sizes = [1, 896], strides = [1, 1]} : vector<1x1024xf32> to vector<1x896xf32>
      %37 = vector.broadcast %35 : vector<32x1xf32> to vector<32x896xf32>
      %38 = vector.broadcast %36 : vector<1x896xf32> to vector<32x896xf32>
      %39 = arith.mulf %37, %38 : vector<32x896xf32>
      %40 = arith.addf %34, %39 : vector<32x896xf32>
      %41 = vector.extract_strided_slice %0 {offsets = [0, 5], sizes = [32, 1], strides = [1, 1]} : vector<32x9xf32> to vector<32x1xf32>
      %42 = vector.extract_strided_slice %9 {offsets = [0, 34], sizes = [1, 896], strides = [1, 1]} : vector<1x1024xf32> to vector<1x896xf32>
      %43 = vector.broadcast %41 : vector<32x1xf32> to vector<32x896xf32>
      %44 = vector.broadcast %42 : vector<1x896xf32> to vector<32x896xf32>
      %45 = arith.mulf %43, %44 : vector<32x896xf32>
      %46 = arith.addf %40, %45 : vector<32x896xf32>
      %47 = vector.extract_strided_slice %0 {offsets = [0, 6], sizes = [32, 1], strides = [1, 1]} : vector<32x9xf32> to vector<32x1xf32>
      %48 = vector.extract_strided_slice %9 {offsets = [0, 64], sizes = [1, 896], strides = [1, 1]} : vector<1x1024xf32> to vector<1x896xf32>
      %49 = vector.broadcast %47 : vector<32x1xf32> to vector<32x896xf32>
      %50 = vector.broadcast %48 : vector<1x896xf32> to vector<32x896xf32>
      %51 = arith.mulf %49, %50 : vector<32x896xf32>
      %52 = arith.addf %46, %51 : vector<32x896xf32>
      %53 = vector.extract_strided_slice %0 {offsets = [0, 7], sizes = [32, 1], strides = [1, 1]} : vector<32x9xf32> to vector<32x1xf32>
      %54 = vector.extract_strided_slice %9 {offsets = [0, 65], sizes = [1, 896], strides = [1, 1]} : vector<1x1024xf32> to vector<1x896xf32>
      %55 = vector.broadcast %53 : vector<32x1xf32> to vector<32x896xf32>
      %56 = vector.broadcast %54 : vector<1x896xf32> to vector<32x896xf32>
      %57 = arith.mulf %55, %56 : vector<32x896xf32>
      %58 = arith.addf %52, %57 : vector<32x896xf32>
      %59 = vector.extract_strided_slice %0 {offsets = [0, 8], sizes = [32, 1], strides = [1, 1]} : vector<32x9xf32> to vector<32x1xf32>
      %60 = vector.extract_strided_slice %9 {offsets = [0, 66], sizes = [1, 896], strides = [1, 1]} : vector<1x1024xf32> to vector<1x896xf32>
      %61 = vector.broadcast %59 : vector<32x1xf32> to vector<32x896xf32>
      %62 = vector.broadcast %60 : vector<1x896xf32> to vector<32x896xf32>
      %63 = arith.mulf %61, %62 : vector<32x896xf32>
      %64 = arith.addf %58, %63 : vector<32x896xf32>
      %65 = vector.broadcast %1 : vector<32x1xf32> to vector<32x896xf32>
      %66 = arith.addf %64, %65 : vector<32x896xf32>
      %cst_14 = arith.constant 0.000000e+00 : f32
      %67 = vector.broadcast %cst_14 : f32 to vector<32x896xf32>
      %68 = arith.maximumf %66, %67 : vector<32x896xf32>
      %69 = arith.truncf %68 : vector<32x896xf32> to vector<32x896xbf16>
      %c0_15 = arith.constant 0 : index
      %c0_16 = arith.constant 0 : index
      %70 = vector.load %arg9[%c0_15, %c0_16] : memref<32x896xbf16, #tpu.memory_space<vmem>>, vector<32x896xbf16>
      tpu.vector_store %arg9[%c0_15, %c0_16], %69 {strides = array<i32>} : memref<32x896xbf16, #tpu.memory_space<vmem>>, vector<32x896xbf16>,
      %c0_17 = arith.constant 0 : index
      %c0_18 = arith.constant 0 : index
      %71 = vector.load %arg9[%c0_17, %c0_18] : memref<32x896xbf16, #tpu.memory_space<vmem>>, vector<32x768xbf16>
      %c0_19 = arith.constant 0 : index
      %c1 = arith.constant 1 : index
      %72 = vector.load %arg9[%c0_19, %c1] : memref<32x896xbf16, #tpu.memory_space<vmem>>, vector<32x768xbf16>
      %c0_20 = arith.constant 0 : index
      %c2 = arith.constant 2 : index
      %73 = vector.load %arg9[%c0_20, %c2] : memref<32x896xbf16, #tpu.memory_space<vmem>>, vector<32x768xbf16>
      %c0_21 = arith.constant 0 : index
      %c32 = arith.constant 32 : index
      %74 = vector.load %arg9[%c0_21, %c32] : memref<32x896xbf16, #tpu.memory_space<vmem>>, vector<32x768xbf16>
      %c0_22 = arith.constant 0 : index
      %c33 = arith.constant 33 : index
      %75 = vector.load %arg9[%c0_22, %c33] : memref<32x896xbf16, #tpu.memory_space<vmem>>, vector<32x768xbf16>
      %c0_23 = arith.constant 0 : index
      %c34 = arith.constant 34 : index
      %76 = vector.load %arg9[%c0_23, %c34] : memref<32x896xbf16, #tpu.memory_space<vmem>>, vector<32x768xbf16>
      %c0_24 = arith.constant 0 : index
      %c64 = arith.constant 64 : index
      %77 = vector.load %arg9[%c0_24, %c64] : memref<32x896xbf16, #tpu.memory_space<vmem>>, vector<32x768xbf16>
      %c0_25 = arith.constant 0 : index
      %c65 = arith.constant 65 : index
      %78 = vector.load %arg9[%c0_25, %c65] : memref<32x896xbf16, #tpu.memory_space<vmem>>, vector<32x768xbf16>
      %c0_26 = arith.constant 0 : index
      %c66 = arith.constant 66 : index
      %79 = vector.load %arg9[%c0_26, %c66] : memref<32x896xbf16, #tpu.memory_space<vmem>>, vector<32x768xbf16>
      %80 = tpu.concatenate %71, %72, %73, %74, %75, %76, %77, %78, %79 in 0 : vector<32x768xbf16>, vector<32x768xbf16>, vector<32x768xbf16>, vector<32x768xbf16>, vector<32x768xbf16>, vector<32x768xbf16>, vector<32x768xbf16>, vector<32x768xbf16>, vector<32x768xbf16> -> vector<288x768xbf16>
      %cst_27 = arith.constant dense<0.000000e+00> : vector<64x768xf32>
      %81 = tpu.matmul %2, %80, %cst_27 {dimension_numbers = #tpu.dot_dimension_numbers<[1], [0], [0], [1], [0, 0, 1, 1], [], []>} : vector<64x288xbf16>, vector<288x768xbf16>, vector<64x768xf32> -> vector<64x768xf32>
      %82 = vector.extract_strided_slice %81 {offsets = [0, 0], sizes = [64, 736], strides = [1, 1]} : vector<64x768xf32> to vector<64x736xf32>
      %83 = vector.extract_strided_slice %81 {offsets = [0, 32], sizes = [64, 736], strides = [1, 1]} : vector<64x768xf32> to vector<64x736xf32>
      %84 = arith.maximumf %82, %83 : vector<64x736xf32>
      %85 = arith.truncf %84 : vector<64x736xf32> to vector<64x736xbf16>
      %cst_28 = arith.constant dense<0.000000e+00> : vector<64x144xf32>
      %86 = tpu.matmul %85, %4, %cst_28 {dimension_numbers = #tpu.dot_dimension_numbers<[1], [0], [0], [1], [0, 0, 1, 1], [], []>} : vector<64x736xbf16>, vector<736x144xbf16>, vector<64x144xf32> -> vector<64x144xf32>
      %cst_29 = arith.constant dense<0.000000e+00> : vector<64x144xf32>
      %87 = tpu.matmul %85, %5, %cst_29 {dimension_numbers = #tpu.dot_dimension_numbers<[1], [0], [0], [1], [0, 0, 1, 1], [], []>} : vector<64x736xbf16>, vector<736x144xbf16>, vector<64x144xf32> -> vector<64x144xf32>
      %88 = arith.maximumf %86, %87 : vector<64x144xf32>
      %89 = vector.broadcast %3 : vector<64x1xf32> to vector<64x144xf32>
      %90 = arith.addf %88, %89 : vector<64x144xf32>
      %cst_30 = arith.constant 0.000000e+00 : f32
      %91 = vector.broadcast %cst_30 : f32 to vector<64x144xf32>
      %92 = arith.maximumf %90, %91 : vector<64x144xf32>
      %93 = arith.truncf %92 : vector<64x144xf32> to vector<64x144xbf16>
      %94 = arith.index_cast %arg10 : i32 to index
      %c0_31 = arith.constant 0 : index
      %c0_32 = arith.constant 0 : index
      %95 = vector.load %arg8[%94, %c0_31, %c0_32] : memref<2x64x144xbf16, #tpu.memory_space<vmem>>, vector<1x64x144xbf16>
      %96 = vector.shape_cast %95 : vector<1x64x144xbf16> to vector<64x144xbf16>
      %97 = vector.shape_cast %93 : vector<64x144xbf16> to vector<1x64x144xbf16>
      tpu.vector_store %arg8[%94, %c0_31, %c0_32], %97 {strides = array<i32>} : memref<2x64x144xbf16, #tpu.memory_space<vmem>>, vector<1x64x144xbf16>,
    }
    %c2_i32_11 = arith.constant 2 : i32
    return
  }
  func.func @transform_0(%arg0: i32) -> (i32, i32, i32) {
    %c0_i32 = arith.constant 0 : i32
    %c0_i32_0 = arith.constant 0 : i32
    %c0_i32_1 = arith.constant 0 : i32
    return %arg0, %c0_i32, %c0_i32_0 : i32, i32, i32
  }
  func.func @transform_1(%arg0: i32) -> (i32, i32) {
    %c0_i32 = arith.constant 0 : i32
    %c0_i32_0 = arith.constant 0 : i32
    %c0_i32_1 = arith.constant 0 : i32
    return %c0_i32, %c0_i32_0 : i32, i32
  }
  func.func @transform_2(%arg0: i32) -> (i32, i32) {
    %c0_i32 = arith.constant 0 : i32
    %c0_i32_0 = arith.constant 0 : i32
    %c0_i32_1 = arith.constant 0 : i32
    return %c0_i32, %c0_i32_0 : i32, i32
  }
  func.func @transform_3(%arg0: i32) -> (i32, i32) {
    %c0_i32 = arith.constant 0 : i32
    %c0_i32_0 = arith.constant 0 : i32
    %c0_i32_1 = arith.constant 0 : i32
    return %c0_i32, %c0_i32_0 : i32, i32
  }
  func.func @transform_4(%arg0: i32) -> (i32, i32) {
    %c0_i32 = arith.constant 0 : i32
    %c0_i32_0 = arith.constant 0 : i32
    %c0_i32_1 = arith.constant 0 : i32
    return %c0_i32, %c0_i32_0 : i32, i32
  }
  func.func @transform_5(%arg0: i32) -> (i32, i32) {
    %c0_i32 = arith.constant 0 : i32
    %c0_i32_0 = arith.constant 0 : i32
    %c0_i32_1 = arith.constant 0 : i32
    return %c0_i32, %c0_i32_0 : i32, i32
  }
  func.func @transform_6(%arg0: i32) -> (i32, i32) {
    %c0_i32 = arith.constant 0 : i32
    %c0_i32_0 = arith.constant 0 : i32
    %c0_i32_1 = arith.constant 0 : i32
    return %c0_i32, %c0_i32_0 : i32, i32
  }
  func.func @transform_7(%arg0: i32) -> (i32, i32, i32) {
    %c0_i32 = arith.constant 0 : i32
    %c0_i32_0 = arith.constant 0 : i32
    %c0_i32_1 = arith.constant 0 : i32
    return %arg0, %c0_i32, %c0_i32_0 : i32, i32, i32
  }
}

module attributes {stable_mosaic.version = 11 : i64} {
  func.func @_fc_kernel(%arg0: i32, %arg1: memref<2x9216xbf16, #tpu.memory_space<vmem>>, %arg2: memref<9216x128xbf16, #tpu.memory_space<vmem>>, %arg3: memref<1x128xf32, #tpu.memory_space<vmem>>, %arg4: memref<128x10xbf16, #tpu.memory_space<vmem>>, %arg5: memref<1x10xf32, #tpu.memory_space<vmem>>, %arg6: memref<2x10xf32, #tpu.memory_space<vmem>>) attributes {dimension_semantics = [#tpu.dimension_semantics<parallel>], iteration_bounds = array<i64: 1>, scalar_prefetch = 0 : i64, scratch_operands = 0 : i64, tpu.core_type = #tpu.core_type<tc>, window_params = [{transform_indices = @transform_0, window_bounds = array<i64: 2, 9216>}, {pipeline_mode = #tpu.pipeline_mode<synchronous>, transform_indices = @transform_1, window_bounds = array<i64: 9216, 128>}, {pipeline_mode = #tpu.pipeline_mode<synchronous>, transform_indices = @transform_2, window_bounds = array<i64: 1, 128>}, {pipeline_mode = #tpu.pipeline_mode<synchronous>, transform_indices = @transform_3, window_bounds = array<i64: 128, 10>}, {pipeline_mode = #tpu.pipeline_mode<synchronous>, transform_indices = @transform_4, window_bounds = array<i64: 1, 10>}, {transform_indices = @transform_5, window_bounds = array<i64: 2, 10>}]} {
    %c0 = arith.constant 0 : index
    %c0_0 = arith.constant 0 : index
    %0 = vector.load %arg1[%c0, %c0_0] : memref<2x9216xbf16, #tpu.memory_space<vmem>>, vector<2x9216xbf16>
    %c0_1 = arith.constant 0 : index
    %c0_2 = arith.constant 0 : index
    %1 = vector.load %arg2[%c0_1, %c0_2] : memref<9216x128xbf16, #tpu.memory_space<vmem>>, vector<9216x128xbf16>
    %cst = arith.constant dense<0.000000e+00> : vector<2x128xf32>
    %2 = tpu.matmul %0, %1, %cst {dimension_numbers = #tpu.dot_dimension_numbers<[1], [0], [0], [1], [0, 0, 1, 1], [], []>} : vector<2x9216xbf16>, vector<9216x128xbf16>, vector<2x128xf32> -> vector<2x128xf32>
    %c0_3 = arith.constant 0 : index
    %c0_4 = arith.constant 0 : index
    %3 = vector.load %arg3[%c0_3, %c0_4] : memref<1x128xf32, #tpu.memory_space<vmem>>, vector<1x128xf32>
    %4 = vector.broadcast %3 : vector<1x128xf32> to vector<2x128xf32>
    %5 = arith.addf %2, %4 : vector<2x128xf32>
    %cst_5 = arith.constant 0.000000e+00 : f32
    %6 = vector.broadcast %cst_5 : f32 to vector<2x128xf32>
    %7 = arith.maximumf %5, %6 : vector<2x128xf32>
    %8 = arith.truncf %7 : vector<2x128xf32> to vector<2x128xbf16>
    %c0_6 = arith.constant 0 : index
    %c0_7 = arith.constant 0 : index
    %9 = vector.load %arg4[%c0_6, %c0_7] : memref<128x10xbf16, #tpu.memory_space<vmem>>, vector<128x10xbf16>
    %cst_8 = arith.constant dense<0.000000e+00> : vector<2x10xf32>
    %10 = tpu.matmul %8, %9, %cst_8 {dimension_numbers = #tpu.dot_dimension_numbers<[1], [0], [0], [1], [0, 0, 1, 1], [], []>} : vector<2x128xbf16>, vector<128x10xbf16>, vector<2x10xf32> -> vector<2x10xf32>
    %c0_9 = arith.constant 0 : index
    %c0_10 = arith.constant 0 : index
    %11 = vector.load %arg5[%c0_9, %c0_10] : memref<1x10xf32, #tpu.memory_space<vmem>>, vector<1x10xf32>
    %12 = vector.broadcast %11 : vector<1x10xf32> to vector<2x10xf32>
    %13 = arith.addf %10, %12 : vector<2x10xf32>
    %c0_11 = arith.constant 0 : index
    %c0_12 = arith.constant 0 : index
    %14 = vector.load %arg6[%c0_11, %c0_12] : memref<2x10xf32, #tpu.memory_space<vmem>>, vector<2x10xf32>
    tpu.vector_store %arg6[%c0_11, %c0_12], %13 {strides = array<i32>} : memref<2x10xf32, #tpu.memory_space<vmem>>, vector<2x10xf32>,
    return
  }
  func.func @transform_0(%arg0: i32) -> (i32, i32) {
    %c0_i32 = arith.constant 0 : i32
    %c0_i32_0 = arith.constant 0 : i32
    return %arg0, %c0_i32 : i32, i32
  }
  func.func @transform_1(%arg0: i32) -> (i32, i32) {
    %c0_i32 = arith.constant 0 : i32
    %c0_i32_0 = arith.constant 0 : i32
    %c0_i32_1 = arith.constant 0 : i32
    return %c0_i32, %c0_i32_0 : i32, i32
  }
  func.func @transform_2(%arg0: i32) -> (i32, i32) {
    %c0_i32 = arith.constant 0 : i32
    %c0_i32_0 = arith.constant 0 : i32
    %c0_i32_1 = arith.constant 0 : i32
    return %c0_i32, %c0_i32_0 : i32, i32
  }
  func.func @transform_3(%arg0: i32) -> (i32, i32) {
    %c0_i32 = arith.constant 0 : i32
    %c0_i32_0 = arith.constant 0 : i32
    %c0_i32_1 = arith.constant 0 : i32
    return %c0_i32, %c0_i32_0 : i32, i32
  }
  func.func @transform_4(%arg0: i32) -> (i32, i32) {
    %c0_i32 = arith.constant 0 : i32
    %c0_i32_0 = arith.constant 0 : i32
    %c0_i32_1 = arith.constant 0 : i32
    return %c0_i32, %c0_i32_0 : i32, i32
  }
  func.func @transform_5(%arg0: i32) -> (i32, i32) {
    %c0_i32 = arith.constant 0 : i32
    %c0_i32_0 = arith.constant 0 : i32
    return %arg0, %c0_i32 : i32, i32
  }
}

</mosaic_0001>

<llo_original>
// kernel: simple_cnn_forward.2
$region0: #{simple_cnn_forward.2}
  #allocation0 [shape = 'u32[]', space=smem, size = 0x4, offset = 0x4, fixed_abs, tag = 'smem constant byte address 0x4 - core index']
  #allocation1 [shape = 'u32[144,128]{1,0:T(1,128)}', space=vmem, size = 0x12000, scoped, tag = 'internal scratch']
  #allocation2 [shape = 'bf16[32,896]{1,0:T(8,128)(2,1)}', space=vmem, size = 0xe000, scoped, tag = 'scratch operand']
  %s0 = inlined_call_operand.vmem [shape: f32[2,1,1024], index: 0, kind: input, shape index: {}]
  %s1 = inlined_call_operand.vmem [shape: f32[32,9], index: 1, kind: input, shape index: {}]
  %s2 = inlined_call_operand.vmem [shape: f32[32,1], index: 2, kind: input, shape index: {}]
  %s3 = inlined_call_operand.hbm [shape: bf16[64,288], index: 3, kind: input, shape index: {}]
  %s4 = inlined_call_operand.vmem [shape: f32[64,1], index: 4, kind: input, shape index: {}]
  %s5 = inlined_call_operand.vmem [shape: bf16[736,144], index: 5, kind: input, shape index: {}]
  %s6 = inlined_call_operand.vmem [shape: bf16[736,144], index: 6, kind: input, shape index: {}]
  %s7 = inlined_call_operand.vmem [shape: bf16[2,64,144], index: 7, kind: output, shape index: {}]
  %s8 = sld [smem:[#allocation0]]
  $region49: #{simple_cnn_forward.2} parent=0
    _
  %s10 = ssub.s32 1, %s8
  %s11 = scalar_select 0, %s10, %s8
  $region1: #{simple_cnn_forward.2} parent=0
    #allocation3 [shape = 'u8[49152]{0}', space=vmem, size = 0xc000, scoped, tag = 'input window, operand 3, single buffered']
    #allocation4 [shape = 's32[1]{0}', space=sflag, size = 0x4, scoped, tag = 'scoped memory for simple_cnn_forward.2']
    %12 = vsyncpa [#allocation4], 0
    // Predicated region
    $region2: #{simple_cnn_forward.2} parent=1 // pred_check
      _
    $region3: #{simple_cnn_forward.2} parent=1 // pred_check_branch
      %14 = sbr.rel (0) target = $region5
    $region4: #{simple_cnn_forward.2} parent=1 // pred_region
      _
    $region5: #{simple_cnn_forward.2} parent=1 // pred_fallthru
      _
    // Predicated region
    $region6: #{simple_cnn_forward.2} parent=1 // pred_check
      _
    $region7: #{simple_cnn_forward.2} parent=1 // pred_check_branch
      %16 = sbr.rel (0) target = $region9
    $region8: #{simple_cnn_forward.2} parent=1 // pred_region
      _
    $region9: #{simple_cnn_forward.2} parent=1 // pred_fallthru
      _
    // Predicated region
    $region10: #{simple_cnn_forward.2} parent=1 // pred_check
      _
    $region11: #{simple_cnn_forward.2} parent=1 // pred_check_branch
      %18 = sbr.rel (0) target = $region13
    $region12: #{simple_cnn_forward.2} parent=1 // pred_region
      _
    $region13: #{simple_cnn_forward.2} parent=1 // pred_fallthru
      _
    // Predicated region
    $region14: #{simple_cnn_forward.2} parent=1 // pred_check
      _
    $region15: #{simple_cnn_forward.2} parent=1 // pred_check_branch
      %20 = sbr.rel (0) target = $region17
    $region16: #{simple_cnn_forward.2} parent=1 // pred_region
      %s22 = ssub.s32 1536, 1536
      %23 = vsyncadd [#allocation4], %s22
      %s24 = sshll.u32 [#allocation3], 4
      %s25 = int_to_ptr.vmem [resolvable:$true] %s24
      %30 = dma.hbm_to_vmem [thread:$0]  %s3, 1536, %s25, [#allocation4], 192, 192, 12
    $region17: #{simple_cnn_forward.2} parent=1 // pred_fallthru
      _
    // Predicated region
    $region18: #{simple_cnn_forward.2} parent=1 // pred_check
      _
    $region19: #{simple_cnn_forward.2} parent=1 // pred_check_branch
      %32 = sbr.rel (0) target = $region21
    $region20: #{simple_cnn_forward.2} parent=1 // pred_region
      _
    $region21: #{simple_cnn_forward.2} parent=1 // pred_fallthru
      _
    // Predicated region
    $region22: #{simple_cnn_forward.2} parent=1 // pred_check
      _
    $region23: #{simple_cnn_forward.2} parent=1 // pred_check_branch
      %34 = sbr.rel (0) target = $region25
    $region24: #{simple_cnn_forward.2} parent=1 // pred_region
      _
    $region25: #{simple_cnn_forward.2} parent=1 // pred_fallthru
      _
    // Predicated region
    $region26: #{simple_cnn_forward.2} parent=1 // pred_check
      _
    $region27: #{simple_cnn_forward.2} parent=1 // pred_check_branch
      %36 = sbr.rel (0) target = $region29
    $region28: #{simple_cnn_forward.2} parent=1 // pred_region
      _
    $region29: #{simple_cnn_forward.2} parent=1 // pred_fallthru
      _
    // Predicated region
    $region30: #{simple_cnn_forward.2} parent=1 // pred_check
      _
    $region31: #{simple_cnn_forward.2} parent=1 // pred_check_branch
      %38 = sbr.rel (0) target = $region33
    $region32: #{simple_cnn_forward.2} parent=1 // pred_region
      %39 = dma.done [#allocation4], 1536
    $region33: #{simple_cnn_forward.2} parent=1 // pred_fallthru
      _
    %v41 = vld [vmem:[%s1] sm:$0xff]
    %v42 = vld [vmem:[%s1 + $0x8] sm:$0xff]
    %v43 = vld [vmem:[%s1 + $0x10] sm:$0xff]
    %v44 = vld [vmem:[%s1 + $0x18] sm:$0xff]
    %v45 = vld [vmem:[%s2] sm:$0xff]
    %v46 = vld [vmem:[%s2 + $0x8] sm:$0xff]
    %v47 = vld [vmem:[%s2 + $0x10] sm:$0xff]
    %v48 = vld [vmem:[%s2 + $0x18] sm:$0xff]
    %v49 = vld [vmem:[#allocation3] sm:$0xff]
    %v50 = vld [vmem:[#allocation3 + $0x8] sm:$0xf]
    %v51 = vld [vmem:[#allocation3 + $0xc] sm:$0xff]
    %v52 = vld [vmem:[#allocation3 + $0x14] sm:$0xf]
    %v53 = vld [vmem:[#allocation3 + $0x18] sm:$0xff]
    %v54 = vld [vmem:[#allocation3 + $0x20] sm:$0xf]
    %v55 = vld [vmem:[#allocation3 + $0x24] sm:$0xff]
    %v56 = vld [vmem:[#allocation3 + $0x2c] sm:$0xf]
    %v57 = vld [vmem:[#allocation3 + $0x30] sm:$0xff]
    %v58 = vld [vmem:[#allocation3 + $0x38] sm:$0xf]
    %v59 = vld [vmem:[#allocation3 + $0x3c] sm:$0xff]
    %v60 = vld [vmem:[#allocation3 + $0x44] sm:$0xf]
    %v61 = vld [vmem:[#allocation3 + $0x48] sm:$0xff]
    %v62 = vld [vmem:[#allocation3 + $0x50] sm:$0xf]
    %v63 = vld [vmem:[#allocation3 + $0x54] sm:$0xff]
    %v64 = vld [vmem:[#allocation3 + $0x5c] sm:$0xf]
    %v65 = vld [vmem:[%s4] sm:$0xff]
    %v66 = vld [vmem:[%s4 + $0x8] sm:$0xff]
    %v67 = vld [vmem:[%s4 + $0x10] sm:$0xff]
    %v68 = vld [vmem:[%s4 + $0x18] sm:$0xff]
    %v69 = vld [vmem:[%s4 + $0x20] sm:$0xff]
    %v70 = vld [vmem:[%s4 + $0x28] sm:$0xff]
    %v71 = vld [vmem:[%s4 + $0x30] sm:$0xff]
    %v72 = vld [vmem:[%s4 + $0x38] sm:$0xff]
    %v73 = vld [vmem:[%s5] sm:$0xff]
    %v74 = vld [vmem:[%s5 + $0x8] sm:$0xff]
    %v75 = vld [vmem:[%s5 + $0x10] sm:$0xff]
    %v76 = vld [vmem:[%s5 + $0x18] sm:$0xff]
    %v77 = vld [vmem:[%s5 + $0x20] sm:$0xff]
    %v78 = vld [vmem:[%s5 + $0x28] sm:$0xff]
    %v79 = vld [vmem:[%s5 + $0x30] sm:$0xff]
    %v80 = vld [vmem:[%s5 + $0x38] sm:$0xff]
    %v81 = vld [vmem:[%s5 + $0x40] sm:$0xff]
    %v82 = vld [vmem:[%s5 + $0x48] sm:$0xff]
    %v83 = vld [vmem:[%s5 + $0x50] sm:$0xff]
    %v84 = vld [vmem:[%s5 + $0x58] sm:$0xff]
    %v85 = vld [vmem:[%s5 + $0x60] sm:$0xff]
    %v86 = vld [vmem:[%s5 + $0x68] sm:$0xff]
    %v87 = vld [vmem:[%s5 + $0x70] sm:$0xff]
    %v88 = vld [vmem:[%s5 + $0x78] sm:$0xff]
    %v89 = vld [vmem:[%s5 + $0x80] sm:$0xff]
    %v90 = vld [vmem:[%s5 + $0x88] sm:$0xff]
    %v91 = vld [vmem:[%s5 + $0x90] sm:$0xff]
    %v92 = vld [vmem:[%s5 + $0x98] sm:$0xff]
    %v93 = vld [vmem:[%s5 + $0xa0] sm:$0xff]
    %v94 = vld [vmem:[%s5 + $0xa8] sm:$0xff]
    %v95 = vld [vmem:[%s5 + $0xb0] sm:$0xff]
    %v96 = vld [vmem:[%s5 + $0xb8] sm:$0xff]
    %v97 = vld [vmem:[%s5 + $0xc0] sm:$0xff]
    %v98 = vld [vmem:[%s5 + $0xc8] sm:$0xff]
    %v99 = vld [vmem:[%s5 + $0xd0] sm:$0xff]
    %v100 = vld [vmem:[%s5 + $0xd8] sm:$0xff]
    %v101 = vld [vmem:[%s5 + $0xe0] sm:$0xff]
    %v102 = vld [vmem:[%s5 + $0xe8] sm:$0xff]
    %v103 = vld [vmem:[%s5 + $0xf0] sm:$0xff]
    %v104 = vld [vmem:[%s5 + $0xf8] sm:$0xff]
    %v105 = vld [vmem:[%s5 + $0x100] sm:$0xff]
    %v106 = vld [vmem:[%s5 + $0x108] sm:$0xff]
    %v107 = vld [vmem:[%s5 + $0x110] sm:$0xff]
    %v108 = vld [vmem:[%s5 + $0x118] sm:$0xff]
    %v109 = vld [vmem:[%s5 + $0x120] sm:$0xff]
    %v110 = vld [vmem:[%s5 + $0x128] sm:$0xff]
    %v111 = vld [vmem:[%s5 + $0x130] sm:$0xff]
    %v112 = vld [vmem:[%s5 + $0x138] sm:$0xff]
    %v113 = vld [vmem:[%s5 + $0x140] sm:$0xff]
    %v114 = vld [vmem:[%s5 + $0x148] sm:$0xff]
    %v115 = vld [vmem:[%s5 + $0x150] sm:$0xff]
    %v116 = vld [vmem:[%s5 + $0x158] sm:$0xff]
    %v117 = vld [vmem:[%s5 + $0x160] sm:$0xff]
    %v118 = vld [vmem:[%s5 + $0x168] sm:$0xff]
    %v119 = vld [vmem:[%s5 + $0x170] sm:$0xff]
    %v120 = vld [vmem:[%s5 + $0x178] sm:$0xff]
    %v121 = vld [vmem:[%s5 + $0x180] sm:$0xff]
    %v122 = vld [vmem:[%s5 + $0x188] sm:$0xff]
    %v123 = vld [vmem:[%s5 + $0x190] sm:$0xff]
    %v124 = vld [vmem:[%s5 + $0x198] sm:$0xff]
    %v125 = vld [vmem:[%s5 + $0x1a0] sm:$0xff]
    %v126 = vld [vmem:[%s5 + $0x1a8] sm:$0xff]
    %v127 = vld [vmem:[%s5 + $0x1b0] sm:$0xff]
    %v128 = vld [vmem:[%s5 + $0x1b8] sm:$0xff]
    %v129 = vld [vmem:[%s5 + $0x1c0] sm:$0xff]
    %v130 = vld [vmem:[%s5 + $0x1c8] sm:$0xff]
    %v131 = vld [vmem:[%s5 + $0x1d0] sm:$0xff]
    %v132 = vld [vmem:[%s5 + $0x1d8] sm:$0xff]
    %v133 = vld [vmem:[%s5 + $0x1e0] sm:$0xff]
    %v134 = vld [vmem:[%s5 + $0x1e8] sm:$0xff]
    %v135 = vld [vmem:[%s5 + $0x1f0] sm:$0xff]
    %v136 = vld [vmem:[%s5 + $0x1f8] sm:$0xff]
    %v137 = vld [vmem:[%s5 + $0x200] sm:$0xff]
    %v138 = vld [vmem:[%s5 + $0x208] sm:$0xff]
    %v139 = vld [vmem:[%s5 + $0x210] sm:$0xff]
    %v140 = vld [vmem:[%s5 + $0x218] sm:$0xff]
    %v141 = vld [vmem:[%s5 + $0x220] sm:$0xff]
    %v142 = vld [vmem:[%s5 + $0x228] sm:$0xff]
    %v143 = vld [vmem:[%s5 + $0x230] sm:$0xff]
    %v144 = vld [vmem:[%s5 + $0x238] sm:$0xff]
    %v145 = vld [vmem:[%s5 + $0x240] sm:$0xff]
    %v146 = vld [vmem:[%s5 + $0x248] sm:$0xff]
    %v147 = vld [vmem:[%s5 + $0x250] sm:$0xff]
    %v148 = vld [vmem:[%s5 + $0x258] sm:$0xff]
    %v149 = vld [vmem:[%s5 + $0x260] sm:$0xff]
    %v150 = vld [vmem:[%s5 + $0x268] sm:$0xff]
    %v151 = vld [vmem:[%s5 + $0x270] sm:$0xff]
    %v152 = vld [vmem:[%s5 + $0x278] sm:$0xff]
    %v153 = vld [vmem:[%s5 + $0x280] sm:$0xff]
    %v154 = vld [vmem:[%s5 + $0x288] sm:$0xff]
    %v155 = vld [vmem:[%s5 + $0x290] sm:$0xff]
    %v156 = vld [vmem:[%s5 + $0x298] sm:$0xff]
    %v157 = vld [vmem:[%s5 + $0x2a0] sm:$0xff]
    %v158 = vld [vmem:[%s5 + $0x2a8] sm:$0xff]
    %v159 = vld [vmem:[%s5 + $0x2b0] sm:$0xff]
    %v160 = vld [vmem:[%s5 + $0x2b8] sm:$0xff]
    %v161 = vld [vmem:[%s5 + $0x2c0] sm:$0xff]
    %v162 = vld [vmem:[%s5 + $0x2c8] sm:$0xff]
    %v163 = vld [vmem:[%s5 + $0x2d0] sm:$0xff]
    %v164 = vld [vmem:[%s5 + $0x2d8] sm:$0xff]
    %v165 = vld [vmem:[%s6] sm:$0xff]
    %v166 = vld [vmem:[%s6 + $0x8] sm:$0xff]
    %v167 = vld [vmem:[%s6 + $0x10] sm:$0xff]
    %v168 = vld [vmem:[%s6 + $0x18] sm:$0xff]
    %v169 = vld [vmem:[%s6 + $0x20] sm:$0xff]
    %v170 = vld [vmem:[%s6 + $0x28] sm:$0xff]
    %v171 = vld [vmem:[%s6 + $0x30] sm:$0xff]
    %v172 = vld [vmem:[%s6 + $0x38] sm:$0xff]
    %v173 = vld [vmem:[%s6 + $0x40] sm:$0xff]
    %v174 = vld [vmem:[%s6 + $0x48] sm:$0xff]
    %v175 = vld [vmem:[%s6 + $0x50] sm:$0xff]
    %v176 = vld [vmem:[%s6 + $0x58] sm:$0xff]
    %v177 = vld [vmem:[%s6 + $0x60] sm:$0xff]
    %v178 = vld [vmem:[%s6 + $0x68] sm:$0xff]
    %v179 = vld [vmem:[%s6 + $0x70] sm:$0xff]
    %v180 = vld [vmem:[%s6 + $0x78] sm:$0xff]
    %v181 = vld [vmem:[%s6 + $0x80] sm:$0xff]
    %v182 = vld [vmem:[%s6 + $0x88] sm:$0xff]
    %v183 = vld [vmem:[%s6 + $0x90] sm:$0xff]
    %v184 = vld [vmem:[%s6 + $0x98] sm:$0xff]
    %v185 = vld [vmem:[%s6 + $0xa0] sm:$0xff]
    %v186 = vld [vmem:[%s6 + $0xa8] sm:$0xff]
    %v187 = vld [vmem:[%s6 + $0xb0] sm:$0xff]
    %v188 = vld [vmem:[%s6 + $0xb8] sm:$0xff]
    %v189 = vld [vmem:[%s6 + $0xc0] sm:$0xff]
    %v190 = vld [vmem:[%s6 + $0xc8] sm:$0xff]
    %v191 = vld [vmem:[%s6 + $0xd0] sm:$0xff]
    %v192 = vld [vmem:[%s6 + $0xd8] sm:$0xff]
    %v193 = vld [vmem:[%s6 + $0xe0] sm:$0xff]
    %v194 = vld [vmem:[%s6 + $0xe8] sm:$0xff]
    %v195 = vld [vmem:[%s6 + $0xf0] sm:$0xff]
    %v196 = vld [vmem:[%s6 + $0xf8] sm:$0xff]
    %v197 = vld [vmem:[%s6 + $0x100] sm:$0xff]
    %v198 = vld [vmem:[%s6 + $0x108] sm:$0xff]
    %v199 = vld [vmem:[%s6 + $0x110] sm:$0xff]
    %v200 = vld [vmem:[%s6 + $0x118] sm:$0xff]
    %v201 = vld [vmem:[%s6 + $0x120] sm:$0xff]
    %v202 = vld [vmem:[%s6 + $0x128] sm:$0xff]
    %v203 = vld [vmem:[%s6 + $0x130] sm:$0xff]
    %v204 = vld [vmem:[%s6 + $0x138] sm:$0xff]
    %v205 = vld [vmem:[%s6 + $0x140] sm:$0xff]
    %v206 = vld [vmem:[%s6 + $0x148] sm:$0xff]
    %v207 = vld [vmem:[%s6 + $0x150] sm:$0xff]
    %v208 = vld [vmem:[%s6 + $0x158] sm:$0xff]
    %v209 = vld [vmem:[%s6 + $0x160] sm:$0xff]
    %v210 = vld [vmem:[%s6 + $0x168] sm:$0xff]
    %v211 = vld [vmem:[%s6 + $0x170] sm:$0xff]
    %v212 = vld [vmem:[%s6 + $0x178] sm:$0xff]
    %v213 = vld [vmem:[%s6 + $0x180] sm:$0xff]
    %v214 = vld [vmem:[%s6 + $0x188] sm:$0xff]
    %v215 = vld [vmem:[%s6 + $0x190] sm:$0xff]
    %v216 = vld [vmem:[%s6 + $0x198] sm:$0xff]
    %v217 = vld [vmem:[%s6 + $0x1a0] sm:$0xff]
    %v218 = vld [vmem:[%s6 + $0x1a8] sm:$0xff]
    %v219 = vld [vmem:[%s6 + $0x1b0] sm:$0xff]
    %v220 = vld [vmem:[%s6 + $0x1b8] sm:$0xff]
    %v221 = vld [vmem:[%s6 + $0x1c0] sm:$0xff]
    %v222 = vld [vmem:[%s6 + $0x1c8] sm:$0xff]
    %v223 = vld [vmem:[%s6 + $0x1d0] sm:$0xff]
    %v224 = vld [vmem:[%s6 + $0x1d8] sm:$0xff]
    %v225 = vld [vmem:[%s6 + $0x1e0] sm:$0xff]
    %v226 = vld [vmem:[%s6 + $0x1e8] sm:$0xff]
    %v227 = vld [vmem:[%s6 + $0x1f0] sm:$0xff]
    %v228 = vld [vmem:[%s6 + $0x1f8] sm:$0xff]
    %v229 = vld [vmem:[%s6 + $0x200] sm:$0xff]
    %v230 = vld [vmem:[%s6 + $0x208] sm:$0xff]
    %v231 = vld [vmem:[%s6 + $0x210] sm:$0xff]
    %v232 = vld [vmem:[%s6 + $0x218] sm:$0xff]
    %v233 = vld [vmem:[%s6 + $0x220] sm:$0xff]
    %v234 = vld [vmem:[%s6 + $0x228] sm:$0xff]
    %v235 = vld [vmem:[%s6 + $0x230] sm:$0xff]
    %v236 = vld [vmem:[%s6 + $0x238] sm:$0xff]
    %v237 = vld [vmem:[%s6 + $0x240] sm:$0xff]
    %v238 = vld [vmem:[%s6 + $0x248] sm:$0xff]
    %v239 = vld [vmem:[%s6 + $0x250] sm:$0xff]
    %v240 = vld [vmem:[%s6 + $0x258] sm:$0xff]
    %v241 = vld [vmem:[%s6 + $0x260] sm:$0xff]
    %v242 = vld [vmem:[%s6 + $0x268] sm:$0xff]
    %v243 = vld [vmem:[%s6 + $0x270] sm:$0xff]
    %v244 = vld [vmem:[%s6 + $0x278] sm:$0xff]
    %v245 = vld [vmem:[%s6 + $0x280] sm:$0xff]
    %v246 = vld [vmem:[%s6 + $0x288] sm:$0xff]
    %v247 = vld [vmem:[%s6 + $0x290] sm:$0xff]
    %v248 = vld [vmem:[%s6 + $0x298] sm:$0xff]
    %v249 = vld [vmem:[%s6 + $0x2a0] sm:$0xff]
    %v250 = vld [vmem:[%s6 + $0x2a8] sm:$0xff]
    %v251 = vld [vmem:[%s6 + $0x2b0] sm:$0xff]
    %v252 = vld [vmem:[%s6 + $0x2b8] sm:$0xff]
    %v253 = vld [vmem:[%s6 + $0x2c0] sm:$0xff]
    %v254 = vld [vmem:[%s6 + $0x2c8] sm:$0xff]
    %v255 = vld [vmem:[%s6 + $0x2d0] sm:$0xff]
    %v256 = vld [vmem:[%s6 + $0x2d8] sm:$0xff]
    loop: start=0, step=1, limit=2
    $region34: #{simple_cnn_forward.2} parent=1 // loop_pre_header
      _
    $region35: #{simple_cnn_forward.2} parent=1 // loop_header
      %s258 = sphi 0, %s262
      %p259 = scmp.ge.s32.totalorder %s258, 2
    $region36: #{simple_cnn_forward.2} parent=1 // loop_header_branch
      %261 = sbr.rel (%p259) target = $region40
    $region37: #{simple_cnn_forward.2} parent=1 // loop_body
      %s263 = smul.u32 %s258, 8
      %s264 = scalar_lea.vmem %s0, %s263
      %v265 = vld [vmem:[%s264] sm:$0xff]
      %267 = vset.pattern.permute.xlu0 0
      %268 = vperm.xlu0 %267, %v41
      %v269 = vpop.permute.xlu0 %268
      %272 = vset.pattern.permute.xlu0 0
      %273 = vperm.xlu0 %272, %v42
      %v274 = vpop.permute.xlu0 %273
      %277 = vset.pattern.permute.xlu0 0
      %278 = vperm.xlu0 %277, %v43
      %v279 = vpop.permute.xlu0 %278
      %282 = vset.pattern.permute.xlu0 0
      %283 = vperm.xlu0 %282, %v44
      %v284 = vpop.permute.xlu0 %283
      %v287 = vlaneseq
      %v288 = vshrl.u32 %v287, 7
      %v289 = vsub.s32 0, %v288
      %v290 = vrot.slane %v265, %v289
      %v291 = vlaneseq
      %v292 = vshrl.u32 %v291, 7
      %v293 = vsub.s32 1, %v292
      %v294 = vrot.slane %v265, %v293
      %v295 = vlaneseq
      %v296 = vshrl.u32 %v295, 7
      %v297 = vsub.s32 2, %v296
      %v298 = vrot.slane %v265, %v297
      %v299 = vlaneseq
      %v300 = vshrl.u32 %v299, 7
      %v301 = vsub.s32 3, %v300
      %v302 = vrot.slane %v265, %v301
      %v303 = vlaneseq
      %v304 = vshrl.u32 %v303, 7
      %v305 = vsub.s32 4, %v304
      %v306 = vrot.slane %v265, %v305
      %v307 = vlaneseq
      %v308 = vshrl.u32 %v307, 7
      %v309 = vsub.s32 5, %v308
      %v310 = vrot.slane %v265, %v309
      %v311 = vlaneseq
      %v312 = vshrl.u32 %v311, 7
      %v313 = vsub.s32 6, %v312
      %v314 = vrot.slane %v265, %v313
      %v322 = vmul.f32 %v269, %v290
      %v323 = vmul.f32 %v269, %v294
      %v324 = vmul.f32 %v269, %v298
      %v325 = vmul.f32 %v269, %v302
      %v326 = vmul.f32 %v269, %v306
      %v327 = vmul.f32 %v269, %v310
      %v328 = vmul.f32 %v269, %v314
      %v329 = vmul.f32 %v274, %v290
      %v330 = vmul.f32 %v274, %v294
      %v331 = vmul.f32 %v274, %v298
      %v332 = vmul.f32 %v274, %v302
      %v333 = vmul.f32 %v274, %v306
      %v334 = vmul.f32 %v274, %v310
      %v335 = vmul.f32 %v274, %v314
      %v336 = vmul.f32 %v279, %v290
      %v337 = vmul.f32 %v279, %v294
      %v338 = vmul.f32 %v279, %v298
      %v339 = vmul.f32 %v279, %v302
      %v340 = vmul.f32 %v279, %v306
      %v341 = vmul.f32 %v279, %v310
      %v342 = vmul.f32 %v279, %v314
      %v343 = vmul.f32 %v284, %v290
      %v344 = vmul.f32 %v284, %v294
      %v345 = vmul.f32 %v284, %v298
      %v346 = vmul.f32 %v284, %v302
      %v347 = vmul.f32 %v284, %v306
      %v348 = vmul.f32 %v284, %v310
      %v349 = vmul.f32 %v284, %v314
      %v350 = vadd.f32 %v322, 0.0
      %v351 = vadd.f32 %v323, 0.0
      %v352 = vadd.f32 %v324, 0.0
      %v353 = vadd.f32 %v325, 0.0
      %v354 = vadd.f32 %v326, 0.0
      %v355 = vadd.f32 %v327, 0.0
      %v356 = vadd.f32 %v328, 0.0
      %v357 = vadd.f32 %v329, 0.0
      %v358 = vadd.f32 %v330, 0.0
      %v359 = vadd.f32 %v331, 0.0
      %v360 = vadd.f32 %v332, 0.0
      %v361 = vadd.f32 %v333, 0.0
      %v362 = vadd.f32 %v334, 0.0
      %v363 = vadd.f32 %v335, 0.0
      %v364 = vadd.f32 %v336, 0.0
      %v365 = vadd.f32 %v337, 0.0
      %v366 = vadd.f32 %v338, 0.0
      %v367 = vadd.f32 %v339, 0.0
      %v368 = vadd.f32 %v340, 0.0
      %v369 = vadd.f32 %v341, 0.0
      %v370 = vadd.f32 %v342, 0.0
      %v371 = vadd.f32 %v343, 0.0
      %v372 = vadd.f32 %v344, 0.0
      %v373 = vadd.f32 %v345, 0.0
      %v374 = vadd.f32 %v346, 0.0
      %v375 = vadd.f32 %v347, 0.0
      %v376 = vadd.f32 %v348, 0.0
      %v377 = vadd.f32 %v349, 0.0
      %378 = vset.pattern.permute.xlu0 1
      %379 = vperm.xlu0 %378, %v41
      %v380 = vpop.permute.xlu0 %379
      %382 = vset.pattern.permute.xlu0 1
      %383 = vperm.xlu0 %382, %v42
      %v384 = vpop.permute.xlu0 %383
      %386 = vset.pattern.permute.xlu0 1
      %387 = vperm.xlu0 %386, %v43
      %v388 = vpop.permute.xlu0 %387
      %390 = vset.pattern.permute.xlu0 1
      %391 = vperm.xlu0 %390, %v44
      %v392 = vpop.permute.xlu0 %391
      %v394 = vlaneseq
      %v395 = vshrl.u32 %v394, 7
      %v396 = vsub.s32 7, %v395
      %v397 = vrot.slane %v265, %v396
      %v399 = vmul.f32 %v380, %v290
      %v400 = vmul.f32 %v380, %v294
      %v401 = vmul.f32 %v380, %v298
      %v402 = vmul.f32 %v380, %v302
      %v403 = vmul.f32 %v380, %v306
      %v404 = vmul.f32 %v380, %v310
      %v405 = vmul.f32 %v380, %v314
      %v406 = vmul.f32 %v380, %v397
      %v407 = vmul.f32 %v384, %v290
      %v408 = vmul.f32 %v384, %v294
      %v409 = vmul.f32 %v384, %v298
      %v410 = vmul.f32 %v384, %v302
      %v411 = vmul.f32 %v384, %v306
      %v412 = vmul.f32 %v384, %v310
      %v413 = vmul.f32 %v384, %v314
      %v414 = vmul.f32 %v384, %v397
      %v415 = vmul.f32 %v388, %v290
      %v416 = vmul.f32 %v388, %v294
      %v417 = vmul.f32 %v388, %v298
      %v418 = vmul.f32 %v388, %v302
      %v419 = vmul.f32 %v388, %v306
      %v420 = vmul.f32 %v388, %v310
      %v421 = vmul.f32 %v388, %v314
      %v422 = vmul.f32 %v388, %v397
      %v423 = vmul.f32 %v392, %v290
      %v424 = vmul.f32 %v392, %v294
      %v425 = vmul.f32 %v392, %v298
      %v426 = vmul.f32 %v392, %v302
      %v427 = vmul.f32 %v392, %v306
      %v428 = vmul.f32 %v392, %v310
      %v429 = vmul.f32 %v392, %v314
      %v430 = vmul.f32 %v392, %v397
      %463 = vrot.lane.b32.xlu0 %v399, 127
      %v464 = vpop.permute.xlu0 %463
      %465 = vrot.lane.b32.xlu0 %v400, 127
      %v466 = vpop.permute.xlu0 %465
      %467 = vrot.lane.b32.xlu0 %v401, 127
      %v468 = vpop.permute.xlu0 %467
      %469 = vrot.lane.b32.xlu0 %v402, 127
      %v470 = vpop.permute.xlu0 %469
      %471 = vrot.lane.b32.xlu0 %v403, 127
      %v472 = vpop.permute.xlu0 %471
      %473 = vrot.lane.b32.xlu0 %v404, 127
      %v474 = vpop.permute.xlu0 %473
      %475 = vrot.lane.b32.xlu0 %v405, 127
      %v476 = vpop.permute.xlu0 %475
      %477 = vrot.lane.b32.xlu0 %v406, 127
      %v478 = vpop.permute.xlu0 %477
      %479 = vrot.lane.b32.xlu0 %v407, 127
      %v480 = vpop.permute.xlu0 %479
      %481 = vrot.lane.b32.xlu0 %v408, 127
      %v482 = vpop.permute.xlu0 %481
      %483 = vrot.lane.b32.xlu0 %v409, 127
      %v484 = vpop.permute.xlu0 %483
      %485 = vrot.lane.b32.xlu0 %v410, 127
      %v486 = vpop.permute.xlu0 %485
      %487 = vrot.lane.b32.xlu0 %v411, 127
      %v488 = vpop.permute.xlu0 %487
      %489 = vrot.lane.b32.xlu0 %v412, 127
      %v490 = vpop.permute.xlu0 %489
      %491 = vrot.lane.b32.xlu0 %v413, 127
      %v492 = vpop.permute.xlu0 %491
      %493 = vrot.lane.b32.xlu0 %v414, 127
      %v494 = vpop.permute.xlu0 %493
      %495 = vrot.lane.b32.xlu0 %v415, 127
      %v496 = vpop.permute.xlu0 %495
      %497 = vrot.lane.b32.xlu0 %v416, 127
      %v498 = vpop.permute.xlu0 %497
      %499 = vrot.lane.b32.xlu0 %v417, 127
      %v500 = vpop.permute.xlu0 %499
      %501 = vrot.lane.b32.xlu0 %v418, 127
      %v502 = vpop.permute.xlu0 %501
      %503 = vrot.lane.b32.xlu0 %v419, 127
      %v504 = vpop.permute.xlu0 %503
      %505 = vrot.lane.b32.xlu0 %v420, 127
      %v506 = vpop.permute.xlu0 %505
      %507 = vrot.lane.b32.xlu0 %v421, 127
      %v508 = vpop.permute.xlu0 %507
      %509 = vrot.lane.b32.xlu0 %v422, 127
      %v510 = vpop.permute.xlu0 %509
      %511 = vrot.lane.b32.xlu0 %v423, 127
      %v512 = vpop.permute.xlu0 %511
      %513 = vrot.lane.b32.xlu0 %v424, 127
      %v514 = vpop.permute.xlu0 %513
      %515 = vrot.lane.b32.xlu0 %v425, 127
      %v516 = vpop.permute.xlu0 %515
      %517 = vrot.lane.b32.xlu0 %v426, 127
      %v518 = vpop.permute.xlu0 %517
      %519 = vrot.lane.b32.xlu0 %v427, 127
      %v520 = vpop.permute.xlu0 %519
      %521 = vrot.lane.b32.xlu0 %v428, 127
      %v522 = vpop.permute.xlu0 %521
      %523 = vrot.lane.b32.xlu0 %v429, 127
      %v524 = vpop.permute.xlu0 %523
      %525 = vrot.lane.b32.xlu0 %v430, 127
      %v526 = vpop.permute.xlu0 %525
      %vm527 = vcmask 1039360
      %v528 = vsel %vm527, %v464, %v466
      %v529 = vsel %vm527, %v466, %v468
      %v530 = vsel %vm527, %v468, %v470
      %v531 = vsel %vm527, %v470, %v472
      %v532 = vsel %vm527, %v472, %v474
      %v533 = vsel %vm527, %v474, %v476
      %v534 = vsel %vm527, %v476, %v478
      %v535 = vsel %vm527, %v480, %v482
      %v536 = vsel %vm527, %v482, %v484
      %v537 = vsel %vm527, %v484, %v486
      %v538 = vsel %vm527, %v486, %v488
      %v539 = vsel %vm527, %v488, %v490
      %v540 = vsel %vm527, %v490, %v492
      %v541 = vsel %vm527, %v492, %v494
      %v542 = vsel %vm527, %v496, %v498
      %v543 = vsel %vm527, %v498, %v500
      %v544 = vsel %vm527, %v500, %v502
      %v545 = vsel %vm527, %v502, %v504
      %v546 = vsel %vm527, %v504, %v506
      %v547 = vsel %vm527, %v506, %v508
      %v548 = vsel %vm527, %v508, %v510
      %v549 = vsel %vm527, %v512, %v514
      %v550 = vsel %vm527, %v514, %v516
      %v551 = vsel %vm527, %v516, %v518
      %v552 = vsel %vm527, %v518, %v520
      %v553 = vsel %vm527, %v520, %v522
      %v554 = vsel %vm527, %v522, %v524
      %v555 = vsel %vm527, %v524, %v526
      %v584 = vadd.f32 %v350, %v528
      %v585 = vadd.f32 %v351, %v529
      %v586 = vadd.f32 %v352, %v530
      %v587 = vadd.f32 %v353, %v531
      %v588 = vadd.f32 %v354, %v532
      %v589 = vadd.f32 %v355, %v533
      %v590 = vadd.f32 %v356, %v534
      %v591 = vadd.f32 %v357, %v535
      %v592 = vadd.f32 %v358, %v536
      %v593 = vadd.f32 %v359, %v537
      %v594 = vadd.f32 %v360, %v538
      %v595 = vadd.f32 %v361, %v539
      %v596 = vadd.f32 %v362, %v540
      %v597 = vadd.f32 %v363, %v541
      %v598 = vadd.f32 %v364, %v542
      %v599 = vadd.f32 %v365, %v543
      %v600 = vadd.f32 %v366, %v544
      %v601 = vadd.f32 %v367, %v545
      %v602 = vadd.f32 %v368, %v546
      %v603 = vadd.f32 %v369, %v547
      %v604 = vadd.f32 %v370, %v548
      %v605 = vadd.f32 %v371, %v549
      %v606 = vadd.f32 %v372, %v550
      %v607 = vadd.f32 %v373, %v551
      %v608 = vadd.f32 %v374, %v552
      %v609 = vadd.f32 %v375, %v553
      %v610 = vadd.f32 %v376, %v554
      %v611 = vadd.f32 %v377, %v555
      %612 = vset.pattern.permute.xlu0 2
      %613 = vperm.xlu0 %612, %v41
      %v614 = vpop.permute.xlu0 %613
      %616 = vset.pattern.permute.xlu0 2
      %617 = vperm.xlu0 %616, %v42
      %v618 = vpop.permute.xlu0 %617
      %620 = vset.pattern.permute.xlu0 2
      %621 = vperm.xlu0 %620, %v43
      %v622 = vpop.permute.xlu0 %621
      %624 = vset.pattern.permute.xlu0 2
      %625 = vperm.xlu0 %624, %v44
      %v626 = vpop.permute.xlu0 %625
      %v628 = vmul.f32 %v614, %v290
      %v629 = vmul.f32 %v614, %v294
      %v630 = vmul.f32 %v614, %v298
      %v631 = vmul.f32 %v614, %v302
      %v632 = vmul.f32 %v614, %v306
      %v633 = vmul.f32 %v614, %v310
      %v634 = vmul.f32 %v614, %v314
      %v635 = vmul.f32 %v614, %v397
      %v636 = vmul.f32 %v618, %v290
      %v637 = vmul.f32 %v618, %v294
      %v638 = vmul.f32 %v618, %v298
      %v639 = vmul.f32 %v618, %v302
      %v640 = vmul.f32 %v618, %v306
      %v641 = vmul.f32 %v618, %v310
      %v642 = vmul.f32 %v618, %v314
      %v643 = vmul.f32 %v618, %v397
      %v644 = vmul.f32 %v622, %v290
      %v645 = vmul.f32 %v622, %v294
      %v646 = vmul.f32 %v622, %v298
      %v647 = vmul.f32 %v622, %v302
      %v648 = vmul.f32 %v622, %v306
      %v649 = vmul.f32 %v622, %v310
      %v650 = vmul.f32 %v622, %v314
      %v651 = vmul.f32 %v622, %v397
      %v652 = vmul.f32 %v626, %v290
      %v653 = vmul.f32 %v626, %v294
      %v654 = vmul.f32 %v626, %v298
      %v655 = vmul.f32 %v626, %v302
      %v656 = vmul.f32 %v626, %v306
      %v657 = vmul.f32 %v626, %v310
      %v658 = vmul.f32 %v626, %v314
      %v659 = vmul.f32 %v626, %v397
      %692 = vrot.lane.b32.xlu0 %v628, 126
      %v693 = vpop.permute.xlu0 %692
      %694 = vrot.lane.b32.xlu0 %v629, 126
      %v695 = vpop.permute.xlu0 %694
      %696 = vrot.lane.b32.xlu0 %v630, 126
      %v697 = vpop.permute.xlu0 %696
      %698 = vrot.lane.b32.xlu0 %v631, 126
      %v699 = vpop.permute.xlu0 %698
      %700 = vrot.lane.b32.xlu0 %v632, 126
      %v701 = vpop.permute.xlu0 %700
      %702 = vrot.lane.b32.xlu0 %v633, 126
      %v703 = vpop.permute.xlu0 %702
      %704 = vrot.lane.b32.xlu0 %v634, 126
      %v705 = vpop.permute.xlu0 %704
      %706 = vrot.lane.b32.xlu0 %v635, 126
      %v707 = vpop.permute.xlu0 %706
      %708 = vrot.lane.b32.xlu0 %v636, 126
      %v709 = vpop.permute.xlu0 %708
      %710 = vrot.lane.b32.xlu0 %v637, 126
      %v711 = vpop.permute.xlu0 %710
      %712 = vrot.lane.b32.xlu0 %v638, 126
      %v713 = vpop.permute.xlu0 %712
      %714 = vrot.lane.b32.xlu0 %v639, 126
      %v715 = vpop.permute.xlu0 %714
      %716 = vrot.lane.b32.xlu0 %v640, 126
      %v717 = vpop.permute.xlu0 %716
      %718 = vrot.lane.b32.xlu0 %v641, 126
      %v719 = vpop.permute.xlu0 %718
      %720 = vrot.lane.b32.xlu0 %v642, 126
      %v721 = vpop.permute.xlu0 %720
      %722 = vrot.lane.b32.xlu0 %v643, 126
      %v723 = vpop.permute.xlu0 %722
      %724 = vrot.lane.b32.xlu0 %v644, 126
      %v725 = vpop.permute.xlu0 %724
      %726 = vrot.lane.b32.xlu0 %v645, 126
      %v727 = vpop.permute.xlu0 %726
      %728 = vrot.lane.b32.xlu0 %v646, 126
      %v729 = vpop.permute.xlu0 %728
      %730 = vrot.lane.b32.xlu0 %v647, 126
      %v731 = vpop.permute.xlu0 %730
      %732 = vrot.lane.b32.xlu0 %v648, 126
      %v733 = vpop.permute.xlu0 %732
      %734 = vrot.lane.b32.xlu0 %v649, 126
      %v735 = vpop.permute.xlu0 %734
      %736 = vrot.lane.b32.xlu0 %v650, 126
      %v737 = vpop.permute.xlu0 %736
      %738 = vrot.lane.b32.xlu0 %v651, 126
      %v739 = vpop.permute.xlu0 %738
      %740 = vrot.lane.b32.xlu0 %v652, 126
      %v741 = vpop.permute.xlu0 %740
      %742 = vrot.lane.b32.xlu0 %v653, 126
      %v743 = vpop.permute.xlu0 %742
      %744 = vrot.lane.b32.xlu0 %v654, 126
      %v745 = vpop.permute.xlu0 %744
      %746 = vrot.lane.b32.xlu0 %v655, 126
      %v747 = vpop.permute.xlu0 %746
      %748 = vrot.lane.b32.xlu0 %v656, 126
      %v749 = vpop.permute.xlu0 %748
      %750 = vrot.lane.b32.xlu0 %v657, 126
      %v751 = vpop.permute.xlu0 %750
      %752 = vrot.lane.b32.xlu0 %v658, 126
      %v753 = vpop.permute.xlu0 %752
      %754 = vrot.lane.b32.xlu0 %v659, 126
      %v755 = vpop.permute.xlu0 %754
      %vm756 = vcmask 1031168
      %v757 = vsel %vm756, %v693, %v695
      %v758 = vsel %vm756, %v695, %v697
      %v759 = vsel %vm756, %v697, %v699
      %v760 = vsel %vm756, %v699, %v701
      %v761 = vsel %vm756, %v701, %v703
      %v762 = vsel %vm756, %v703, %v705
      %v763 = vsel %vm756, %v705, %v707
      %v764 = vsel %vm756, %v709, %v711
      %v765 = vsel %vm756, %v711, %v713
      %v766 = vsel %vm756, %v713, %v715
      %v767 = vsel %vm756, %v715, %v717
      %v768 = vsel %vm756, %v717, %v719
      %v769 = vsel %vm756, %v719, %v721
      %v770 = vsel %vm756, %v721, %v723
      %v771 = vsel %vm756, %v725, %v727
      %v772 = vsel %vm756, %v727, %v729
      %v773 = vsel %vm756, %v729, %v731
      %v774 = vsel %vm756, %v731, %v733
      %v775 = vsel %vm756, %v733, %v735
      %v776 = vsel %vm756, %v735, %v737
      %v777 = vsel %vm756, %v737, %v739
      %v778 = vsel %vm756, %v741, %v743
      %v779 = vsel %vm756, %v743, %v745
      %v780 = vsel %vm756, %v745, %v747
      %v781 = vsel %vm756, %v747, %v749
      %v782 = vsel %vm756, %v749, %v751
      %v783 = vsel %vm756, %v751, %v753
      %v784 = vsel %vm756, %v753, %v755
      %v813 = vadd.f32 %v584, %v757
      %v814 = vadd.f32 %v585, %v758
      %v815 = vadd.f32 %v586, %v759
      %v816 = vadd.f32 %v587, %v760
      %v817 = vadd.f32 %v588, %v761
      %v818 = vadd.f32 %v589, %v762
      %v819 = vadd.f32 %v590, %v763
      %v820 = vadd.f32 %v591, %v764
      %v821 = vadd.f32 %v592, %v765
      %v822 = vadd.f32 %v593, %v766
      %v823 = vadd.f32 %v594, %v767
      %v824 = vadd.f32 %v595, %v768
      %v825 = vadd.f32 %v596, %v769
      %v826 = vadd.f32 %v597, %v770
      %v827 = vadd.f32 %v598, %v771
      %v828 = vadd.f32 %v599, %v772
      %v829 = vadd.f32 %v600, %v773
      %v830 = vadd.f32 %v601, %v774
      %v831 = vadd.f32 %v602, %v775
      %v832 = vadd.f32 %v603, %v776
      %v833 = vadd.f32 %v604, %v777
      %v834 = vadd.f32 %v605, %v778
      %v835 = vadd.f32 %v606, %v779
      %v836 = vadd.f32 %v607, %v780
      %v837 = vadd.f32 %v608, %v781
      %v838 = vadd.f32 %v609, %v782
      %v839 = vadd.f32 %v610, %v783
      %v840 = vadd.f32 %v611, %v784
      %841 = vset.pattern.permute.xlu0 3
      %842 = vperm.xlu0 %841, %v41
      %v843 = vpop.permute.xlu0 %842
      %845 = vset.pattern.permute.xlu0 3
      %846 = vperm.xlu0 %845, %v42
      %v847 = vpop.permute.xlu0 %846
      %849 = vset.pattern.permute.xlu0 3
      %850 = vperm.xlu0 %849, %v43
      %v851 = vpop.permute.xlu0 %850
      %853 = vset.pattern.permute.xlu0 3
      %854 = vperm.xlu0 %853, %v44
      %v855 = vpop.permute.xlu0 %854
      %v857 = vmul.f32 %v843, %v290
      %v858 = vmul.f32 %v843, %v294
      %v859 = vmul.f32 %v843, %v298
      %v860 = vmul.f32 %v843, %v302
      %v861 = vmul.f32 %v843, %v306
      %v862 = vmul.f32 %v843, %v310
      %v863 = vmul.f32 %v843, %v314
      %v864 = vmul.f32 %v843, %v397
      %v865 = vmul.f32 %v847, %v290
      %v866 = vmul.f32 %v847, %v294
      %v867 = vmul.f32 %v847, %v298
      %v868 = vmul.f32 %v847, %v302
      %v869 = vmul.f32 %v847, %v306
      %v870 = vmul.f32 %v847, %v310
      %v871 = vmul.f32 %v847, %v314
      %v872 = vmul.f32 %v847, %v397
      %v873 = vmul.f32 %v851, %v290
      %v874 = vmul.f32 %v851, %v294
      %v875 = vmul.f32 %v851, %v298
      %v876 = vmul.f32 %v851, %v302
      %v877 = vmul.f32 %v851, %v306
      %v878 = vmul.f32 %v851, %v310
      %v879 = vmul.f32 %v851, %v314
      %v880 = vmul.f32 %v851, %v397
      %v881 = vmul.f32 %v855, %v290
      %v882 = vmul.f32 %v855, %v294
      %v883 = vmul.f32 %v855, %v298
      %v884 = vmul.f32 %v855, %v302
      %v885 = vmul.f32 %v855, %v306
      %v886 = vmul.f32 %v855, %v310
      %v887 = vmul.f32 %v855, %v314
      %v888 = vmul.f32 %v855, %v397
      %921 = vrot.lane.b32.xlu0 %v857, 96
      %v922 = vpop.permute.xlu0 %921
      %923 = vrot.lane.b32.xlu0 %v858, 96
      %v924 = vpop.permute.xlu0 %923
      %925 = vrot.lane.b32.xlu0 %v859, 96
      %v926 = vpop.permute.xlu0 %925
      %927 = vrot.lane.b32.xlu0 %v860, 96
      %v928 = vpop.permute.xlu0 %927
      %929 = vrot.lane.b32.xlu0 %v861, 96
      %v930 = vpop.permute.xlu0 %929
      %931 = vrot.lane.b32.xlu0 %v862, 96
      %v932 = vpop.permute.xlu0 %931
      %933 = vrot.lane.b32.xlu0 %v863, 96
      %v934 = vpop.permute.xlu0 %933
      %935 = vrot.lane.b32.xlu0 %v864, 96
      %v936 = vpop.permute.xlu0 %935
      %937 = vrot.lane.b32.xlu0 %v865, 96
      %v938 = vpop.permute.xlu0 %937
      %939 = vrot.lane.b32.xlu0 %v866, 96
      %v940 = vpop.permute.xlu0 %939
      %941 = vrot.lane.b32.xlu0 %v867, 96
      %v942 = vpop.permute.xlu0 %941
      %943 = vrot.lane.b32.xlu0 %v868, 96
      %v944 = vpop.permute.xlu0 %943
      %945 = vrot.lane.b32.xlu0 %v869, 96
      %v946 = vpop.permute.xlu0 %945
      %947 = vrot.lane.b32.xlu0 %v870, 96
      %v948 = vpop.permute.xlu0 %947
      %949 = vrot.lane.b32.xlu0 %v871, 96
      %v950 = vpop.permute.xlu0 %949
      %951 = vrot.lane.b32.xlu0 %v872, 96
      %v952 = vpop.permute.xlu0 %951
      %953 = vrot.lane.b32.xlu0 %v873, 96
      %v954 = vpop.permute.xlu0 %953
      %955 = vrot.lane.b32.xlu0 %v874, 96
      %v956 = vpop.permute.xlu0 %955
      %957 = vrot.lane.b32.xlu0 %v875, 96
      %v958 = vpop.permute.xlu0 %957
      %959 = vrot.lane.b32.xlu0 %v876, 96
      %v960 = vpop.permute.xlu0 %959
      %961 = vrot.lane.b32.xlu0 %v877, 96
      %v962 = vpop.permute.xlu0 %961
      %963 = vrot.lane.b32.xlu0 %v878, 96
      %v964 = vpop.permute.xlu0 %963
      %965 = vrot.lane.b32.xlu0 %v879, 96
      %v966 = vpop.permute.xlu0 %965
      %967 = vrot.lane.b32.xlu0 %v880, 96
      %v968 = vpop.permute.xlu0 %967
      %969 = vrot.lane.b32.xlu0 %v881, 96
      %v970 = vpop.permute.xlu0 %969
      %971 = vrot.lane.b32.xlu0 %v882, 96
      %v972 = vpop.permute.xlu0 %971
      %973 = vrot.lane.b32.xlu0 %v883, 96
      %v974 = vpop.permute.xlu0 %973
      %975 = vrot.lane.b32.xlu0 %v884, 96
      %v976 = vpop.permute.xlu0 %975
      %977 = vrot.lane.b32.xlu0 %v885, 96
      %v978 = vpop.permute.xlu0 %977
      %979 = vrot.lane.b32.xlu0 %v886, 96
      %v980 = vpop.permute.xlu0 %979
      %981 = vrot.lane.b32.xlu0 %v887, 96
      %v982 = vpop.permute.xlu0 %981
      %983 = vrot.lane.b32.xlu0 %v888, 96
      %v984 = vpop.permute.xlu0 %983
      %vm985 = vcmask 785408
      %v986 = vsel %vm985, %v922, %v924
      %v987 = vsel %vm985, %v924, %v926
      %v988 = vsel %vm985, %v926, %v928
      %v989 = vsel %vm985, %v928, %v930
      %v990 = vsel %vm985, %v930, %v932
      %v991 = vsel %vm985, %v932, %v934
      %v992 = vsel %vm985, %v934, %v936
      %v993 = vsel %vm985, %v938, %v940
      %v994 = vsel %vm985, %v940, %v942
      %v995 = vsel %vm985, %v942, %v944
      %v996 = vsel %vm985, %v944, %v946
      %v997 = vsel %vm985, %v946, %v948
      %v998 = vsel %vm985, %v948, %v950
      %v999 = vsel %vm985, %v950, %v952
      %v1000 = vsel %vm985, %v954, %v956
      %v1001 = vsel %vm985, %v956, %v958
      %v1002 = vsel %vm985, %v958, %v960
      %v1003 = vsel %vm985, %v960, %v962
      %v1004 = vsel %vm985, %v962, %v964
      %v1005 = vsel %vm985, %v964, %v966
      %v1006 = vsel %vm985, %v966, %v968
      %v1007 = vsel %vm985, %v970, %v972
      %v1008 = vsel %vm985, %v972, %v974
      %v1009 = vsel %vm985, %v974, %v976
      %v1010 = vsel %vm985, %v976, %v978
      %v1011 = vsel %vm985, %v978, %v980
      %v1012 = vsel %vm985, %v980, %v982
      %v1013 = vsel %vm985, %v982, %v984
      %v1042 = vadd.f32 %v813, %v986
      %v1043 = vadd.f32 %v814, %v987
      %v1044 = vadd.f32 %v815, %v988
      %v1045 = vadd.f32 %v816, %v989
      %v1046 = vadd.f32 %v817, %v990
      %v1047 = vadd.f32 %v818, %v991
      %v1048 = vadd.f32 %v819, %v992
      %v1049 = vadd.f32 %v820, %v993
      %v1050 = vadd.f32 %v821, %v994
      %v1051 = vadd.f32 %v822, %v995
      %v1052 = vadd.f32 %v823, %v996
      %v1053 = vadd.f32 %v824, %v997
      %v1054 = vadd.f32 %v825, %v998
      %v1055 = vadd.f32 %v826, %v999
      %v1056 = vadd.f32 %v827, %v1000
      %v1057 = vadd.f32 %v828, %v1001
      %v1058 = vadd.f32 %v829, %v1002
      %v1059 = vadd.f32 %v830, %v1003
      %v1060 = vadd.f32 %v831, %v1004
      %v1061 = vadd.f32 %v832, %v1005
      %v1062 = vadd.f32 %v833, %v1006
      %v1063 = vadd.f32 %v834, %v1007
      %v1064 = vadd.f32 %v835, %v1008
      %v1065 = vadd.f32 %v836, %v1009
      %v1066 = vadd.f32 %v837, %v1010
      %v1067 = vadd.f32 %v838, %v1011
      %v1068 = vadd.f32 %v839, %v1012
      %v1069 = vadd.f32 %v840, %v1013
      %1070 = vset.pattern.permute.xlu0 4
      %1071 = vperm.xlu0 %1070, %v41
      %v1072 = vpop.permute.xlu0 %1071
      %1074 = vset.pattern.permute.xlu0 4
      %1075 = vperm.xlu0 %1074, %v42
      %v1076 = vpop.permute.xlu0 %1075
      %1078 = vset.pattern.permute.xlu0 4
      %1079 = vperm.xlu0 %1078, %v43
      %v1080 = vpop.permute.xlu0 %1079
      %1082 = vset.pattern.permute.xlu0 4
      %1083 = vperm.xlu0 %1082, %v44
      %v1084 = vpop.permute.xlu0 %1083
      %v1086 = vmul.f32 %v1072, %v290
      %v1087 = vmul.f32 %v1072, %v294
      %v1088 = vmul.f32 %v1072, %v298
      %v1089 = vmul.f32 %v1072, %v302
      %v1090 = vmul.f32 %v1072, %v306
      %v1091 = vmul.f32 %v1072, %v310
      %v1092 = vmul.f32 %v1072, %v314
      %v1093 = vmul.f32 %v1072, %v397
      %v1094 = vmul.f32 %v1076, %v290
      %v1095 = vmul.f32 %v1076, %v294
      %v1096 = vmul.f32 %v1076, %v298
      %v1097 = vmul.f32 %v1076, %v302
      %v1098 = vmul.f32 %v1076, %v306
      %v1099 = vmul.f32 %v1076, %v310
      %v1100 = vmul.f32 %v1076, %v314
      %v1101 = vmul.f32 %v1076, %v397
      %v1102 = vmul.f32 %v1080, %v290
      %v1103 = vmul.f32 %v1080, %v294
      %v1104 = vmul.f32 %v1080, %v298
      %v1105 = vmul.f32 %v1080, %v302
      %v1106 = vmul.f32 %v1080, %v306
      %v1107 = vmul.f32 %v1080, %v310
      %v1108 = vmul.f32 %v1080, %v314
      %v1109 = vmul.f32 %v1080, %v397
      %v1110 = vmul.f32 %v1084, %v290
      %v1111 = vmul.f32 %v1084, %v294
      %v1112 = vmul.f32 %v1084, %v298
      %v1113 = vmul.f32 %v1084, %v302
      %v1114 = vmul.f32 %v1084, %v306
      %v1115 = vmul.f32 %v1084, %v310
      %v1116 = vmul.f32 %v1084, %v314
      %v1117 = vmul.f32 %v1084, %v397
      %1150 = vrot.lane.b32.xlu0 %v1086, 95
      %v1151 = vpop.permute.xlu0 %1150
      %1152 = vrot.lane.b32.xlu0 %v1087, 95
      %v1153 = vpop.permute.xlu0 %1152
      %1154 = vrot.lane.b32.xlu0 %v1088, 95
      %v1155 = vpop.permute.xlu0 %1154
      %1156 = vrot.lane.b32.xlu0 %v1089, 95
      %v1157 = vpop.permute.xlu0 %1156
      %1158 = vrot.lane.b32.xlu0 %v1090, 95
      %v1159 = vpop.permute.xlu0 %1158
      %1160 = vrot.lane.b32.xlu0 %v1091, 95
      %v1161 = vpop.permute.xlu0 %1160
      %1162 = vrot.lane.b32.xlu0 %v1092, 95
      %v1163 = vpop.permute.xlu0 %1162
      %1164 = vrot.lane.b32.xlu0 %v1093, 95
      %v1165 = vpop.permute.xlu0 %1164
      %1166 = vrot.lane.b32.xlu0 %v1094, 95
      %v1167 = vpop.permute.xlu0 %1166
      %1168 = vrot.lane.b32.xlu0 %v1095, 95
      %v1169 = vpop.permute.xlu0 %1168
      %1170 = vrot.lane.b32.xlu0 %v1096, 95
      %v1171 = vpop.permute.xlu0 %1170
      %1172 = vrot.lane.b32.xlu0 %v1097, 95
      %v1173 = vpop.permute.xlu0 %1172
      %1174 = vrot.lane.b32.xlu0 %v1098, 95
      %v1175 = vpop.permute.xlu0 %1174
      %1176 = vrot.lane.b32.xlu0 %v1099, 95
      %v1177 = vpop.permute.xlu0 %1176
      %1178 = vrot.lane.b32.xlu0 %v1100, 95
      %v1179 = vpop.permute.xlu0 %1178
      %1180 = vrot.lane.b32.xlu0 %v1101, 95
      %v1181 = vpop.permute.xlu0 %1180
      %1182 = vrot.lane.b32.xlu0 %v1102, 95
      %v1183 = vpop.permute.xlu0 %1182
      %1184 = vrot.lane.b32.xlu0 %v1103, 95
      %v1185 = vpop.permute.xlu0 %1184
      %1186 = vrot.lane.b32.xlu0 %v1104, 95
      %v1187 = vpop.permute.xlu0 %1186
      %1188 = vrot.lane.b32.xlu0 %v1105, 95
      %v1189 = vpop.permute.xlu0 %1188
      %1190 = vrot.lane.b32.xlu0 %v1106, 95
      %v1191 = vpop.permute.xlu0 %1190
      %1192 = vrot.lane.b32.xlu0 %v1107, 95
      %v1193 = vpop.permute.xlu0 %1192
      %1194 = vrot.lane.b32.xlu0 %v1108, 95
      %v1195 = vpop.permute.xlu0 %1194
      %1196 = vrot.lane.b32.xlu0 %v1109, 95
      %v1197 = vpop.permute.xlu0 %1196
      %1198 = vrot.lane.b32.xlu0 %v1110, 95
      %v1199 = vpop.permute.xlu0 %1198
      %1200 = vrot.lane.b32.xlu0 %v1111, 95
      %v1201 = vpop.permute.xlu0 %1200
      %1202 = vrot.lane.b32.xlu0 %v1112, 95
      %v1203 = vpop.permute.xlu0 %1202
      %1204 = vrot.lane.b32.xlu0 %v1113, 95
      %v1205 = vpop.permute.xlu0 %1204
      %1206 = vrot.lane.b32.xlu0 %v1114, 95
      %v1207 = vpop.permute.xlu0 %1206
      %1208 = vrot.lane.b32.xlu0 %v1115, 95
      %v1209 = vpop.permute.xlu0 %1208
      %1210 = vrot.lane.b32.xlu0 %v1116, 95
      %v1211 = vpop.permute.xlu0 %1210
      %1212 = vrot.lane.b32.xlu0 %v1117, 95
      %v1213 = vpop.permute.xlu0 %1212
      %vm1214 = vcmask 777216
      %v1215 = vsel %vm1214, %v1151, %v1153
      %v1216 = vsel %vm1214, %v1153, %v1155
      %v1217 = vsel %vm1214, %v1155, %v1157
      %v1218 = vsel %vm1214, %v1157, %v1159
      %v1219 = vsel %vm1214, %v1159, %v1161
      %v1220 = vsel %vm1214, %v1161, %v1163
      %v1221 = vsel %vm1214, %v1163, %v1165
      %v1222 = vsel %vm1214, %v1167, %v1169
      %v1223 = vsel %vm1214, %v1169, %v1171
      %v1224 = vsel %vm1214, %v1171, %v1173
      %v1225 = vsel %vm1214, %v1173, %v1175
      %v1226 = vsel %vm1214, %v1175, %v1177
      %v1227 = vsel %vm1214, %v1177, %v1179
      %v1228 = vsel %vm1214, %v1179, %v1181
      %v1229 = vsel %vm1214, %v1183, %v1185
      %v1230 = vsel %vm1214, %v1185, %v1187
      %v1231 = vsel %vm1214, %v1187, %v1189
      %v1232 = vsel %vm1214, %v1189, %v1191
      %v1233 = vsel %vm1214, %v1191, %v1193
      %v1234 = vsel %vm1214, %v1193, %v1195
      %v1235 = vsel %vm1214, %v1195, %v1197
      %v1236 = vsel %vm1214, %v1199, %v1201
      %v1237 = vsel %vm1214, %v1201, %v1203
      %v1238 = vsel %vm1214, %v1203, %v1205
      %v1239 = vsel %vm1214, %v1205, %v1207
      %v1240 = vsel %vm1214, %v1207, %v1209
      %v1241 = vsel %vm1214, %v1209, %v1211
      %v1242 = vsel %vm1214, %v1211, %v1213
      %v1271 = vadd.f32 %v1042, %v1215
      %v1272 = vadd.f32 %v1043, %v1216
      %v1273 = vadd.f32 %v1044, %v1217
      %v1274 = vadd.f32 %v1045, %v1218
      %v1275 = vadd.f32 %v1046, %v1219
      %v1276 = vadd.f32 %v1047, %v1220
      %v1277 = vadd.f32 %v1048, %v1221
      %v1278 = vadd.f32 %v1049, %v1222
      %v1279 = vadd.f32 %v1050, %v1223
      %v1280 = vadd.f32 %v1051, %v1224
      %v1281 = vadd.f32 %v1052, %v1225
      %v1282 = vadd.f32 %v1053, %v1226
      %v1283 = vadd.f32 %v1054, %v1227
      %v1284 = vadd.f32 %v1055, %v1228
      %v1285 = vadd.f32 %v1056, %v1229
      %v1286 = vadd.f32 %v1057, %v1230
      %v1287 = vadd.f32 %v1058, %v1231
      %v1288 = vadd.f32 %v1059, %v1232
      %v1289 = vadd.f32 %v1060, %v1233
      %v1290 = vadd.f32 %v1061, %v1234
      %v1291 = vadd.f32 %v1062, %v1235
      %v1292 = vadd.f32 %v1063, %v1236
      %v1293 = vadd.f32 %v1064, %v1237
      %v1294 = vadd.f32 %v1065, %v1238
      %v1295 = vadd.f32 %v1066, %v1239
      %v1296 = vadd.f32 %v1067, %v1240
      %v1297 = vadd.f32 %v1068, %v1241
      %v1298 = vadd.f32 %v1069, %v1242
      %1299 = vset.pattern.permute.xlu0 5
      %1300 = vperm.xlu0 %1299, %v41
      %v1301 = vpop.permute.xlu0 %1300
      %1303 = vset.pattern.permute.xlu0 5
      %1304 = vperm.xlu0 %1303, %v42
      %v1305 = vpop.permute.xlu0 %1304
      %1307 = vset.pattern.permute.xlu0 5
      %1308 = vperm.xlu0 %1307, %v43
      %v1309 = vpop.permute.xlu0 %1308
      %1311 = vset.pattern.permute.xlu0 5
      %1312 = vperm.xlu0 %1311, %v44
      %v1313 = vpop.permute.xlu0 %1312
      %v1315 = vmul.f32 %v1301, %v290
      %v1316 = vmul.f32 %v1301, %v294
      %v1317 = vmul.f32 %v1301, %v298
      %v1318 = vmul.f32 %v1301, %v302
      %v1319 = vmul.f32 %v1301, %v306
      %v1320 = vmul.f32 %v1301, %v310
      %v1321 = vmul.f32 %v1301, %v314
      %v1322 = vmul.f32 %v1301, %v397
      %v1323 = vmul.f32 %v1305, %v290
      %v1324 = vmul.f32 %v1305, %v294
      %v1325 = vmul.f32 %v1305, %v298
      %v1326 = vmul.f32 %v1305, %v302
      %v1327 = vmul.f32 %v1305, %v306
      %v1328 = vmul.f32 %v1305, %v310
      %v1329 = vmul.f32 %v1305, %v314
      %v1330 = vmul.f32 %v1305, %v397
      %v1331 = vmul.f32 %v1309, %v290
      %v1332 = vmul.f32 %v1309, %v294
      %v1333 = vmul.f32 %v1309, %v298
      %v1334 = vmul.f32 %v1309, %v302
      %v1335 = vmul.f32 %v1309, %v306
      %v1336 = vmul.f32 %v1309, %v310
      %v1337 = vmul.f32 %v1309, %v314
      %v1338 = vmul.f32 %v1309, %v397
      %v1339 = vmul.f32 %v1313, %v290
      %v1340 = vmul.f32 %v1313, %v294
      %v1341 = vmul.f32 %v1313, %v298
      %v1342 = vmul.f32 %v1313, %v302
      %v1343 = vmul.f32 %v1313, %v306
      %v1344 = vmul.f32 %v1313, %v310
      %v1345 = vmul.f32 %v1313, %v314
      %v1346 = vmul.f32 %v1313, %v397
      %1379 = vrot.lane.b32.xlu0 %v1315, 94
      %v1380 = vpop.permute.xlu0 %1379
      %1381 = vrot.lane.b32.xlu0 %v1316, 94
      %v1382 = vpop.permute.xlu0 %1381
      %1383 = vrot.lane.b32.xlu0 %v1317, 94
      %v1384 = vpop.permute.xlu0 %1383
      %1385 = vrot.lane.b32.xlu0 %v1318, 94
      %v1386 = vpop.permute.xlu0 %1385
      %1387 = vrot.lane.b32.xlu0 %v1319, 94
      %v1388 = vpop.permute.xlu0 %1387
      %1389 = vrot.lane.b32.xlu0 %v1320, 94
      %v1390 = vpop.permute.xlu0 %1389
      %1391 = vrot.lane.b32.xlu0 %v1321, 94
      %v1392 = vpop.permute.xlu0 %1391
      %1393 = vrot.lane.b32.xlu0 %v1322, 94
      %v1394 = vpop.permute.xlu0 %1393
      %1395 = vrot.lane.b32.xlu0 %v1323, 94
      %v1396 = vpop.permute.xlu0 %1395
      %1397 = vrot.lane.b32.xlu0 %v1324, 94
      %v1398 = vpop.permute.xlu0 %1397
      %1399 = vrot.lane.b32.xlu0 %v1325, 94
      %v1400 = vpop.permute.xlu0 %1399
      %1401 = vrot.lane.b32.xlu0 %v1326, 94
      %v1402 = vpop.permute.xlu0 %1401
      %1403 = vrot.lane.b32.xlu0 %v1327, 94
      %v1404 = vpop.permute.xlu0 %1403
      %1405 = vrot.lane.b32.xlu0 %v1328, 94
      %v1406 = vpop.permute.xlu0 %1405
      %1407 = vrot.lane.b32.xlu0 %v1329, 94
      %v1408 = vpop.permute.xlu0 %1407
      %1409 = vrot.lane.b32.xlu0 %v1330, 94
      %v1410 = vpop.permute.xlu0 %1409
      %1411 = vrot.lane.b32.xlu0 %v1331, 94
      %v1412 = vpop.permute.xlu0 %1411
      %1413 = vrot.lane.b32.xlu0 %v1332, 94
      %v1414 = vpop.permute.xlu0 %1413
      %1415 = vrot.lane.b32.xlu0 %v1333, 94
      %v1416 = vpop.permute.xlu0 %1415
      %1417 = vrot.lane.b32.xlu0 %v1334, 94
      %v1418 = vpop.permute.xlu0 %1417
      %1419 = vrot.lane.b32.xlu0 %v1335, 94
      %v1420 = vpop.permute.xlu0 %1419
      %1421 = vrot.lane.b32.xlu0 %v1336, 94
      %v1422 = vpop.permute.xlu0 %1421
      %1423 = vrot.lane.b32.xlu0 %v1337, 94
      %v1424 = vpop.permute.xlu0 %1423
      %1425 = vrot.lane.b32.xlu0 %v1338, 94
      %v1426 = vpop.permute.xlu0 %1425
      %1427 = vrot.lane.b32.xlu0 %v1339, 94
      %v1428 = vpop.permute.xlu0 %1427
      %1429 = vrot.lane.b32.xlu0 %v1340, 94
      %v1430 = vpop.permute.xlu0 %1429
      %1431 = vrot.lane.b32.xlu0 %v1341, 94
      %v1432 = vpop.permute.xlu0 %1431
      %1433 = vrot.lane.b32.xlu0 %v1342, 94
      %v1434 = vpop.permute.xlu0 %1433
      %1435 = vrot.lane.b32.xlu0 %v1343, 94
      %v1436 = vpop.permute.xlu0 %1435
      %1437 = vrot.lane.b32.xlu0 %v1344, 94
      %v1438 = vpop.permute.xlu0 %1437
      %1439 = vrot.lane.b32.xlu0 %v1345, 94
      %v1440 = vpop.permute.xlu0 %1439
      %1441 = vrot.lane.b32.xlu0 %v1346, 94
      %v1442 = vpop.permute.xlu0 %1441
      %vm1443 = vcmask 769024
      %v1444 = vsel %vm1443, %v1380, %v1382
      %v1445 = vsel %vm1443, %v1382, %v1384
      %v1446 = vsel %vm1443, %v1384, %v1386
      %v1447 = vsel %vm1443, %v1386, %v1388
      %v1448 = vsel %vm1443, %v1388, %v1390
      %v1449 = vsel %vm1443, %v1390, %v1392
      %v1450 = vsel %vm1443, %v1392, %v1394
      %v1451 = vsel %vm1443, %v1396, %v1398
      %v1452 = vsel %vm1443, %v1398, %v1400
      %v1453 = vsel %vm1443, %v1400, %v1402
      %v1454 = vsel %vm1443, %v1402, %v1404
      %v1455 = vsel %vm1443, %v1404, %v1406
      %v1456 = vsel %vm1443, %v1406, %v1408
      %v1457 = vsel %vm1443, %v1408, %v1410
      %v1458 = vsel %vm1443, %v1412, %v1414
      %v1459 = vsel %vm1443, %v1414, %v1416
      %v1460 = vsel %vm1443, %v1416, %v1418
      %v1461 = vsel %vm1443, %v1418, %v1420
      %v1462 = vsel %vm1443, %v1420, %v1422
      %v1463 = vsel %vm1443, %v1422, %v1424
      %v1464 = vsel %vm1443, %v1424, %v1426
      %v1465 = vsel %vm1443, %v1428, %v1430
      %v1466 = vsel %vm1443, %v1430, %v1432
      %v1467 = vsel %vm1443, %v1432, %v1434
      %v1468 = vsel %vm1443, %v1434, %v1436
      %v1469 = vsel %vm1443, %v1436, %v1438
      %v1470 = vsel %vm1443, %v1438, %v1440
      %v1471 = vsel %vm1443, %v1440, %v1442
      %v1500 = vadd.f32 %v1271, %v1444
      %v1501 = vadd.f32 %v1272, %v1445
      %v1502 = vadd.f32 %v1273, %v1446
      %v1503 = vadd.f32 %v1274, %v1447
      %v1504 = vadd.f32 %v1275, %v1448
      %v1505 = vadd.f32 %v1276, %v1449
      %v1506 = vadd.f32 %v1277, %v1450
      %v1507 = vadd.f32 %v1278, %v1451
      %v1508 = vadd.f32 %v1279, %v1452
      %v1509 = vadd.f32 %v1280, %v1453
      %v1510 = vadd.f32 %v1281, %v1454
      %v1511 = vadd.f32 %v1282, %v1455
      %v1512 = vadd.f32 %v1283, %v1456
      %v1513 = vadd.f32 %v1284, %v1457
      %v1514 = vadd.f32 %v1285, %v1458
      %v1515 = vadd.f32 %v1286, %v1459
      %v1516 = vadd.f32 %v1287, %v1460
      %v1517 = vadd.f32 %v1288, %v1461
      %v1518 = vadd.f32 %v1289, %v1462
      %v1519 = vadd.f32 %v1290, %v1463
      %v1520 = vadd.f32 %v1291, %v1464
      %v1521 = vadd.f32 %v1292, %v1465
      %v1522 = vadd.f32 %v1293, %v1466
      %v1523 = vadd.f32 %v1294, %v1467
      %v1524 = vadd.f32 %v1295, %v1468
      %v1525 = vadd.f32 %v1296, %v1469
      %v1526 = vadd.f32 %v1297, %v1470
      %v1527 = vadd.f32 %v1298, %v1471
      %1528 = vset.pattern.permute.xlu0 6
      %1529 = vperm.xlu0 %1528, %v41
      %v1530 = vpop.permute.xlu0 %1529
      %1532 = vset.pattern.permute.xlu0 6
      %1533 = vperm.xlu0 %1532, %v42
      %v1534 = vpop.permute.xlu0 %1533
      %1536 = vset.pattern.permute.xlu0 6
      %1537 = vperm.xlu0 %1536, %v43
      %v1538 = vpop.permute.xlu0 %1537
      %1540 = vset.pattern.permute.xlu0 6
      %1541 = vperm.xlu0 %1540, %v44
      %v1542 = vpop.permute.xlu0 %1541
      %v1544 = vmul.f32 %v1530, %v290
      %v1545 = vmul.f32 %v1530, %v294
      %v1546 = vmul.f32 %v1530, %v298
      %v1547 = vmul.f32 %v1530, %v302
      %v1548 = vmul.f32 %v1530, %v306
      %v1549 = vmul.f32 %v1530, %v310
      %v1550 = vmul.f32 %v1530, %v314
      %v1551 = vmul.f32 %v1530, %v397
      %v1552 = vmul.f32 %v1534, %v290
      %v1553 = vmul.f32 %v1534, %v294
      %v1554 = vmul.f32 %v1534, %v298
      %v1555 = vmul.f32 %v1534, %v302
      %v1556 = vmul.f32 %v1534, %v306
      %v1557 = vmul.f32 %v1534, %v310
      %v1558 = vmul.f32 %v1534, %v314
      %v1559 = vmul.f32 %v1534, %v397
      %v1560 = vmul.f32 %v1538, %v290
      %v1561 = vmul.f32 %v1538, %v294
      %v1562 = vmul.f32 %v1538, %v298
      %v1563 = vmul.f32 %v1538, %v302
      %v1564 = vmul.f32 %v1538, %v306
      %v1565 = vmul.f32 %v1538, %v310
      %v1566 = vmul.f32 %v1538, %v314
      %v1567 = vmul.f32 %v1538, %v397
      %v1568 = vmul.f32 %v1542, %v290
      %v1569 = vmul.f32 %v1542, %v294
      %v1570 = vmul.f32 %v1542, %v298
      %v1571 = vmul.f32 %v1542, %v302
      %v1572 = vmul.f32 %v1542, %v306
      %v1573 = vmul.f32 %v1542, %v310
      %v1574 = vmul.f32 %v1542, %v314
      %v1575 = vmul.f32 %v1542, %v397
      %1608 = vrot.lane.b32.xlu0 %v1544, 64
      %v1609 = vpop.permute.xlu0 %1608
      %1610 = vrot.lane.b32.xlu0 %v1545, 64
      %v1611 = vpop.permute.xlu0 %1610
      %1612 = vrot.lane.b32.xlu0 %v1546, 64
      %v1613 = vpop.permute.xlu0 %1612
      %1614 = vrot.lane.b32.xlu0 %v1547, 64
      %v1615 = vpop.permute.xlu0 %1614
      %1616 = vrot.lane.b32.xlu0 %v1548, 64
      %v1617 = vpop.permute.xlu0 %1616
      %1618 = vrot.lane.b32.xlu0 %v1549, 64
      %v1619 = vpop.permute.xlu0 %1618
      %1620 = vrot.lane.b32.xlu0 %v1550, 64
      %v1621 = vpop.permute.xlu0 %1620
      %1622 = vrot.lane.b32.xlu0 %v1551, 64
      %v1623 = vpop.permute.xlu0 %1622
      %1624 = vrot.lane.b32.xlu0 %v1552, 64
      %v1625 = vpop.permute.xlu0 %1624
      %1626 = vrot.lane.b32.xlu0 %v1553, 64
      %v1627 = vpop.permute.xlu0 %1626
      %1628 = vrot.lane.b32.xlu0 %v1554, 64
      %v1629 = vpop.permute.xlu0 %1628
      %1630 = vrot.lane.b32.xlu0 %v1555, 64
      %v1631 = vpop.permute.xlu0 %1630
      %1632 = vrot.lane.b32.xlu0 %v1556, 64
      %v1633 = vpop.permute.xlu0 %1632
      %1634 = vrot.lane.b32.xlu0 %v1557, 64
      %v1635 = vpop.permute.xlu0 %1634
      %1636 = vrot.lane.b32.xlu0 %v1558, 64
      %v1637 = vpop.permute.xlu0 %1636
      %1638 = vrot.lane.b32.xlu0 %v1559, 64
      %v1639 = vpop.permute.xlu0 %1638
      %1640 = vrot.lane.b32.xlu0 %v1560, 64
      %v1641 = vpop.permute.xlu0 %1640
      %1642 = vrot.lane.b32.xlu0 %v1561, 64
      %v1643 = vpop.permute.xlu0 %1642
      %1644 = vrot.lane.b32.xlu0 %v1562, 64
      %v1645 = vpop.permute.xlu0 %1644
      %1646 = vrot.lane.b32.xlu0 %v1563, 64
      %v1647 = vpop.permute.xlu0 %1646
      %1648 = vrot.lane.b32.xlu0 %v1564, 64
      %v1649 = vpop.permute.xlu0 %1648
      %1650 = vrot.lane.b32.xlu0 %v1565, 64
      %v1651 = vpop.permute.xlu0 %1650
      %1652 = vrot.lane.b32.xlu0 %v1566, 64
      %v1653 = vpop.permute.xlu0 %1652
      %1654 = vrot.lane.b32.xlu0 %v1567, 64
      %v1655 = vpop.permute.xlu0 %1654
      %1656 = vrot.lane.b32.xlu0 %v1568, 64
      %v1657 = vpop.permute.xlu0 %1656
      %1658 = vrot.lane.b32.xlu0 %v1569, 64
      %v1659 = vpop.permute.xlu0 %1658
      %1660 = vrot.lane.b32.xlu0 %v1570, 64
      %v1661 = vpop.permute.xlu0 %1660
      %1662 = vrot.lane.b32.xlu0 %v1571, 64
      %v1663 = vpop.permute.xlu0 %1662
      %1664 = vrot.lane.b32.xlu0 %v1572, 64
      %v1665 = vpop.permute.xlu0 %1664
      %1666 = vrot.lane.b32.xlu0 %v1573, 64
      %v1667 = vpop.permute.xlu0 %1666
      %1668 = vrot.lane.b32.xlu0 %v1574, 64
      %v1669 = vpop.permute.xlu0 %1668
      %1670 = vrot.lane.b32.xlu0 %v1575, 64
      %v1671 = vpop.permute.xlu0 %1670
      %vm1672 = vcmask 523264
      %v1673 = vsel %vm1672, %v1609, %v1611
      %v1674 = vsel %vm1672, %v1611, %v1613
      %v1675 = vsel %vm1672, %v1613, %v1615
      %v1676 = vsel %vm1672, %v1615, %v1617
      %v1677 = vsel %vm1672, %v1617, %v1619
      %v1678 = vsel %vm1672, %v1619, %v1621
      %v1679 = vsel %vm1672, %v1621, %v1623
      %v1680 = vsel %vm1672, %v1625, %v1627
      %v1681 = vsel %vm1672, %v1627, %v1629
      %v1682 = vsel %vm1672, %v1629, %v1631
      %v1683 = vsel %vm1672, %v1631, %v1633
      %v1684 = vsel %vm1672, %v1633, %v1635
      %v1685 = vsel %vm1672, %v1635, %v1637
      %v1686 = vsel %vm1672, %v1637, %v1639
      %v1687 = vsel %vm1672, %v1641, %v1643
      %v1688 = vsel %vm1672, %v1643, %v1645
      %v1689 = vsel %vm1672, %v1645, %v1647
      %v1690 = vsel %vm1672, %v1647, %v1649
      %v1691 = vsel %vm1672, %v1649, %v1651
      %v1692 = vsel %vm1672, %v1651, %v1653
      %v1693 = vsel %vm1672, %v1653, %v1655
      %v1694 = vsel %vm1672, %v1657, %v1659
      %v1695 = vsel %vm1672, %v1659, %v1661
      %v1696 = vsel %vm1672, %v1661, %v1663
      %v1697 = vsel %vm1672, %v1663, %v1665
      %v1698 = vsel %vm1672, %v1665, %v1667
      %v1699 = vsel %vm1672, %v1667, %v1669
      %v1700 = vsel %vm1672, %v1669, %v1671
      %v1729 = vadd.f32 %v1500, %v1673
      %v1730 = vadd.f32 %v1501, %v1674
      %v1731 = vadd.f32 %v1502, %v1675
      %v1732 = vadd.f32 %v1503, %v1676
      %v1733 = vadd.f32 %v1504, %v1677
      %v1734 = vadd.f32 %v1505, %v1678
      %v1735 = vadd.f32 %v1506, %v1679
      %v1736 = vadd.f32 %v1507, %v1680
      %v1737 = vadd.f32 %v1508, %v1681
      %v1738 = vadd.f32 %v1509, %v1682
      %v1739 = vadd.f32 %v1510, %v1683
      %v1740 = vadd.f32 %v1511, %v1684
      %v1741 = vadd.f32 %v1512, %v1685
      %v1742 = vadd.f32 %v1513, %v1686
      %v1743 = vadd.f32 %v1514, %v1687
      %v1744 = vadd.f32 %v1515, %v1688
      %v1745 = vadd.f32 %v1516, %v1689
      %v1746 = vadd.f32 %v1517, %v1690
      %v1747 = vadd.f32 %v1518, %v1691
      %v1748 = vadd.f32 %v1519, %v1692
      %v1749 = vadd.f32 %v1520, %v1693
      %v1750 = vadd.f32 %v1521, %v1694
      %v1751 = vadd.f32 %v1522, %v1695
      %v1752 = vadd.f32 %v1523, %v1696
      %v1753 = vadd.f32 %v1524, %v1697
      %v1754 = vadd.f32 %v1525, %v1698
      %v1755 = vadd.f32 %v1526, %v1699
      %v1756 = vadd.f32 %v1527, %v1700
      %1757 = vset.pattern.permute.xlu0 7
      %1758 = vperm.xlu0 %1757, %v41
      %v1759 = vpop.permute.xlu0 %1758
      %1761 = vset.pattern.permute.xlu0 7
      %1762 = vperm.xlu0 %1761, %v42
      %v1763 = vpop.permute.xlu0 %1762
      %1765 = vset.pattern.permute.xlu0 7
      %1766 = vperm.xlu0 %1765, %v43
      %v1767 = vpop.permute.xlu0 %1766
      %1769 = vset.pattern.permute.xlu0 7
      %1770 = vperm.xlu0 %1769, %v44
      %v1771 = vpop.permute.xlu0 %1770
      %v1773 = vmul.f32 %v1759, %v290
      %v1774 = vmul.f32 %v1759, %v294
      %v1775 = vmul.f32 %v1759, %v298
      %v1776 = vmul.f32 %v1759, %v302
      %v1777 = vmul.f32 %v1759, %v306
      %v1778 = vmul.f32 %v1759, %v310
      %v1779 = vmul.f32 %v1759, %v314
      %v1780 = vmul.f32 %v1759, %v397
      %v1781 = vmul.f32 %v1763, %v290
      %v1782 = vmul.f32 %v1763, %v294
      %v1783 = vmul.f32 %v1763, %v298
      %v1784 = vmul.f32 %v1763, %v302
      %v1785 = vmul.f32 %v1763, %v306
      %v1786 = vmul.f32 %v1763, %v310
      %v1787 = vmul.f32 %v1763, %v314
      %v1788 = vmul.f32 %v1763, %v397
      %v1789 = vmul.f32 %v1767, %v290
      %v1790 = vmul.f32 %v1767, %v294
      %v1791 = vmul.f32 %v1767, %v298
      %v1792 = vmul.f32 %v1767, %v302
      %v1793 = vmul.f32 %v1767, %v306
      %v1794 = vmul.f32 %v1767, %v310
      %v1795 = vmul.f32 %v1767, %v314
      %v1796 = vmul.f32 %v1767, %v397
      %v1797 = vmul.f32 %v1771, %v290
      %v1798 = vmul.f32 %v1771, %v294
      %v1799 = vmul.f32 %v1771, %v298
      %v1800 = vmul.f32 %v1771, %v302
      %v1801 = vmul.f32 %v1771, %v306
      %v1802 = vmul.f32 %v1771, %v310
      %v1803 = vmul.f32 %v1771, %v314
      %v1804 = vmul.f32 %v1771, %v397
      %1837 = vrot.lane.b32.xlu0 %v1773, 63
      %v1838 = vpop.permute.xlu0 %1837
      %1839 = vrot.lane.b32.xlu0 %v1774, 63
      %v1840 = vpop.permute.xlu0 %1839
      %1841 = vrot.lane.b32.xlu0 %v1775, 63
      %v1842 = vpop.permute.xlu0 %1841
      %1843 = vrot.lane.b32.xlu0 %v1776, 63
      %v1844 = vpop.permute.xlu0 %1843
      %1845 = vrot.lane.b32.xlu0 %v1777, 63
      %v1846 = vpop.permute.xlu0 %1845
      %1847 = vrot.lane.b32.xlu0 %v1778, 63
      %v1848 = vpop.permute.xlu0 %1847
      %1849 = vrot.lane.b32.xlu0 %v1779, 63
      %v1850 = vpop.permute.xlu0 %1849
      %1851 = vrot.lane.b32.xlu0 %v1780, 63
      %v1852 = vpop.permute.xlu0 %1851
      %1853 = vrot.lane.b32.xlu0 %v1781, 63
      %v1854 = vpop.permute.xlu0 %1853
      %1855 = vrot.lane.b32.xlu0 %v1782, 63
      %v1856 = vpop.permute.xlu0 %1855
      %1857 = vrot.lane.b32.xlu0 %v1783, 63
      %v1858 = vpop.permute.xlu0 %1857
      %1859 = vrot.lane.b32.xlu0 %v1784, 63
      %v1860 = vpop.permute.xlu0 %1859
      %1861 = vrot.lane.b32.xlu0 %v1785, 63
      %v1862 = vpop.permute.xlu0 %1861
      %1863 = vrot.lane.b32.xlu0 %v1786, 63
      %v1864 = vpop.permute.xlu0 %1863
      %1865 = vrot.lane.b32.xlu0 %v1787, 63
      %v1866 = vpop.permute.xlu0 %1865
      %1867 = vrot.lane.b32.xlu0 %v1788, 63
      %v1868 = vpop.permute.xlu0 %1867
      %1869 = vrot.lane.b32.xlu0 %v1789, 63
      %v1870 = vpop.permute.xlu0 %1869
      %1871 = vrot.lane.b32.xlu0 %v1790, 63
      %v1872 = vpop.permute.xlu0 %1871
      %1873 = vrot.lane.b32.xlu0 %v1791, 63
      %v1874 = vpop.permute.xlu0 %1873
      %1875 = vrot.lane.b32.xlu0 %v1792, 63
      %v1876 = vpop.permute.xlu0 %1875
      %1877 = vrot.lane.b32.xlu0 %v1793, 63
      %v1878 = vpop.permute.xlu0 %1877
      %1879 = vrot.lane.b32.xlu0 %v1794, 63
      %v1880 = vpop.permute.xlu0 %1879
      %1881 = vrot.lane.b32.xlu0 %v1795, 63
      %v1882 = vpop.permute.xlu0 %1881
      %1883 = vrot.lane.b32.xlu0 %v1796, 63
      %v1884 = vpop.permute.xlu0 %1883
      %1885 = vrot.lane.b32.xlu0 %v1797, 63
      %v1886 = vpop.permute.xlu0 %1885
      %1887 = vrot.lane.b32.xlu0 %v1798, 63
      %v1888 = vpop.permute.xlu0 %1887
      %1889 = vrot.lane.b32.xlu0 %v1799, 63
      %v1890 = vpop.permute.xlu0 %1889
      %1891 = vrot.lane.b32.xlu0 %v1800, 63
      %v1892 = vpop.permute.xlu0 %1891
      %1893 = vrot.lane.b32.xlu0 %v1801, 63
      %v1894 = vpop.permute.xlu0 %1893
      %1895 = vrot.lane.b32.xlu0 %v1802, 63
      %v1896 = vpop.permute.xlu0 %1895
      %1897 = vrot.lane.b32.xlu0 %v1803, 63
      %v1898 = vpop.permute.xlu0 %1897
      %1899 = vrot.lane.b32.xlu0 %v1804, 63
      %v1900 = vpop.permute.xlu0 %1899
      %vm1901 = vcmask 515072
      %v1902 = vsel %vm1901, %v1838, %v1840
      %v1903 = vsel %vm1901, %v1840, %v1842
      %v1904 = vsel %vm1901, %v1842, %v1844
      %v1905 = vsel %vm1901, %v1844, %v1846
      %v1906 = vsel %vm1901, %v1846, %v1848
      %v1907 = vsel %vm1901, %v1848, %v1850
      %v1908 = vsel %vm1901, %v1850, %v1852
      %v1909 = vsel %vm1901, %v1854, %v1856
      %v1910 = vsel %vm1901, %v1856, %v1858
      %v1911 = vsel %vm1901, %v1858, %v1860
      %v1912 = vsel %vm1901, %v1860, %v1862
      %v1913 = vsel %vm1901, %v1862, %v1864
      %v1914 = vsel %vm1901, %v1864, %v1866
      %v1915 = vsel %vm1901, %v1866, %v1868
      %v1916 = vsel %vm1901, %v1870, %v1872
      %v1917 = vsel %vm1901, %v1872, %v1874
      %v1918 = vsel %vm1901, %v1874, %v1876
      %v1919 = vsel %vm1901, %v1876, %v1878
      %v1920 = vsel %vm1901, %v1878, %v1880
      %v1921 = vsel %vm1901, %v1880, %v1882
      %v1922 = vsel %vm1901, %v1882, %v1884
      %v1923 = vsel %vm1901, %v1886, %v1888
      %v1924 = vsel %vm1901, %v1888, %v1890
      %v1925 = vsel %vm1901, %v1890, %v1892
      %v1926 = vsel %vm1901, %v1892, %v1894
      %v1927 = vsel %vm1901, %v1894, %v1896
      %v1928 = vsel %vm1901, %v1896, %v1898
      %v1929 = vsel %vm1901, %v1898, %v1900
      %v1958 = vadd.f32 %v1729, %v1902
      %v1959 = vadd.f32 %v1730, %v1903
      %v1960 = vadd.f32 %v1731, %v1904
      %v1961 = vadd.f32 %v1732, %v1905
      %v1962 = vadd.f32 %v1733, %v1906
      %v1963 = vadd.f32 %v1734, %v1907
      %v1964 = vadd.f32 %v1735, %v1908
      %v1965 = vadd.f32 %v1736, %v1909
      %v1966 = vadd.f32 %v1737, %v1910
      %v1967 = vadd.f32 %v1738, %v1911
      %v1968 = vadd.f32 %v1739, %v1912
      %v1969 = vadd.f32 %v1740, %v1913
      %v1970 = vadd.f32 %v1741, %v1914
      %v1971 = vadd.f32 %v1742, %v1915
      %v1972 = vadd.f32 %v1743, %v1916
      %v1973 = vadd.f32 %v1744, %v1917
      %v1974 = vadd.f32 %v1745, %v1918
      %v1975 = vadd.f32 %v1746, %v1919
      %v1976 = vadd.f32 %v1747, %v1920
      %v1977 = vadd.f32 %v1748, %v1921
      %v1978 = vadd.f32 %v1749, %v1922
      %v1979 = vadd.f32 %v1750, %v1923
      %v1980 = vadd.f32 %v1751, %v1924
      %v1981 = vadd.f32 %v1752, %v1925
      %v1982 = vadd.f32 %v1753, %v1926
      %v1983 = vadd.f32 %v1754, %v1927
      %v1984 = vadd.f32 %v1755, %v1928
      %v1985 = vadd.f32 %v1756, %v1929
      %1986 = vset.pattern.permute.xlu0 8
      %1987 = vperm.xlu0 %1986, %v41
      %v1988 = vpop.permute.xlu0 %1987
      %1990 = vset.pattern.permute.xlu0 8
      %1991 = vperm.xlu0 %1990, %v42
      %v1992 = vpop.permute.xlu0 %1991
      %1994 = vset.pattern.permute.xlu0 8
      %1995 = vperm.xlu0 %1994, %v43
      %v1996 = vpop.permute.xlu0 %1995
      %1998 = vset.pattern.permute.xlu0 8
      %1999 = vperm.xlu0 %1998, %v44
      %v2000 = vpop.permute.xlu0 %1999
      %v2002 = vmul.f32 %v1988, %v290
      %v2003 = vmul.f32 %v1988, %v294
      %v2004 = vmul.f32 %v1988, %v298
      %v2005 = vmul.f32 %v1988, %v302
      %v2006 = vmul.f32 %v1988, %v306
      %v2007 = vmul.f32 %v1988, %v310
      %v2008 = vmul.f32 %v1988, %v314
      %v2009 = vmul.f32 %v1988, %v397
      %v2010 = vmul.f32 %v1992, %v290
      %v2011 = vmul.f32 %v1992, %v294
      %v2012 = vmul.f32 %v1992, %v298
      %v2013 = vmul.f32 %v1992, %v302
      %v2014 = vmul.f32 %v1992, %v306
      %v2015 = vmul.f32 %v1992, %v310
      %v2016 = vmul.f32 %v1992, %v314
      %v2017 = vmul.f32 %v1992, %v397
      %v2018 = vmul.f32 %v1996, %v290
      %v2019 = vmul.f32 %v1996, %v294
      %v2020 = vmul.f32 %v1996, %v298
      %v2021 = vmul.f32 %v1996, %v302
      %v2022 = vmul.f32 %v1996, %v306
      %v2023 = vmul.f32 %v1996, %v310
      %v2024 = vmul.f32 %v1996, %v314
      %v2025 = vmul.f32 %v1996, %v397
      %v2026 = vmul.f32 %v2000, %v290
      %v2027 = vmul.f32 %v2000, %v294
      %v2028 = vmul.f32 %v2000, %v298
      %v2029 = vmul.f32 %v2000, %v302
      %v2030 = vmul.f32 %v2000, %v306
      %v2031 = vmul.f32 %v2000, %v310
      %v2032 = vmul.f32 %v2000, %v314
      %v2033 = vmul.f32 %v2000, %v397
      %2066 = vrot.lane.b32.xlu0 %v2002, 62
      %v2067 = vpop.permute.xlu0 %2066
      %2068 = vrot.lane.b32.xlu0 %v2003, 62
      %v2069 = vpop.permute.xlu0 %2068
      %2070 = vrot.lane.b32.xlu0 %v2004, 62
      %v2071 = vpop.permute.xlu0 %2070
      %2072 = vrot.lane.b32.xlu0 %v2005, 62
      %v2073 = vpop.permute.xlu0 %2072
      %2074 = vrot.lane.b32.xlu0 %v2006, 62
      %v2075 = vpop.permute.xlu0 %2074
      %2076 = vrot.lane.b32.xlu0 %v2007, 62
      %v2077 = vpop.permute.xlu0 %2076
      %2078 = vrot.lane.b32.xlu0 %v2008, 62
      %v2079 = vpop.permute.xlu0 %2078
      %2080 = vrot.lane.b32.xlu0 %v2009, 62
      %v2081 = vpop.permute.xlu0 %2080
      %2082 = vrot.lane.b32.xlu0 %v2010, 62
      %v2083 = vpop.permute.xlu0 %2082
      %2084 = vrot.lane.b32.xlu0 %v2011, 62
      %v2085 = vpop.permute.xlu0 %2084
      %2086 = vrot.lane.b32.xlu0 %v2012, 62
      %v2087 = vpop.permute.xlu0 %2086
      %2088 = vrot.lane.b32.xlu0 %v2013, 62
      %v2089 = vpop.permute.xlu0 %2088
      %2090 = vrot.lane.b32.xlu0 %v2014, 62
      %v2091 = vpop.permute.xlu0 %2090
      %2092 = vrot.lane.b32.xlu0 %v2015, 62
      %v2093 = vpop.permute.xlu0 %2092
      %2094 = vrot.lane.b32.xlu0 %v2016, 62
      %v2095 = vpop.permute.xlu0 %2094
      %2096 = vrot.lane.b32.xlu0 %v2017, 62
      %v2097 = vpop.permute.xlu0 %2096
      %2098 = vrot.lane.b32.xlu0 %v2018, 62
      %v2099 = vpop.permute.xlu0 %2098
      %2100 = vrot.lane.b32.xlu0 %v2019, 62
      %v2101 = vpop.permute.xlu0 %2100
      %2102 = vrot.lane.b32.xlu0 %v2020, 62
      %v2103 = vpop.permute.xlu0 %2102
      %2104 = vrot.lane.b32.xlu0 %v2021, 62
      %v2105 = vpop.permute.xlu0 %2104
      %2106 = vrot.lane.b32.xlu0 %v2022, 62
      %v2107 = vpop.permute.xlu0 %2106
      %2108 = vrot.lane.b32.xlu0 %v2023, 62
      %v2109 = vpop.permute.xlu0 %2108
      %2110 = vrot.lane.b32.xlu0 %v2024, 62
      %v2111 = vpop.permute.xlu0 %2110
      %2112 = vrot.lane.b32.xlu0 %v2025, 62
      %v2113 = vpop.permute.xlu0 %2112
      %2114 = vrot.lane.b32.xlu0 %v2026, 62
      %v2115 = vpop.permute.xlu0 %2114
      %2116 = vrot.lane.b32.xlu0 %v2027, 62
      %v2117 = vpop.permute.xlu0 %2116
      %2118 = vrot.lane.b32.xlu0 %v2028, 62
      %v2119 = vpop.permute.xlu0 %2118
      %2120 = vrot.lane.b32.xlu0 %v2029, 62
      %v2121 = vpop.permute.xlu0 %2120
      %2122 = vrot.lane.b32.xlu0 %v2030, 62
      %v2123 = vpop.permute.xlu0 %2122
      %2124 = vrot.lane.b32.xlu0 %v2031, 62
      %v2125 = vpop.permute.xlu0 %2124
      %2126 = vrot.lane.b32.xlu0 %v2032, 62
      %v2127 = vpop.permute.xlu0 %2126
      %2128 = vrot.lane.b32.xlu0 %v2033, 62
      %v2129 = vpop.permute.xlu0 %2128
      %vm2130 = vcmask 506880
      %v2131 = vsel %vm2130, %v2067, %v2069
      %v2132 = vsel %vm2130, %v2069, %v2071
      %v2133 = vsel %vm2130, %v2071, %v2073
      %v2134 = vsel %vm2130, %v2073, %v2075
      %v2135 = vsel %vm2130, %v2075, %v2077
      %v2136 = vsel %vm2130, %v2077, %v2079
      %v2137 = vsel %vm2130, %v2079, %v2081
      %v2138 = vsel %vm2130, %v2083, %v2085
      %v2139 = vsel %vm2130, %v2085, %v2087
      %v2140 = vsel %vm2130, %v2087, %v2089
      %v2141 = vsel %vm2130, %v2089, %v2091
      %v2142 = vsel %vm2130, %v2091, %v2093
      %v2143 = vsel %vm2130, %v2093, %v2095
      %v2144 = vsel %vm2130, %v2095, %v2097
      %v2145 = vsel %vm2130, %v2099, %v2101
      %v2146 = vsel %vm2130, %v2101, %v2103
      %v2147 = vsel %vm2130, %v2103, %v2105
      %v2148 = vsel %vm2130, %v2105, %v2107
      %v2149 = vsel %vm2130, %v2107, %v2109
      %v2150 = vsel %vm2130, %v2109, %v2111
      %v2151 = vsel %vm2130, %v2111, %v2113
      %v2152 = vsel %vm2130, %v2115, %v2117
      %v2153 = vsel %vm2130, %v2117, %v2119
      %v2154 = vsel %vm2130, %v2119, %v2121
      %v2155 = vsel %vm2130, %v2121, %v2123
      %v2156 = vsel %vm2130, %v2123, %v2125
      %v2157 = vsel %vm2130, %v2125, %v2127
      %v2158 = vsel %vm2130, %v2127, %v2129
      %v2187 = vadd.f32 %v1958, %v2131
      %v2188 = vadd.f32 %v1959, %v2132
      %v2189 = vadd.f32 %v1960, %v2133
      %v2190 = vadd.f32 %v1961, %v2134
      %v2191 = vadd.f32 %v1962, %v2135
      %v2192 = vadd.f32 %v1963, %v2136
      %v2193 = vadd.f32 %v1964, %v2137
      %v2194 = vadd.f32 %v1965, %v2138
      %v2195 = vadd.f32 %v1966, %v2139
      %v2196 = vadd.f32 %v1967, %v2140
      %v2197 = vadd.f32 %v1968, %v2141
      %v2198 = vadd.f32 %v1969, %v2142
      %v2199 = vadd.f32 %v1970, %v2143
      %v2200 = vadd.f32 %v1971, %v2144
      %v2201 = vadd.f32 %v1972, %v2145
      %v2202 = vadd.f32 %v1973, %v2146
      %v2203 = vadd.f32 %v1974, %v2147
      %v2204 = vadd.f32 %v1975, %v2148
      %v2205 = vadd.f32 %v1976, %v2149
      %v2206 = vadd.f32 %v1977, %v2150
      %v2207 = vadd.f32 %v1978, %v2151
      %v2208 = vadd.f32 %v1979, %v2152
      %v2209 = vadd.f32 %v1980, %v2153
      %v2210 = vadd.f32 %v1981, %v2154
      %v2211 = vadd.f32 %v1982, %v2155
      %v2212 = vadd.f32 %v1983, %v2156
      %v2213 = vadd.f32 %v1984, %v2157
      %v2214 = vadd.f32 %v1985, %v2158
      %2216 = vset.pattern.permute.xlu0 0
      %2217 = vperm.xlu0 %2216, %v45
      %v2218 = vpop.permute.xlu0 %2217
      %2221 = vset.pattern.permute.xlu0 0
      %2222 = vperm.xlu0 %2221, %v46
      %v2223 = vpop.permute.xlu0 %2222
      %2226 = vset.pattern.permute.xlu0 0
      %2227 = vperm.xlu0 %2226, %v47
      %v2228 = vpop.permute.xlu0 %2227
      %2231 = vset.pattern.permute.xlu0 0
      %2232 = vperm.xlu0 %2231, %v48
      %v2233 = vpop.permute.xlu0 %2232
      %v2235 = vadd.f32 %v2187, %v2218
      %v2236 = vadd.f32 %v2188, %v2218
      %v2237 = vadd.f32 %v2189, %v2218
      %v2238 = vadd.f32 %v2190, %v2218
      %v2239 = vadd.f32 %v2191, %v2218
      %v2240 = vadd.f32 %v2192, %v2218
      %v2241 = vadd.f32 %v2193, %v2218
      %v2242 = vadd.f32 %v2194, %v2223
      %v2243 = vadd.f32 %v2195, %v2223
      %v2244 = vadd.f32 %v2196, %v2223
      %v2245 = vadd.f32 %v2197, %v2223
      %v2246 = vadd.f32 %v2198, %v2223
      %v2247 = vadd.f32 %v2199, %v2223
      %v2248 = vadd.f32 %v2200, %v2223
      %v2249 = vadd.f32 %v2201, %v2228
      %v2250 = vadd.f32 %v2202, %v2228
      %v2251 = vadd.f32 %v2203, %v2228
      %v2252 = vadd.f32 %v2204, %v2228
      %v2253 = vadd.f32 %v2205, %v2228
      %v2254 = vadd.f32 %v2206, %v2228
      %v2255 = vadd.f32 %v2207, %v2228
      %v2256 = vadd.f32 %v2208, %v2233
      %v2257 = vadd.f32 %v2209, %v2233
      %v2258 = vadd.f32 %v2210, %v2233
      %v2259 = vadd.f32 %v2211, %v2233
      %v2260 = vadd.f32 %v2212, %v2233
      %v2261 = vadd.f32 %v2213, %v2233
      %v2262 = vadd.f32 %v2214, %v2233
      %v2263 = vmax.f32 %v2235, 0.0
      %v2264 = vmax.f32 %v2236, 0.0
      %v2265 = vmax.f32 %v2237, 0.0
      %v2266 = vmax.f32 %v2238, 0.0
      %v2267 = vmax.f32 %v2239, 0.0
      %v2268 = vmax.f32 %v2240, 0.0
      %v2269 = vmax.f32 %v2241, 0.0
      %v2270 = vmax.f32 %v2242, 0.0
      %v2271 = vmax.f32 %v2243, 0.0
      %v2272 = vmax.f32 %v2244, 0.0
      %v2273 = vmax.f32 %v2245, 0.0
      %v2274 = vmax.f32 %v2246, 0.0
      %v2275 = vmax.f32 %v2247, 0.0
      %v2276 = vmax.f32 %v2248, 0.0
      %v2277 = vmax.f32 %v2249, 0.0
      %v2278 = vmax.f32 %v2250, 0.0
      %v2279 = vmax.f32 %v2251, 0.0
      %v2280 = vmax.f32 %v2252, 0.0
      %v2281 = vmax.f32 %v2253, 0.0
      %v2282 = vmax.f32 %v2254, 0.0
      %v2283 = vmax.f32 %v2255, 0.0
      %v2284 = vmax.f32 %v2256, 0.0
      %v2285 = vmax.f32 %v2257, 0.0
      %v2286 = vmax.f32 %v2258, 0.0
      %v2287 = vmax.f32 %v2259, 0.0
      %v2288 = vmax.f32 %v2260, 0.0
      %v2289 = vmax.f32 %v2261, 0.0
      %v2290 = vmax.f32 %v2262, 0.0
      %v2291 = vpack.c.bf16 %v2270, %v2263
      %v2292 = vpack.c.bf16 %v2271, %v2264
      %v2293 = vpack.c.bf16 %v2272, %v2265
      %v2294 = vpack.c.bf16 %v2273, %v2266
      %v2295 = vpack.c.bf16 %v2274, %v2267
      %v2296 = vpack.c.bf16 %v2275, %v2268
      %v2297 = vpack.c.bf16 %v2276, %v2269
      %v2298 = vpack.c.bf16 %v2284, %v2277
      %v2299 = vpack.c.bf16 %v2285, %v2278
      %v2300 = vpack.c.bf16 %v2286, %v2279
      %v2301 = vpack.c.bf16 %v2287, %v2280
      %v2302 = vpack.c.bf16 %v2288, %v2281
      %v2303 = vpack.c.bf16 %v2289, %v2282
      %v2304 = vpack.c.bf16 %v2290, %v2283
      %v2319 = vunpack.c.l.b16 %v2291
      %v2320 = vunpack.c.l.b16 %v2292
      %v2321 = vunpack.c.l.b16 %v2293
      %v2322 = vunpack.c.l.b16 %v2294
      %v2323 = vunpack.c.l.b16 %v2295
      %v2324 = vunpack.c.l.b16 %v2296
      %v2325 = vunpack.c.l.b16 %v2297
      %v2326 = vunpack.c.h.b16 %v2291
      %v2327 = vunpack.c.h.b16 %v2292
      %v2328 = vunpack.c.h.b16 %v2293
      %v2329 = vunpack.c.h.b16 %v2294
      %v2330 = vunpack.c.h.b16 %v2295
      %v2331 = vunpack.c.h.b16 %v2296
      %v2332 = vunpack.c.h.b16 %v2297
      %v2333 = vunpack.c.l.b16 %v2298
      %v2334 = vunpack.c.l.b16 %v2299
      %v2335 = vunpack.c.l.b16 %v2300
      %v2336 = vunpack.c.l.b16 %v2301
      %v2337 = vunpack.c.l.b16 %v2302
      %v2338 = vunpack.c.l.b16 %v2303
      %v2339 = vunpack.c.l.b16 %v2304
      %v2340 = vunpack.c.h.b16 %v2298
      %v2341 = vunpack.c.h.b16 %v2299
      %v2342 = vunpack.c.h.b16 %v2300
      %v2343 = vunpack.c.h.b16 %v2301
      %v2344 = vunpack.c.h.b16 %v2302
      %v2345 = vunpack.c.h.b16 %v2303
      %v2346 = vunpack.c.h.b16 %v2304
      %v2347 = vpack.c.b16 %v2320, %v2319
      %v2348 = vpack.c.b16 %v2322, %v2321
      %v2349 = vpack.c.b16 %v2324, %v2323
      %v2350 = vpack.c.b16 %v2325, %v2325
      %v2351 = vpack.c.b16 %v2327, %v2326
      %v2352 = vpack.c.b16 %v2329, %v2328
      %v2353 = vpack.c.b16 %v2331, %v2330
      %v2354 = vpack.c.b16 %v2332, %v2332
      %v2355 = vpack.c.b16 %v2334, %v2333
      %v2356 = vpack.c.b16 %v2336, %v2335
      %v2357 = vpack.c.b16 %v2338, %v2337
      %v2358 = vpack.c.b16 %v2339, %v2339
      %v2359 = vpack.c.b16 %v2341, %v2340
      %v2360 = vpack.c.b16 %v2343, %v2342
      %v2361 = vpack.c.b16 %v2345, %v2344
      %v2362 = vpack.c.b16 %v2346, %v2346
      %2379 = vst [vmem:[#allocation2] sm:$0xff] %v2347
      %2380 = vst [vmem:[#allocation2 + $0x8] sm:$0xff] %v2348
      %2381 = vst [vmem:[#allocation2 + $0x10] sm:$0xff] %v2349
      %2382 = vst [vmem:[#allocation2 + $0x18] sm:$0xf] %v2350
      %2383 = vst [vmem:[#allocation2 + $0x1c] sm:$0xff] %v2351
      %2384 = vst [vmem:[#allocation2 + $0x24] sm:$0xff] %v2352
      %2385 = vst [vmem:[#allocation2 + $0x2c] sm:$0xff] %v2353
      %2386 = vst [vmem:[#allocation2 + $0x34] sm:$0xf] %v2354
      %2387 = vst [vmem:[#allocation2 + $0x38] sm:$0xff] %v2355
      %2388 = vst [vmem:[#allocation2 + $0x40] sm:$0xff] %v2356
      %2389 = vst [vmem:[#allocation2 + $0x48] sm:$0xff] %v2357
      %2390 = vst [vmem:[#allocation2 + $0x50] sm:$0xf] %v2358
      %2391 = vst [vmem:[#allocation2 + $0x54] sm:$0xff] %v2359
      %2392 = vst [vmem:[#allocation2 + $0x5c] sm:$0xff] %v2360
      %2393 = vst [vmem:[#allocation2 + $0x64] sm:$0xff] %v2361
      %2394 = vst [vmem:[#allocation2 + $0x6c] sm:$0xf] %v2362
      %v2395 = vld [vmem:[#allocation2] sm:$0xff]
      %v2396 = vld [vmem:[#allocation2 + $0x8] sm:$0xff]
      %v2397 = vld [vmem:[#allocation2 + $0x10] sm:$0xff]
      %v2398 = vld [vmem:[#allocation2 + $0x1c] sm:$0xff]
      %v2399 = vld [vmem:[#allocation2 + $0x24] sm:$0xff]
      %v2400 = vld [vmem:[#allocation2 + $0x2c] sm:$0xff]
      %v2401 = vld [vmem:[#allocation2 + $0x38] sm:$0xff]
      %v2402 = vld [vmem:[#allocation2 + $0x40] sm:$0xff]
      %v2403 = vld [vmem:[#allocation2 + $0x48] sm:$0xff]
      %v2404 = vld [vmem:[#allocation2 + $0x54] sm:$0xff]
      %v2405 = vld [vmem:[#allocation2 + $0x5c] sm:$0xff]
      %v2406 = vld [vmem:[#allocation2 + $0x64] sm:$0xff]
      %v2407 = vld [vmem:[#allocation2] sm:$0xff]
      %v2408 = vld [vmem:[#allocation2 + $0x8] sm:$0xff]
      %v2409 = vld [vmem:[#allocation2 + $0x10] sm:$0xff]
      %v2410 = vld [vmem:[#allocation2 + $0x18] sm:$0xf]
      %v2411 = vld [vmem:[#allocation2 + $0x1c] sm:$0xff]
      %v2412 = vld [vmem:[#allocation2 + $0x24] sm:$0xff]
      %v2413 = vld [vmem:[#allocation2 + $0x2c] sm:$0xff]
      %v2414 = vld [vmem:[#allocation2 + $0x34] sm:$0xf]
      %v2415 = vld [vmem:[#allocation2 + $0x38] sm:$0xff]
      %v2416 = vld [vmem:[#allocation2 + $0x40] sm:$0xff]
      %v2417 = vld [vmem:[#allocation2 + $0x48] sm:$0xff]
      %v2418 = vld [vmem:[#allocation2 + $0x50] sm:$0xf]
      %v2419 = vld [vmem:[#allocation2 + $0x54] sm:$0xff]
      %v2420 = vld [vmem:[#allocation2 + $0x5c] sm:$0xff]
      %v2421 = vld [vmem:[#allocation2 + $0x64] sm:$0xff]
      %v2422 = vld [vmem:[#allocation2 + $0x6c] sm:$0xf]
      %v2435 = vunpack.c.l.b16 %v2395
      %v2436 = vunpack.c.h.b16 %v2395
      %v2437 = vunpack.c.l.b16 %v2396
      %v2438 = vunpack.c.h.b16 %v2396
      %v2439 = vunpack.c.l.b16 %v2397
      %v2440 = vunpack.c.h.b16 %v2397
      %v2441 = vunpack.c.l.b16 %v2398
      %v2442 = vunpack.c.h.b16 %v2398
      %v2443 = vunpack.c.l.b16 %v2399
      %v2444 = vunpack.c.h.b16 %v2399
      %v2445 = vunpack.c.l.b16 %v2400
      %v2446 = vunpack.c.h.b16 %v2400
      %v2447 = vunpack.c.l.b16 %v2401
      %v2448 = vunpack.c.h.b16 %v2401
      %v2449 = vunpack.c.l.b16 %v2402
      %v2450 = vunpack.c.h.b16 %v2402
      %v2451 = vunpack.c.l.b16 %v2403
      %v2452 = vunpack.c.h.b16 %v2403
      %v2453 = vunpack.c.l.b16 %v2404
      %v2454 = vunpack.c.h.b16 %v2404
      %v2455 = vunpack.c.l.b16 %v2405
      %v2456 = vunpack.c.h.b16 %v2405
      %v2457 = vunpack.c.l.b16 %v2406
      %v2458 = vunpack.c.h.b16 %v2406
      %v2459 = vpack.c.b16 %v2441, %v2435
      %v2460 = vpack.c.b16 %v2442, %v2436
      %v2461 = vpack.c.b16 %v2443, %v2437
      %v2462 = vpack.c.b16 %v2444, %v2438
      %v2463 = vpack.c.b16 %v2445, %v2439
      %v2464 = vpack.c.b16 %v2446, %v2440
      %v2465 = vpack.c.b16 %v2453, %v2447
      %v2466 = vpack.c.b16 %v2454, %v2448
      %v2467 = vpack.c.b16 %v2455, %v2449
      %v2468 = vpack.c.b16 %v2456, %v2450
      %v2469 = vpack.c.b16 %v2457, %v2451
      %v2470 = vpack.c.b16 %v2458, %v2452
      %v2499 = vunpack.c.l.b16 %v2407
      %v2500 = vunpack.c.h.b16 %v2407
      %v2501 = vunpack.c.l.b16 %v2408
      %v2502 = vunpack.c.h.b16 %v2408
      %v2503 = vunpack.c.l.b16 %v2409
      %v2504 = vunpack.c.h.b16 %v2409
      %v2505 = vunpack.c.l.b16 %v2410
      %v2506 = vunpack.c.l.b16 %v2411
      %v2507 = vunpack.c.h.b16 %v2411
      %v2508 = vunpack.c.l.b16 %v2412
      %v2509 = vunpack.c.h.b16 %v2412
      %v2510 = vunpack.c.l.b16 %v2413
      %v2511 = vunpack.c.h.b16 %v2413
      %v2512 = vunpack.c.l.b16 %v2414
      %v2513 = vunpack.c.l.b16 %v2415
      %v2514 = vunpack.c.h.b16 %v2415
      %v2515 = vunpack.c.l.b16 %v2416
      %v2516 = vunpack.c.h.b16 %v2416
      %v2517 = vunpack.c.l.b16 %v2417
      %v2518 = vunpack.c.h.b16 %v2417
      %v2519 = vunpack.c.l.b16 %v2418
      %v2520 = vunpack.c.l.b16 %v2419
      %v2521 = vunpack.c.h.b16 %v2419
      %v2522 = vunpack.c.l.b16 %v2420
      %v2523 = vunpack.c.h.b16 %v2420
      %v2524 = vunpack.c.l.b16 %v2421
      %v2525 = vunpack.c.h.b16 %v2421
      %v2526 = vunpack.c.l.b16 %v2422
      %v2527 = vpack.c.b16 %v2506, %v2499
      %v2528 = vpack.c.b16 %v2507, %v2500
      %v2529 = vpack.c.b16 %v2508, %v2501
      %v2530 = vpack.c.b16 %v2509, %v2502
      %v2531 = vpack.c.b16 %v2510, %v2503
      %v2532 = vpack.c.b16 %v2511, %v2504
      %v2533 = vpack.c.b16 %v2512, %v2505
      %v2534 = vpack.c.b16 %v2520, %v2513
      %v2535 = vpack.c.b16 %v2521, %v2514
      %v2536 = vpack.c.b16 %v2522, %v2515
      %v2537 = vpack.c.b16 %v2523, %v2516
      %v2538 = vpack.c.b16 %v2524, %v2517
      %v2539 = vpack.c.b16 %v2525, %v2518
      %v2540 = vpack.c.b16 %v2526, %v2519
      %2541 = vrot.lane.b32.xlu0 %v2527, 127
      %v2542 = vpop.permute.xlu0 %2541
      %2543 = vrot.lane.b32.xlu0 %v2528, 127
      %v2544 = vpop.permute.xlu0 %2543
      %2545 = vrot.lane.b32.xlu0 %v2529, 127
      %v2546 = vpop.permute.xlu0 %2545
      %2547 = vrot.lane.b32.xlu0 %v2530, 127
      %v2548 = vpop.permute.xlu0 %2547
      %2549 = vrot.lane.b32.xlu0 %v2531, 127
      %v2550 = vpop.permute.xlu0 %2549
      %2551 = vrot.lane.b32.xlu0 %v2532, 127
      %v2552 = vpop.permute.xlu0 %2551
      %2553 = vrot.lane.b32.xlu0 %v2533, 127
      %v2554 = vpop.permute.xlu0 %2553
      %2555 = vrot.lane.b32.xlu0 %v2534, 127
      %v2556 = vpop.permute.xlu0 %2555
      %2557 = vrot.lane.b32.xlu0 %v2535, 127
      %v2558 = vpop.permute.xlu0 %2557
      %2559 = vrot.lane.b32.xlu0 %v2536, 127
      %v2560 = vpop.permute.xlu0 %2559
      %2561 = vrot.lane.b32.xlu0 %v2537, 127
      %v2562 = vpop.permute.xlu0 %2561
      %2563 = vrot.lane.b32.xlu0 %v2538, 127
      %v2564 = vpop.permute.xlu0 %2563
      %2565 = vrot.lane.b32.xlu0 %v2539, 127
      %v2566 = vpop.permute.xlu0 %2565
      %2567 = vrot.lane.b32.xlu0 %v2540, 127
      %v2568 = vpop.permute.xlu0 %2567
      %vm2569 = vcmask 1039360
      %v2570 = vsel %vm2569, %v2542, %v2544
      %v2571 = vsel %vm2569, %v2544, %v2546
      %v2572 = vsel %vm2569, %v2546, %v2548
      %v2573 = vsel %vm2569, %v2548, %v2550
      %v2574 = vsel %vm2569, %v2550, %v2552
      %v2575 = vsel %vm2569, %v2552, %v2554
      %v2576 = vsel %vm2569, %v2556, %v2558
      %v2577 = vsel %vm2569, %v2558, %v2560
      %v2578 = vsel %vm2569, %v2560, %v2562
      %v2579 = vsel %vm2569, %v2562, %v2564
      %v2580 = vsel %vm2569, %v2564, %v2566
      %v2581 = vsel %vm2569, %v2566, %v2568
      %2594 = vrot.lane.b32.xlu0 %v2527, 126
      %v2595 = vpop.permute.xlu0 %2594
      %2596 = vrot.lane.b32.xlu0 %v2528, 126
      %v2597 = vpop.permute.xlu0 %2596
      %2598 = vrot.lane.b32.xlu0 %v2529, 126
      %v2599 = vpop.permute.xlu0 %2598
      %2600 = vrot.lane.b32.xlu0 %v2530, 126
      %v2601 = vpop.permute.xlu0 %2600
      %2602 = vrot.lane.b32.xlu0 %v2531, 126
      %v2603 = vpop.permute.xlu0 %2602
      %2604 = vrot.lane.b32.xlu0 %v2532, 126
      %v2605 = vpop.permute.xlu0 %2604
      %2606 = vrot.lane.b32.xlu0 %v2533, 126
      %v2607 = vpop.permute.xlu0 %2606
      %2608 = vrot.lane.b32.xlu0 %v2534, 126
      %v2609 = vpop.permute.xlu0 %2608
      %2610 = vrot.lane.b32.xlu0 %v2535, 126
      %v2611 = vpop.permute.xlu0 %2610
      %2612 = vrot.lane.b32.xlu0 %v2536, 126
      %v2613 = vpop.permute.xlu0 %2612
      %2614 = vrot.lane.b32.xlu0 %v2537, 126
      %v2615 = vpop.permute.xlu0 %2614
      %2616 = vrot.lane.b32.xlu0 %v2538, 126
      %v2617 = vpop.permute.xlu0 %2616
      %2618 = vrot.lane.b32.xlu0 %v2539, 126
      %v2619 = vpop.permute.xlu0 %2618
      %2620 = vrot.lane.b32.xlu0 %v2540, 126
      %v2621 = vpop.permute.xlu0 %2620
      %vm2622 = vcmask 1031168
      %v2623 = vsel %vm2622, %v2595, %v2597
      %v2624 = vsel %vm2622, %v2597, %v2599
      %v2625 = vsel %vm2622, %v2599, %v2601
      %v2626 = vsel %vm2622, %v2601, %v2603
      %v2627 = vsel %vm2622, %v2603, %v2605
      %v2628 = vsel %vm2622, %v2605, %v2607
      %v2629 = vsel %vm2622, %v2609, %v2611
      %v2630 = vsel %vm2622, %v2611, %v2613
      %v2631 = vsel %vm2622, %v2613, %v2615
      %v2632 = vsel %vm2622, %v2615, %v2617
      %v2633 = vsel %vm2622, %v2617, %v2619
      %v2634 = vsel %vm2622, %v2619, %v2621
      %2647 = vrot.lane.b32.xlu0 %v2527, 96
      %v2648 = vpop.permute.xlu0 %2647
      %2649 = vrot.lane.b32.xlu0 %v2528, 96
      %v2650 = vpop.permute.xlu0 %2649
      %2651 = vrot.lane.b32.xlu0 %v2529, 96
      %v2652 = vpop.permute.xlu0 %2651
      %2653 = vrot.lane.b32.xlu0 %v2530, 96
      %v2654 = vpop.permute.xlu0 %2653
      %2655 = vrot.lane.b32.xlu0 %v2531, 96
      %v2656 = vpop.permute.xlu0 %2655
      %2657 = vrot.lane.b32.xlu0 %v2532, 96
      %v2658 = vpop.permute.xlu0 %2657
      %2659 = vrot.lane.b32.xlu0 %v2533, 96
      %v2660 = vpop.permute.xlu0 %2659
      %2661 = vrot.lane.b32.xlu0 %v2534, 96
      %v2662 = vpop.permute.xlu0 %2661
      %2663 = vrot.lane.b32.xlu0 %v2535, 96
      %v2664 = vpop.permute.xlu0 %2663
      %2665 = vrot.lane.b32.xlu0 %v2536, 96
      %v2666 = vpop.permute.xlu0 %2665
      %2667 = vrot.lane.b32.xlu0 %v2537, 96
      %v2668 = vpop.permute.xlu0 %2667
      %2669 = vrot.lane.b32.xlu0 %v2538, 96
      %v2670 = vpop.permute.xlu0 %2669
      %2671 = vrot.lane.b32.xlu0 %v2539, 96
      %v2672 = vpop.permute.xlu0 %2671
      %2673 = vrot.lane.b32.xlu0 %v2540, 96
      %v2674 = vpop.permute.xlu0 %2673
      %vm2675 = vcmask 785408
      %v2676 = vsel %vm2675, %v2648, %v2650
      %v2677 = vsel %vm2675, %v2650, %v2652
      %v2678 = vsel %vm2675, %v2652, %v2654
      %v2679 = vsel %vm2675, %v2654, %v2656
      %v2680 = vsel %vm2675, %v2656, %v2658
      %v2681 = vsel %vm2675, %v2658, %v2660
      %v2682 = vsel %vm2675, %v2662, %v2664
      %v2683 = vsel %vm2675, %v2664, %v2666
      %v2684 = vsel %vm2675, %v2666, %v2668
      %v2685 = vsel %vm2675, %v2668, %v2670
      %v2686 = vsel %vm2675, %v2670, %v2672
      %v2687 = vsel %vm2675, %v2672, %v2674
      %2700 = vrot.lane.b32.xlu0 %v2527, 95
      %v2701 = vpop.permute.xlu0 %2700
      %2702 = vrot.lane.b32.xlu0 %v2528, 95
      %v2703 = vpop.permute.xlu0 %2702
      %2704 = vrot.lane.b32.xlu0 %v2529, 95
      %v2705 = vpop.permute.xlu0 %2704
      %2706 = vrot.lane.b32.xlu0 %v2530, 95
      %v2707 = vpop.permute.xlu0 %2706
      %2708 = vrot.lane.b32.xlu0 %v2531, 95
      %v2709 = vpop.permute.xlu0 %2708
      %2710 = vrot.lane.b32.xlu0 %v2532, 95
      %v2711 = vpop.permute.xlu0 %2710
      %2712 = vrot.lane.b32.xlu0 %v2533, 95
      %v2713 = vpop.permute.xlu0 %2712
      %2714 = vrot.lane.b32.xlu0 %v2534, 95
      %v2715 = vpop.permute.xlu0 %2714
      %2716 = vrot.lane.b32.xlu0 %v2535, 95
      %v2717 = vpop.permute.xlu0 %2716
      %2718 = vrot.lane.b32.xlu0 %v2536, 95
      %v2719 = vpop.permute.xlu0 %2718
      %2720 = vrot.lane.b32.xlu0 %v2537, 95
      %v2721 = vpop.permute.xlu0 %2720
      %2722 = vrot.lane.b32.xlu0 %v2538, 95
      %v2723 = vpop.permute.xlu0 %2722
      %2724 = vrot.lane.b32.xlu0 %v2539, 95
      %v2725 = vpop.permute.xlu0 %2724
      %2726 = vrot.lane.b32.xlu0 %v2540, 95
      %v2727 = vpop.permute.xlu0 %2726
      %vm2728 = vcmask 777216
      %v2729 = vsel %vm2728, %v2701, %v2703
      %v2730 = vsel %vm2728, %v2703, %v2705
      %v2731 = vsel %vm2728, %v2705, %v2707
      %v2732 = vsel %vm2728, %v2707, %v2709
      %v2733 = vsel %vm2728, %v2709, %v2711
      %v2734 = vsel %vm2728, %v2711, %v2713
      %v2735 = vsel %vm2728, %v2715, %v2717
      %v2736 = vsel %vm2728, %v2717, %v2719
      %v2737 = vsel %vm2728, %v2719, %v2721
      %v2738 = vsel %vm2728, %v2721, %v2723
      %v2739 = vsel %vm2728, %v2723, %v2725
      %v2740 = vsel %vm2728, %v2725, %v2727
      %2753 = vrot.lane.b32.xlu0 %v2527, 94
      %v2754 = vpop.permute.xlu0 %2753
      %2755 = vrot.lane.b32.xlu0 %v2528, 94
      %v2756 = vpop.permute.xlu0 %2755
      %2757 = vrot.lane.b32.xlu0 %v2529, 94
      %v2758 = vpop.permute.xlu0 %2757
      %2759 = vrot.lane.b32.xlu0 %v2530, 94
      %v2760 = vpop.permute.xlu0 %2759
      %2761 = vrot.lane.b32.xlu0 %v2531, 94
      %v2762 = vpop.permute.xlu0 %2761
      %2763 = vrot.lane.b32.xlu0 %v2532, 94
      %v2764 = vpop.permute.xlu0 %2763
      %2765 = vrot.lane.b32.xlu0 %v2533, 94
      %v2766 = vpop.permute.xlu0 %2765
      %2767 = vrot.lane.b32.xlu0 %v2534, 94
      %v2768 = vpop.permute.xlu0 %2767
      %2769 = vrot.lane.b32.xlu0 %v2535, 94
      %v2770 = vpop.permute.xlu0 %2769
      %2771 = vrot.lane.b32.xlu0 %v2536, 94
      %v2772 = vpop.permute.xlu0 %2771
      %2773 = vrot.lane.b32.xlu0 %v2537, 94
      %v2774 = vpop.permute.xlu0 %2773
      %2775 = vrot.lane.b32.xlu0 %v2538, 94
      %v2776 = vpop.permute.xlu0 %2775
      %2777 = vrot.lane.b32.xlu0 %v2539, 94
      %v2778 = vpop.permute.xlu0 %2777
      %2779 = vrot.lane.b32.xlu0 %v2540, 94
      %v2780 = vpop.permute.xlu0 %2779
      %vm2781 = vcmask 769024
      %v2782 = vsel %vm2781, %v2754, %v2756
      %v2783 = vsel %vm2781, %v2756, %v2758
      %v2784 = vsel %vm2781, %v2758, %v2760
      %v2785 = vsel %vm2781, %v2760, %v2762
      %v2786 = vsel %vm2781, %v2762, %v2764
      %v2787 = vsel %vm2781, %v2764, %v2766
      %v2788 = vsel %vm2781, %v2768, %v2770
      %v2789 = vsel %vm2781, %v2770, %v2772
      %v2790 = vsel %vm2781, %v2772, %v2774
      %v2791 = vsel %vm2781, %v2774, %v2776
      %v2792 = vsel %vm2781, %v2776, %v2778
      %v2793 = vsel %vm2781, %v2778, %v2780
      %2806 = vrot.lane.b32.xlu0 %v2527, 64
      %v2807 = vpop.permute.xlu0 %2806
      %2808 = vrot.lane.b32.xlu0 %v2528, 64
      %v2809 = vpop.permute.xlu0 %2808
      %2810 = vrot.lane.b32.xlu0 %v2529, 64
      %v2811 = vpop.permute.xlu0 %2810
      %2812 = vrot.lane.b32.xlu0 %v2530, 64
      %v2813 = vpop.permute.xlu0 %2812
      %2814 = vrot.lane.b32.xlu0 %v2531, 64
      %v2815 = vpop.permute.xlu0 %2814
      %2816 = vrot.lane.b32.xlu0 %v2532, 64
      %v2817 = vpop.permute.xlu0 %2816
      %2818 = vrot.lane.b32.xlu0 %v2533, 64
      %v2819 = vpop.permute.xlu0 %2818
      %2820 = vrot.lane.b32.xlu0 %v2534, 64
      %v2821 = vpop.permute.xlu0 %2820
      %2822 = vrot.lane.b32.xlu0 %v2535, 64
      %v2823 = vpop.permute.xlu0 %2822
      %2824 = vrot.lane.b32.xlu0 %v2536, 64
      %v2825 = vpop.permute.xlu0 %2824
      %2826 = vrot.lane.b32.xlu0 %v2537, 64
      %v2827 = vpop.permute.xlu0 %2826
      %2828 = vrot.lane.b32.xlu0 %v2538, 64
      %v2829 = vpop.permute.xlu0 %2828
      %2830 = vrot.lane.b32.xlu0 %v2539, 64
      %v2831 = vpop.permute.xlu0 %2830
      %2832 = vrot.lane.b32.xlu0 %v2540, 64
      %v2833 = vpop.permute.xlu0 %2832
      %vm2834 = vcmask 523264
      %v2835 = vsel %vm2834, %v2807, %v2809
      %v2836 = vsel %vm2834, %v2809, %v2811
      %v2837 = vsel %vm2834, %v2811, %v2813
      %v2838 = vsel %vm2834, %v2813, %v2815
      %v2839 = vsel %vm2834, %v2815, %v2817
      %v2840 = vsel %vm2834, %v2817, %v2819
      %v2841 = vsel %vm2834, %v2821, %v2823
      %v2842 = vsel %vm2834, %v2823, %v2825
      %v2843 = vsel %vm2834, %v2825, %v2827
      %v2844 = vsel %vm2834, %v2827, %v2829
      %v2845 = vsel %vm2834, %v2829, %v2831
      %v2846 = vsel %vm2834, %v2831, %v2833
      %2859 = vrot.lane.b32.xlu0 %v2527, 63
      %v2860 = vpop.permute.xlu0 %2859
      %2861 = vrot.lane.b32.xlu0 %v2528, 63
      %v2862 = vpop.permute.xlu0 %2861
      %2863 = vrot.lane.b32.xlu0 %v2529, 63
      %v2864 = vpop.permute.xlu0 %2863
      %2865 = vrot.lane.b32.xlu0 %v2530, 63
      %v2866 = vpop.permute.xlu0 %2865
      %2867 = vrot.lane.b32.xlu0 %v2531, 63
      %v2868 = vpop.permute.xlu0 %2867
      %2869 = vrot.lane.b32.xlu0 %v2532, 63
      %v2870 = vpop.permute.xlu0 %2869
      %2871 = vrot.lane.b32.xlu0 %v2533, 63
      %v2872 = vpop.permute.xlu0 %2871
      %2873 = vrot.lane.b32.xlu0 %v2534, 63
      %v2874 = vpop.permute.xlu0 %2873
      %2875 = vrot.lane.b32.xlu0 %v2535, 63
      %v2876 = vpop.permute.xlu0 %2875
      %2877 = vrot.lane.b32.xlu0 %v2536, 63
      %v2878 = vpop.permute.xlu0 %2877
      %2879 = vrot.lane.b32.xlu0 %v2537, 63
      %v2880 = vpop.permute.xlu0 %2879
      %2881 = vrot.lane.b32.xlu0 %v2538, 63
      %v2882 = vpop.permute.xlu0 %2881
      %2883 = vrot.lane.b32.xlu0 %v2539, 63
      %v2884 = vpop.permute.xlu0 %2883
      %2885 = vrot.lane.b32.xlu0 %v2540, 63
      %v2886 = vpop.permute.xlu0 %2885
      %vm2887 = vcmask 515072
      %v2888 = vsel %vm2887, %v2860, %v2862
      %v2889 = vsel %vm2887, %v2862, %v2864
      %v2890 = vsel %vm2887, %v2864, %v2866
      %v2891 = vsel %vm2887, %v2866, %v2868
      %v2892 = vsel %vm2887, %v2868, %v2870
      %v2893 = vsel %vm2887, %v2870, %v2872
      %v2894 = vsel %vm2887, %v2874, %v2876
      %v2895 = vsel %vm2887, %v2876, %v2878
      %v2896 = vsel %vm2887, %v2878, %v2880
      %v2897 = vsel %vm2887, %v2880, %v2882
      %v2898 = vsel %vm2887, %v2882, %v2884
      %v2899 = vsel %vm2887, %v2884, %v2886
      %2912 = vrot.lane.b32.xlu0 %v2527, 62
      %v2913 = vpop.permute.xlu0 %2912
      %2914 = vrot.lane.b32.xlu0 %v2528, 62
      %v2915 = vpop.permute.xlu0 %2914
      %2916 = vrot.lane.b32.xlu0 %v2529, 62
      %v2917 = vpop.permute.xlu0 %2916
      %2918 = vrot.lane.b32.xlu0 %v2530, 62
      %v2919 = vpop.permute.xlu0 %2918
      %2920 = vrot.lane.b32.xlu0 %v2531, 62
      %v2921 = vpop.permute.xlu0 %2920
      %2922 = vrot.lane.b32.xlu0 %v2532, 62
      %v2923 = vpop.permute.xlu0 %2922
      %2924 = vrot.lane.b32.xlu0 %v2533, 62
      %v2925 = vpop.permute.xlu0 %2924
      %2926 = vrot.lane.b32.xlu0 %v2534, 62
      %v2927 = vpop.permute.xlu0 %2926
      %2928 = vrot.lane.b32.xlu0 %v2535, 62
      %v2929 = vpop.permute.xlu0 %2928
      %2930 = vrot.lane.b32.xlu0 %v2536, 62
      %v2931 = vpop.permute.xlu0 %2930
      %2932 = vrot.lane.b32.xlu0 %v2537, 62
      %v2933 = vpop.permute.xlu0 %2932
      %2934 = vrot.lane.b32.xlu0 %v2538, 62
      %v2935 = vpop.permute.xlu0 %2934
      %2936 = vrot.lane.b32.xlu0 %v2539, 62
      %v2937 = vpop.permute.xlu0 %2936
      %2938 = vrot.lane.b32.xlu0 %v2540, 62
      %v2939 = vpop.permute.xlu0 %2938
      %vm2940 = vcmask 506880
      %v2941 = vsel %vm2940, %v2913, %v2915
      %v2942 = vsel %vm2940, %v2915, %v2917
      %v2943 = vsel %vm2940, %v2917, %v2919
      %v2944 = vsel %vm2940, %v2919, %v2921
      %v2945 = vsel %vm2940, %v2921, %v2923
      %v2946 = vsel %vm2940, %v2923, %v2925
      %v2947 = vsel %vm2940, %v2927, %v2929
      %v2948 = vsel %vm2940, %v2929, %v2931
      %v2949 = vsel %vm2940, %v2931, %v2933
      %v2950 = vsel %vm2940, %v2933, %v2935
      %v2951 = vsel %vm2940, %v2935, %v2937
      %v2952 = vsel %vm2940, %v2937, %v2939
      %v2981 = vunpack.c.l.b16 %v49
      %v2982 = vunpack.c.h.b16 %v49
      %v2983 = vunpack.c.l.b16 %v50
      %v2984 = vunpack.c.l.b16 %v51
      %v2985 = vunpack.c.h.b16 %v51
      %v2986 = vunpack.c.l.b16 %v52
      %v2987 = vunpack.c.l.b16 %v53
      %v2988 = vunpack.c.h.b16 %v53
      %v2989 = vunpack.c.l.b16 %v54
      %v2990 = vunpack.c.l.b16 %v55
      %v2991 = vunpack.c.h.b16 %v55
      %v2992 = vunpack.c.l.b16 %v56
      %v2993 = vunpack.c.l.b16 %v57
      %v2994 = vunpack.c.h.b16 %v57
      %v2995 = vunpack.c.l.b16 %v58
      %v2996 = vunpack.c.l.b16 %v59
      %v2997 = vunpack.c.h.b16 %v59
      %v2998 = vunpack.c.l.b16 %v60
      %v2999 = vunpack.c.l.b16 %v61
      %v3000 = vunpack.c.h.b16 %v61
      %v3001 = vunpack.c.l.b16 %v62
      %v3002 = vunpack.c.l.b16 %v63
      %v3003 = vunpack.c.h.b16 %v63
      %v3004 = vunpack.c.l.b16 %v64
      %v3005 = vpack.c.b16 %v2984, %v2981
      %v3006 = vpack.c.b16 %v2985, %v2982
      %v3007 = vpack.c.b16 %v2986, %v2983
      %v3008 = vpack.c.b16 %v2990, %v2987
      %v3009 = vpack.c.b16 %v2991, %v2988
      %v3010 = vpack.c.b16 %v2992, %v2989
      %v3011 = vpack.c.b16 %v2996, %v2993
      %v3012 = vpack.c.b16 %v2997, %v2994
      %v3013 = vpack.c.b16 %v2998, %v2995
      %v3014 = vpack.c.b16 %v3002, %v2999
      %v3015 = vpack.c.b16 %v3003, %v3000
      %v3016 = vpack.c.b16 %v3004, %v3001
      %vm3025 = vcmask 261120
      %v3027 = vsel %vm3025, %v3007, 0
      %v3030 = vsel %vm3025, %v3010, 0
      %v3033 = vsel %vm3025, %v3013, 0
      %v3036 = vsel %vm3025, %v3016, 0
      %3038 = vmatprep.subr.bf16.mxu0 %v2683
      %3039 = vmatpush1.bf16.msra.mxu0 %v2682
      %3040 = vmatprep.subr.bf16.mxu0 %v2677
      %3041 = vmatpush1.bf16.msra.mxu0 %v2676
      %3042 = vmatprep.subr.bf16.mxu0 %v2630
      %3043 = vmatpush1.bf16.msra.mxu0 %v2629
      %3044 = vmatprep.subr.bf16.mxu0 %v2624
      %3045 = vmatpush1.bf16.msra.mxu0 %v2623
      %3046 = vmatprep.subr.bf16.mxu0 %v2577
      %3047 = vmatpush1.bf16.msra.mxu0 %v2576
      %3048 = vmatprep.subr.bf16.mxu0 %v2571
      %3049 = vmatpush1.bf16.msra.mxu0 %v2570
      %3050 = vmatprep.subr.bf16.mxu0 %v2466
      %3051 = vmatpush1.bf16.msra.mxu0 %v2465
      %3052 = vmatprep.subr.bf16.mxu0 %v2460
      %3053 = vmatpush1.bf16.msra.mxu0 %v2459
      %3054 = vmatprep.subr.bf16.mxu0 %v2895
      %3055 = vmatpush2.bf16.msra.mxu0 %v2894
      %3056 = vmatprep.subr.bf16.mxu0 %v2889
      %3057 = vmatpush2.bf16.msra.mxu0 %v2888
      %3058 = vmatprep.subr.bf16.mxu0 %v2842
      %3059 = vmatpush2.bf16.msra.mxu0 %v2841
      %3060 = vmatprep.subr.bf16.mxu0 %v2836
      %3061 = vmatpush2.bf16.msra.mxu0 %v2835
      %3062 = vmatprep.subr.bf16.mxu0 %v2789
      %3063 = vmatpush2.bf16.msra.mxu0 %v2788
      %3064 = vmatprep.subr.bf16.mxu0 %v2783
      %3065 = vmatpush2.bf16.msra.mxu0 %v2782
      %3066 = vmatprep.subr.bf16.mxu0 %v2736
      %3067 = vmatpush2.bf16.msra.mxu0 %v2735
      %3068 = vmatprep.subr.bf16.mxu0 %v2730
      %3069 = vmatpush2.bf16.msra.mxu0 %v2729
      %3070 = vmatprep.mubr.bf16.mxu0 %v3006
      %3071 = vmatmul.mubr.bf16.gmra.mxu0 %v3005
      %v3072 = vpop.f32.mrf.mxu0
      %v3073 = vadd.f32 0.0, %v3072
      %v3074 = vpop.f32.mrf.mxu0
      %v3075 = vadd.f32 0.0, %v3074
      %v3076 = vpop.f32.mrf.mxu0
      %v3077 = vadd.f32 0.0, %v3076
      %v3078 = vpop.f32.mrf.mxu0
      %v3079 = vadd.f32 0.0, %v3078
      %3080 = vmatprep.mubr.bf16.mxu0 %v3009
      %3081 = vmatmul.mubr.bf16.gmra.mxu0 %v3008
      %v3082 = vpop.f32.mrf.mxu0
      %v3083 = vadd.f32 0.0, %v3082
      %v3084 = vpop.f32.mrf.mxu0
      %v3085 = vadd.f32 0.0, %v3084
      %v3086 = vpop.f32.mrf.mxu0
      %v3087 = vadd.f32 0.0, %v3086
      %v3088 = vpop.f32.mrf.mxu0
      %v3089 = vadd.f32 0.0, %v3088
      %3090 = vmatprep.mubr.bf16.mxu0 %v3012
      %3091 = vmatmul.mubr.bf16.gmra.mxu0 %v3011
      %v3092 = vpop.f32.mrf.mxu0
      %v3093 = vadd.f32 0.0, %v3092
      %v3094 = vpop.f32.mrf.mxu0
      %v3095 = vadd.f32 0.0, %v3094
      %v3096 = vpop.f32.mrf.mxu0
      %v3097 = vadd.f32 0.0, %v3096
      %v3098 = vpop.f32.mrf.mxu0
      %v3099 = vadd.f32 0.0, %v3098
      %3100 = vmatprep.mubr.bf16.mxu0 %v3015
      %3101 = vmatmul.mubr.bf16.gmra.mxu0 %v3014
      %v3102 = vpop.f32.mrf.mxu0
      %v3103 = vadd.f32 0.0, %v3102
      %v3104 = vpop.f32.mrf.mxu0
      %v3105 = vadd.f32 0.0, %v3104
      %v3106 = vpop.f32.mrf.mxu0
      %v3107 = vadd.f32 0.0, %v3106
      %v3108 = vpop.f32.mrf.mxu0
      %v3109 = vadd.f32 0.0, %v3108
      %3110 = vdwg.mxu0
      %3111 = vmatprep.subr.bf16.mxu0 0
      %3112 = vmatpush1.bf16.msra.mxu0 0
      %3113 = vmatprep.subr.bf16.mxu0 0
      %3114 = vmatpush1.bf16.msra.mxu0 0
      %3115 = vmatprep.subr.bf16.mxu0 0
      %3116 = vmatpush1.bf16.msra.mxu0 0
      %3117 = vmatprep.subr.bf16.mxu0 0
      %3118 = vmatpush1.bf16.msra.mxu0 0
      %3119 = vmatprep.subr.bf16.mxu0 0
      %3120 = vmatpush1.bf16.msra.mxu0 0
      %3121 = vmatprep.subr.bf16.mxu0 0
      %3122 = vmatpush1.bf16.msra.mxu0 0
      %3123 = vmatprep.subr.bf16.mxu0 %v2948
      %3124 = vmatpush1.bf16.msra.mxu0 %v2947
      %3125 = vmatprep.subr.bf16.mxu0 %v2942
      %3126 = vmatpush1.bf16.msra.mxu0 %v2941
      %3127 = vmatprep.subr.bf16.mxu0 0
      %3128 = vmatpush2.bf16.msra.mxu0 0
      %3129 = vmatprep.subr.bf16.mxu0 0
      %3130 = vmatpush2.bf16.msra.mxu0 0
      %3131 = vmatprep.subr.bf16.mxu0 0
      %3132 = vmatpush2.bf16.msra.mxu0 0
      %3133 = vmatprep.subr.bf16.mxu0 0
      %3134 = vmatpush2.bf16.msra.mxu0 0
      %3135 = vmatprep.subr.bf16.mxu0 0
      %3136 = vmatpush2.bf16.msra.mxu0 0
      %3137 = vmatprep.subr.bf16.mxu0 0
      %3138 = vmatpush2.bf16.msra.mxu0 0
      %3139 = vmatprep.subr.bf16.mxu0 0
      %3140 = vmatpush2.bf16.msra.mxu0 0
      %3141 = vmatprep.subr.bf16.mxu0 0
      %3142 = vmatpush2.bf16.msra.mxu0 0
      %3143 = vmatprep.mubr.bf16.mxu0 0
      %3144 = vmatmul.mubr.bf16.gmra.mxu0 %v3027
      %v3145 = vpop.f32.mrf.mxu0
      %v3146 = vadd.f32 %v3073, %v3145
      %v3147 = vpop.f32.mrf.mxu0
      %v3148 = vadd.f32 %v3075, %v3147
      %v3149 = vpop.f32.mrf.mxu0
      %v3150 = vadd.f32 %v3077, %v3149
      %v3151 = vpop.f32.mrf.mxu0
      %v3152 = vadd.f32 %v3079, %v3151
      %3153 = vmatprep.mubr.bf16.mxu0 0
      %3154 = vmatmul.mubr.bf16.gmra.mxu0 %v3030
      %v3155 = vpop.f32.mrf.mxu0
      %v3156 = vadd.f32 %v3083, %v3155
      %v3157 = vpop.f32.mrf.mxu0
      %v3158 = vadd.f32 %v3085, %v3157
      %v3159 = vpop.f32.mrf.mxu0
      %v3160 = vadd.f32 %v3087, %v3159
      %v3161 = vpop.f32.mrf.mxu0
      %v3162 = vadd.f32 %v3089, %v3161
      %3163 = vmatprep.mubr.bf16.mxu0 0
      %3164 = vmatmul.mubr.bf16.gmra.mxu0 %v3033
      %v3165 = vpop.f32.mrf.mxu0
      %v3166 = vadd.f32 %v3093, %v3165
      %v3167 = vpop.f32.mrf.mxu0
      %v3168 = vadd.f32 %v3095, %v3167
      %v3169 = vpop.f32.mrf.mxu0
      %v3170 = vadd.f32 %v3097, %v3169
      %v3171 = vpop.f32.mrf.mxu0
      %v3172 = vadd.f32 %v3099, %v3171
      %3173 = vmatprep.mubr.bf16.mxu0 0
      %3174 = vmatmul.mubr.bf16.gmra.mxu0 %v3036
      %v3175 = vpop.f32.mrf.mxu0
      %v3176 = vadd.f32 %v3103, %v3175
      %v3177 = vpop.f32.mrf.mxu0
      %v3178 = vadd.f32 %v3105, %v3177
      %v3179 = vpop.f32.mrf.mxu0
      %v3180 = vadd.f32 %v3107, %v3179
      %v3181 = vpop.f32.mrf.mxu0
      %v3182 = vadd.f32 %v3109, %v3181
      %3183 = vdwg.mxu0
      %3184 = vmatprep.subr.bf16.mxu0 %v2685
      %3185 = vmatpush1.bf16.msra.mxu0 %v2684
      %3186 = vmatprep.subr.bf16.mxu0 %v2679
      %3187 = vmatpush1.bf16.msra.mxu0 %v2678
      %3188 = vmatprep.subr.bf16.mxu0 %v2632
      %3189 = vmatpush1.bf16.msra.mxu0 %v2631
      %3190 = vmatprep.subr.bf16.mxu0 %v2626
      %3191 = vmatpush1.bf16.msra.mxu0 %v2625
      %3192 = vmatprep.subr.bf16.mxu0 %v2579
      %3193 = vmatpush1.bf16.msra.mxu0 %v2578
      %3194 = vmatprep.subr.bf16.mxu0 %v2573
      %3195 = vmatpush1.bf16.msra.mxu0 %v2572
      %3196 = vmatprep.subr.bf16.mxu0 %v2468
      %3197 = vmatpush1.bf16.msra.mxu0 %v2467
      %3198 = vmatprep.subr.bf16.mxu0 %v2462
      %3199 = vmatpush1.bf16.msra.mxu0 %v2461
      %3200 = vmatprep.subr.bf16.mxu0 %v2897
      %3201 = vmatpush2.bf16.msra.mxu0 %v2896
      %3202 = vmatprep.subr.bf16.mxu0 %v2891
      %3203 = vmatpush2.bf16.msra.mxu0 %v2890
      %3204 = vmatprep.subr.bf16.mxu0 %v2844
      %3205 = vmatpush2.bf16.msra.mxu0 %v2843
      %3206 = vmatprep.subr.bf16.mxu0 %v2838
      %3207 = vmatpush2.bf16.msra.mxu0 %v2837
      %3208 = vmatprep.subr.bf16.mxu0 %v2791
      %3209 = vmatpush2.bf16.msra.mxu0 %v2790
      %3210 = vmatprep.subr.bf16.mxu0 %v2785
      %3211 = vmatpush2.bf16.msra.mxu0 %v2784
      %3212 = vmatprep.subr.bf16.mxu0 %v2738
      %3213 = vmatpush2.bf16.msra.mxu0 %v2737
      %3214 = vmatprep.subr.bf16.mxu0 %v2732
      %3215 = vmatpush2.bf16.msra.mxu0 %v2731
      %3216 = vmatprep.mubr.bf16.mxu0 %v3006
      %3217 = vmatmul.mubr.bf16.gmra.mxu0 %v3005
      %v3218 = vpop.f32.mrf.mxu0
      %v3219 = vadd.f32 0.0, %v3218
      %v3220 = vpop.f32.mrf.mxu0
      %v3221 = vadd.f32 0.0, %v3220
      %v3222 = vpop.f32.mrf.mxu0
      %v3223 = vadd.f32 0.0, %v3222
      %v3224 = vpop.f32.mrf.mxu0
      %v3225 = vadd.f32 0.0, %v3224
      %3226 = vmatprep.mubr.bf16.mxu0 %v3009
      %3227 = vmatmul.mubr.bf16.gmra.mxu0 %v3008
      %v3228 = vpop.f32.mrf.mxu0
      %v3229 = vadd.f32 0.0, %v3228
      %v3230 = vpop.f32.mrf.mxu0
      %v3231 = vadd.f32 0.0, %v3230
      %v3232 = vpop.f32.mrf.mxu0
      %v3233 = vadd.f32 0.0, %v3232
      %v3234 = vpop.f32.mrf.mxu0
      %v3235 = vadd.f32 0.0, %v3234
      %3236 = vmatprep.mubr.bf16.mxu0 %v3012
      %3237 = vmatmul.mubr.bf16.gmra.mxu0 %v3011
      %v3238 = vpop.f32.mrf.mxu0
      %v3239 = vadd.f32 0.0, %v3238
      %v3240 = vpop.f32.mrf.mxu0
      %v3241 = vadd.f32 0.0, %v3240
      %v3242 = vpop.f32.mrf.mxu0
      %v3243 = vadd.f32 0.0, %v3242
      %v3244 = vpop.f32.mrf.mxu0
      %v3245 = vadd.f32 0.0, %v3244
      %3246 = vmatprep.mubr.bf16.mxu0 %v3015
      %3247 = vmatmul.mubr.bf16.gmra.mxu0 %v3014
      %v3248 = vpop.f32.mrf.mxu0
      %v3249 = vadd.f32 0.0, %v3248
      %v3250 = vpop.f32.mrf.mxu0
      %v3251 = vadd.f32 0.0, %v3250
      %v3252 = vpop.f32.mrf.mxu0
      %v3253 = vadd.f32 0.0, %v3252
      %v3254 = vpop.f32.mrf.mxu0
      %v3255 = vadd.f32 0.0, %v3254
      %3256 = vdwg.mxu0
      %3257 = vmatprep.subr.bf16.mxu0 0
      %3258 = vmatpush1.bf16.msra.mxu0 0
      %3259 = vmatprep.subr.bf16.mxu0 0
      %3260 = vmatpush1.bf16.msra.mxu0 0
      %3261 = vmatprep.subr.bf16.mxu0 0
      %3262 = vmatpush1.bf16.msra.mxu0 0
      %3263 = vmatprep.subr.bf16.mxu0 0
      %3264 = vmatpush1.bf16.msra.mxu0 0
      %3265 = vmatprep.subr.bf16.mxu0 0
      %3266 = vmatpush1.bf16.msra.mxu0 0
      %3267 = vmatprep.subr.bf16.mxu0 0
      %3268 = vmatpush1.bf16.msra.mxu0 0
      %3269 = vmatprep.subr.bf16.mxu0 %v2950
      %3270 = vmatpush1.bf16.msra.mxu0 %v2949
      %3271 = vmatprep.subr.bf16.mxu0 %v2944
      %3272 = vmatpush1.bf16.msra.mxu0 %v2943
      %3273 = vmatprep.subr.bf16.mxu0 0
      %3274 = vmatpush2.bf16.msra.mxu0 0
      %3275 = vmatprep.subr.bf16.mxu0 0
      %3276 = vmatpush2.bf16.msra.mxu0 0
      %3277 = vmatprep.subr.bf16.mxu0 0
      %3278 = vmatpush2.bf16.msra.mxu0 0
      %3279 = vmatprep.subr.bf16.mxu0 0
      %3280 = vmatpush2.bf16.msra.mxu0 0
      %3281 = vmatprep.subr.bf16.mxu0 0
      %3282 = vmatpush2.bf16.msra.mxu0 0
      %3283 = vmatprep.subr.bf16.mxu0 0
      %3284 = vmatpush2.bf16.msra.mxu0 0
      %3285 = vmatprep.subr.bf16.mxu0 0
      %3286 = vmatpush2.bf16.msra.mxu0 0
      %3287 = vmatprep.subr.bf16.mxu0 0
      %3288 = vmatpush2.bf16.msra.mxu0 0
      %3289 = vmatprep.mubr.bf16.mxu0 0
      %3290 = vmatmul.mubr.bf16.gmra.mxu0 %v3027
      %v3291 = vpop.f32.mrf.mxu0
      %v3292 = vadd.f32 %v3219, %v3291
      %v3293 = vpop.f32.mrf.mxu0
      %v3294 = vadd.f32 %v3221, %v3293
      %v3295 = vpop.f32.mrf.mxu0
      %v3296 = vadd.f32 %v3223, %v3295
      %v3297 = vpop.f32.mrf.mxu0
      %v3298 = vadd.f32 %v3225, %v3297
      %3299 = vmatprep.mubr.bf16.mxu0 0
      %3300 = vmatmul.mubr.bf16.gmra.mxu0 %v3030
      %v3301 = vpop.f32.mrf.mxu0
      %v3302 = vadd.f32 %v3229, %v3301
      %v3303 = vpop.f32.mrf.mxu0
      %v3304 = vadd.f32 %v3231, %v3303
      %v3305 = vpop.f32.mrf.mxu0
      %v3306 = vadd.f32 %v3233, %v3305
      %v3307 = vpop.f32.mrf.mxu0
      %v3308 = vadd.f32 %v3235, %v3307
      %3309 = vmatprep.mubr.bf16.mxu0 0
      %3310 = vmatmul.mubr.bf16.gmra.mxu0 %v3033
      %v3311 = vpop.f32.mrf.mxu0
      %v3312 = vadd.f32 %v3239, %v3311
      %v3313 = vpop.f32.mrf.mxu0
      %v3314 = vadd.f32 %v3241, %v3313
      %v3315 = vpop.f32.mrf.mxu0
      %v3316 = vadd.f32 %v3243, %v3315
      %v3317 = vpop.f32.mrf.mxu0
      %v3318 = vadd.f32 %v3245, %v3317
      %3319 = vmatprep.mubr.bf16.mxu0 0
      %3320 = vmatmul.mubr.bf16.gmra.mxu0 %v3036
      %v3321 = vpop.f32.mrf.mxu0
      %v3322 = vadd.f32 %v3249, %v3321
      %v3323 = vpop.f32.mrf.mxu0
      %v3324 = vadd.f32 %v3251, %v3323
      %v3325 = vpop.f32.mrf.mxu0
      %v3326 = vadd.f32 %v3253, %v3325
      %v3327 = vpop.f32.mrf.mxu0
      %v3328 = vadd.f32 %v3255, %v3327
      %3329 = vdwg.mxu0
      %3330 = vmatprep.subr.bf16.mxu0 %v2687
      %3331 = vmatpush1.bf16.msra.mxu0 %v2686
      %3332 = vmatprep.subr.bf16.mxu0 %v2681
      %3333 = vmatpush1.bf16.msra.mxu0 %v2680
      %3334 = vmatprep.subr.bf16.mxu0 %v2634
      %3335 = vmatpush1.bf16.msra.mxu0 %v2633
      %3336 = vmatprep.subr.bf16.mxu0 %v2628
      %3337 = vmatpush1.bf16.msra.mxu0 %v2627
      %3338 = vmatprep.subr.bf16.mxu0 %v2581
      %3339 = vmatpush1.bf16.msra.mxu0 %v2580
      %3340 = vmatprep.subr.bf16.mxu0 %v2575
      %3341 = vmatpush1.bf16.msra.mxu0 %v2574
      %3342 = vmatprep.subr.bf16.mxu0 %v2470
      %3343 = vmatpush1.bf16.msra.mxu0 %v2469
      %3344 = vmatprep.subr.bf16.mxu0 %v2464
      %3345 = vmatpush1.bf16.msra.mxu0 %v2463
      %3346 = vmatprep.subr.bf16.mxu0 %v2899
      %3347 = vmatpush2.bf16.msra.mxu0 %v2898
      %3348 = vmatprep.subr.bf16.mxu0 %v2893
      %3349 = vmatpush2.bf16.msra.mxu0 %v2892
      %3350 = vmatprep.subr.bf16.mxu0 %v2846
      %3351 = vmatpush2.bf16.msra.mxu0 %v2845
      %3352 = vmatprep.subr.bf16.mxu0 %v2840
      %3353 = vmatpush2.bf16.msra.mxu0 %v2839
      %3354 = vmatprep.subr.bf16.mxu0 %v2793
      %3355 = vmatpush2.bf16.msra.mxu0 %v2792
      %3356 = vmatprep.subr.bf16.mxu0 %v2787
      %3357 = vmatpush2.bf16.msra.mxu0 %v2786
      %3358 = vmatprep.subr.bf16.mxu0 %v2740
      %3359 = vmatpush2.bf16.msra.mxu0 %v2739
      %3360 = vmatprep.subr.bf16.mxu0 %v2734
      %3361 = vmatpush2.bf16.msra.mxu0 %v2733
      %3362 = vmatprep.mubr.bf16.mxu0 %v3006
      %3363 = vmatmul.mubr.bf16.gmra.mxu0 %v3005
      %v3364 = vpop.f32.mrf.mxu0
      %v3365 = vadd.f32 0.0, %v3364
      %v3366 = vpop.f32.mrf.mxu0
      %v3367 = vadd.f32 0.0, %v3366
      %v3368 = vpop.f32.mrf.mxu0
      %v3369 = vadd.f32 0.0, %v3368
      %v3370 = vpop.f32.mrf.mxu0
      %v3371 = vadd.f32 0.0, %v3370
      %3372 = vmatprep.mubr.bf16.mxu0 %v3009
      %3373 = vmatmul.mubr.bf16.gmra.mxu0 %v3008
      %v3374 = vpop.f32.mrf.mxu0
      %v3375 = vadd.f32 0.0, %v3374
      %v3376 = vpop.f32.mrf.mxu0
      %v3377 = vadd.f32 0.0, %v3376
      %v3378 = vpop.f32.mrf.mxu0
      %v3379 = vadd.f32 0.0, %v3378
      %v3380 = vpop.f32.mrf.mxu0
      %v3381 = vadd.f32 0.0, %v3380
      %3382 = vmatprep.mubr.bf16.mxu0 %v3012
      %3383 = vmatmul.mubr.bf16.gmra.mxu0 %v3011
      %v3384 = vpop.f32.mrf.mxu0
      %v3385 = vadd.f32 0.0, %v3384
      %v3386 = vpop.f32.mrf.mxu0
      %v3387 = vadd.f32 0.0, %v3386
      %v3388 = vpop.f32.mrf.mxu0
      %v3389 = vadd.f32 0.0, %v3388
      %v3390 = vpop.f32.mrf.mxu0
      %v3391 = vadd.f32 0.0, %v3390
      %3392 = vmatprep.mubr.bf16.mxu0 %v3015
      %3393 = vmatmul.mubr.bf16.gmra.mxu0 %v3014
      %v3394 = vpop.f32.mrf.mxu0
      %v3395 = vadd.f32 0.0, %v3394
      %v3396 = vpop.f32.mrf.mxu0
      %v3397 = vadd.f32 0.0, %v3396
      %v3398 = vpop.f32.mrf.mxu0
      %v3399 = vadd.f32 0.0, %v3398
      %v3400 = vpop.f32.mrf.mxu0
      %v3401 = vadd.f32 0.0, %v3400
      %3402 = vdwg.mxu0
      %3403 = vmatprep.subr.bf16.mxu0 0
      %3404 = vmatpush1.bf16.msra.mxu0 0
      %3405 = vmatprep.subr.bf16.mxu0 0
      %3406 = vmatpush1.bf16.msra.mxu0 0
      %3407 = vmatprep.subr.bf16.mxu0 0
      %3408 = vmatpush1.bf16.msra.mxu0 0
      %3409 = vmatprep.subr.bf16.mxu0 0
      %3410 = vmatpush1.bf16.msra.mxu0 0
      %3411 = vmatprep.subr.bf16.mxu0 0
      %3412 = vmatpush1.bf16.msra.mxu0 0
      %3413 = vmatprep.subr.bf16.mxu0 0
      %3414 = vmatpush1.bf16.msra.mxu0 0
      %3415 = vmatprep.subr.bf16.mxu0 %v2952
      %3416 = vmatpush1.bf16.msra.mxu0 %v2951
      %3417 = vmatprep.subr.bf16.mxu0 %v2946
      %3418 = vmatpush1.bf16.msra.mxu0 %v2945
      %3419 = vmatprep.subr.bf16.mxu0 0
      %3420 = vmatpush2.bf16.msra.mxu0 0
      %3421 = vmatprep.subr.bf16.mxu0 0
      %3422 = vmatpush2.bf16.msra.mxu0 0
      %3423 = vmatprep.subr.bf16.mxu0 0
      %3424 = vmatpush2.bf16.msra.mxu0 0
      %3425 = vmatprep.subr.bf16.mxu0 0
      %3426 = vmatpush2.bf16.msra.mxu0 0
      %3427 = vmatprep.subr.bf16.mxu0 0
      %3428 = vmatpush2.bf16.msra.mxu0 0
      %3429 = vmatprep.subr.bf16.mxu0 0
      %3430 = vmatpush2.bf16.msra.mxu0 0
      %3431 = vmatprep.subr.bf16.mxu0 0
      %3432 = vmatpush2.bf16.msra.mxu0 0
      %3433 = vmatprep.subr.bf16.mxu0 0
      %3434 = vmatpush2.bf16.msra.mxu0 0
      %3435 = vmatprep.mubr.bf16.mxu0 0
      %3436 = vmatmul.mubr.bf16.gmra.mxu0 %v3027
      %v3437 = vpop.f32.mrf.mxu0
      %v3438 = vadd.f32 %v3365, %v3437
      %v3439 = vpop.f32.mrf.mxu0
      %v3440 = vadd.f32 %v3367, %v3439
      %v3441 = vpop.f32.mrf.mxu0
      %v3442 = vadd.f32 %v3369, %v3441
      %v3443 = vpop.f32.mrf.mxu0
      %v3444 = vadd.f32 %v3371, %v3443
      %3445 = vmatprep.mubr.bf16.mxu0 0
      %3446 = vmatmul.mubr.bf16.gmra.mxu0 %v3030
      %v3447 = vpop.f32.mrf.mxu0
      %v3448 = vadd.f32 %v3375, %v3447
      %v3449 = vpop.f32.mrf.mxu0
      %v3450 = vadd.f32 %v3377, %v3449
      %v3451 = vpop.f32.mrf.mxu0
      %v3452 = vadd.f32 %v3379, %v3451
      %v3453 = vpop.f32.mrf.mxu0
      %v3454 = vadd.f32 %v3381, %v3453
      %3455 = vmatprep.mubr.bf16.mxu0 0
      %3456 = vmatmul.mubr.bf16.gmra.mxu0 %v3033
      %v3457 = vpop.f32.mrf.mxu0
      %v3458 = vadd.f32 %v3385, %v3457
      %v3459 = vpop.f32.mrf.mxu0
      %v3460 = vadd.f32 %v3387, %v3459
      %v3461 = vpop.f32.mrf.mxu0
      %v3462 = vadd.f32 %v3389, %v3461
      %v3463 = vpop.f32.mrf.mxu0
      %v3464 = vadd.f32 %v3391, %v3463
      %3465 = vmatprep.mubr.bf16.mxu0 0
      %3466 = vmatmul.mubr.bf16.gmra.mxu0 %v3036
      %v3467 = vpop.f32.mrf.mxu0
      %v3468 = vadd.f32 %v3395, %v3467
      %v3469 = vpop.f32.mrf.mxu0
      %v3470 = vadd.f32 %v3397, %v3469
      %v3471 = vpop.f32.mrf.mxu0
      %v3472 = vadd.f32 %v3399, %v3471
      %v3473 = vpop.f32.mrf.mxu0
      %v3474 = vadd.f32 %v3401, %v3473
      %3475 = vdwg.mxu0
      %3524 = vrot.lane.b32.xlu0 %v3146, 96
      %v3525 = vpop.permute.xlu0 %3524
      %3526 = vrot.lane.b32.xlu0 %v3148, 96
      %v3527 = vpop.permute.xlu0 %3526
      %3528 = vrot.lane.b32.xlu0 %v3292, 96
      %v3529 = vpop.permute.xlu0 %3528
      %3530 = vrot.lane.b32.xlu0 %v3294, 96
      %v3531 = vpop.permute.xlu0 %3530
      %3532 = vrot.lane.b32.xlu0 %v3438, 96
      %v3533 = vpop.permute.xlu0 %3532
      %3534 = vrot.lane.b32.xlu0 %v3440, 96
      %v3535 = vpop.permute.xlu0 %3534
      %3536 = vrot.lane.b32.xlu0 %v3150, 96
      %v3537 = vpop.permute.xlu0 %3536
      %3538 = vrot.lane.b32.xlu0 %v3152, 96
      %v3539 = vpop.permute.xlu0 %3538
      %3540 = vrot.lane.b32.xlu0 %v3296, 96
      %v3541 = vpop.permute.xlu0 %3540
      %3542 = vrot.lane.b32.xlu0 %v3298, 96
      %v3543 = vpop.permute.xlu0 %3542
      %3544 = vrot.lane.b32.xlu0 %v3442, 96
      %v3545 = vpop.permute.xlu0 %3544
      %3546 = vrot.lane.b32.xlu0 %v3444, 96
      %v3547 = vpop.permute.xlu0 %3546
      %3548 = vrot.lane.b32.xlu0 %v3156, 96
      %v3549 = vpop.permute.xlu0 %3548
      %3550 = vrot.lane.b32.xlu0 %v3158, 96
      %v3551 = vpop.permute.xlu0 %3550
      %3552 = vrot.lane.b32.xlu0 %v3302, 96
      %v3553 = vpop.permute.xlu0 %3552
      %3554 = vrot.lane.b32.xlu0 %v3304, 96
      %v3555 = vpop.permute.xlu0 %3554
      %3556 = vrot.lane.b32.xlu0 %v3448, 96
      %v3557 = vpop.permute.xlu0 %3556
      %3558 = vrot.lane.b32.xlu0 %v3450, 96
      %v3559 = vpop.permute.xlu0 %3558
      %3560 = vrot.lane.b32.xlu0 %v3160, 96
      %v3561 = vpop.permute.xlu0 %3560
      %3562 = vrot.lane.b32.xlu0 %v3162, 96
      %v3563 = vpop.permute.xlu0 %3562
      %3564 = vrot.lane.b32.xlu0 %v3306, 96
      %v3565 = vpop.permute.xlu0 %3564
      %3566 = vrot.lane.b32.xlu0 %v3308, 96
      %v3567 = vpop.permute.xlu0 %3566
      %3568 = vrot.lane.b32.xlu0 %v3452, 96
      %v3569 = vpop.permute.xlu0 %3568
      %3570 = vrot.lane.b32.xlu0 %v3454, 96
      %v3571 = vpop.permute.xlu0 %3570
      %3572 = vrot.lane.b32.xlu0 %v3166, 96
      %v3573 = vpop.permute.xlu0 %3572
      %3574 = vrot.lane.b32.xlu0 %v3168, 96
      %v3575 = vpop.permute.xlu0 %3574
      %3576 = vrot.lane.b32.xlu0 %v3312, 96
      %v3577 = vpop.permute.xlu0 %3576
      %3578 = vrot.lane.b32.xlu0 %v3314, 96
      %v3579 = vpop.permute.xlu0 %3578
      %3580 = vrot.lane.b32.xlu0 %v3458, 96
      %v3581 = vpop.permute.xlu0 %3580
      %3582 = vrot.lane.b32.xlu0 %v3460, 96
      %v3583 = vpop.permute.xlu0 %3582
      %3584 = vrot.lane.b32.xlu0 %v3170, 96
      %v3585 = vpop.permute.xlu0 %3584
      %3586 = vrot.lane.b32.xlu0 %v3172, 96
      %v3587 = vpop.permute.xlu0 %3586
      %3588 = vrot.lane.b32.xlu0 %v3316, 96
      %v3589 = vpop.permute.xlu0 %3588
      %3590 = vrot.lane.b32.xlu0 %v3318, 96
      %v3591 = vpop.permute.xlu0 %3590
      %3592 = vrot.lane.b32.xlu0 %v3462, 96
      %v3593 = vpop.permute.xlu0 %3592
      %3594 = vrot.lane.b32.xlu0 %v3464, 96
      %v3595 = vpop.permute.xlu0 %3594
      %3596 = vrot.lane.b32.xlu0 %v3176, 96
      %v3597 = vpop.permute.xlu0 %3596
      %3598 = vrot.lane.b32.xlu0 %v3178, 96
      %v3599 = vpop.permute.xlu0 %3598
      %3600 = vrot.lane.b32.xlu0 %v3322, 96
      %v3601 = vpop.permute.xlu0 %3600
      %3602 = vrot.lane.b32.xlu0 %v3324, 96
      %v3603 = vpop.permute.xlu0 %3602
      %3604 = vrot.lane.b32.xlu0 %v3468, 96
      %v3605 = vpop.permute.xlu0 %3604
      %3606 = vrot.lane.b32.xlu0 %v3470, 96
      %v3607 = vpop.permute.xlu0 %3606
      %3608 = vrot.lane.b32.xlu0 %v3180, 96
      %v3609 = vpop.permute.xlu0 %3608
      %3610 = vrot.lane.b32.xlu0 %v3182, 96
      %v3611 = vpop.permute.xlu0 %3610
      %3612 = vrot.lane.b32.xlu0 %v3326, 96
      %v3613 = vpop.permute.xlu0 %3612
      %3614 = vrot.lane.b32.xlu0 %v3328, 96
      %v3615 = vpop.permute.xlu0 %3614
      %3616 = vrot.lane.b32.xlu0 %v3472, 96
      %v3617 = vpop.permute.xlu0 %3616
      %3618 = vrot.lane.b32.xlu0 %v3474, 96
      %v3619 = vpop.permute.xlu0 %3618
      %v3620 = vsel %vm985, %v3525, %v3527
      %v3621 = vsel %vm985, %v3527, %v3529
      %v3622 = vsel %vm985, %v3529, %v3531
      %v3623 = vsel %vm985, %v3531, %v3533
      %v3624 = vsel %vm985, %v3533, %v3535
      %v3625 = vsel %vm985, %v3537, %v3539
      %v3626 = vsel %vm985, %v3539, %v3541
      %v3627 = vsel %vm985, %v3541, %v3543
      %v3628 = vsel %vm985, %v3543, %v3545
      %v3629 = vsel %vm985, %v3545, %v3547
      %v3630 = vsel %vm985, %v3549, %v3551
      %v3631 = vsel %vm985, %v3551, %v3553
      %v3632 = vsel %vm985, %v3553, %v3555
      %v3633 = vsel %vm985, %v3555, %v3557
      %v3634 = vsel %vm985, %v3557, %v3559
      %v3635 = vsel %vm985, %v3561, %v3563
      %v3636 = vsel %vm985, %v3563, %v3565
      %v3637 = vsel %vm985, %v3565, %v3567
      %v3638 = vsel %vm985, %v3567, %v3569
      %v3639 = vsel %vm985, %v3569, %v3571
      %v3640 = vsel %vm985, %v3573, %v3575
      %v3641 = vsel %vm985, %v3575, %v3577
      %v3642 = vsel %vm985, %v3577, %v3579
      %v3643 = vsel %vm985, %v3579, %v3581
      %v3644 = vsel %vm985, %v3581, %v3583
      %v3645 = vsel %vm985, %v3585, %v3587
      %v3646 = vsel %vm985, %v3587, %v3589
      %v3647 = vsel %vm985, %v3589, %v3591
      %v3648 = vsel %vm985, %v3591, %v3593
      %v3649 = vsel %vm985, %v3593, %v3595
      %v3650 = vsel %vm985, %v3597, %v3599
      %v3651 = vsel %vm985, %v3599, %v3601
      %v3652 = vsel %vm985, %v3601, %v3603
      %v3653 = vsel %vm985, %v3603, %v3605
      %v3654 = vsel %vm985, %v3605, %v3607
      %v3655 = vsel %vm985, %v3609, %v3611
      %v3656 = vsel %vm985, %v3611, %v3613
      %v3657 = vsel %vm985, %v3613, %v3615
      %v3658 = vsel %vm985, %v3615, %v3617
      %v3659 = vsel %vm985, %v3617, %v3619
      %v3708 = vmax.f32 %v3146, %v3620
      %v3709 = vmax.f32 %v3148, %v3621
      %v3710 = vmax.f32 %v3292, %v3622
      %v3711 = vmax.f32 %v3294, %v3623
      %v3712 = vmax.f32 %v3438, %v3624
      %v3713 = vmax.f32 %v3440, %v3535
      %v3714 = vmax.f32 %v3150, %v3625
      %v3715 = vmax.f32 %v3152, %v3626
      %v3716 = vmax.f32 %v3296, %v3627
      %v3717 = vmax.f32 %v3298, %v3628
      %v3718 = vmax.f32 %v3442, %v3629
      %v3719 = vmax.f32 %v3444, %v3547
      %v3720 = vmax.f32 %v3156, %v3630
      %v3721 = vmax.f32 %v3158, %v3631
      %v3722 = vmax.f32 %v3302, %v3632
      %v3723 = vmax.f32 %v3304, %v3633
      %v3724 = vmax.f32 %v3448, %v3634
      %v3725 = vmax.f32 %v3450, %v3559
      %v3726 = vmax.f32 %v3160, %v3635
      %v3727 = vmax.f32 %v3162, %v3636
      %v3728 = vmax.f32 %v3306, %v3637
      %v3729 = vmax.f32 %v3308, %v3638
      %v3730 = vmax.f32 %v3452, %v3639
      %v3731 = vmax.f32 %v3454, %v3571
      %v3732 = vmax.f32 %v3166, %v3640
      %v3733 = vmax.f32 %v3168, %v3641
      %v3734 = vmax.f32 %v3312, %v3642
      %v3735 = vmax.f32 %v3314, %v3643
      %v3736 = vmax.f32 %v3458, %v3644
      %v3737 = vmax.f32 %v3460, %v3583
      %v3738 = vmax.f32 %v3170, %v3645
      %v3739 = vmax.f32 %v3172, %v3646
      %v3740 = vmax.f32 %v3316, %v3647
      %v3741 = vmax.f32 %v3318, %v3648
      %v3742 = vmax.f32 %v3462, %v3649
      %v3743 = vmax.f32 %v3464, %v3595
      %v3744 = vmax.f32 %v3176, %v3650
      %v3745 = vmax.f32 %v3178, %v3651
      %v3746 = vmax.f32 %v3322, %v3652
      %v3747 = vmax.f32 %v3324, %v3653
      %v3748 = vmax.f32 %v3468, %v3654
      %v3749 = vmax.f32 %v3470, %v3607
      %v3750 = vmax.f32 %v3180, %v3655
      %v3751 = vmax.f32 %v3182, %v3656
      %v3752 = vmax.f32 %v3326, %v3657
      %v3753 = vmax.f32 %v3328, %v3658
      %v3754 = vmax.f32 %v3472, %v3659
      %v3755 = vmax.f32 %v3474, %v3619
      %v3756 = vpack.c.bf16 %v3714, %v3708
      %v3757 = vpack.c.bf16 %v3715, %v3709
      %v3758 = vpack.c.bf16 %v3716, %v3710
      %v3759 = vpack.c.bf16 %v3717, %v3711
      %v3760 = vpack.c.bf16 %v3718, %v3712
      %v3761 = vpack.c.bf16 %v3719, %v3713
      %v3762 = vpack.c.bf16 %v3726, %v3720
      %v3763 = vpack.c.bf16 %v3727, %v3721
      %v3764 = vpack.c.bf16 %v3728, %v3722
      %v3765 = vpack.c.bf16 %v3729, %v3723
      %v3766 = vpack.c.bf16 %v3730, %v3724
      %v3767 = vpack.c.bf16 %v3731, %v3725
      %v3768 = vpack.c.bf16 %v3738, %v3732
      %v3769 = vpack.c.bf16 %v3739, %v3733
      %v3770 = vpack.c.bf16 %v3740, %v3734
      %v3771 = vpack.c.bf16 %v3741, %v3735
      %v3772 = vpack.c.bf16 %v3742, %v3736
      %v3773 = vpack.c.bf16 %v3743, %v3737
      %v3774 = vpack.c.bf16 %v3750, %v3744
      %v3775 = vpack.c.bf16 %v3751, %v3745
      %v3776 = vpack.c.bf16 %v3752, %v3746
      %v3777 = vpack.c.bf16 %v3753, %v3747
      %v3778 = vpack.c.bf16 %v3754, %v3748
      %v3779 = vpack.c.bf16 %v3755, %v3749
      %v3872 = vunpack.c.l.b16 %v73
      %v3873 = vunpack.c.h.b16 %v73
      %v3874 = vunpack.c.l.b16 %v74
      %v3875 = vunpack.c.h.b16 %v74
      %v3876 = vunpack.c.l.b16 %v75
      %v3877 = vunpack.c.h.b16 %v75
      %v3878 = vunpack.c.l.b16 %v76
      %v3879 = vunpack.c.h.b16 %v76
      %v3880 = vunpack.c.l.b16 %v77
      %v3881 = vunpack.c.h.b16 %v77
      %v3882 = vunpack.c.l.b16 %v78
      %v3883 = vunpack.c.h.b16 %v78
      %v3884 = vunpack.c.l.b16 %v79
      %v3885 = vunpack.c.h.b16 %v79
      %v3886 = vunpack.c.l.b16 %v80
      %v3887 = vunpack.c.h.b16 %v80
      %v3888 = vunpack.c.l.b16 %v81
      %v3889 = vunpack.c.h.b16 %v81
      %v3890 = vunpack.c.l.b16 %v82
      %v3891 = vunpack.c.h.b16 %v82
      %v3892 = vunpack.c.l.b16 %v83
      %v3893 = vunpack.c.h.b16 %v83
      %v3894 = vunpack.c.l.b16 %v84
      %v3895 = vunpack.c.h.b16 %v84
      %v3896 = vunpack.c.l.b16 %v85
      %v3897 = vunpack.c.h.b16 %v85
      %v3898 = vunpack.c.l.b16 %v86
      %v3899 = vunpack.c.h.b16 %v86
      %v3900 = vunpack.c.l.b16 %v87
      %v3901 = vunpack.c.h.b16 %v87
      %v3902 = vunpack.c.l.b16 %v88
      %v3903 = vunpack.c.h.b16 %v88
      %v3904 = vunpack.c.l.b16 %v89
      %v3905 = vunpack.c.h.b16 %v89
      %v3906 = vunpack.c.l.b16 %v90
      %v3907 = vunpack.c.h.b16 %v90
      %v3908 = vunpack.c.l.b16 %v91
      %v3909 = vunpack.c.h.b16 %v91
      %v3910 = vunpack.c.l.b16 %v92
      %v3911 = vunpack.c.h.b16 %v92
      %v3912 = vunpack.c.l.b16 %v93
      %v3913 = vunpack.c.h.b16 %v93
      %v3914 = vunpack.c.l.b16 %v94
      %v3915 = vunpack.c.h.b16 %v94
      %v3916 = vunpack.c.l.b16 %v95
      %v3917 = vunpack.c.h.b16 %v95
      %v3918 = vunpack.c.l.b16 %v96
      %v3919 = vunpack.c.h.b16 %v96
      %v3920 = vunpack.c.l.b16 %v97
      %v3921 = vunpack.c.h.b16 %v97
      %v3922 = vunpack.c.l.b16 %v98
      %v3923 = vunpack.c.h.b16 %v98
      %v3924 = vunpack.c.l.b16 %v99
      %v3925 = vunpack.c.h.b16 %v99
      %v3926 = vunpack.c.l.b16 %v100
      %v3927 = vunpack.c.h.b16 %v100
      %v3928 = vunpack.c.l.b16 %v101
      %v3929 = vunpack.c.h.b16 %v101
      %v3930 = vunpack.c.l.b16 %v102
      %v3931 = vunpack.c.h.b16 %v102
      %v3932 = vunpack.c.l.b16 %v103
      %v3933 = vunpack.c.h.b16 %v103
      %v3934 = vunpack.c.l.b16 %v104
      %v3935 = vunpack.c.h.b16 %v104
      %v3936 = vunpack.c.l.b16 %v105
      %v3937 = vunpack.c.h.b16 %v105
      %v3938 = vunpack.c.l.b16 %v106
      %v3939 = vunpack.c.h.b16 %v106
      %v3940 = vunpack.c.l.b16 %v107
      %v3941 = vunpack.c.h.b16 %v107
      %v3942 = vunpack.c.l.b16 %v108
      %v3943 = vunpack.c.h.b16 %v108
      %v3944 = vunpack.c.l.b16 %v109
      %v3945 = vunpack.c.h.b16 %v109
      %v3946 = vunpack.c.l.b16 %v110
      %v3947 = vunpack.c.h.b16 %v110
      %v3948 = vunpack.c.l.b16 %v111
      %v3949 = vunpack.c.h.b16 %v111
      %v3950 = vunpack.c.l.b16 %v112
      %v3951 = vunpack.c.h.b16 %v112
      %v3952 = vunpack.c.l.b16 %v113
      %v3953 = vunpack.c.h.b16 %v113
      %v3954 = vunpack.c.l.b16 %v114
      %v3955 = vunpack.c.h.b16 %v114
      %v3956 = vunpack.c.l.b16 %v115
      %v3957 = vunpack.c.h.b16 %v115
      %v3958 = vunpack.c.l.b16 %v116
      %v3959 = vunpack.c.h.b16 %v116
      %v3960 = vunpack.c.l.b16 %v117
      %v3961 = vunpack.c.h.b16 %v117
      %v3962 = vunpack.c.l.b16 %v118
      %v3963 = vunpack.c.h.b16 %v118
      %v3964 = vunpack.c.l.b16 %v119
      %v3965 = vunpack.c.h.b16 %v119
      %v3966 = vunpack.c.l.b16 %v120
      %v3967 = vunpack.c.h.b16 %v120
      %v3968 = vunpack.c.l.b16 %v121
      %v3969 = vunpack.c.h.b16 %v121
      %v3970 = vunpack.c.l.b16 %v122
      %v3971 = vunpack.c.h.b16 %v122
      %v3972 = vunpack.c.l.b16 %v123
      %v3973 = vunpack.c.h.b16 %v123
      %v3974 = vunpack.c.l.b16 %v124
      %v3975 = vunpack.c.h.b16 %v124
      %v3976 = vunpack.c.l.b16 %v125
      %v3977 = vunpack.c.h.b16 %v125
      %v3978 = vunpack.c.l.b16 %v126
      %v3979 = vunpack.c.h.b16 %v126
      %v3980 = vunpack.c.l.b16 %v127
      %v3981 = vunpack.c.h.b16 %v127
      %v3982 = vunpack.c.l.b16 %v128
      %v3983 = vunpack.c.h.b16 %v128
      %v3984 = vunpack.c.l.b16 %v129
      %v3985 = vunpack.c.h.b16 %v129
      %v3986 = vunpack.c.l.b16 %v130
      %v3987 = vunpack.c.h.b16 %v130
      %v3988 = vunpack.c.l.b16 %v131
      %v3989 = vunpack.c.h.b16 %v131
      %v3990 = vunpack.c.l.b16 %v132
      %v3991 = vunpack.c.h.b16 %v132
      %v3992 = vunpack.c.l.b16 %v133
      %v3993 = vunpack.c.h.b16 %v133
      %v3994 = vunpack.c.l.b16 %v134
      %v3995 = vunpack.c.h.b16 %v134
      %v3996 = vunpack.c.l.b16 %v135
      %v3997 = vunpack.c.h.b16 %v135
      %v3998 = vunpack.c.l.b16 %v136
      %v3999 = vunpack.c.h.b16 %v136
      %v4000 = vunpack.c.l.b16 %v137
      %v4001 = vunpack.c.h.b16 %v137
      %v4002 = vunpack.c.l.b16 %v138
      %v4003 = vunpack.c.h.b16 %v138
      %v4004 = vunpack.c.l.b16 %v139
      %v4005 = vunpack.c.h.b16 %v139
      %v4006 = vunpack.c.l.b16 %v140
      %v4007 = vunpack.c.h.b16 %v140
      %v4008 = vunpack.c.l.b16 %v141
      %v4009 = vunpack.c.h.b16 %v141
      %v4010 = vunpack.c.l.b16 %v142
      %v4011 = vunpack.c.h.b16 %v142
      %v4012 = vunpack.c.l.b16 %v143
      %v4013 = vunpack.c.h.b16 %v143
      %v4014 = vunpack.c.l.b16 %v144
      %v4015 = vunpack.c.h.b16 %v144
      %v4016 = vunpack.c.l.b16 %v145
      %v4017 = vunpack.c.h.b16 %v145
      %v4018 = vunpack.c.l.b16 %v146
      %v4019 = vunpack.c.h.b16 %v146
      %v4020 = vunpack.c.l.b16 %v147
      %v4021 = vunpack.c.h.b16 %v147
      %v4022 = vunpack.c.l.b16 %v148
      %v4023 = vunpack.c.h.b16 %v148
      %v4024 = vunpack.c.l.b16 %v149
      %v4025 = vunpack.c.h.b16 %v149
      %v4026 = vunpack.c.l.b16 %v150
      %v4027 = vunpack.c.h.b16 %v150
      %v4028 = vunpack.c.l.b16 %v151
      %v4029 = vunpack.c.h.b16 %v151
      %v4030 = vunpack.c.l.b16 %v152
      %v4031 = vunpack.c.h.b16 %v152
      %v4032 = vunpack.c.l.b16 %v153
      %v4033 = vunpack.c.h.b16 %v153
      %v4034 = vunpack.c.l.b16 %v154
      %v4035 = vunpack.c.h.b16 %v154
      %v4036 = vunpack.c.l.b16 %v155
      %v4037 = vunpack.c.h.b16 %v155
      %v4038 = vunpack.c.l.b16 %v156
      %v4039 = vunpack.c.h.b16 %v156
      %v4040 = vunpack.c.l.b16 %v157
      %v4041 = vunpack.c.h.b16 %v157
      %v4042 = vunpack.c.l.b16 %v158
      %v4043 = vunpack.c.h.b16 %v158
      %v4044 = vunpack.c.l.b16 %v159
      %v4045 = vunpack.c.h.b16 %v159
      %v4046 = vunpack.c.l.b16 %v160
      %v4047 = vunpack.c.h.b16 %v160
      %v4048 = vunpack.c.l.b16 %v161
      %v4049 = vunpack.c.h.b16 %v161
      %v4050 = vunpack.c.l.b16 %v162
      %v4051 = vunpack.c.h.b16 %v162
      %v4052 = vunpack.c.l.b16 %v163
      %v4053 = vunpack.c.h.b16 %v163
      %v4054 = vunpack.c.l.b16 %v164
      %v4055 = vunpack.c.h.b16 %v164
      %v4056 = vpack.c.b16 %v3874, %v3872
      %v4057 = vpack.c.b16 %v3875, %v3873
      %v4058 = vpack.c.b16 %v3878, %v3876
      %v4059 = vpack.c.b16 %v3879, %v3877
      %v4060 = vpack.c.b16 %v3882, %v3880
      %v4061 = vpack.c.b16 %v3883, %v3881
      %v4062 = vpack.c.b16 %v3886, %v3884
      %v4063 = vpack.c.b16 %v3887, %v3885
      %v4064 = vpack.c.b16 %v3890, %v3888
      %v4065 = vpack.c.b16 %v3891, %v3889
      %v4066 = vpack.c.b16 %v3894, %v3892
      %v4067 = vpack.c.b16 %v3895, %v3893
      %v4068 = vpack.c.b16 %v3898, %v3896
      %v4069 = vpack.c.b16 %v3899, %v3897
      %v4070 = vpack.c.b16 %v3902, %v3900
      %v4071 = vpack.c.b16 %v3903, %v3901
      %v4072 = vpack.c.b16 %v3906, %v3904
      %v4073 = vpack.c.b16 %v3907, %v3905
      %v4074 = vpack.c.b16 %v3910, %v3908
      %v4075 = vpack.c.b16 %v3911, %v3909
      %v4076 = vpack.c.b16 %v3914, %v3912
      %v4077 = vpack.c.b16 %v3915, %v3913
      %v4078 = vpack.c.b16 %v3918, %v3916
      %v4079 = vpack.c.b16 %v3919, %v3917
      %v4080 = vpack.c.b16 %v3922, %v3920
      %v4081 = vpack.c.b16 %v3923, %v3921
      %v4082 = vpack.c.b16 %v3926, %v3924
      %v4083 = vpack.c.b16 %v3927, %v3925
      %v4084 = vpack.c.b16 %v3930, %v3928
      %v4085 = vpack.c.b16 %v3931, %v3929
      %v4086 = vpack.c.b16 %v3934, %v3932
      %v4087 = vpack.c.b16 %v3935, %v3933
      %v4088 = vpack.c.b16 %v3938, %v3936
      %v4089 = vpack.c.b16 %v3939, %v3937
      %v4090 = vpack.c.b16 %v3942, %v3940
      %v4091 = vpack.c.b16 %v3943, %v3941
      %v4092 = vpack.c.b16 %v3946, %v3944
      %v4093 = vpack.c.b16 %v3947, %v3945
      %v4094 = vpack.c.b16 %v3950, %v3948
      %v4095 = vpack.c.b16 %v3951, %v3949
      %v4096 = vpack.c.b16 %v3954, %v3952
      %v4097 = vpack.c.b16 %v3955, %v3953
      %v4098 = vpack.c.b16 %v3958, %v3956
      %v4099 = vpack.c.b16 %v3959, %v3957
      %v4100 = vpack.c.b16 %v3962, %v3960
      %v4101 = vpack.c.b16 %v3963, %v3961
      %v4102 = vpack.c.b16 %v3966, %v3964
      %v4103 = vpack.c.b16 %v3967, %v3965
      %v4104 = vpack.c.b16 %v3970, %v3968
      %v4105 = vpack.c.b16 %v3971, %v3969
      %v4106 = vpack.c.b16 %v3974, %v3972
      %v4107 = vpack.c.b16 %v3975, %v3973
      %v4108 = vpack.c.b16 %v3978, %v3976
      %v4109 = vpack.c.b16 %v3979, %v3977
      %v4110 = vpack.c.b16 %v3982, %v3980
      %v4111 = vpack.c.b16 %v3983, %v3981
      %v4112 = vpack.c.b16 %v3986, %v3984
      %v4113 = vpack.c.b16 %v3987, %v3985
      %v4114 = vpack.c.b16 %v3990, %v3988
      %v4115 = vpack.c.b16 %v3991, %v3989
      %v4116 = vpack.c.b16 %v3994, %v3992
      %v4117 = vpack.c.b16 %v3995, %v3993
      %v4118 = vpack.c.b16 %v3998, %v3996
      %v4119 = vpack.c.b16 %v3999, %v3997
      %v4120 = vpack.c.b16 %v4002, %v4000
      %v4121 = vpack.c.b16 %v4003, %v4001
      %v4122 = vpack.c.b16 %v4006, %v4004
      %v4123 = vpack.c.b16 %v4007, %v4005
      %v4124 = vpack.c.b16 %v4010, %v4008
      %v4125 = vpack.c.b16 %v4011, %v4009
      %v4126 = vpack.c.b16 %v4014, %v4012
      %v4127 = vpack.c.b16 %v4015, %v4013
      %v4128 = vpack.c.b16 %v4018, %v4016
      %v4129 = vpack.c.b16 %v4019, %v4017
      %v4130 = vpack.c.b16 %v4022, %v4020
      %v4131 = vpack.c.b16 %v4023, %v4021
      %v4132 = vpack.c.b16 %v4026, %v4024
      %v4133 = vpack.c.b16 %v4027, %v4025
      %v4134 = vpack.c.b16 %v4030, %v4028
      %v4135 = vpack.c.b16 %v4031, %v4029
      %v4136 = vpack.c.b16 %v4034, %v4032
      %v4137 = vpack.c.b16 %v4035, %v4033
      %v4138 = vpack.c.b16 %v4038, %v4036
      %v4139 = vpack.c.b16 %v4039, %v4037
      %v4140 = vpack.c.b16 %v4042, %v4040
      %v4141 = vpack.c.b16 %v4043, %v4041
      %v4142 = vpack.c.b16 %v4046, %v4044
      %v4143 = vpack.c.b16 %v4047, %v4045
      %v4144 = vpack.c.b16 %v4050, %v4048
      %v4145 = vpack.c.b16 %v4051, %v4049
      %v4146 = vpack.c.b16 %v4054, %v4052
      %v4147 = vpack.c.b16 %v4055, %v4053
      %v4241 = vsel %vm985, %v3761, 0
      %v4244 = vsel %vm985, %v3767, 0
      %v4247 = vsel %vm985, %v3773, 0
      %v4250 = vsel %vm985, %v3779, 0
      %4252 = vmatprep.subr.bf16.mxu0 %v4071
      %4253 = vmatpush1.bf16.msra.mxu0 %v4070
      %4254 = vmatprep.subr.bf16.mxu0 %v4069
      %4255 = vmatpush1.bf16.msra.mxu0 %v4068
      %4256 = vmatprep.subr.bf16.mxu0 %v4067
      %4257 = vmatpush1.bf16.msra.mxu0 %v4066
      %4258 = vmatprep.subr.bf16.mxu0 %v4065
      %4259 = vmatpush1.bf16.msra.mxu0 %v4064
      %4260 = vmatprep.subr.bf16.mxu0 %v4063
      %4261 = vmatpush1.bf16.msra.mxu0 %v4062
      %4262 = vmatprep.subr.bf16.mxu0 %v4061
      %4263 = vmatpush1.bf16.msra.mxu0 %v4060
      %4264 = vmatprep.subr.bf16.mxu0 %v4059
      %4265 = vmatpush1.bf16.msra.mxu0 %v4058
      %4266 = vmatprep.subr.bf16.mxu0 %v4057
      %4267 = vmatpush1.bf16.msra.mxu0 %v4056
      %4268 = vmatprep.subr.bf16.mxu0 %v4087
      %4269 = vmatpush2.bf16.msra.mxu0 %v4086
      %4270 = vmatprep.subr.bf16.mxu0 %v4085
      %4271 = vmatpush2.bf16.msra.mxu0 %v4084
      %4272 = vmatprep.subr.bf16.mxu0 %v4083
      %4273 = vmatpush2.bf16.msra.mxu0 %v4082
      %4274 = vmatprep.subr.bf16.mxu0 %v4081
      %4275 = vmatpush2.bf16.msra.mxu0 %v4080
      %4276 = vmatprep.subr.bf16.mxu0 %v4079
      %4277 = vmatpush2.bf16.msra.mxu0 %v4078
      %4278 = vmatprep.subr.bf16.mxu0 %v4077
      %4279 = vmatpush2.bf16.msra.mxu0 %v4076
      %4280 = vmatprep.subr.bf16.mxu0 %v4075
      %4281 = vmatpush2.bf16.msra.mxu0 %v4074
      %4282 = vmatprep.subr.bf16.mxu0 %v4073
      %4283 = vmatpush2.bf16.msra.mxu0 %v4072
      %4284 = vmatprep.mubr.bf16.mxu0 %v3757
      %4285 = vmatmul.mubr.bf16.gmra.mxu0 %v3756
      %v4286 = vpop.f32.mrf.mxu0
      %v4287 = vadd.f32 0.0, %v4286
      %v4288 = vpop.f32.mrf.mxu0
      %v4289 = vadd.f32 0.0, %v4288
      %v4290 = vpop.f32.mrf.mxu0
      %v4291 = vadd.f32 0.0, %v4290
      %v4292 = vpop.f32.mrf.mxu0
      %v4293 = vadd.f32 0.0, %v4292
      %4294 = vmatprep.mubr.bf16.mxu0 %v3763
      %4295 = vmatmul.mubr.bf16.gmra.mxu0 %v3762
      %v4296 = vpop.f32.mrf.mxu0
      %v4297 = vadd.f32 0.0, %v4296
      %v4298 = vpop.f32.mrf.mxu0
      %v4299 = vadd.f32 0.0, %v4298
      %v4300 = vpop.f32.mrf.mxu0
      %v4301 = vadd.f32 0.0, %v4300
      %v4302 = vpop.f32.mrf.mxu0
      %v4303 = vadd.f32 0.0, %v4302
      %4304 = vmatprep.mubr.bf16.mxu0 %v3769
      %4305 = vmatmul.mubr.bf16.gmra.mxu0 %v3768
      %v4306 = vpop.f32.mrf.mxu0
      %v4307 = vadd.f32 0.0, %v4306
      %v4308 = vpop.f32.mrf.mxu0
      %v4309 = vadd.f32 0.0, %v4308
      %v4310 = vpop.f32.mrf.mxu0
      %v4311 = vadd.f32 0.0, %v4310
      %v4312 = vpop.f32.mrf.mxu0
      %v4313 = vadd.f32 0.0, %v4312
      %4314 = vmatprep.mubr.bf16.mxu0 %v3775
      %4315 = vmatmul.mubr.bf16.gmra.mxu0 %v3774
      %v4316 = vpop.f32.mrf.mxu0
      %v4317 = vadd.f32 0.0, %v4316
      %v4318 = vpop.f32.mrf.mxu0
      %v4319 = vadd.f32 0.0, %v4318
      %v4320 = vpop.f32.mrf.mxu0
      %v4321 = vadd.f32 0.0, %v4320
      %v4322 = vpop.f32.mrf.mxu0
      %v4323 = vadd.f32 0.0, %v4322
      %4324 = vdwg.mxu0
      %4325 = vmatprep.subr.bf16.mxu0 %v4103
      %4326 = vmatpush1.bf16.msra.mxu0 %v4102
      %4327 = vmatprep.subr.bf16.mxu0 %v4101
      %4328 = vmatpush1.bf16.msra.mxu0 %v4100
      %4329 = vmatprep.subr.bf16.mxu0 %v4099
      %4330 = vmatpush1.bf16.msra.mxu0 %v4098
      %4331 = vmatprep.subr.bf16.mxu0 %v4097
      %4332 = vmatpush1.bf16.msra.mxu0 %v4096
      %4333 = vmatprep.subr.bf16.mxu0 %v4095
      %4334 = vmatpush1.bf16.msra.mxu0 %v4094
      %4335 = vmatprep.subr.bf16.mxu0 %v4093
      %4336 = vmatpush1.bf16.msra.mxu0 %v4092
      %4337 = vmatprep.subr.bf16.mxu0 %v4091
      %4338 = vmatpush1.bf16.msra.mxu0 %v4090
      %4339 = vmatprep.subr.bf16.mxu0 %v4089
      %4340 = vmatpush1.bf16.msra.mxu0 %v4088
      %4341 = vmatprep.subr.bf16.mxu0 %v4119
      %4342 = vmatpush2.bf16.msra.mxu0 %v4118
      %4343 = vmatprep.subr.bf16.mxu0 %v4117
      %4344 = vmatpush2.bf16.msra.mxu0 %v4116
      %4345 = vmatprep.subr.bf16.mxu0 %v4115
      %4346 = vmatpush2.bf16.msra.mxu0 %v4114
      %4347 = vmatprep.subr.bf16.mxu0 %v4113
      %4348 = vmatpush2.bf16.msra.mxu0 %v4112
      %4349 = vmatprep.subr.bf16.mxu0 %v4111
      %4350 = vmatpush2.bf16.msra.mxu0 %v4110
      %4351 = vmatprep.subr.bf16.mxu0 %v4109
      %4352 = vmatpush2.bf16.msra.mxu0 %v4108
      %4353 = vmatprep.subr.bf16.mxu0 %v4107
      %4354 = vmatpush2.bf16.msra.mxu0 %v4106
      %4355 = vmatprep.subr.bf16.mxu0 %v4105
      %4356 = vmatpush2.bf16.msra.mxu0 %v4104
      %4357 = vmatprep.mubr.bf16.mxu0 %v3759
      %4358 = vmatmul.mubr.bf16.gmra.mxu0 %v3758
      %v4359 = vpop.f32.mrf.mxu0
      %v4360 = vadd.f32 %v4287, %v4359
      %v4361 = vpop.f32.mrf.mxu0
      %v4362 = vadd.f32 %v4289, %v4361
      %v4363 = vpop.f32.mrf.mxu0
      %v4364 = vadd.f32 %v4291, %v4363
      %v4365 = vpop.f32.mrf.mxu0
      %v4366 = vadd.f32 %v4293, %v4365
      %4367 = vmatprep.mubr.bf16.mxu0 %v3765
      %4368 = vmatmul.mubr.bf16.gmra.mxu0 %v3764
      %v4369 = vpop.f32.mrf.mxu0
      %v4370 = vadd.f32 %v4297, %v4369
      %v4371 = vpop.f32.mrf.mxu0
      %v4372 = vadd.f32 %v4299, %v4371
      %v4373 = vpop.f32.mrf.mxu0
      %v4374 = vadd.f32 %v4301, %v4373
      %v4375 = vpop.f32.mrf.mxu0
      %v4376 = vadd.f32 %v4303, %v4375
      %4377 = vmatprep.mubr.bf16.mxu0 %v3771
      %4378 = vmatmul.mubr.bf16.gmra.mxu0 %v3770
      %v4379 = vpop.f32.mrf.mxu0
      %v4380 = vadd.f32 %v4307, %v4379
      %v4381 = vpop.f32.mrf.mxu0
      %v4382 = vadd.f32 %v4309, %v4381
      %v4383 = vpop.f32.mrf.mxu0
      %v4384 = vadd.f32 %v4311, %v4383
      %v4385 = vpop.f32.mrf.mxu0
      %v4386 = vadd.f32 %v4313, %v4385
      %4387 = vmatprep.mubr.bf16.mxu0 %v3777
      %4388 = vmatmul.mubr.bf16.gmra.mxu0 %v3776
      %v4389 = vpop.f32.mrf.mxu0
      %v4390 = vadd.f32 %v4317, %v4389
      %v4391 = vpop.f32.mrf.mxu0
      %v4392 = vadd.f32 %v4319, %v4391
      %v4393 = vpop.f32.mrf.mxu0
      %v4394 = vadd.f32 %v4321, %v4393
      %v4395 = vpop.f32.mrf.mxu0
      %v4396 = vadd.f32 %v4323, %v4395
      %4397 = vdwg.mxu0
      %4398 = vmatprep.subr.bf16.mxu0 %v4135
      %4399 = vmatpush1.bf16.msra.mxu0 %v4134
      %4400 = vmatprep.subr.bf16.mxu0 %v4133
      %4401 = vmatpush1.bf16.msra.mxu0 %v4132
      %4402 = vmatprep.subr.bf16.mxu0 %v4131
      %4403 = vmatpush1.bf16.msra.mxu0 %v4130
      %4404 = vmatprep.subr.bf16.mxu0 %v4129
      %4405 = vmatpush1.bf16.msra.mxu0 %v4128
      %4406 = vmatprep.subr.bf16.mxu0 %v4127
      %4407 = vmatpush1.bf16.msra.mxu0 %v4126
      %4408 = vmatprep.subr.bf16.mxu0 %v4125
      %4409 = vmatpush1.bf16.msra.mxu0 %v4124
      %4410 = vmatprep.subr.bf16.mxu0 %v4123
      %4411 = vmatpush1.bf16.msra.mxu0 %v4122
      %4412 = vmatprep.subr.bf16.mxu0 %v4121
      %4413 = vmatpush1.bf16.msra.mxu0 %v4120
      %4414 = vmatprep.subr.bf16.mxu0 0
      %4415 = vmatpush2.bf16.msra.mxu0 0
      %4416 = vmatprep.subr.bf16.mxu0 0
      %4417 = vmatpush2.bf16.msra.mxu0 0
      %4418 = vmatprep.subr.bf16.mxu0 %v4147
      %4419 = vmatpush2.bf16.msra.mxu0 %v4146
      %4420 = vmatprep.subr.bf16.mxu0 %v4145
      %4421 = vmatpush2.bf16.msra.mxu0 %v4144
      %4422 = vmatprep.subr.bf16.mxu0 %v4143
      %4423 = vmatpush2.bf16.msra.mxu0 %v4142
      %4424 = vmatprep.subr.bf16.mxu0 %v4141
      %4425 = vmatpush2.bf16.msra.mxu0 %v4140
      %4426 = vmatprep.subr.bf16.mxu0 %v4139
      %4427 = vmatpush2.bf16.msra.mxu0 %v4138
      %4428 = vmatprep.subr.bf16.mxu0 %v4137
      %4429 = vmatpush2.bf16.msra.mxu0 %v4136
      %4430 = vmatprep.mubr.bf16.mxu0 %v4241
      %4431 = vmatmul.mubr.bf16.gmra.mxu0 %v3760
      %v4432 = vpop.f32.mrf.mxu0
      %v4433 = vadd.f32 %v4360, %v4432
      %v4434 = vpop.f32.mrf.mxu0
      %v4435 = vadd.f32 %v4362, %v4434
      %v4436 = vpop.f32.mrf.mxu0
      %v4437 = vadd.f32 %v4364, %v4436
      %v4438 = vpop.f32.mrf.mxu0
      %v4439 = vadd.f32 %v4366, %v4438
      %4440 = vmatprep.mubr.bf16.mxu0 %v4244
      %4441 = vmatmul.mubr.bf16.gmra.mxu0 %v3766
      %v4442 = vpop.f32.mrf.mxu0
      %v4443 = vadd.f32 %v4370, %v4442
      %v4444 = vpop.f32.mrf.mxu0
      %v4445 = vadd.f32 %v4372, %v4444
      %v4446 = vpop.f32.mrf.mxu0
      %v4447 = vadd.f32 %v4374, %v4446
      %v4448 = vpop.f32.mrf.mxu0
      %v4449 = vadd.f32 %v4376, %v4448
      %4450 = vmatprep.mubr.bf16.mxu0 %v4247
      %4451 = vmatmul.mubr.bf16.gmra.mxu0 %v3772
      %v4452 = vpop.f32.mrf.mxu0
      %v4453 = vadd.f32 %v4380, %v4452
      %v4454 = vpop.f32.mrf.mxu0
      %v4455 = vadd.f32 %v4382, %v4454
      %v4456 = vpop.f32.mrf.mxu0
      %v4457 = vadd.f32 %v4384, %v4456
      %v4458 = vpop.f32.mrf.mxu0
      %v4459 = vadd.f32 %v4386, %v4458
      %4460 = vmatprep.mubr.bf16.mxu0 %v4250
      %4461 = vmatmul.mubr.bf16.gmra.mxu0 %v3778
      %v4462 = vpop.f32.mrf.mxu0
      %v4463 = vadd.f32 %v4390, %v4462
      %v4464 = vpop.f32.mrf.mxu0
      %v4465 = vadd.f32 %v4392, %v4464
      %v4466 = vpop.f32.mrf.mxu0
      %v4467 = vadd.f32 %v4394, %v4466
      %v4468 = vpop.f32.mrf.mxu0
      %v4469 = vadd.f32 %v4396, %v4468
      %4470 = vdwg.mxu0
      %v4563 = vunpack.c.l.b16 %v165
      %v4564 = vunpack.c.h.b16 %v165
      %v4565 = vunpack.c.l.b16 %v166
      %v4566 = vunpack.c.h.b16 %v166
      %v4567 = vunpack.c.l.b16 %v167
      %v4568 = vunpack.c.h.b16 %v167
      %v4569 = vunpack.c.l.b16 %v168
      %v4570 = vunpack.c.h.b16 %v168
      %v4571 = vunpack.c.l.b16 %v169
      %v4572 = vunpack.c.h.b16 %v169
      %v4573 = vunpack.c.l.b16 %v170
      %v4574 = vunpack.c.h.b16 %v170
      %v4575 = vunpack.c.l.b16 %v171
      %v4576 = vunpack.c.h.b16 %v171
      %v4577 = vunpack.c.l.b16 %v172
      %v4578 = vunpack.c.h.b16 %v172
      %v4579 = vunpack.c.l.b16 %v173
      %v4580 = vunpack.c.h.b16 %v173
      %v4581 = vunpack.c.l.b16 %v174
      %v4582 = vunpack.c.h.b16 %v174
      %v4583 = vunpack.c.l.b16 %v175
      %v4584 = vunpack.c.h.b16 %v175
      %v4585 = vunpack.c.l.b16 %v176
      %v4586 = vunpack.c.h.b16 %v176
      %v4587 = vunpack.c.l.b16 %v177
      %v4588 = vunpack.c.h.b16 %v177
      %v4589 = vunpack.c.l.b16 %v178
      %v4590 = vunpack.c.h.b16 %v178
      %v4591 = vunpack.c.l.b16 %v179
      %v4592 = vunpack.c.h.b16 %v179
      %v4593 = vunpack.c.l.b16 %v180
      %v4594 = vunpack.c.h.b16 %v180
      %v4595 = vunpack.c.l.b16 %v181
      %v4596 = vunpack.c.h.b16 %v181
      %v4597 = vunpack.c.l.b16 %v182
      %v4598 = vunpack.c.h.b16 %v182
      %v4599 = vunpack.c.l.b16 %v183
      %v4600 = vunpack.c.h.b16 %v183
      %v4601 = vunpack.c.l.b16 %v184
      %v4602 = vunpack.c.h.b16 %v184
      %v4603 = vunpack.c.l.b16 %v185
      %v4604 = vunpack.c.h.b16 %v185
      %v4605 = vunpack.c.l.b16 %v186
      %v4606 = vunpack.c.h.b16 %v186
      %v4607 = vunpack.c.l.b16 %v187
      %v4608 = vunpack.c.h.b16 %v187
      %v4609 = vunpack.c.l.b16 %v188
      %v4610 = vunpack.c.h.b16 %v188
      %v4611 = vunpack.c.l.b16 %v189
      %v4612 = vunpack.c.h.b16 %v189
      %v4613 = vunpack.c.l.b16 %v190
      %v4614 = vunpack.c.h.b16 %v190
      %v4615 = vunpack.c.l.b16 %v191
      %v4616 = vunpack.c.h.b16 %v191
      %v4617 = vunpack.c.l.b16 %v192
      %v4618 = vunpack.c.h.b16 %v192
      %v4619 = vunpack.c.l.b16 %v193
      %v4620 = vunpack.c.h.b16 %v193
      %v4621 = vunpack.c.l.b16 %v194
      %v4622 = vunpack.c.h.b16 %v194
      %v4623 = vunpack.c.l.b16 %v195
      %v4624 = vunpack.c.h.b16 %v195
      %v4625 = vunpack.c.l.b16 %v196
      %v4626 = vunpack.c.h.b16 %v196
      %v4627 = vunpack.c.l.b16 %v197
      %v4628 = vunpack.c.h.b16 %v197
      %v4629 = vunpack.c.l.b16 %v198
      %v4630 = vunpack.c.h.b16 %v198
      %v4631 = vunpack.c.l.b16 %v199
      %v4632 = vunpack.c.h.b16 %v199
      %v4633 = vunpack.c.l.b16 %v200
      %v4634 = vunpack.c.h.b16 %v200
      %v4635 = vunpack.c.l.b16 %v201
      %v4636 = vunpack.c.h.b16 %v201
      %v4637 = vunpack.c.l.b16 %v202
      %v4638 = vunpack.c.h.b16 %v202
      %v4639 = vunpack.c.l.b16 %v203
      %v4640 = vunpack.c.h.b16 %v203
      %v4641 = vunpack.c.l.b16 %v204
      %v4642 = vunpack.c.h.b16 %v204
      %v4643 = vunpack.c.l.b16 %v205
      %v4644 = vunpack.c.h.b16 %v205
      %v4645 = vunpack.c.l.b16 %v206
      %v4646 = vunpack.c.h.b16 %v206
      %v4647 = vunpack.c.l.b16 %v207
      %v4648 = vunpack.c.h.b16 %v207
      %v4649 = vunpack.c.l.b16 %v208
      %v4650 = vunpack.c.h.b16 %v208
      %v4651 = vunpack.c.l.b16 %v209
      %v4652 = vunpack.c.h.b16 %v209
      %v4653 = vunpack.c.l.b16 %v210
      %v4654 = vunpack.c.h.b16 %v210
      %v4655 = vunpack.c.l.b16 %v211
      %v4656 = vunpack.c.h.b16 %v211
      %v4657 = vunpack.c.l.b16 %v212
      %v4658 = vunpack.c.h.b16 %v212
      %v4659 = vunpack.c.l.b16 %v213
      %v4660 = vunpack.c.h.b16 %v213
      %v4661 = vunpack.c.l.b16 %v214
      %v4662 = vunpack.c.h.b16 %v214
      %v4663 = vunpack.c.l.b16 %v215
      %v4664 = vunpack.c.h.b16 %v215
      %v4665 = vunpack.c.l.b16 %v216
      %v4666 = vunpack.c.h.b16 %v216
      %v4667 = vunpack.c.l.b16 %v217
      %v4668 = vunpack.c.h.b16 %v217
      %v4669 = vunpack.c.l.b16 %v218
      %v4670 = vunpack.c.h.b16 %v218
      %v4671 = vunpack.c.l.b16 %v219
      %v4672 = vunpack.c.h.b16 %v219
      %v4673 = vunpack.c.l.b16 %v220
      %v4674 = vunpack.c.h.b16 %v220
      %v4675 = vunpack.c.l.b16 %v221
      %v4676 = vunpack.c.h.b16 %v221
      %v4677 = vunpack.c.l.b16 %v222
      %v4678 = vunpack.c.h.b16 %v222
      %v4679 = vunpack.c.l.b16 %v223
      %v4680 = vunpack.c.h.b16 %v223
      %v4681 = vunpack.c.l.b16 %v224
      %v4682 = vunpack.c.h.b16 %v224
      %v4683 = vunpack.c.l.b16 %v225
      %v4684 = vunpack.c.h.b16 %v225
      %v4685 = vunpack.c.l.b16 %v226
      %v4686 = vunpack.c.h.b16 %v226
      %v4687 = vunpack.c.l.b16 %v227
      %v4688 = vunpack.c.h.b16 %v227
      %v4689 = vunpack.c.l.b16 %v228
      %v4690 = vunpack.c.h.b16 %v228
      %v4691 = vunpack.c.l.b16 %v229
      %v4692 = vunpack.c.h.b16 %v229
      %v4693 = vunpack.c.l.b16 %v230
      %v4694 = vunpack.c.h.b16 %v230
      %v4695 = vunpack.c.l.b16 %v231
      %v4696 = vunpack.c.h.b16 %v231
      %v4697 = vunpack.c.l.b16 %v232
      %v4698 = vunpack.c.h.b16 %v232
      %v4699 = vunpack.c.l.b16 %v233
      %v4700 = vunpack.c.h.b16 %v233
      %v4701 = vunpack.c.l.b16 %v234
      %v4702 = vunpack.c.h.b16 %v234
      %v4703 = vunpack.c.l.b16 %v235
      %v4704 = vunpack.c.h.b16 %v235
      %v4705 = vunpack.c.l.b16 %v236
      %v4706 = vunpack.c.h.b16 %v236
      %v4707 = vunpack.c.l.b16 %v237
      %v4708 = vunpack.c.h.b16 %v237
      %v4709 = vunpack.c.l.b16 %v238
      %v4710 = vunpack.c.h.b16 %v238
      %v4711 = vunpack.c.l.b16 %v239
      %v4712 = vunpack.c.h.b16 %v239
      %v4713 = vunpack.c.l.b16 %v240
      %v4714 = vunpack.c.h.b16 %v240
      %v4715 = vunpack.c.l.b16 %v241
      %v4716 = vunpack.c.h.b16 %v241
      %v4717 = vunpack.c.l.b16 %v242
      %v4718 = vunpack.c.h.b16 %v242
      %v4719 = vunpack.c.l.b16 %v243
      %v4720 = vunpack.c.h.b16 %v243
      %v4721 = vunpack.c.l.b16 %v244
      %v4722 = vunpack.c.h.b16 %v244
      %v4723 = vunpack.c.l.b16 %v245
      %v4724 = vunpack.c.h.b16 %v245
      %v4725 = vunpack.c.l.b16 %v246
      %v4726 = vunpack.c.h.b16 %v246
      %v4727 = vunpack.c.l.b16 %v247
      %v4728 = vunpack.c.h.b16 %v247
      %v4729 = vunpack.c.l.b16 %v248
      %v4730 = vunpack.c.h.b16 %v248
      %v4731 = vunpack.c.l.b16 %v249
      %v4732 = vunpack.c.h.b16 %v249
      %v4733 = vunpack.c.l.b16 %v250
      %v4734 = vunpack.c.h.b16 %v250
      %v4735 = vunpack.c.l.b16 %v251
      %v4736 = vunpack.c.h.b16 %v251
      %v4737 = vunpack.c.l.b16 %v252
      %v4738 = vunpack.c.h.b16 %v252
      %v4739 = vunpack.c.l.b16 %v253
      %v4740 = vunpack.c.h.b16 %v253
      %v4741 = vunpack.c.l.b16 %v254
      %v4742 = vunpack.c.h.b16 %v254
      %v4743 = vunpack.c.l.b16 %v255
      %v4744 = vunpack.c.h.b16 %v255
      %v4745 = vunpack.c.l.b16 %v256
      %v4746 = vunpack.c.h.b16 %v256
      %v4747 = vpack.c.b16 %v4565, %v4563
      %v4748 = vpack.c.b16 %v4566, %v4564
      %v4749 = vpack.c.b16 %v4569, %v4567
      %v4750 = vpack.c.b16 %v4570, %v4568
      %v4751 = vpack.c.b16 %v4573, %v4571
      %v4752 = vpack.c.b16 %v4574, %v4572
      %v4753 = vpack.c.b16 %v4577, %v4575
      %v4754 = vpack.c.b16 %v4578, %v4576
      %v4755 = vpack.c.b16 %v4581, %v4579
      %v4756 = vpack.c.b16 %v4582, %v4580
      %v4757 = vpack.c.b16 %v4585, %v4583
      %v4758 = vpack.c.b16 %v4586, %v4584
      %v4759 = vpack.c.b16 %v4589, %v4587
      %v4760 = vpack.c.b16 %v4590, %v4588
      %v4761 = vpack.c.b16 %v4593, %v4591
      %v4762 = vpack.c.b16 %v4594, %v4592
      %v4763 = vpack.c.b16 %v4597, %v4595
      %v4764 = vpack.c.b16 %v4598, %v4596
      %v4765 = vpack.c.b16 %v4601, %v4599
      %v4766 = vpack.c.b16 %v4602, %v4600
      %v4767 = vpack.c.b16 %v4605, %v4603
      %v4768 = vpack.c.b16 %v4606, %v4604
      %v4769 = vpack.c.b16 %v4609, %v4607
      %v4770 = vpack.c.b16 %v4610, %v4608
      %v4771 = vpack.c.b16 %v4613, %v4611
      %v4772 = vpack.c.b16 %v4614, %v4612
      %v4773 = vpack.c.b16 %v4617, %v4615
      %v4774 = vpack.c.b16 %v4618, %v4616
      %v4775 = vpack.c.b16 %v4621, %v4619
      %v4776 = vpack.c.b16 %v4622, %v4620
      %v4777 = vpack.c.b16 %v4625, %v4623
      %v4778 = vpack.c.b16 %v4626, %v4624
      %v4779 = vpack.c.b16 %v4629, %v4627
      %v4780 = vpack.c.b16 %v4630, %v4628
      %v4781 = vpack.c.b16 %v4633, %v4631
      %v4782 = vpack.c.b16 %v4634, %v4632
      %v4783 = vpack.c.b16 %v4637, %v4635
      %v4784 = vpack.c.b16 %v4638, %v4636
      %v4785 = vpack.c.b16 %v4641, %v4639
      %v4786 = vpack.c.b16 %v4642, %v4640
      %v4787 = vpack.c.b16 %v4645, %v4643
      %v4788 = vpack.c.b16 %v4646, %v4644
      %v4789 = vpack.c.b16 %v4649, %v4647
      %v4790 = vpack.c.b16 %v4650, %v4648
      %v4791 = vpack.c.b16 %v4653, %v4651
      %v4792 = vpack.c.b16 %v4654, %v4652
      %v4793 = vpack.c.b16 %v4657, %v4655
      %v4794 = vpack.c.b16 %v4658, %v4656
      %v4795 = vpack.c.b16 %v4661, %v4659
      %v4796 = vpack.c.b16 %v4662, %v4660
      %v4797 = vpack.c.b16 %v4665, %v4663
      %v4798 = vpack.c.b16 %v4666, %v4664
      %v4799 = vpack.c.b16 %v4669, %v4667
      %v4800 = vpack.c.b16 %v4670, %v4668
      %v4801 = vpack.c.b16 %v4673, %v4671
      %v4802 = vpack.c.b16 %v4674, %v4672
      %v4803 = vpack.c.b16 %v4677, %v4675
      %v4804 = vpack.c.b16 %v4678, %v4676
      %v4805 = vpack.c.b16 %v4681, %v4679
      %v4806 = vpack.c.b16 %v4682, %v4680
      %v4807 = vpack.c.b16 %v4685, %v4683
      %v4808 = vpack.c.b16 %v4686, %v4684
      %v4809 = vpack.c.b16 %v4689, %v4687
      %v4810 = vpack.c.b16 %v4690, %v4688
      %v4811 = vpack.c.b16 %v4693, %v4691
      %v4812 = vpack.c.b16 %v4694, %v4692
      %v4813 = vpack.c.b16 %v4697, %v4695
      %v4814 = vpack.c.b16 %v4698, %v4696
      %v4815 = vpack.c.b16 %v4701, %v4699
      %v4816 = vpack.c.b16 %v4702, %v4700
      %v4817 = vpack.c.b16 %v4705, %v4703
      %v4818 = vpack.c.b16 %v4706, %v4704
      %v4819 = vpack.c.b16 %v4709, %v4707
      %v4820 = vpack.c.b16 %v4710, %v4708
      %v4821 = vpack.c.b16 %v4713, %v4711
      %v4822 = vpack.c.b16 %v4714, %v4712
      %v4823 = vpack.c.b16 %v4717, %v4715
      %v4824 = vpack.c.b16 %v4718, %v4716
      %v4825 = vpack.c.b16 %v4721, %v4719
      %v4826 = vpack.c.b16 %v4722, %v4720
      %v4827 = vpack.c.b16 %v4725, %v4723
      %v4828 = vpack.c.b16 %v4726, %v4724
      %v4829 = vpack.c.b16 %v4729, %v4727
      %v4830 = vpack.c.b16 %v4730, %v4728
      %v4831 = vpack.c.b16 %v4733, %v4731
      %v4832 = vpack.c.b16 %v4734, %v4732
      %v4833 = vpack.c.b16 %v4737, %v4735
      %v4834 = vpack.c.b16 %v4738, %v4736
      %v4835 = vpack.c.b16 %v4741, %v4739
      %v4836 = vpack.c.b16 %v4742, %v4740
      %v4837 = vpack.c.b16 %v4745, %v4743
      %v4838 = vpack.c.b16 %v4746, %v4744
      %4931 = vmatprep.subr.bf16.mxu0 %v4762
      %4932 = vmatpush1.bf16.msra.mxu0 %v4761
      %4933 = vmatprep.subr.bf16.mxu0 %v4760
      %4934 = vmatpush1.bf16.msra.mxu0 %v4759
      %4935 = vmatprep.subr.bf16.mxu0 %v4758
      %4936 = vmatpush1.bf16.msra.mxu0 %v4757
      %4937 = vmatprep.subr.bf16.mxu0 %v4756
      %4938 = vmatpush1.bf16.msra.mxu0 %v4755
      %4939 = vmatprep.subr.bf16.mxu0 %v4754
      %4940 = vmatpush1.bf16.msra.mxu0 %v4753
      %4941 = vmatprep.subr.bf16.mxu0 %v4752
      %4942 = vmatpush1.bf16.msra.mxu0 %v4751
      %4943 = vmatprep.subr.bf16.mxu0 %v4750
      %4944 = vmatpush1.bf16.msra.mxu0 %v4749
      %4945 = vmatprep.subr.bf16.mxu0 %v4748
      %4946 = vmatpush1.bf16.msra.mxu0 %v4747
      %4947 = vmatprep.subr.bf16.mxu0 %v4778
      %4948 = vmatpush2.bf16.msra.mxu0 %v4777
      %4949 = vmatprep.subr.bf16.mxu0 %v4776
      %4950 = vmatpush2.bf16.msra.mxu0 %v4775
      %4951 = vmatprep.subr.bf16.mxu0 %v4774
      %4952 = vmatpush2.bf16.msra.mxu0 %v4773
      %4953 = vmatprep.subr.bf16.mxu0 %v4772
      %4954 = vmatpush2.bf16.msra.mxu0 %v4771
      %4955 = vmatprep.subr.bf16.mxu0 %v4770
      %4956 = vmatpush2.bf16.msra.mxu0 %v4769
      %4957 = vmatprep.subr.bf16.mxu0 %v4768
      %4958 = vmatpush2.bf16.msra.mxu0 %v4767
      %4959 = vmatprep.subr.bf16.mxu0 %v4766
      %4960 = vmatpush2.bf16.msra.mxu0 %v4765
      %4961 = vmatprep.subr.bf16.mxu0 %v4764
      %4962 = vmatpush2.bf16.msra.mxu0 %v4763
      %4963 = vmatprep.mubr.bf16.mxu0 %v3757
      %4964 = vmatmul.mubr.bf16.gmra.mxu0 %v3756
      %v4965 = vpop.f32.mrf.mxu0
      %v4966 = vadd.f32 0.0, %v4965
      %v4967 = vpop.f32.mrf.mxu0
      %v4968 = vadd.f32 0.0, %v4967
      %v4969 = vpop.f32.mrf.mxu0
      %v4970 = vadd.f32 0.0, %v4969
      %v4971 = vpop.f32.mrf.mxu0
      %v4972 = vadd.f32 0.0, %v4971
      %4973 = vmatprep.mubr.bf16.mxu0 %v3763
      %4974 = vmatmul.mubr.bf16.gmra.mxu0 %v3762
      %v4975 = vpop.f32.mrf.mxu0
      %v4976 = vadd.f32 0.0, %v4975
      %v4977 = vpop.f32.mrf.mxu0
      %v4978 = vadd.f32 0.0, %v4977
      %v4979 = vpop.f32.mrf.mxu0
      %v4980 = vadd.f32 0.0, %v4979
      %v4981 = vpop.f32.mrf.mxu0
      %v4982 = vadd.f32 0.0, %v4981
      %4983 = vmatprep.mubr.bf16.mxu0 %v3769
      %4984 = vmatmul.mubr.bf16.gmra.mxu0 %v3768
      %v4985 = vpop.f32.mrf.mxu0
      %v4986 = vadd.f32 0.0, %v4985
      %v4987 = vpop.f32.mrf.mxu0
      %v4988 = vadd.f32 0.0, %v4987
      %v4989 = vpop.f32.mrf.mxu0
      %v4990 = vadd.f32 0.0, %v4989
      %v4991 = vpop.f32.mrf.mxu0
      %v4992 = vadd.f32 0.0, %v4991
      %4993 = vmatprep.mubr.bf16.mxu0 %v3775
      %4994 = vmatmul.mubr.bf16.gmra.mxu0 %v3774
      %v4995 = vpop.f32.mrf.mxu0
      %v4996 = vadd.f32 0.0, %v4995
      %v4997 = vpop.f32.mrf.mxu0
      %v4998 = vadd.f32 0.0, %v4997
      %v4999 = vpop.f32.mrf.mxu0
      %v5000 = vadd.f32 0.0, %v4999
      %v5001 = vpop.f32.mrf.mxu0
      %v5002 = vadd.f32 0.0, %v5001
      %5003 = vdwg.mxu0
      %5004 = vmatprep.subr.bf16.mxu0 %v4794
      %5005 = vmatpush1.bf16.msra.mxu0 %v4793
      %5006 = vmatprep.subr.bf16.mxu0 %v4792
      %5007 = vmatpush1.bf16.msra.mxu0 %v4791
      %5008 = vmatprep.subr.bf16.mxu0 %v4790
      %5009 = vmatpush1.bf16.msra.mxu0 %v4789
      %5010 = vmatprep.subr.bf16.mxu0 %v4788
      %5011 = vmatpush1.bf16.msra.mxu0 %v4787
      %5012 = vmatprep.subr.bf16.mxu0 %v4786
      %5013 = vmatpush1.bf16.msra.mxu0 %v4785
      %5014 = vmatprep.subr.bf16.mxu0 %v4784
      %5015 = vmatpush1.bf16.msra.mxu0 %v4783
      %5016 = vmatprep.subr.bf16.mxu0 %v4782
      %5017 = vmatpush1.bf16.msra.mxu0 %v4781
      %5018 = vmatprep.subr.bf16.mxu0 %v4780
      %5019 = vmatpush1.bf16.msra.mxu0 %v4779
      %5020 = vmatprep.subr.bf16.mxu0 %v4810
      %5021 = vmatpush2.bf16.msra.mxu0 %v4809
      %5022 = vmatprep.subr.bf16.mxu0 %v4808
      %5023 = vmatpush2.bf16.msra.mxu0 %v4807
      %5024 = vmatprep.subr.bf16.mxu0 %v4806
      %5025 = vmatpush2.bf16.msra.mxu0 %v4805
      %5026 = vmatprep.subr.bf16.mxu0 %v4804
      %5027 = vmatpush2.bf16.msra.mxu0 %v4803
      %5028 = vmatprep.subr.bf16.mxu0 %v4802
      %5029 = vmatpush2.bf16.msra.mxu0 %v4801
      %5030 = vmatprep.subr.bf16.mxu0 %v4800
      %5031 = vmatpush2.bf16.msra.mxu0 %v4799
      %5032 = vmatprep.subr.bf16.mxu0 %v4798
      %5033 = vmatpush2.bf16.msra.mxu0 %v4797
      %5034 = vmatprep.subr.bf16.mxu0 %v4796
      %5035 = vmatpush2.bf16.msra.mxu0 %v4795
      %5036 = vmatprep.mubr.bf16.mxu0 %v3759
      %5037 = vmatmul.mubr.bf16.gmra.mxu0 %v3758
      %v5038 = vpop.f32.mrf.mxu0
      %v5039 = vadd.f32 %v4966, %v5038
      %v5040 = vpop.f32.mrf.mxu0
      %v5041 = vadd.f32 %v4968, %v5040
      %v5042 = vpop.f32.mrf.mxu0
      %v5043 = vadd.f32 %v4970, %v5042
      %v5044 = vpop.f32.mrf.mxu0
      %v5045 = vadd.f32 %v4972, %v5044
      %5046 = vmatprep.mubr.bf16.mxu0 %v3765
      %5047 = vmatmul.mubr.bf16.gmra.mxu0 %v3764
      %v5048 = vpop.f32.mrf.mxu0
      %v5049 = vadd.f32 %v4976, %v5048
      %v5050 = vpop.f32.mrf.mxu0
      %v5051 = vadd.f32 %v4978, %v5050
      %v5052 = vpop.f32.mrf.mxu0
      %v5053 = vadd.f32 %v4980, %v5052
      %v5054 = vpop.f32.mrf.mxu0
      %v5055 = vadd.f32 %v4982, %v5054
      %5056 = vmatprep.mubr.bf16.mxu0 %v3771
      %5057 = vmatmul.mubr.bf16.gmra.mxu0 %v3770
      %v5058 = vpop.f32.mrf.mxu0
      %v5059 = vadd.f32 %v4986, %v5058
      %v5060 = vpop.f32.mrf.mxu0
      %v5061 = vadd.f32 %v4988, %v5060
      %v5062 = vpop.f32.mrf.mxu0
      %v5063 = vadd.f32 %v4990, %v5062
      %v5064 = vpop.f32.mrf.mxu0
      %v5065 = vadd.f32 %v4992, %v5064
      %5066 = vmatprep.mubr.bf16.mxu0 %v3777
      %5067 = vmatmul.mubr.bf16.gmra.mxu0 %v3776
      %v5068 = vpop.f32.mrf.mxu0
      %v5069 = vadd.f32 %v4996, %v5068
      %v5070 = vpop.f32.mrf.mxu0
      %v5071 = vadd.f32 %v4998, %v5070
      %v5072 = vpop.f32.mrf.mxu0
      %v5073 = vadd.f32 %v5000, %v5072
      %v5074 = vpop.f32.mrf.mxu0
      %v5075 = vadd.f32 %v5002, %v5074
      %5076 = vdwg.mxu0
      %5077 = vmatprep.subr.bf16.mxu0 %v4826
      %5078 = vmatpush1.bf16.msra.mxu0 %v4825
      %5079 = vmatprep.subr.bf16.mxu0 %v4824
      %5080 = vmatpush1.bf16.msra.mxu0 %v4823
      %5081 = vmatprep.subr.bf16.mxu0 %v4822
      %5082 = vmatpush1.bf16.msra.mxu0 %v4821
      %5083 = vmatprep.subr.bf16.mxu0 %v4820
      %5084 = vmatpush1.bf16.msra.mxu0 %v4819
      %5085 = vmatprep.subr.bf16.mxu0 %v4818
      %5086 = vmatpush1.bf16.msra.mxu0 %v4817
      %5087 = vmatprep.subr.bf16.mxu0 %v4816
      %5088 = vmatpush1.bf16.msra.mxu0 %v4815
      %5089 = vmatprep.subr.bf16.mxu0 %v4814
      %5090 = vmatpush1.bf16.msra.mxu0 %v4813
      %5091 = vmatprep.subr.bf16.mxu0 %v4812
      %5092 = vmatpush1.bf16.msra.mxu0 %v4811
      %5093 = vmatprep.subr.bf16.mxu0 0
      %5094 = vmatpush2.bf16.msra.mxu0 0
      %5095 = vmatprep.subr.bf16.mxu0 0
      %5096 = vmatpush2.bf16.msra.mxu0 0
      %5097 = vmatprep.subr.bf16.mxu0 %v4838
      %5098 = vmatpush2.bf16.msra.mxu0 %v4837
      %5099 = vmatprep.subr.bf16.mxu0 %v4836
      %5100 = vmatpush2.bf16.msra.mxu0 %v4835
      %5101 = vmatprep.subr.bf16.mxu0 %v4834
      %5102 = vmatpush2.bf16.msra.mxu0 %v4833
      %5103 = vmatprep.subr.bf16.mxu0 %v4832
      %5104 = vmatpush2.bf16.msra.mxu0 %v4831
      %5105 = vmatprep.subr.bf16.mxu0 %v4830
      %5106 = vmatpush2.bf16.msra.mxu0 %v4829
      %5107 = vmatprep.subr.bf16.mxu0 %v4828
      %5108 = vmatpush2.bf16.msra.mxu0 %v4827
      %5109 = vmatprep.mubr.bf16.mxu0 %v4241
      %5110 = vmatmul.mubr.bf16.gmra.mxu0 %v3760
      %v5111 = vpop.f32.mrf.mxu0
      %v5112 = vadd.f32 %v5039, %v5111
      %v5113 = vpop.f32.mrf.mxu0
      %v5114 = vadd.f32 %v5041, %v5113
      %v5115 = vpop.f32.mrf.mxu0
      %v5116 = vadd.f32 %v5043, %v5115
      %v5117 = vpop.f32.mrf.mxu0
      %v5118 = vadd.f32 %v5045, %v5117
      %5119 = vmatprep.mubr.bf16.mxu0 %v4244
      %5120 = vmatmul.mubr.bf16.gmra.mxu0 %v3766
      %v5121 = vpop.f32.mrf.mxu0
      %v5122 = vadd.f32 %v5049, %v5121
      %v5123 = vpop.f32.mrf.mxu0
      %v5124 = vadd.f32 %v5051, %v5123
      %v5125 = vpop.f32.mrf.mxu0
      %v5126 = vadd.f32 %v5053, %v5125
      %v5127 = vpop.f32.mrf.mxu0
      %v5128 = vadd.f32 %v5055, %v5127
      %5129 = vmatprep.mubr.bf16.mxu0 %v4247
      %5130 = vmatmul.mubr.bf16.gmra.mxu0 %v3772
      %v5131 = vpop.f32.mrf.mxu0
      %v5132 = vadd.f32 %v5059, %v5131
      %v5133 = vpop.f32.mrf.mxu0
      %v5134 = vadd.f32 %v5061, %v5133
      %v5135 = vpop.f32.mrf.mxu0
      %v5136 = vadd.f32 %v5063, %v5135
      %v5137 = vpop.f32.mrf.mxu0
      %v5138 = vadd.f32 %v5065, %v5137
      %5139 = vmatprep.mubr.bf16.mxu0 %v4250
      %5140 = vmatmul.mubr.bf16.gmra.mxu0 %v3778
      %v5141 = vpop.f32.mrf.mxu0
      %v5142 = vadd.f32 %v5069, %v5141
      %v5143 = vpop.f32.mrf.mxu0
      %v5144 = vadd.f32 %v5071, %v5143
      %v5145 = vpop.f32.mrf.mxu0
      %v5146 = vadd.f32 %v5073, %v5145
      %v5147 = vpop.f32.mrf.mxu0
      %v5148 = vadd.f32 %v5075, %v5147
      %5149 = vdwg.mxu0
      %v5150 = vmax.f32 %v4433, %v5112
      %v5151 = vmax.f32 %v4435, %v5114
      %v5152 = vmax.f32 %v4437, %v5116
      %v5153 = vmax.f32 %v4439, %v5118
      %v5154 = vmax.f32 %v4443, %v5122
      %v5155 = vmax.f32 %v4445, %v5124
      %v5156 = vmax.f32 %v4447, %v5126
      %v5157 = vmax.f32 %v4449, %v5128
      %v5158 = vmax.f32 %v4453, %v5132
      %v5159 = vmax.f32 %v4455, %v5134
      %v5160 = vmax.f32 %v4457, %v5136
      %v5161 = vmax.f32 %v4459, %v5138
      %v5162 = vmax.f32 %v4463, %v5142
      %v5163 = vmax.f32 %v4465, %v5144
      %v5164 = vmax.f32 %v4467, %v5146
      %v5165 = vmax.f32 %v4469, %v5148
      %5167 = vset.pattern.permute.xlu0 0
      %5168 = vperm.xlu0 %5167, %v65
      %v5169 = vpop.permute.xlu0 %5168
      %5172 = vset.pattern.permute.xlu0 0
      %5173 = vperm.xlu0 %5172, %v66
      %v5174 = vpop.permute.xlu0 %5173
      %5177 = vset.pattern.permute.xlu0 0
      %5178 = vperm.xlu0 %5177, %v67
      %v5179 = vpop.permute.xlu0 %5178
      %5182 = vset.pattern.permute.xlu0 0
      %5183 = vperm.xlu0 %5182, %v68
      %v5184 = vpop.permute.xlu0 %5183
      %5187 = vset.pattern.permute.xlu0 0
      %5188 = vperm.xlu0 %5187, %v69
      %v5189 = vpop.permute.xlu0 %5188
      %5192 = vset.pattern.permute.xlu0 0
      %5193 = vperm.xlu0 %5192, %v70
      %v5194 = vpop.permute.xlu0 %5193
      %5197 = vset.pattern.permute.xlu0 0
      %5198 = vperm.xlu0 %5197, %v71
      %v5199 = vpop.permute.xlu0 %5198
      %5202 = vset.pattern.permute.xlu0 0
      %5203 = vperm.xlu0 %5202, %v72
      %v5204 = vpop.permute.xlu0 %5203
      %v5206 = vadd.f32 %v5150, %v5169
      %v5207 = vadd.f32 %v5151, %v5169
      %v5208 = vadd.f32 %v5152, %v5174
      %v5209 = vadd.f32 %v5153, %v5174
      %v5210 = vadd.f32 %v5154, %v5179
      %v5211 = vadd.f32 %v5155, %v5179
      %v5212 = vadd.f32 %v5156, %v5184
      %v5213 = vadd.f32 %v5157, %v5184
      %v5214 = vadd.f32 %v5158, %v5189
      %v5215 = vadd.f32 %v5159, %v5189
      %v5216 = vadd.f32 %v5160, %v5194
      %v5217 = vadd.f32 %v5161, %v5194
      %v5218 = vadd.f32 %v5162, %v5199
      %v5219 = vadd.f32 %v5163, %v5199
      %v5220 = vadd.f32 %v5164, %v5204
      %v5221 = vadd.f32 %v5165, %v5204
      %v5222 = vmax.f32 %v5206, 0.0
      %v5223 = vmax.f32 %v5207, 0.0
      %v5224 = vmax.f32 %v5208, 0.0
      %v5225 = vmax.f32 %v5209, 0.0
      %v5226 = vmax.f32 %v5210, 0.0
      %v5227 = vmax.f32 %v5211, 0.0
      %v5228 = vmax.f32 %v5212, 0.0
      %v5229 = vmax.f32 %v5213, 0.0
      %v5230 = vmax.f32 %v5214, 0.0
      %v5231 = vmax.f32 %v5215, 0.0
      %v5232 = vmax.f32 %v5216, 0.0
      %v5233 = vmax.f32 %v5217, 0.0
      %v5234 = vmax.f32 %v5218, 0.0
      %v5235 = vmax.f32 %v5219, 0.0
      %v5236 = vmax.f32 %v5220, 0.0
      %v5237 = vmax.f32 %v5221, 0.0
      %v5238 = vpack.c.bf16 %v5224, %v5222
      %v5239 = vpack.c.bf16 %v5225, %v5223
      %v5240 = vpack.c.bf16 %v5228, %v5226
      %v5241 = vpack.c.bf16 %v5229, %v5227
      %v5242 = vpack.c.bf16 %v5232, %v5230
      %v5243 = vpack.c.bf16 %v5233, %v5231
      %v5244 = vpack.c.bf16 %v5236, %v5234
      %v5245 = vpack.c.bf16 %v5237, %v5235
      %v5254 = vunpack.c.l.b16 %v5238
      %v5255 = vunpack.c.l.b16 %v5239
      %v5256 = vunpack.c.h.b16 %v5238
      %v5257 = vunpack.c.h.b16 %v5239
      %v5258 = vunpack.c.l.b16 %v5240
      %v5259 = vunpack.c.l.b16 %v5241
      %v5260 = vunpack.c.h.b16 %v5240
      %v5261 = vunpack.c.h.b16 %v5241
      %v5262 = vunpack.c.l.b16 %v5242
      %v5263 = vunpack.c.l.b16 %v5243
      %v5264 = vunpack.c.h.b16 %v5242
      %v5265 = vunpack.c.h.b16 %v5243
      %v5266 = vunpack.c.l.b16 %v5244
      %v5267 = vunpack.c.l.b16 %v5245
      %v5268 = vunpack.c.h.b16 %v5244
      %v5269 = vunpack.c.h.b16 %v5245
      %v5270 = vpack.c.b16 %v5255, %v5254
      %v5271 = vpack.c.b16 %v5257, %v5256
      %v5272 = vpack.c.b16 %v5259, %v5258
      %v5273 = vpack.c.b16 %v5261, %v5260
      %v5274 = vpack.c.b16 %v5263, %v5262
      %v5275 = vpack.c.b16 %v5265, %v5264
      %v5276 = vpack.c.b16 %v5267, %v5266
      %v5277 = vpack.c.b16 %v5269, %v5268
      %s5286 = smul.u32 %s258, 16
      %s5287 = smul.addr %s5286, 4
      %s5288 = scalar_lea.vmem %s7, %s5287
      %vm5289 = vcmask 1043456
      %vm5290 = vcmask 130052
      %vm5291 = vmor %vm5290, %vm5289
      %5292 = vst.msk [vmem:[%s5288] sm:$0xff] %vm5291, %v5270
      %5293 = vst.msk [vmem:[%s5288 + $0x8] sm:$0xff] %vm5291, %v5271
      %5294 = vst.msk [vmem:[%s5288 + $0x10] sm:$0xff] %vm5291, %v5272
      %5295 = vst.msk [vmem:[%s5288 + $0x18] sm:$0xff] %vm5291, %v5273
      %5296 = vst.msk [vmem:[%s5288 + $0x20] sm:$0xff] %vm5291, %v5274
      %5297 = vst.msk [vmem:[%s5288 + $0x28] sm:$0xff] %vm5291, %v5275
      %5298 = vst.msk [vmem:[%s5288 + $0x30] sm:$0xff] %vm5291, %v5276
      %5299 = vst.msk [vmem:[%s5288 + $0x38] sm:$0xff] %vm5291, %v5277
    $region38: #{simple_cnn_forward.2} parent=1 // loop_footer
      %s262 = sadd.s32 1, %s258
    $region39: #{simple_cnn_forward.2} parent=1 // loop_footer_branch
      %257 = sbr.rel target = $region35
    $region40: #{simple_cnn_forward.2} parent=1 // loop_exit
      _
    // Predicated region
    $region41: #{simple_cnn_forward.2} parent=1 // pred_check
      _
    $region42: #{simple_cnn_forward.2} parent=1 // pred_check_branch
      %5301 = sbr.rel (0) target = $region44
    $region43: #{simple_cnn_forward.2} parent=1 // pred_region
      _
    $region44: #{simple_cnn_forward.2} parent=1 // pred_fallthru
      _
    // Predicated region
    $region45: #{simple_cnn_forward.2} parent=1 // pred_check
      _
    $region46: #{simple_cnn_forward.2} parent=1 // pred_check_branch
      %5303 = sbr.rel (0) target = $region48
    $region47: #{simple_cnn_forward.2} parent=1 // pred_region
      _
    $region48: #{simple_cnn_forward.2} parent=1 // pred_fallthru
      _
    %5304 = vsyncpa [#allocation4], 1

// kernel: simple_cnn_forward.3
$region0: #{simple_cnn_forward.3}
  #allocation0 [shape = 'u32[]', space=smem, size = 0x4, offset = 0x4, fixed_abs, tag = 'smem constant byte address 0x4 - core index']
  #allocation1 [shape = 'u32[144,128]{1,0:T(1,128)}', space=vmem, size = 0x12000, scoped, tag = 'internal scratch']
  %s0 = inlined_call_operand.vmem [shape: bf16[2,9216], index: 0, kind: input, shape index: {}]
  %s1 = inlined_call_operand.vmem [shape: bf16[9216,128], index: 1, kind: input, shape index: {}]
  %s2 = inlined_call_operand.vmem [shape: f32[1,128], index: 2, kind: input, shape index: {}]
  %s3 = inlined_call_operand.vmem [shape: bf16[128,10], index: 3, kind: input, shape index: {}]
  %s4 = inlined_call_operand.vmem [shape: f32[1,10], index: 4, kind: input, shape index: {}]
  %s5 = inlined_call_operand.hbm [shape: f32[2,10], index: 5, kind: output, shape index: {}]
  %s6 = sld [smem:[#allocation0]]
  $region30: #{simple_cnn_forward.3} parent=0
    _
  %s8 = ssub.s32 1, %s6
  %s9 = scalar_select 0, %s8, %s6
  $region1: #{simple_cnn_forward.3} parent=0
    #allocation2 [shape = 'u8[1024]{0}', space=vmem, size = 0x400, scoped, tag = 'output window, operand 0, single buffered']
    #allocation3 [shape = 's32[1]{0}', space=sflag, size = 0x4, scoped, tag = 'scoped memory for simple_cnn_forward.3']
    %10 = vsyncpa [#allocation3], 0
    // Predicated region
    $region2: #{simple_cnn_forward.3} parent=1 // pred_check
      _
    $region3: #{simple_cnn_forward.3} parent=1 // pred_check_branch
      %12 = sbr.rel (0) target = $region5
    $region4: #{simple_cnn_forward.3} parent=1 // pred_region
      _
    $region5: #{simple_cnn_forward.3} parent=1 // pred_fallthru
      _
    // Predicated region
    $region6: #{simple_cnn_forward.3} parent=1 // pred_check
      _
    $region7: #{simple_cnn_forward.3} parent=1 // pred_check_branch
      %14 = sbr.rel (0) target = $region9
    $region8: #{simple_cnn_forward.3} parent=1 // pred_region
      _
    $region9: #{simple_cnn_forward.3} parent=1 // pred_fallthru
      _
    // Predicated region
    $region10: #{simple_cnn_forward.3} parent=1 // pred_check
      _
    $region11: #{simple_cnn_forward.3} parent=1 // pred_check_branch
      %16 = sbr.rel (0) target = $region13
    $region12: #{simple_cnn_forward.3} parent=1 // pred_region
      _
    $region13: #{simple_cnn_forward.3} parent=1 // pred_fallthru
      _
    // Predicated region
    $region14: #{simple_cnn_forward.3} parent=1 // pred_check
      _
    $region15: #{simple_cnn_forward.3} parent=1 // pred_check_branch
      %18 = sbr.rel (0) target = $region17
    $region16: #{simple_cnn_forward.3} parent=1 // pred_region
      _
    $region17: #{simple_cnn_forward.3} parent=1 // pred_fallthru
      _
    // Predicated region
    $region18: #{simple_cnn_forward.3} parent=1 // pred_check
      _
    $region19: #{simple_cnn_forward.3} parent=1 // pred_check_branch
      %20 = sbr.rel (0) target = $region21
    $region20: #{simple_cnn_forward.3} parent=1 // pred_region
      _
    $region21: #{simple_cnn_forward.3} parent=1 // pred_fallthru
      _
    %v22 = vld [vmem:[%s0] sm:$0xff]
    %v23 = vld [vmem:[%s0 + $0x8] sm:$0xff]
    %v24 = vld [vmem:[%s0 + $0x10] sm:$0xff]
    %v25 = vld [vmem:[%s0 + $0x18] sm:$0xff]
    %v26 = vld [vmem:[%s0 + $0x20] sm:$0xff]
    %v27 = vld [vmem:[%s0 + $0x28] sm:$0xff]
    %v28 = vld [vmem:[%s0 + $0x30] sm:$0xff]
    %v29 = vld [vmem:[%s0 + $0x38] sm:$0xff]
    %v30 = vld [vmem:[%s0 + $0x40] sm:$0xff]
    %v31 = vld [vmem:[%s1] sm:$0xf]
    %v32 = vld [vmem:[%s1 + $0x4] sm:$0xf]
    %v33 = vld [vmem:[%s1 + $0x8] sm:$0xf]
    %v34 = vld [vmem:[%s1 + $0xc] sm:$0xf]
    %v35 = vld [vmem:[%s1 + $0x10] sm:$0xf]
    %v36 = vld [vmem:[%s1 + $0x14] sm:$0xf]
    %v37 = vld [vmem:[%s1 + $0x18] sm:$0xf]
    %v38 = vld [vmem:[%s1 + $0x1c] sm:$0xf]
    %v39 = vld [vmem:[%s1 + $0x20] sm:$0xf]
    %v40 = vld [vmem:[%s1 + $0x24] sm:$0xf]
    %v41 = vld [vmem:[%s1 + $0x28] sm:$0xf]
    %v42 = vld [vmem:[%s1 + $0x2c] sm:$0xf]
    %v43 = vld [vmem:[%s1 + $0x30] sm:$0xf]
    %v44 = vld [vmem:[%s1 + $0x34] sm:$0xf]
    %v45 = vld [vmem:[%s1 + $0x38] sm:$0xf]
    %v46 = vld [vmem:[%s1 + $0x3c] sm:$0xf]
    %v47 = vld [vmem:[%s1 + $0x40] sm:$0xf]
    %v48 = vld [vmem:[%s1 + $0x44] sm:$0xf]
    %v49 = vld [vmem:[%s1 + $0x48] sm:$0xf]
    %v50 = vld [vmem:[%s1 + $0x4c] sm:$0xf]
    %v51 = vld [vmem:[%s1 + $0x50] sm:$0xf]
    %v52 = vld [vmem:[%s1 + $0x54] sm:$0xf]
    %v53 = vld [vmem:[%s1 + $0x58] sm:$0xf]
    %v54 = vld [vmem:[%s1 + $0x5c] sm:$0xf]
    %v55 = vld [vmem:[%s1 + $0x60] sm:$0xf]
    %v56 = vld [vmem:[%s1 + $0x64] sm:$0xf]
    %v57 = vld [vmem:[%s1 + $0x68] sm:$0xf]
    %v58 = vld [vmem:[%s1 + $0x6c] sm:$0xf]
    %v59 = vld [vmem:[%s1 + $0x70] sm:$0xf]
    %v60 = vld [vmem:[%s1 + $0x74] sm:$0xf]
    %v61 = vld [vmem:[%s1 + $0x78] sm:$0xf]
    %v62 = vld [vmem:[%s1 + $0x7c] sm:$0xf]
    %v63 = vld [vmem:[%s1 + $0x80] sm:$0xf]
    %v64 = vld [vmem:[%s1 + $0x84] sm:$0xf]
    %v65 = vld [vmem:[%s1 + $0x88] sm:$0xf]
    %v66 = vld [vmem:[%s1 + $0x8c] sm:$0xf]
    %v67 = vld [vmem:[%s1 + $0x90] sm:$0xf]
    %v68 = vld [vmem:[%s1 + $0x94] sm:$0xf]
    %v69 = vld [vmem:[%s1 + $0x98] sm:$0xf]
    %v70 = vld [vmem:[%s1 + $0x9c] sm:$0xf]
    %v71 = vld [vmem:[%s1 + $0xa0] sm:$0xf]
    %v72 = vld [vmem:[%s1 + $0xa4] sm:$0xf]
    %v73 = vld [vmem:[%s1 + $0xa8] sm:$0xf]
    %v74 = vld [vmem:[%s1 + $0xac] sm:$0xf]
    %v75 = vld [vmem:[%s1 + $0xb0] sm:$0xf]
    %v76 = vld [vmem:[%s1 + $0xb4] sm:$0xf]
    %v77 = vld [vmem:[%s1 + $0xb8] sm:$0xf]
    %v78 = vld [vmem:[%s1 + $0xbc] sm:$0xf]
    %v79 = vld [vmem:[%s1 + $0xc0] sm:$0xf]
    %v80 = vld [vmem:[%s1 + $0xc4] sm:$0xf]
    %v81 = vld [vmem:[%s1 + $0xc8] sm:$0xf]
    %v82 = vld [vmem:[%s1 + $0xcc] sm:$0xf]
    %v83 = vld [vmem:[%s1 + $0xd0] sm:$0xf]
    %v84 = vld [vmem:[%s1 + $0xd4] sm:$0xf]
    %v85 = vld [vmem:[%s1 + $0xd8] sm:$0xf]
    %v86 = vld [vmem:[%s1 + $0xdc] sm:$0xf]
    %v87 = vld [vmem:[%s1 + $0xe0] sm:$0xf]
    %v88 = vld [vmem:[%s1 + $0xe4] sm:$0xf]
    %v89 = vld [vmem:[%s1 + $0xe8] sm:$0xf]
    %v90 = vld [vmem:[%s1 + $0xec] sm:$0xf]
    %v91 = vld [vmem:[%s1 + $0xf0] sm:$0xf]
    %v92 = vld [vmem:[%s1 + $0xf4] sm:$0xf]
    %v93 = vld [vmem:[%s1 + $0xf8] sm:$0xf]
    %v94 = vld [vmem:[%s1 + $0xfc] sm:$0xf]
    %v95 = vld [vmem:[%s1 + $0x100] sm:$0xf]
    %v96 = vld [vmem:[%s1 + $0x104] sm:$0xf]
    %v97 = vld [vmem:[%s1 + $0x108] sm:$0xf]
    %v98 = vld [vmem:[%s1 + $0x10c] sm:$0xf]
    %v99 = vld [vmem:[%s1 + $0x110] sm:$0xf]
    %v100 = vld [vmem:[%s1 + $0x114] sm:$0xf]
    %v101 = vld [vmem:[%s1 + $0x118] sm:$0xf]
    %v102 = vld [vmem:[%s1 + $0x11c] sm:$0xf]
    %v103 = vld [vmem:[%s1 + $0x120] sm:$0xf]
    %v104 = vld [vmem:[%s1 + $0x124] sm:$0xf]
    %v105 = vld [vmem:[%s1 + $0x128] sm:$0xf]
    %v106 = vld [vmem:[%s1 + $0x12c] sm:$0xf]
    %v107 = vld [vmem:[%s1 + $0x130] sm:$0xf]
    %v108 = vld [vmem:[%s1 + $0x134] sm:$0xf]
    %v109 = vld [vmem:[%s1 + $0x138] sm:$0xf]
    %v110 = vld [vmem:[%s1 + $0x13c] sm:$0xf]
    %v111 = vld [vmem:[%s1 + $0x140] sm:$0xf]
    %v112 = vld [vmem:[%s1 + $0x144] sm:$0xf]
    %v113 = vld [vmem:[%s1 + $0x148] sm:$0xf]
    %v114 = vld [vmem:[%s1 + $0x14c] sm:$0xf]
    %v115 = vld [vmem:[%s1 + $0x150] sm:$0xf]
    %v116 = vld [vmem:[%s1 + $0x154] sm:$0xf]
    %v117 = vld [vmem:[%s1 + $0x158] sm:$0xf]
    %v118 = vld [vmem:[%s1 + $0x15c] sm:$0xf]
    %v119 = vld [vmem:[%s1 + $0x160] sm:$0xf]
    %v120 = vld [vmem:[%s1 + $0x164] sm:$0xf]
    %v121 = vld [vmem:[%s1 + $0x168] sm:$0xf]
    %v122 = vld [vmem:[%s1 + $0x16c] sm:$0xf]
    %v123 = vld [vmem:[%s1 + $0x170] sm:$0xf]
    %v124 = vld [vmem:[%s1 + $0x174] sm:$0xf]
    %v125 = vld [vmem:[%s1 + $0x178] sm:$0xf]
    %v126 = vld [vmem:[%s1 + $0x17c] sm:$0xf]
    %v127 = vld [vmem:[%s1 + $0x180] sm:$0xf]
    %v128 = vld [vmem:[%s1 + $0x184] sm:$0xf]
    %v129 = vld [vmem:[%s1 + $0x188] sm:$0xf]
    %v130 = vld [vmem:[%s1 + $0x18c] sm:$0xf]
    %v131 = vld [vmem:[%s1 + $0x190] sm:$0xf]
    %v132 = vld [vmem:[%s1 + $0x194] sm:$0xf]
    %v133 = vld [vmem:[%s1 + $0x198] sm:$0xf]
    %v134 = vld [vmem:[%s1 + $0x19c] sm:$0xf]
    %v135 = vld [vmem:[%s1 + $0x1a0] sm:$0xf]
    %v136 = vld [vmem:[%s1 + $0x1a4] sm:$0xf]
    %v137 = vld [vmem:[%s1 + $0x1a8] sm:$0xf]
    %v138 = vld [vmem:[%s1 + $0x1ac] sm:$0xf]
    %v139 = vld [vmem:[%s1 + $0x1b0] sm:$0xf]
    %v140 = vld [vmem:[%s1 + $0x1b4] sm:$0xf]
    %v141 = vld [vmem:[%s1 + $0x1b8] sm:$0xf]
    %v142 = vld [vmem:[%s1 + $0x1bc] sm:$0xf]
    %v143 = vld [vmem:[%s1 + $0x1c0] sm:$0xf]
    %v144 = vld [vmem:[%s1 + $0x1c4] sm:$0xf]
    %v145 = vld [vmem:[%s1 + $0x1c8] sm:$0xf]
    %v146 = vld [vmem:[%s1 + $0x1cc] sm:$0xf]
    %v147 = vld [vmem:[%s1 + $0x1d0] sm:$0xf]
    %v148 = vld [vmem:[%s1 + $0x1d4] sm:$0xf]
    %v149 = vld [vmem:[%s1 + $0x1d8] sm:$0xf]
    %v150 = vld [vmem:[%s1 + $0x1dc] sm:$0xf]
    %v151 = vld [vmem:[%s1 + $0x1e0] sm:$0xf]
    %v152 = vld [vmem:[%s1 + $0x1e4] sm:$0xf]
    %v153 = vld [vmem:[%s1 + $0x1e8] sm:$0xf]
    %v154 = vld [vmem:[%s1 + $0x1ec] sm:$0xf]
    %v155 = vld [vmem:[%s1 + $0x1f0] sm:$0xf]
    %v156 = vld [vmem:[%s1 + $0x1f4] sm:$0xf]
    %v157 = vld [vmem:[%s1 + $0x1f8] sm:$0xf]
    %v158 = vld [vmem:[%s1 + $0x1fc] sm:$0xf]
    %v159 = vld [vmem:[%s1 + $0x200] sm:$0xf]
    %v160 = vld [vmem:[%s1 + $0x204] sm:$0xf]
    %v161 = vld [vmem:[%s1 + $0x208] sm:$0xf]
    %v162 = vld [vmem:[%s1 + $0x20c] sm:$0xf]
    %v163 = vld [vmem:[%s1 + $0x210] sm:$0xf]
    %v164 = vld [vmem:[%s1 + $0x214] sm:$0xf]
    %v165 = vld [vmem:[%s1 + $0x218] sm:$0xf]
    %v166 = vld [vmem:[%s1 + $0x21c] sm:$0xf]
    %v167 = vld [vmem:[%s1 + $0x220] sm:$0xf]
    %v168 = vld [vmem:[%s1 + $0x224] sm:$0xf]
    %v169 = vld [vmem:[%s1 + $0x228] sm:$0xf]
    %v170 = vld [vmem:[%s1 + $0x22c] sm:$0xf]
    %v171 = vld [vmem:[%s1 + $0x230] sm:$0xf]
    %v172 = vld [vmem:[%s1 + $0x234] sm:$0xf]
    %v173 = vld [vmem:[%s1 + $0x238] sm:$0xf]
    %v174 = vld [vmem:[%s1 + $0x23c] sm:$0xf]
    %v175 = vld [vmem:[%s1 + $0x240] sm:$0xf]
    %v176 = vld [vmem:[%s1 + $0x244] sm:$0xf]
    %v177 = vld [vmem:[%s1 + $0x248] sm:$0xf]
    %v178 = vld [vmem:[%s1 + $0x24c] sm:$0xf]
    %v179 = vld [vmem:[%s1 + $0x250] sm:$0xf]
    %v180 = vld [vmem:[%s1 + $0x254] sm:$0xf]
    %v181 = vld [vmem:[%s1 + $0x258] sm:$0xf]
    %v182 = vld [vmem:[%s1 + $0x25c] sm:$0xf]
    %v183 = vld [vmem:[%s1 + $0x260] sm:$0xf]
    %v184 = vld [vmem:[%s1 + $0x264] sm:$0xf]
    %v185 = vld [vmem:[%s1 + $0x268] sm:$0xf]
    %v186 = vld [vmem:[%s1 + $0x26c] sm:$0xf]
    %v187 = vld [vmem:[%s1 + $0x270] sm:$0xf]
    %v188 = vld [vmem:[%s1 + $0x274] sm:$0xf]
    %v189 = vld [vmem:[%s1 + $0x278] sm:$0xf]
    %v190 = vld [vmem:[%s1 + $0x27c] sm:$0xf]
    %v191 = vld [vmem:[%s1 + $0x280] sm:$0xf]
    %v192 = vld [vmem:[%s1 + $0x284] sm:$0xf]
    %v193 = vld [vmem:[%s1 + $0x288] sm:$0xf]
    %v194 = vld [vmem:[%s1 + $0x28c] sm:$0xf]
    %v195 = vld [vmem:[%s1 + $0x290] sm:$0xf]
    %v196 = vld [vmem:[%s1 + $0x294] sm:$0xf]
    %v197 = vld [vmem:[%s1 + $0x298] sm:$0xf]
    %v198 = vld [vmem:[%s1 + $0x29c] sm:$0xf]
    %v199 = vld [vmem:[%s1 + $0x2a0] sm:$0xf]
    %v200 = vld [vmem:[%s1 + $0x2a4] sm:$0xf]
    %v201 = vld [vmem:[%s1 + $0x2a8] sm:$0xf]
    %v202 = vld [vmem:[%s1 + $0x2ac] sm:$0xf]
    %v203 = vld [vmem:[%s1 + $0x2b0] sm:$0xf]
    %v204 = vld [vmem:[%s1 + $0x2b4] sm:$0xf]
    %v205 = vld [vmem:[%s1 + $0x2b8] sm:$0xf]
    %v206 = vld [vmem:[%s1 + $0x2bc] sm:$0xf]
    %v207 = vld [vmem:[%s1 + $0x2c0] sm:$0xf]
    %v208 = vld [vmem:[%s1 + $0x2c4] sm:$0xf]
    %v209 = vld [vmem:[%s1 + $0x2c8] sm:$0xf]
    %v210 = vld [vmem:[%s1 + $0x2cc] sm:$0xf]
    %v211 = vld [vmem:[%s1 + $0x2d0] sm:$0xf]
    %v212 = vld [vmem:[%s1 + $0x2d4] sm:$0xf]
    %v213 = vld [vmem:[%s1 + $0x2d8] sm:$0xf]
    %v214 = vld [vmem:[%s1 + $0x2dc] sm:$0xf]
    %v215 = vld [vmem:[%s1 + $0x2e0] sm:$0xf]
    %v216 = vld [vmem:[%s1 + $0x2e4] sm:$0xf]
    %v217 = vld [vmem:[%s1 + $0x2e8] sm:$0xf]
    %v218 = vld [vmem:[%s1 + $0x2ec] sm:$0xf]
    %v219 = vld [vmem:[%s1 + $0x2f0] sm:$0xf]
    %v220 = vld [vmem:[%s1 + $0x2f4] sm:$0xf]
    %v221 = vld [vmem:[%s1 + $0x2f8] sm:$0xf]
    %v222 = vld [vmem:[%s1 + $0x2fc] sm:$0xf]
    %v223 = vld [vmem:[%s1 + $0x300] sm:$0xf]
    %v224 = vld [vmem:[%s1 + $0x304] sm:$0xf]
    %v225 = vld [vmem:[%s1 + $0x308] sm:$0xf]
    %v226 = vld [vmem:[%s1 + $0x30c] sm:$0xf]
    %v227 = vld [vmem:[%s1 + $0x310] sm:$0xf]
    %v228 = vld [vmem:[%s1 + $0x314] sm:$0xf]
    %v229 = vld [vmem:[%s1 + $0x318] sm:$0xf]
    %v230 = vld [vmem:[%s1 + $0x31c] sm:$0xf]
    %v231 = vld [vmem:[%s1 + $0x320] sm:$0xf]
    %v232 = vld [vmem:[%s1 + $0x324] sm:$0xf]
    %v233 = vld [vmem:[%s1 + $0x328] sm:$0xf]
    %v234 = vld [vmem:[%s1 + $0x32c] sm:$0xf]
    %v235 = vld [vmem:[%s1 + $0x330] sm:$0xf]
    %v236 = vld [vmem:[%s1 + $0x334] sm:$0xf]
    %v237 = vld [vmem:[%s1 + $0x338] sm:$0xf]
    %v238 = vld [vmem:[%s1 + $0x33c] sm:$0xf]
    %v239 = vld [vmem:[%s1 + $0x340] sm:$0xf]
    %v240 = vld [vmem:[%s1 + $0x344] sm:$0xf]
    %v241 = vld [vmem:[%s1 + $0x348] sm:$0xf]
    %v242 = vld [vmem:[%s1 + $0x34c] sm:$0xf]
    %v243 = vld [vmem:[%s1 + $0x350] sm:$0xf]
    %v244 = vld [vmem:[%s1 + $0x354] sm:$0xf]
    %v245 = vld [vmem:[%s1 + $0x358] sm:$0xf]
    %v246 = vld [vmem:[%s1 + $0x35c] sm:$0xf]
    %v247 = vld [vmem:[%s1 + $0x360] sm:$0xf]
    %v248 = vld [vmem:[%s1 + $0x364] sm:$0xf]
    %v249 = vld [vmem:[%s1 + $0x368] sm:$0xf]
    %v250 = vld [vmem:[%s1 + $0x36c] sm:$0xf]
    %v251 = vld [vmem:[%s1 + $0x370] sm:$0xf]
    %v252 = vld [vmem:[%s1 + $0x374] sm:$0xf]
    %v253 = vld [vmem:[%s1 + $0x378] sm:$0xf]
    %v254 = vld [vmem:[%s1 + $0x37c] sm:$0xf]
    %v255 = vld [vmem:[%s1 + $0x380] sm:$0xf]
    %v256 = vld [vmem:[%s1 + $0x384] sm:$0xf]
    %v257 = vld [vmem:[%s1 + $0x388] sm:$0xf]
    %v258 = vld [vmem:[%s1 + $0x38c] sm:$0xf]
    %v259 = vld [vmem:[%s1 + $0x390] sm:$0xf]
    %v260 = vld [vmem:[%s1 + $0x394] sm:$0xf]
    %v261 = vld [vmem:[%s1 + $0x398] sm:$0xf]
    %v262 = vld [vmem:[%s1 + $0x39c] sm:$0xf]
    %v263 = vld [vmem:[%s1 + $0x3a0] sm:$0xf]
    %v264 = vld [vmem:[%s1 + $0x3a4] sm:$0xf]
    %v265 = vld [vmem:[%s1 + $0x3a8] sm:$0xf]
    %v266 = vld [vmem:[%s1 + $0x3ac] sm:$0xf]
    %v267 = vld [vmem:[%s1 + $0x3b0] sm:$0xf]
    %v268 = vld [vmem:[%s1 + $0x3b4] sm:$0xf]
    %v269 = vld [vmem:[%s1 + $0x3b8] sm:$0xf]
    %v270 = vld [vmem:[%s1 + $0x3bc] sm:$0xf]
    %v271 = vld [vmem:[%s1 + $0x3c0] sm:$0xf]
    %v272 = vld [vmem:[%s1 + $0x3c4] sm:$0xf]
    %v273 = vld [vmem:[%s1 + $0x3c8] sm:$0xf]
    %v274 = vld [vmem:[%s1 + $0x3cc] sm:$0xf]
    %v275 = vld [vmem:[%s1 + $0x3d0] sm:$0xf]
    %v276 = vld [vmem:[%s1 + $0x3d4] sm:$0xf]
    %v277 = vld [vmem:[%s1 + $0x3d8] sm:$0xf]
    %v278 = vld [vmem:[%s1 + $0x3dc] sm:$0xf]
    %v279 = vld [vmem:[%s1 + $0x3e0] sm:$0xf]
    %v280 = vld [vmem:[%s1 + $0x3e4] sm:$0xf]
    %v281 = vld [vmem:[%s1 + $0x3e8] sm:$0xf]
    %v282 = vld [vmem:[%s1 + $0x3ec] sm:$0xf]
    %v283 = vld [vmem:[%s1 + $0x3f0] sm:$0xf]
    %v284 = vld [vmem:[%s1 + $0x3f4] sm:$0xf]
    %v285 = vld [vmem:[%s1 + $0x3f8] sm:$0xf]
    %v286 = vld [vmem:[%s1 + $0x3fc] sm:$0xf]
    %v287 = vld [vmem:[%s1 + $0x400] sm:$0xf]
    %v288 = vld [vmem:[%s1 + $0x404] sm:$0xf]
    %v289 = vld [vmem:[%s1 + $0x408] sm:$0xf]
    %v290 = vld [vmem:[%s1 + $0x40c] sm:$0xf]
    %v291 = vld [vmem:[%s1 + $0x410] sm:$0xf]
    %v292 = vld [vmem:[%s1 + $0x414] sm:$0xf]
    %v293 = vld [vmem:[%s1 + $0x418] sm:$0xf]
    %v294 = vld [vmem:[%s1 + $0x41c] sm:$0xf]
    %v295 = vld [vmem:[%s1 + $0x420] sm:$0xf]
    %v296 = vld [vmem:[%s1 + $0x424] sm:$0xf]
    %v297 = vld [vmem:[%s1 + $0x428] sm:$0xf]
    %v298 = vld [vmem:[%s1 + $0x42c] sm:$0xf]
    %v299 = vld [vmem:[%s1 + $0x430] sm:$0xf]
    %v300 = vld [vmem:[%s1 + $0x434] sm:$0xf]
    %v301 = vld [vmem:[%s1 + $0x438] sm:$0xf]
    %v302 = vld [vmem:[%s1 + $0x43c] sm:$0xf]
    %v303 = vld [vmem:[%s1 + $0x440] sm:$0xf]
    %v304 = vld [vmem:[%s1 + $0x444] sm:$0xf]
    %v305 = vld [vmem:[%s1 + $0x448] sm:$0xf]
    %v306 = vld [vmem:[%s1 + $0x44c] sm:$0xf]
    %v307 = vld [vmem:[%s1 + $0x450] sm:$0xf]
    %v308 = vld [vmem:[%s1 + $0x454] sm:$0xf]
    %v309 = vld [vmem:[%s1 + $0x458] sm:$0xf]
    %v310 = vld [vmem:[%s1 + $0x45c] sm:$0xf]
    %v311 = vld [vmem:[%s1 + $0x460] sm:$0xf]
    %v312 = vld [vmem:[%s1 + $0x464] sm:$0xf]
    %v313 = vld [vmem:[%s1 + $0x468] sm:$0xf]
    %v314 = vld [vmem:[%s1 + $0x46c] sm:$0xf]
    %v315 = vld [vmem:[%s1 + $0x470] sm:$0xf]
    %v316 = vld [vmem:[%s1 + $0x474] sm:$0xf]
    %v317 = vld [vmem:[%s1 + $0x478] sm:$0xf]
    %v318 = vld [vmem:[%s1 + $0x47c] sm:$0xf]
    %v319 = vld [vmem:[%s1 + $0x480] sm:$0xf]
    %v320 = vld [vmem:[%s1 + $0x484] sm:$0xf]
    %v321 = vld [vmem:[%s1 + $0x488] sm:$0xf]
    %v322 = vld [vmem:[%s1 + $0x48c] sm:$0xf]
    %v323 = vld [vmem:[%s1 + $0x490] sm:$0xf]
    %v324 = vld [vmem:[%s1 + $0x494] sm:$0xf]
    %v325 = vld [vmem:[%s1 + $0x498] sm:$0xf]
    %v326 = vld [vmem:[%s1 + $0x49c] sm:$0xf]
    %v327 = vld [vmem:[%s1 + $0x4a0] sm:$0xf]
    %v328 = vld [vmem:[%s1 + $0x4a4] sm:$0xf]
    %v329 = vld [vmem:[%s1 + $0x4a8] sm:$0xf]
    %v330 = vld [vmem:[%s1 + $0x4ac] sm:$0xf]
    %v331 = vld [vmem:[%s1 + $0x4b0] sm:$0xf]
    %v332 = vld [vmem:[%s1 + $0x4b4] sm:$0xf]
    %v333 = vld [vmem:[%s1 + $0x4b8] sm:$0xf]
    %v334 = vld [vmem:[%s1 + $0x4bc] sm:$0xf]
    %v335 = vld [vmem:[%s1 + $0x4c0] sm:$0xf]
    %v336 = vld [vmem:[%s1 + $0x4c4] sm:$0xf]
    %v337 = vld [vmem:[%s1 + $0x4c8] sm:$0xf]
    %v338 = vld [vmem:[%s1 + $0x4cc] sm:$0xf]
    %v339 = vld [vmem:[%s1 + $0x4d0] sm:$0xf]
    %v340 = vld [vmem:[%s1 + $0x4d4] sm:$0xf]
    %v341 = vld [vmem:[%s1 + $0x4d8] sm:$0xf]
    %v342 = vld [vmem:[%s1 + $0x4dc] sm:$0xf]
    %v343 = vld [vmem:[%s1 + $0x4e0] sm:$0xf]
    %v344 = vld [vmem:[%s1 + $0x4e4] sm:$0xf]
    %v345 = vld [vmem:[%s1 + $0x4e8] sm:$0xf]
    %v346 = vld [vmem:[%s1 + $0x4ec] sm:$0xf]
    %v347 = vld [vmem:[%s1 + $0x4f0] sm:$0xf]
    %v348 = vld [vmem:[%s1 + $0x4f4] sm:$0xf]
    %v349 = vld [vmem:[%s1 + $0x4f8] sm:$0xf]
    %v350 = vld [vmem:[%s1 + $0x4fc] sm:$0xf]
    %v351 = vld [vmem:[%s1 + $0x500] sm:$0xf]
    %v352 = vld [vmem:[%s1 + $0x504] sm:$0xf]
    %v353 = vld [vmem:[%s1 + $0x508] sm:$0xf]
    %v354 = vld [vmem:[%s1 + $0x50c] sm:$0xf]
    %v355 = vld [vmem:[%s1 + $0x510] sm:$0xf]
    %v356 = vld [vmem:[%s1 + $0x514] sm:$0xf]
    %v357 = vld [vmem:[%s1 + $0x518] sm:$0xf]
    %v358 = vld [vmem:[%s1 + $0x51c] sm:$0xf]
    %v359 = vld [vmem:[%s1 + $0x520] sm:$0xf]
    %v360 = vld [vmem:[%s1 + $0x524] sm:$0xf]
    %v361 = vld [vmem:[%s1 + $0x528] sm:$0xf]
    %v362 = vld [vmem:[%s1 + $0x52c] sm:$0xf]
    %v363 = vld [vmem:[%s1 + $0x530] sm:$0xf]
    %v364 = vld [vmem:[%s1 + $0x534] sm:$0xf]
    %v365 = vld [vmem:[%s1 + $0x538] sm:$0xf]
    %v366 = vld [vmem:[%s1 + $0x53c] sm:$0xf]
    %v367 = vld [vmem:[%s1 + $0x540] sm:$0xf]
    %v368 = vld [vmem:[%s1 + $0x544] sm:$0xf]
    %v369 = vld [vmem:[%s1 + $0x548] sm:$0xf]
    %v370 = vld [vmem:[%s1 + $0x54c] sm:$0xf]
    %v371 = vld [vmem:[%s1 + $0x550] sm:$0xf]
    %v372 = vld [vmem:[%s1 + $0x554] sm:$0xf]
    %v373 = vld [vmem:[%s1 + $0x558] sm:$0xf]
    %v374 = vld [vmem:[%s1 + $0x55c] sm:$0xf]
    %v375 = vld [vmem:[%s1 + $0x560] sm:$0xf]
    %v376 = vld [vmem:[%s1 + $0x564] sm:$0xf]
    %v377 = vld [vmem:[%s1 + $0x568] sm:$0xf]
    %v378 = vld [vmem:[%s1 + $0x56c] sm:$0xf]
    %v379 = vld [vmem:[%s1 + $0x570] sm:$0xf]
    %v380 = vld [vmem:[%s1 + $0x574] sm:$0xf]
    %v381 = vld [vmem:[%s1 + $0x578] sm:$0xf]
    %v382 = vld [vmem:[%s1 + $0x57c] sm:$0xf]
    %v383 = vld [vmem:[%s1 + $0x580] sm:$0xf]
    %v384 = vld [vmem:[%s1 + $0x584] sm:$0xf]
    %v385 = vld [vmem:[%s1 + $0x588] sm:$0xf]
    %v386 = vld [vmem:[%s1 + $0x58c] sm:$0xf]
    %v387 = vld [vmem:[%s1 + $0x590] sm:$0xf]
    %v388 = vld [vmem:[%s1 + $0x594] sm:$0xf]
    %v389 = vld [vmem:[%s1 + $0x598] sm:$0xf]
    %v390 = vld [vmem:[%s1 + $0x59c] sm:$0xf]
    %v391 = vld [vmem:[%s1 + $0x5a0] sm:$0xf]
    %v392 = vld [vmem:[%s1 + $0x5a4] sm:$0xf]
    %v393 = vld [vmem:[%s1 + $0x5a8] sm:$0xf]
    %v394 = vld [vmem:[%s1 + $0x5ac] sm:$0xf]
    %v395 = vld [vmem:[%s1 + $0x5b0] sm:$0xf]
    %v396 = vld [vmem:[%s1 + $0x5b4] sm:$0xf]
    %v397 = vld [vmem:[%s1 + $0x5b8] sm:$0xf]
    %v398 = vld [vmem:[%s1 + $0x5bc] sm:$0xf]
    %v399 = vld [vmem:[%s1 + $0x5c0] sm:$0xf]
    %v400 = vld [vmem:[%s1 + $0x5c4] sm:$0xf]
    %v401 = vld [vmem:[%s1 + $0x5c8] sm:$0xf]
    %v402 = vld [vmem:[%s1 + $0x5cc] sm:$0xf]
    %v403 = vld [vmem:[%s1 + $0x5d0] sm:$0xf]
    %v404 = vld [vmem:[%s1 + $0x5d4] sm:$0xf]
    %v405 = vld [vmem:[%s1 + $0x5d8] sm:$0xf]
    %v406 = vld [vmem:[%s1 + $0x5dc] sm:$0xf]
    %v407 = vld [vmem:[%s1 + $0x5e0] sm:$0xf]
    %v408 = vld [vmem:[%s1 + $0x5e4] sm:$0xf]
    %v409 = vld [vmem:[%s1 + $0x5e8] sm:$0xf]
    %v410 = vld [vmem:[%s1 + $0x5ec] sm:$0xf]
    %v411 = vld [vmem:[%s1 + $0x5f0] sm:$0xf]
    %v412 = vld [vmem:[%s1 + $0x5f4] sm:$0xf]
    %v413 = vld [vmem:[%s1 + $0x5f8] sm:$0xf]
    %v414 = vld [vmem:[%s1 + $0x5fc] sm:$0xf]
    %v415 = vld [vmem:[%s1 + $0x600] sm:$0xf]
    %v416 = vld [vmem:[%s1 + $0x604] sm:$0xf]
    %v417 = vld [vmem:[%s1 + $0x608] sm:$0xf]
    %v418 = vld [vmem:[%s1 + $0x60c] sm:$0xf]
    %v419 = vld [vmem:[%s1 + $0x610] sm:$0xf]
    %v420 = vld [vmem:[%s1 + $0x614] sm:$0xf]
    %v421 = vld [vmem:[%s1 + $0x618] sm:$0xf]
    %v422 = vld [vmem:[%s1 + $0x61c] sm:$0xf]
    %v423 = vld [vmem:[%s1 + $0x620] sm:$0xf]
    %v424 = vld [vmem:[%s1 + $0x624] sm:$0xf]
    %v425 = vld [vmem:[%s1 + $0x628] sm:$0xf]
    %v426 = vld [vmem:[%s1 + $0x62c] sm:$0xf]
    %v427 = vld [vmem:[%s1 + $0x630] sm:$0xf]
    %v428 = vld [vmem:[%s1 + $0x634] sm:$0xf]
    %v429 = vld [vmem:[%s1 + $0x638] sm:$0xf]
    %v430 = vld [vmem:[%s1 + $0x63c] sm:$0xf]
    %v431 = vld [vmem:[%s1 + $0x640] sm:$0xf]
    %v432 = vld [vmem:[%s1 + $0x644] sm:$0xf]
    %v433 = vld [vmem:[%s1 + $0x648] sm:$0xf]
    %v434 = vld [vmem:[%s1 + $0x64c] sm:$0xf]
    %v435 = vld [vmem:[%s1 + $0x650] sm:$0xf]
    %v436 = vld [vmem:[%s1 + $0x654] sm:$0xf]
    %v437 = vld [vmem:[%s1 + $0x658] sm:$0xf]
    %v438 = vld [vmem:[%s1 + $0x65c] sm:$0xf]
    %v439 = vld [vmem:[%s1 + $0x660] sm:$0xf]
    %v440 = vld [vmem:[%s1 + $0x664] sm:$0xf]
    %v441 = vld [vmem:[%s1 + $0x668] sm:$0xf]
    %v442 = vld [vmem:[%s1 + $0x66c] sm:$0xf]
    %v443 = vld [vmem:[%s1 + $0x670] sm:$0xf]
    %v444 = vld [vmem:[%s1 + $0x674] sm:$0xf]
    %v445 = vld [vmem:[%s1 + $0x678] sm:$0xf]
    %v446 = vld [vmem:[%s1 + $0x67c] sm:$0xf]
    %v447 = vld [vmem:[%s1 + $0x680] sm:$0xf]
    %v448 = vld [vmem:[%s1 + $0x684] sm:$0xf]
    %v449 = vld [vmem:[%s1 + $0x688] sm:$0xf]
    %v450 = vld [vmem:[%s1 + $0x68c] sm:$0xf]
    %v451 = vld [vmem:[%s1 + $0x690] sm:$0xf]
    %v452 = vld [vmem:[%s1 + $0x694] sm:$0xf]
    %v453 = vld [vmem:[%s1 + $0x698] sm:$0xf]
    %v454 = vld [vmem:[%s1 + $0x69c] sm:$0xf]
    %v455 = vld [vmem:[%s1 + $0x6a0] sm:$0xf]
    %v456 = vld [vmem:[%s1 + $0x6a4] sm:$0xf]
    %v457 = vld [vmem:[%s1 + $0x6a8] sm:$0xf]
    %v458 = vld [vmem:[%s1 + $0x6ac] sm:$0xf]
    %v459 = vld [vmem:[%s1 + $0x6b0] sm:$0xf]
    %v460 = vld [vmem:[%s1 + $0x6b4] sm:$0xf]
    %v461 = vld [vmem:[%s1 + $0x6b8] sm:$0xf]
    %v462 = vld [vmem:[%s1 + $0x6bc] sm:$0xf]
    %v463 = vld [vmem:[%s1 + $0x6c0] sm:$0xf]
    %v464 = vld [vmem:[%s1 + $0x6c4] sm:$0xf]
    %v465 = vld [vmem:[%s1 + $0x6c8] sm:$0xf]
    %v466 = vld [vmem:[%s1 + $0x6cc] sm:$0xf]
    %v467 = vld [vmem:[%s1 + $0x6d0] sm:$0xf]
    %v468 = vld [vmem:[%s1 + $0x6d4] sm:$0xf]
    %v469 = vld [vmem:[%s1 + $0x6d8] sm:$0xf]
    %v470 = vld [vmem:[%s1 + $0x6dc] sm:$0xf]
    %v471 = vld [vmem:[%s1 + $0x6e0] sm:$0xf]
    %v472 = vld [vmem:[%s1 + $0x6e4] sm:$0xf]
    %v473 = vld [vmem:[%s1 + $0x6e8] sm:$0xf]
    %v474 = vld [vmem:[%s1 + $0x6ec] sm:$0xf]
    %v475 = vld [vmem:[%s1 + $0x6f0] sm:$0xf]
    %v476 = vld [vmem:[%s1 + $0x6f4] sm:$0xf]
    %v477 = vld [vmem:[%s1 + $0x6f8] sm:$0xf]
    %v478 = vld [vmem:[%s1 + $0x6fc] sm:$0xf]
    %v479 = vld [vmem:[%s1 + $0x700] sm:$0xf]
    %v480 = vld [vmem:[%s1 + $0x704] sm:$0xf]
    %v481 = vld [vmem:[%s1 + $0x708] sm:$0xf]
    %v482 = vld [vmem:[%s1 + $0x70c] sm:$0xf]
    %v483 = vld [vmem:[%s1 + $0x710] sm:$0xf]
    %v484 = vld [vmem:[%s1 + $0x714] sm:$0xf]
    %v485 = vld [vmem:[%s1 + $0x718] sm:$0xf]
    %v486 = vld [vmem:[%s1 + $0x71c] sm:$0xf]
    %v487 = vld [vmem:[%s1 + $0x720] sm:$0xf]
    %v488 = vld [vmem:[%s1 + $0x724] sm:$0xf]
    %v489 = vld [vmem:[%s1 + $0x728] sm:$0xf]
    %v490 = vld [vmem:[%s1 + $0x72c] sm:$0xf]
    %v491 = vld [vmem:[%s1 + $0x730] sm:$0xf]
    %v492 = vld [vmem:[%s1 + $0x734] sm:$0xf]
    %v493 = vld [vmem:[%s1 + $0x738] sm:$0xf]
    %v494 = vld [vmem:[%s1 + $0x73c] sm:$0xf]
    %v495 = vld [vmem:[%s1 + $0x740] sm:$0xf]
    %v496 = vld [vmem:[%s1 + $0x744] sm:$0xf]
    %v497 = vld [vmem:[%s1 + $0x748] sm:$0xf]
    %v498 = vld [vmem:[%s1 + $0x74c] sm:$0xf]
    %v499 = vld [vmem:[%s1 + $0x750] sm:$0xf]
    %v500 = vld [vmem:[%s1 + $0x754] sm:$0xf]
    %v501 = vld [vmem:[%s1 + $0x758] sm:$0xf]
    %v502 = vld [vmem:[%s1 + $0x75c] sm:$0xf]
    %v503 = vld [vmem:[%s1 + $0x760] sm:$0xf]
    %v504 = vld [vmem:[%s1 + $0x764] sm:$0xf]
    %v505 = vld [vmem:[%s1 + $0x768] sm:$0xf]
    %v506 = vld [vmem:[%s1 + $0x76c] sm:$0xf]
    %v507 = vld [vmem:[%s1 + $0x770] sm:$0xf]
    %v508 = vld [vmem:[%s1 + $0x774] sm:$0xf]
    %v509 = vld [vmem:[%s1 + $0x778] sm:$0xf]
    %v510 = vld [vmem:[%s1 + $0x77c] sm:$0xf]
    %v511 = vld [vmem:[%s1 + $0x780] sm:$0xf]
    %v512 = vld [vmem:[%s1 + $0x784] sm:$0xf]
    %v513 = vld [vmem:[%s1 + $0x788] sm:$0xf]
    %v514 = vld [vmem:[%s1 + $0x78c] sm:$0xf]
    %v515 = vld [vmem:[%s1 + $0x790] sm:$0xf]
    %v516 = vld [vmem:[%s1 + $0x794] sm:$0xf]
    %v517 = vld [vmem:[%s1 + $0x798] sm:$0xf]
    %v518 = vld [vmem:[%s1 + $0x79c] sm:$0xf]
    %v519 = vld [vmem:[%s1 + $0x7a0] sm:$0xf]
    %v520 = vld [vmem:[%s1 + $0x7a4] sm:$0xf]
    %v521 = vld [vmem:[%s1 + $0x7a8] sm:$0xf]
    %v522 = vld [vmem:[%s1 + $0x7ac] sm:$0xf]
    %v523 = vld [vmem:[%s1 + $0x7b0] sm:$0xf]
    %v524 = vld [vmem:[%s1 + $0x7b4] sm:$0xf]
    %v525 = vld [vmem:[%s1 + $0x7b8] sm:$0xf]
    %v526 = vld [vmem:[%s1 + $0x7bc] sm:$0xf]
    %v527 = vld [vmem:[%s1 + $0x7c0] sm:$0xf]
    %v528 = vld [vmem:[%s1 + $0x7c4] sm:$0xf]
    %v529 = vld [vmem:[%s1 + $0x7c8] sm:$0xf]
    %v530 = vld [vmem:[%s1 + $0x7cc] sm:$0xf]
    %v531 = vld [vmem:[%s1 + $0x7d0] sm:$0xf]
    %v532 = vld [vmem:[%s1 + $0x7d4] sm:$0xf]
    %v533 = vld [vmem:[%s1 + $0x7d8] sm:$0xf]
    %v534 = vld [vmem:[%s1 + $0x7dc] sm:$0xf]
    %v535 = vld [vmem:[%s1 + $0x7e0] sm:$0xf]
    %v536 = vld [vmem:[%s1 + $0x7e4] sm:$0xf]
    %v537 = vld [vmem:[%s1 + $0x7e8] sm:$0xf]
    %v538 = vld [vmem:[%s1 + $0x7ec] sm:$0xf]
    %v539 = vld [vmem:[%s1 + $0x7f0] sm:$0xf]
    %v540 = vld [vmem:[%s1 + $0x7f4] sm:$0xf]
    %v541 = vld [vmem:[%s1 + $0x7f8] sm:$0xf]
    %v542 = vld [vmem:[%s1 + $0x7fc] sm:$0xf]
    %v543 = vld [vmem:[%s1 + $0x800] sm:$0xf]
    %v544 = vld [vmem:[%s1 + $0x804] sm:$0xf]
    %v545 = vld [vmem:[%s1 + $0x808] sm:$0xf]
    %v546 = vld [vmem:[%s1 + $0x80c] sm:$0xf]
    %v547 = vld [vmem:[%s1 + $0x810] sm:$0xf]
    %v548 = vld [vmem:[%s1 + $0x814] sm:$0xf]
    %v549 = vld [vmem:[%s1 + $0x818] sm:$0xf]
    %v550 = vld [vmem:[%s1 + $0x81c] sm:$0xf]
    %v551 = vld [vmem:[%s1 + $0x820] sm:$0xf]
    %v552 = vld [vmem:[%s1 + $0x824] sm:$0xf]
    %v553 = vld [vmem:[%s1 + $0x828] sm:$0xf]
    %v554 = vld [vmem:[%s1 + $0x82c] sm:$0xf]
    %v555 = vld [vmem:[%s1 + $0x830] sm:$0xf]
    %v556 = vld [vmem:[%s1 + $0x834] sm:$0xf]
    %v557 = vld [vmem:[%s1 + $0x838] sm:$0xf]
    %v558 = vld [vmem:[%s1 + $0x83c] sm:$0xf]
    %v559 = vld [vmem:[%s1 + $0x840] sm:$0xf]
    %v560 = vld [vmem:[%s1 + $0x844] sm:$0xf]
    %v561 = vld [vmem:[%s1 + $0x848] sm:$0xf]
    %v562 = vld [vmem:[%s1 + $0x84c] sm:$0xf]
    %v563 = vld [vmem:[%s1 + $0x850] sm:$0xf]
    %v564 = vld [vmem:[%s1 + $0x854] sm:$0xf]
    %v565 = vld [vmem:[%s1 + $0x858] sm:$0xf]
    %v566 = vld [vmem:[%s1 + $0x85c] sm:$0xf]
    %v567 = vld [vmem:[%s1 + $0x860] sm:$0xf]
    %v568 = vld [vmem:[%s1 + $0x864] sm:$0xf]
    %v569 = vld [vmem:[%s1 + $0x868] sm:$0xf]
    %v570 = vld [vmem:[%s1 + $0x86c] sm:$0xf]
    %v571 = vld [vmem:[%s1 + $0x870] sm:$0xf]
    %v572 = vld [vmem:[%s1 + $0x874] sm:$0xf]
    %v573 = vld [vmem:[%s1 + $0x878] sm:$0xf]
    %v574 = vld [vmem:[%s1 + $0x87c] sm:$0xf]
    %v575 = vld [vmem:[%s1 + $0x880] sm:$0xf]
    %v576 = vld [vmem:[%s1 + $0x884] sm:$0xf]
    %v577 = vld [vmem:[%s1 + $0x888] sm:$0xf]
    %v578 = vld [vmem:[%s1 + $0x88c] sm:$0xf]
    %v579 = vld [vmem:[%s1 + $0x890] sm:$0xf]
    %v580 = vld [vmem:[%s1 + $0x894] sm:$0xf]
    %v581 = vld [vmem:[%s1 + $0x898] sm:$0xf]
    %v582 = vld [vmem:[%s1 + $0x89c] sm:$0xf]
    %v583 = vld [vmem:[%s1 + $0x8a0] sm:$0xf]
    %v584 = vld [vmem:[%s1 + $0x8a4] sm:$0xf]
    %v585 = vld [vmem:[%s1 + $0x8a8] sm:$0xf]
    %v586 = vld [vmem:[%s1 + $0x8ac] sm:$0xf]
    %v587 = vld [vmem:[%s1 + $0x8b0] sm:$0xf]
    %v588 = vld [vmem:[%s1 + $0x8b4] sm:$0xf]
    %v589 = vld [vmem:[%s1 + $0x8b8] sm:$0xf]
    %v590 = vld [vmem:[%s1 + $0x8bc] sm:$0xf]
    %v591 = vld [vmem:[%s1 + $0x8c0] sm:$0xf]
    %v592 = vld [vmem:[%s1 + $0x8c4] sm:$0xf]
    %v593 = vld [vmem:[%s1 + $0x8c8] sm:$0xf]
    %v594 = vld [vmem:[%s1 + $0x8cc] sm:$0xf]
    %v595 = vld [vmem:[%s1 + $0x8d0] sm:$0xf]
    %v596 = vld [vmem:[%s1 + $0x8d4] sm:$0xf]
    %v597 = vld [vmem:[%s1 + $0x8d8] sm:$0xf]
    %v598 = vld [vmem:[%s1 + $0x8dc] sm:$0xf]
    %v599 = vld [vmem:[%s1 + $0x8e0] sm:$0xf]
    %v600 = vld [vmem:[%s1 + $0x8e4] sm:$0xf]
    %v601 = vld [vmem:[%s1 + $0x8e8] sm:$0xf]
    %v602 = vld [vmem:[%s1 + $0x8ec] sm:$0xf]
    %v603 = vld [vmem:[%s1 + $0x8f0] sm:$0xf]
    %v604 = vld [vmem:[%s1 + $0x8f4] sm:$0xf]
    %v605 = vld [vmem:[%s1 + $0x8f8] sm:$0xf]
    %v606 = vld [vmem:[%s1 + $0x8fc] sm:$0xf]
    %v607 = vld [vmem:[%s1 + $0x900] sm:$0xf]
    %v608 = vld [vmem:[%s1 + $0x904] sm:$0xf]
    %v609 = vld [vmem:[%s1 + $0x908] sm:$0xf]
    %v610 = vld [vmem:[%s1 + $0x90c] sm:$0xf]
    %v611 = vld [vmem:[%s1 + $0x910] sm:$0xf]
    %v612 = vld [vmem:[%s1 + $0x914] sm:$0xf]
    %v613 = vld [vmem:[%s1 + $0x918] sm:$0xf]
    %v614 = vld [vmem:[%s1 + $0x91c] sm:$0xf]
    %v615 = vld [vmem:[%s1 + $0x920] sm:$0xf]
    %v616 = vld [vmem:[%s1 + $0x924] sm:$0xf]
    %v617 = vld [vmem:[%s1 + $0x928] sm:$0xf]
    %v618 = vld [vmem:[%s1 + $0x92c] sm:$0xf]
    %v619 = vld [vmem:[%s1 + $0x930] sm:$0xf]
    %v620 = vld [vmem:[%s1 + $0x934] sm:$0xf]
    %v621 = vld [vmem:[%s1 + $0x938] sm:$0xf]
    %v622 = vld [vmem:[%s1 + $0x93c] sm:$0xf]
    %v623 = vld [vmem:[%s1 + $0x940] sm:$0xf]
    %v624 = vld [vmem:[%s1 + $0x944] sm:$0xf]
    %v625 = vld [vmem:[%s1 + $0x948] sm:$0xf]
    %v626 = vld [vmem:[%s1 + $0x94c] sm:$0xf]
    %v627 = vld [vmem:[%s1 + $0x950] sm:$0xf]
    %v628 = vld [vmem:[%s1 + $0x954] sm:$0xf]
    %v629 = vld [vmem:[%s1 + $0x958] sm:$0xf]
    %v630 = vld [vmem:[%s1 + $0x95c] sm:$0xf]
    %v631 = vld [vmem:[%s1 + $0x960] sm:$0xf]
    %v632 = vld [vmem:[%s1 + $0x964] sm:$0xf]
    %v633 = vld [vmem:[%s1 + $0x968] sm:$0xf]
    %v634 = vld [vmem:[%s1 + $0x96c] sm:$0xf]
    %v635 = vld [vmem:[%s1 + $0x970] sm:$0xf]
    %v636 = vld [vmem:[%s1 + $0x974] sm:$0xf]
    %v637 = vld [vmem:[%s1 + $0x978] sm:$0xf]
    %v638 = vld [vmem:[%s1 + $0x97c] sm:$0xf]
    %v639 = vld [vmem:[%s1 + $0x980] sm:$0xf]
    %v640 = vld [vmem:[%s1 + $0x984] sm:$0xf]
    %v641 = vld [vmem:[%s1 + $0x988] sm:$0xf]
    %v642 = vld [vmem:[%s1 + $0x98c] sm:$0xf]
    %v643 = vld [vmem:[%s1 + $0x990] sm:$0xf]
    %v644 = vld [vmem:[%s1 + $0x994] sm:$0xf]
    %v645 = vld [vmem:[%s1 + $0x998] sm:$0xf]
    %v646 = vld [vmem:[%s1 + $0x99c] sm:$0xf]
    %v647 = vld [vmem:[%s1 + $0x9a0] sm:$0xf]
    %v648 = vld [vmem:[%s1 + $0x9a4] sm:$0xf]
    %v649 = vld [vmem:[%s1 + $0x9a8] sm:$0xf]
    %v650 = vld [vmem:[%s1 + $0x9ac] sm:$0xf]
    %v651 = vld [vmem:[%s1 + $0x9b0] sm:$0xf]
    %v652 = vld [vmem:[%s1 + $0x9b4] sm:$0xf]
    %v653 = vld [vmem:[%s1 + $0x9b8] sm:$0xf]
    %v654 = vld [vmem:[%s1 + $0x9bc] sm:$0xf]
    %v655 = vld [vmem:[%s1 + $0x9c0] sm:$0xf]
    %v656 = vld [vmem:[%s1 + $0x9c4] sm:$0xf]
    %v657 = vld [vmem:[%s1 + $0x9c8] sm:$0xf]
    %v658 = vld [vmem:[%s1 + $0x9cc] sm:$0xf]
    %v659 = vld [vmem:[%s1 + $0x9d0] sm:$0xf]
    %v660 = vld [vmem:[%s1 + $0x9d4] sm:$0xf]
    %v661 = vld [vmem:[%s1 + $0x9d8] sm:$0xf]
    %v662 = vld [vmem:[%s1 + $0x9dc] sm:$0xf]
    %v663 = vld [vmem:[%s1 + $0x9e0] sm:$0xf]
    %v664 = vld [vmem:[%s1 + $0x9e4] sm:$0xf]
    %v665 = vld [vmem:[%s1 + $0x9e8] sm:$0xf]
    %v666 = vld [vmem:[%s1 + $0x9ec] sm:$0xf]
    %v667 = vld [vmem:[%s1 + $0x9f0] sm:$0xf]
    %v668 = vld [vmem:[%s1 + $0x9f4] sm:$0xf]
    %v669 = vld [vmem:[%s1 + $0x9f8] sm:$0xf]
    %v670 = vld [vmem:[%s1 + $0x9fc] sm:$0xf]
    %v671 = vld [vmem:[%s1 + $0xa00] sm:$0xf]
    %v672 = vld [vmem:[%s1 + $0xa04] sm:$0xf]
    %v673 = vld [vmem:[%s1 + $0xa08] sm:$0xf]
    %v674 = vld [vmem:[%s1 + $0xa0c] sm:$0xf]
    %v675 = vld [vmem:[%s1 + $0xa10] sm:$0xf]
    %v676 = vld [vmem:[%s1 + $0xa14] sm:$0xf]
    %v677 = vld [vmem:[%s1 + $0xa18] sm:$0xf]
    %v678 = vld [vmem:[%s1 + $0xa1c] sm:$0xf]
    %v679 = vld [vmem:[%s1 + $0xa20] sm:$0xf]
    %v680 = vld [vmem:[%s1 + $0xa24] sm:$0xf]
    %v681 = vld [vmem:[%s1 + $0xa28] sm:$0xf]
    %v682 = vld [vmem:[%s1 + $0xa2c] sm:$0xf]
    %v683 = vld [vmem:[%s1 + $0xa30] sm:$0xf]
    %v684 = vld [vmem:[%s1 + $0xa34] sm:$0xf]
    %v685 = vld [vmem:[%s1 + $0xa38] sm:$0xf]
    %v686 = vld [vmem:[%s1 + $0xa3c] sm:$0xf]
    %v687 = vld [vmem:[%s1 + $0xa40] sm:$0xf]
    %v688 = vld [vmem:[%s1 + $0xa44] sm:$0xf]
    %v689 = vld [vmem:[%s1 + $0xa48] sm:$0xf]
    %v690 = vld [vmem:[%s1 + $0xa4c] sm:$0xf]
    %v691 = vld [vmem:[%s1 + $0xa50] sm:$0xf]
    %v692 = vld [vmem:[%s1 + $0xa54] sm:$0xf]
    %v693 = vld [vmem:[%s1 + $0xa58] sm:$0xf]
    %v694 = vld [vmem:[%s1 + $0xa5c] sm:$0xf]
    %v695 = vld [vmem:[%s1 + $0xa60] sm:$0xf]
    %v696 = vld [vmem:[%s1 + $0xa64] sm:$0xf]
    %v697 = vld [vmem:[%s1 + $0xa68] sm:$0xf]
    %v698 = vld [vmem:[%s1 + $0xa6c] sm:$0xf]
    %v699 = vld [vmem:[%s1 + $0xa70] sm:$0xf]
    %v700 = vld [vmem:[%s1 + $0xa74] sm:$0xf]
    %v701 = vld [vmem:[%s1 + $0xa78] sm:$0xf]
    %v702 = vld [vmem:[%s1 + $0xa7c] sm:$0xf]
    %v703 = vld [vmem:[%s1 + $0xa80] sm:$0xf]
    %v704 = vld [vmem:[%s1 + $0xa84] sm:$0xf]
    %v705 = vld [vmem:[%s1 + $0xa88] sm:$0xf]
    %v706 = vld [vmem:[%s1 + $0xa8c] sm:$0xf]
    %v707 = vld [vmem:[%s1 + $0xa90] sm:$0xf]
    %v708 = vld [vmem:[%s1 + $0xa94] sm:$0xf]
    %v709 = vld [vmem:[%s1 + $0xa98] sm:$0xf]
    %v710 = vld [vmem:[%s1 + $0xa9c] sm:$0xf]
    %v711 = vld [vmem:[%s1 + $0xaa0] sm:$0xf]
    %v712 = vld [vmem:[%s1 + $0xaa4] sm:$0xf]
    %v713 = vld [vmem:[%s1 + $0xaa8] sm:$0xf]
    %v714 = vld [vmem:[%s1 + $0xaac] sm:$0xf]
    %v715 = vld [vmem:[%s1 + $0xab0] sm:$0xf]
    %v716 = vld [vmem:[%s1 + $0xab4] sm:$0xf]
    %v717 = vld [vmem:[%s1 + $0xab8] sm:$0xf]
    %v718 = vld [vmem:[%s1 + $0xabc] sm:$0xf]
    %v719 = vld [vmem:[%s1 + $0xac0] sm:$0xf]
    %v720 = vld [vmem:[%s1 + $0xac4] sm:$0xf]
    %v721 = vld [vmem:[%s1 + $0xac8] sm:$0xf]
    %v722 = vld [vmem:[%s1 + $0xacc] sm:$0xf]
    %v723 = vld [vmem:[%s1 + $0xad0] sm:$0xf]
    %v724 = vld [vmem:[%s1 + $0xad4] sm:$0xf]
    %v725 = vld [vmem:[%s1 + $0xad8] sm:$0xf]
    %v726 = vld [vmem:[%s1 + $0xadc] sm:$0xf]
    %v727 = vld [vmem:[%s1 + $0xae0] sm:$0xf]
    %v728 = vld [vmem:[%s1 + $0xae4] sm:$0xf]
    %v729 = vld [vmem:[%s1 + $0xae8] sm:$0xf]
    %v730 = vld [vmem:[%s1 + $0xaec] sm:$0xf]
    %v731 = vld [vmem:[%s1 + $0xaf0] sm:$0xf]
    %v732 = vld [vmem:[%s1 + $0xaf4] sm:$0xf]
    %v733 = vld [vmem:[%s1 + $0xaf8] sm:$0xf]
    %v734 = vld [vmem:[%s1 + $0xafc] sm:$0xf]
    %v735 = vld [vmem:[%s1 + $0xb00] sm:$0xf]
    %v736 = vld [vmem:[%s1 + $0xb04] sm:$0xf]
    %v737 = vld [vmem:[%s1 + $0xb08] sm:$0xf]
    %v738 = vld [vmem:[%s1 + $0xb0c] sm:$0xf]
    %v739 = vld [vmem:[%s1 + $0xb10] sm:$0xf]
    %v740 = vld [vmem:[%s1 + $0xb14] sm:$0xf]
    %v741 = vld [vmem:[%s1 + $0xb18] sm:$0xf]
    %v742 = vld [vmem:[%s1 + $0xb1c] sm:$0xf]
    %v743 = vld [vmem:[%s1 + $0xb20] sm:$0xf]
    %v744 = vld [vmem:[%s1 + $0xb24] sm:$0xf]
    %v745 = vld [vmem:[%s1 + $0xb28] sm:$0xf]
    %v746 = vld [vmem:[%s1 + $0xb2c] sm:$0xf]
    %v747 = vld [vmem:[%s1 + $0xb30] sm:$0xf]
    %v748 = vld [vmem:[%s1 + $0xb34] sm:$0xf]
    %v749 = vld [vmem:[%s1 + $0xb38] sm:$0xf]
    %v750 = vld [vmem:[%s1 + $0xb3c] sm:$0xf]
    %v751 = vld [vmem:[%s1 + $0xb40] sm:$0xf]
    %v752 = vld [vmem:[%s1 + $0xb44] sm:$0xf]
    %v753 = vld [vmem:[%s1 + $0xb48] sm:$0xf]
    %v754 = vld [vmem:[%s1 + $0xb4c] sm:$0xf]
    %v755 = vld [vmem:[%s1 + $0xb50] sm:$0xf]
    %v756 = vld [vmem:[%s1 + $0xb54] sm:$0xf]
    %v757 = vld [vmem:[%s1 + $0xb58] sm:$0xf]
    %v758 = vld [vmem:[%s1 + $0xb5c] sm:$0xf]
    %v759 = vld [vmem:[%s1 + $0xb60] sm:$0xf]
    %v760 = vld [vmem:[%s1 + $0xb64] sm:$0xf]
    %v761 = vld [vmem:[%s1 + $0xb68] sm:$0xf]
    %v762 = vld [vmem:[%s1 + $0xb6c] sm:$0xf]
    %v763 = vld [vmem:[%s1 + $0xb70] sm:$0xf]
    %v764 = vld [vmem:[%s1 + $0xb74] sm:$0xf]
    %v765 = vld [vmem:[%s1 + $0xb78] sm:$0xf]
    %v766 = vld [vmem:[%s1 + $0xb7c] sm:$0xf]
    %v767 = vld [vmem:[%s1 + $0xb80] sm:$0xf]
    %v768 = vld [vmem:[%s1 + $0xb84] sm:$0xf]
    %v769 = vld [vmem:[%s1 + $0xb88] sm:$0xf]
    %v770 = vld [vmem:[%s1 + $0xb8c] sm:$0xf]
    %v771 = vld [vmem:[%s1 + $0xb90] sm:$0xf]
    %v772 = vld [vmem:[%s1 + $0xb94] sm:$0xf]
    %v773 = vld [vmem:[%s1 + $0xb98] sm:$0xf]
    %v774 = vld [vmem:[%s1 + $0xb9c] sm:$0xf]
    %v775 = vld [vmem:[%s1 + $0xba0] sm:$0xf]
    %v776 = vld [vmem:[%s1 + $0xba4] sm:$0xf]
    %v777 = vld [vmem:[%s1 + $0xba8] sm:$0xf]
    %v778 = vld [vmem:[%s1 + $0xbac] sm:$0xf]
    %v779 = vld [vmem:[%s1 + $0xbb0] sm:$0xf]
    %v780 = vld [vmem:[%s1 + $0xbb4] sm:$0xf]
    %v781 = vld [vmem:[%s1 + $0xbb8] sm:$0xf]
    %v782 = vld [vmem:[%s1 + $0xbbc] sm:$0xf]
    %v783 = vld [vmem:[%s1 + $0xbc0] sm:$0xf]
    %v784 = vld [vmem:[%s1 + $0xbc4] sm:$0xf]
    %v785 = vld [vmem:[%s1 + $0xbc8] sm:$0xf]
    %v786 = vld [vmem:[%s1 + $0xbcc] sm:$0xf]
    %v787 = vld [vmem:[%s1 + $0xbd0] sm:$0xf]
    %v788 = vld [vmem:[%s1 + $0xbd4] sm:$0xf]
    %v789 = vld [vmem:[%s1 + $0xbd8] sm:$0xf]
    %v790 = vld [vmem:[%s1 + $0xbdc] sm:$0xf]
    %v791 = vld [vmem:[%s1 + $0xbe0] sm:$0xf]
    %v792 = vld [vmem:[%s1 + $0xbe4] sm:$0xf]
    %v793 = vld [vmem:[%s1 + $0xbe8] sm:$0xf]
    %v794 = vld [vmem:[%s1 + $0xbec] sm:$0xf]
    %v795 = vld [vmem:[%s1 + $0xbf0] sm:$0xf]
    %v796 = vld [vmem:[%s1 + $0xbf4] sm:$0xf]
    %v797 = vld [vmem:[%s1 + $0xbf8] sm:$0xf]
    %v798 = vld [vmem:[%s1 + $0xbfc] sm:$0xf]
    %v799 = vld [vmem:[%s1 + $0xc00] sm:$0xf]
    %v800 = vld [vmem:[%s1 + $0xc04] sm:$0xf]
    %v801 = vld [vmem:[%s1 + $0xc08] sm:$0xf]
    %v802 = vld [vmem:[%s1 + $0xc0c] sm:$0xf]
    %v803 = vld [vmem:[%s1 + $0xc10] sm:$0xf]
    %v804 = vld [vmem:[%s1 + $0xc14] sm:$0xf]
    %v805 = vld [vmem:[%s1 + $0xc18] sm:$0xf]
    %v806 = vld [vmem:[%s1 + $0xc1c] sm:$0xf]
    %v807 = vld [vmem:[%s1 + $0xc20] sm:$0xf]
    %v808 = vld [vmem:[%s1 + $0xc24] sm:$0xf]
    %v809 = vld [vmem:[%s1 + $0xc28] sm:$0xf]
    %v810 = vld [vmem:[%s1 + $0xc2c] sm:$0xf]
    %v811 = vld [vmem:[%s1 + $0xc30] sm:$0xf]
    %v812 = vld [vmem:[%s1 + $0xc34] sm:$0xf]
    %v813 = vld [vmem:[%s1 + $0xc38] sm:$0xf]
    %v814 = vld [vmem:[%s1 + $0xc3c] sm:$0xf]
    %v815 = vld [vmem:[%s1 + $0xc40] sm:$0xf]
    %v816 = vld [vmem:[%s1 + $0xc44] sm:$0xf]
    %v817 = vld [vmem:[%s1 + $0xc48] sm:$0xf]
    %v818 = vld [vmem:[%s1 + $0xc4c] sm:$0xf]
    %v819 = vld [vmem:[%s1 + $0xc50] sm:$0xf]
    %v820 = vld [vmem:[%s1 + $0xc54] sm:$0xf]
    %v821 = vld [vmem:[%s1 + $0xc58] sm:$0xf]
    %v822 = vld [vmem:[%s1 + $0xc5c] sm:$0xf]
    %v823 = vld [vmem:[%s1 + $0xc60] sm:$0xf]
    %v824 = vld [vmem:[%s1 + $0xc64] sm:$0xf]
    %v825 = vld [vmem:[%s1 + $0xc68] sm:$0xf]
    %v826 = vld [vmem:[%s1 + $0xc6c] sm:$0xf]
    %v827 = vld [vmem:[%s1 + $0xc70] sm:$0xf]
    %v828 = vld [vmem:[%s1 + $0xc74] sm:$0xf]
    %v829 = vld [vmem:[%s1 + $0xc78] sm:$0xf]
    %v830 = vld [vmem:[%s1 + $0xc7c] sm:$0xf]
    %v831 = vld [vmem:[%s1 + $0xc80] sm:$0xf]
    %v832 = vld [vmem:[%s1 + $0xc84] sm:$0xf]
    %v833 = vld [vmem:[%s1 + $0xc88] sm:$0xf]
    %v834 = vld [vmem:[%s1 + $0xc8c] sm:$0xf]
    %v835 = vld [vmem:[%s1 + $0xc90] sm:$0xf]
    %v836 = vld [vmem:[%s1 + $0xc94] sm:$0xf]
    %v837 = vld [vmem:[%s1 + $0xc98] sm:$0xf]
    %v838 = vld [vmem:[%s1 + $0xc9c] sm:$0xf]
    %v839 = vld [vmem:[%s1 + $0xca0] sm:$0xf]
    %v840 = vld [vmem:[%s1 + $0xca4] sm:$0xf]
    %v841 = vld [vmem:[%s1 + $0xca8] sm:$0xf]
    %v842 = vld [vmem:[%s1 + $0xcac] sm:$0xf]
    %v843 = vld [vmem:[%s1 + $0xcb0] sm:$0xf]
    %v844 = vld [vmem:[%s1 + $0xcb4] sm:$0xf]
    %v845 = vld [vmem:[%s1 + $0xcb8] sm:$0xf]
    %v846 = vld [vmem:[%s1 + $0xcbc] sm:$0xf]
    %v847 = vld [vmem:[%s1 + $0xcc0] sm:$0xf]
    %v848 = vld [vmem:[%s1 + $0xcc4] sm:$0xf]
    %v849 = vld [vmem:[%s1 + $0xcc8] sm:$0xf]
    %v850 = vld [vmem:[%s1 + $0xccc] sm:$0xf]
    %v851 = vld [vmem:[%s1 + $0xcd0] sm:$0xf]
    %v852 = vld [vmem:[%s1 + $0xcd4] sm:$0xf]
    %v853 = vld [vmem:[%s1 + $0xcd8] sm:$0xf]
    %v854 = vld [vmem:[%s1 + $0xcdc] sm:$0xf]
    %v855 = vld [vmem:[%s1 + $0xce0] sm:$0xf]
    %v856 = vld [vmem:[%s1 + $0xce4] sm:$0xf]
    %v857 = vld [vmem:[%s1 + $0xce8] sm:$0xf]
    %v858 = vld [vmem:[%s1 + $0xcec] sm:$0xf]
    %v859 = vld [vmem:[%s1 + $0xcf0] sm:$0xf]
    %v860 = vld [vmem:[%s1 + $0xcf4] sm:$0xf]
    %v861 = vld [vmem:[%s1 + $0xcf8] sm:$0xf]
    %v862 = vld [vmem:[%s1 + $0xcfc] sm:$0xf]
    %v863 = vld [vmem:[%s1 + $0xd00] sm:$0xf]
    %v864 = vld [vmem:[%s1 + $0xd04] sm:$0xf]
    %v865 = vld [vmem:[%s1 + $0xd08] sm:$0xf]
    %v866 = vld [vmem:[%s1 + $0xd0c] sm:$0xf]
    %v867 = vld [vmem:[%s1 + $0xd10] sm:$0xf]
    %v868 = vld [vmem:[%s1 + $0xd14] sm:$0xf]
    %v869 = vld [vmem:[%s1 + $0xd18] sm:$0xf]
    %v870 = vld [vmem:[%s1 + $0xd1c] sm:$0xf]
    %v871 = vld [vmem:[%s1 + $0xd20] sm:$0xf]
    %v872 = vld [vmem:[%s1 + $0xd24] sm:$0xf]
    %v873 = vld [vmem:[%s1 + $0xd28] sm:$0xf]
    %v874 = vld [vmem:[%s1 + $0xd2c] sm:$0xf]
    %v875 = vld [vmem:[%s1 + $0xd30] sm:$0xf]
    %v876 = vld [vmem:[%s1 + $0xd34] sm:$0xf]
    %v877 = vld [vmem:[%s1 + $0xd38] sm:$0xf]
    %v878 = vld [vmem:[%s1 + $0xd3c] sm:$0xf]
    %v879 = vld [vmem:[%s1 + $0xd40] sm:$0xf]
    %v880 = vld [vmem:[%s1 + $0xd44] sm:$0xf]
    %v881 = vld [vmem:[%s1 + $0xd48] sm:$0xf]
    %v882 = vld [vmem:[%s1 + $0xd4c] sm:$0xf]
    %v883 = vld [vmem:[%s1 + $0xd50] sm:$0xf]
    %v884 = vld [vmem:[%s1 + $0xd54] sm:$0xf]
    %v885 = vld [vmem:[%s1 + $0xd58] sm:$0xf]
    %v886 = vld [vmem:[%s1 + $0xd5c] sm:$0xf]
    %v887 = vld [vmem:[%s1 + $0xd60] sm:$0xf]
    %v888 = vld [vmem:[%s1 + $0xd64] sm:$0xf]
    %v889 = vld [vmem:[%s1 + $0xd68] sm:$0xf]
    %v890 = vld [vmem:[%s1 + $0xd6c] sm:$0xf]
    %v891 = vld [vmem:[%s1 + $0xd70] sm:$0xf]
    %v892 = vld [vmem:[%s1 + $0xd74] sm:$0xf]
    %v893 = vld [vmem:[%s1 + $0xd78] sm:$0xf]
    %v894 = vld [vmem:[%s1 + $0xd7c] sm:$0xf]
    %v895 = vld [vmem:[%s1 + $0xd80] sm:$0xf]
    %v896 = vld [vmem:[%s1 + $0xd84] sm:$0xf]
    %v897 = vld [vmem:[%s1 + $0xd88] sm:$0xf]
    %v898 = vld [vmem:[%s1 + $0xd8c] sm:$0xf]
    %v899 = vld [vmem:[%s1 + $0xd90] sm:$0xf]
    %v900 = vld [vmem:[%s1 + $0xd94] sm:$0xf]
    %v901 = vld [vmem:[%s1 + $0xd98] sm:$0xf]
    %v902 = vld [vmem:[%s1 + $0xd9c] sm:$0xf]
    %v903 = vld [vmem:[%s1 + $0xda0] sm:$0xf]
    %v904 = vld [vmem:[%s1 + $0xda4] sm:$0xf]
    %v905 = vld [vmem:[%s1 + $0xda8] sm:$0xf]
    %v906 = vld [vmem:[%s1 + $0xdac] sm:$0xf]
    %v907 = vld [vmem:[%s1 + $0xdb0] sm:$0xf]
    %v908 = vld [vmem:[%s1 + $0xdb4] sm:$0xf]
    %v909 = vld [vmem:[%s1 + $0xdb8] sm:$0xf]
    %v910 = vld [vmem:[%s1 + $0xdbc] sm:$0xf]
    %v911 = vld [vmem:[%s1 + $0xdc0] sm:$0xf]
    %v912 = vld [vmem:[%s1 + $0xdc4] sm:$0xf]
    %v913 = vld [vmem:[%s1 + $0xdc8] sm:$0xf]
    %v914 = vld [vmem:[%s1 + $0xdcc] sm:$0xf]
    %v915 = vld [vmem:[%s1 + $0xdd0] sm:$0xf]
    %v916 = vld [vmem:[%s1 + $0xdd4] sm:$0xf]
    %v917 = vld [vmem:[%s1 + $0xdd8] sm:$0xf]
    %v918 = vld [vmem:[%s1 + $0xddc] sm:$0xf]
    %v919 = vld [vmem:[%s1 + $0xde0] sm:$0xf]
    %v920 = vld [vmem:[%s1 + $0xde4] sm:$0xf]
    %v921 = vld [vmem:[%s1 + $0xde8] sm:$0xf]
    %v922 = vld [vmem:[%s1 + $0xdec] sm:$0xf]
    %v923 = vld [vmem:[%s1 + $0xdf0] sm:$0xf]
    %v924 = vld [vmem:[%s1 + $0xdf4] sm:$0xf]
    %v925 = vld [vmem:[%s1 + $0xdf8] sm:$0xf]
    %v926 = vld [vmem:[%s1 + $0xdfc] sm:$0xf]
    %v927 = vld [vmem:[%s1 + $0xe00] sm:$0xf]
    %v928 = vld [vmem:[%s1 + $0xe04] sm:$0xf]
    %v929 = vld [vmem:[%s1 + $0xe08] sm:$0xf]
    %v930 = vld [vmem:[%s1 + $0xe0c] sm:$0xf]
    %v931 = vld [vmem:[%s1 + $0xe10] sm:$0xf]
    %v932 = vld [vmem:[%s1 + $0xe14] sm:$0xf]
    %v933 = vld [vmem:[%s1 + $0xe18] sm:$0xf]
    %v934 = vld [vmem:[%s1 + $0xe1c] sm:$0xf]
    %v935 = vld [vmem:[%s1 + $0xe20] sm:$0xf]
    %v936 = vld [vmem:[%s1 + $0xe24] sm:$0xf]
    %v937 = vld [vmem:[%s1 + $0xe28] sm:$0xf]
    %v938 = vld [vmem:[%s1 + $0xe2c] sm:$0xf]
    %v939 = vld [vmem:[%s1 + $0xe30] sm:$0xf]
    %v940 = vld [vmem:[%s1 + $0xe34] sm:$0xf]
    %v941 = vld [vmem:[%s1 + $0xe38] sm:$0xf]
    %v942 = vld [vmem:[%s1 + $0xe3c] sm:$0xf]
    %v943 = vld [vmem:[%s1 + $0xe40] sm:$0xf]
    %v944 = vld [vmem:[%s1 + $0xe44] sm:$0xf]
    %v945 = vld [vmem:[%s1 + $0xe48] sm:$0xf]
    %v946 = vld [vmem:[%s1 + $0xe4c] sm:$0xf]
    %v947 = vld [vmem:[%s1 + $0xe50] sm:$0xf]
    %v948 = vld [vmem:[%s1 + $0xe54] sm:$0xf]
    %v949 = vld [vmem:[%s1 + $0xe58] sm:$0xf]
    %v950 = vld [vmem:[%s1 + $0xe5c] sm:$0xf]
    %v951 = vld [vmem:[%s1 + $0xe60] sm:$0xf]
    %v952 = vld [vmem:[%s1 + $0xe64] sm:$0xf]
    %v953 = vld [vmem:[%s1 + $0xe68] sm:$0xf]
    %v954 = vld [vmem:[%s1 + $0xe6c] sm:$0xf]
    %v955 = vld [vmem:[%s1 + $0xe70] sm:$0xf]
    %v956 = vld [vmem:[%s1 + $0xe74] sm:$0xf]
    %v957 = vld [vmem:[%s1 + $0xe78] sm:$0xf]
    %v958 = vld [vmem:[%s1 + $0xe7c] sm:$0xf]
    %v959 = vld [vmem:[%s1 + $0xe80] sm:$0xf]
    %v960 = vld [vmem:[%s1 + $0xe84] sm:$0xf]
    %v961 = vld [vmem:[%s1 + $0xe88] sm:$0xf]
    %v962 = vld [vmem:[%s1 + $0xe8c] sm:$0xf]
    %v963 = vld [vmem:[%s1 + $0xe90] sm:$0xf]
    %v964 = vld [vmem:[%s1 + $0xe94] sm:$0xf]
    %v965 = vld [vmem:[%s1 + $0xe98] sm:$0xf]
    %v966 = vld [vmem:[%s1 + $0xe9c] sm:$0xf]
    %v967 = vld [vmem:[%s1 + $0xea0] sm:$0xf]
    %v968 = vld [vmem:[%s1 + $0xea4] sm:$0xf]
    %v969 = vld [vmem:[%s1 + $0xea8] sm:$0xf]
    %v970 = vld [vmem:[%s1 + $0xeac] sm:$0xf]
    %v971 = vld [vmem:[%s1 + $0xeb0] sm:$0xf]
    %v972 = vld [vmem:[%s1 + $0xeb4] sm:$0xf]
    %v973 = vld [vmem:[%s1 + $0xeb8] sm:$0xf]
    %v974 = vld [vmem:[%s1 + $0xebc] sm:$0xf]
    %v975 = vld [vmem:[%s1 + $0xec0] sm:$0xf]
    %v976 = vld [vmem:[%s1 + $0xec4] sm:$0xf]
    %v977 = vld [vmem:[%s1 + $0xec8] sm:$0xf]
    %v978 = vld [vmem:[%s1 + $0xecc] sm:$0xf]
    %v979 = vld [vmem:[%s1 + $0xed0] sm:$0xf]
    %v980 = vld [vmem:[%s1 + $0xed4] sm:$0xf]
    %v981 = vld [vmem:[%s1 + $0xed8] sm:$0xf]
    %v982 = vld [vmem:[%s1 + $0xedc] sm:$0xf]
    %v983 = vld [vmem:[%s1 + $0xee0] sm:$0xf]
    %v984 = vld [vmem:[%s1 + $0xee4] sm:$0xf]
    %v985 = vld [vmem:[%s1 + $0xee8] sm:$0xf]
    %v986 = vld [vmem:[%s1 + $0xeec] sm:$0xf]
    %v987 = vld [vmem:[%s1 + $0xef0] sm:$0xf]
    %v988 = vld [vmem:[%s1 + $0xef4] sm:$0xf]
    %v989 = vld [vmem:[%s1 + $0xef8] sm:$0xf]
    %v990 = vld [vmem:[%s1 + $0xefc] sm:$0xf]
    %v991 = vld [vmem:[%s1 + $0xf00] sm:$0xf]
    %v992 = vld [vmem:[%s1 + $0xf04] sm:$0xf]
    %v993 = vld [vmem:[%s1 + $0xf08] sm:$0xf]
    %v994 = vld [vmem:[%s1 + $0xf0c] sm:$0xf]
    %v995 = vld [vmem:[%s1 + $0xf10] sm:$0xf]
    %v996 = vld [vmem:[%s1 + $0xf14] sm:$0xf]
    %v997 = vld [vmem:[%s1 + $0xf18] sm:$0xf]
    %v998 = vld [vmem:[%s1 + $0xf1c] sm:$0xf]
    %v999 = vld [vmem:[%s1 + $0xf20] sm:$0xf]
    %v1000 = vld [vmem:[%s1 + $0xf24] sm:$0xf]
    %v1001 = vld [vmem:[%s1 + $0xf28] sm:$0xf]
    %v1002 = vld [vmem:[%s1 + $0xf2c] sm:$0xf]
    %v1003 = vld [vmem:[%s1 + $0xf30] sm:$0xf]
    %v1004 = vld [vmem:[%s1 + $0xf34] sm:$0xf]
    %v1005 = vld [vmem:[%s1 + $0xf38] sm:$0xf]
    %v1006 = vld [vmem:[%s1 + $0xf3c] sm:$0xf]
    %v1007 = vld [vmem:[%s1 + $0xf40] sm:$0xf]
    %v1008 = vld [vmem:[%s1 + $0xf44] sm:$0xf]
    %v1009 = vld [vmem:[%s1 + $0xf48] sm:$0xf]
    %v1010 = vld [vmem:[%s1 + $0xf4c] sm:$0xf]
    %v1011 = vld [vmem:[%s1 + $0xf50] sm:$0xf]
    %v1012 = vld [vmem:[%s1 + $0xf54] sm:$0xf]
    %v1013 = vld [vmem:[%s1 + $0xf58] sm:$0xf]
    %v1014 = vld [vmem:[%s1 + $0xf5c] sm:$0xf]
    %v1015 = vld [vmem:[%s1 + $0xf60] sm:$0xf]
    %v1016 = vld [vmem:[%s1 + $0xf64] sm:$0xf]
    %v1017 = vld [vmem:[%s1 + $0xf68] sm:$0xf]
    %v1018 = vld [vmem:[%s1 + $0xf6c] sm:$0xf]
    %v1019 = vld [vmem:[%s1 + $0xf70] sm:$0xf]
    %v1020 = vld [vmem:[%s1 + $0xf74] sm:$0xf]
    %v1021 = vld [vmem:[%s1 + $0xf78] sm:$0xf]
    %v1022 = vld [vmem:[%s1 + $0xf7c] sm:$0xf]
    %v1023 = vld [vmem:[%s1 + $0xf80] sm:$0xf]
    %v1024 = vld [vmem:[%s1 + $0xf84] sm:$0xf]
    %v1025 = vld [vmem:[%s1 + $0xf88] sm:$0xf]
    %v1026 = vld [vmem:[%s1 + $0xf8c] sm:$0xf]
    %v1027 = vld [vmem:[%s1 + $0xf90] sm:$0xf]
    %v1028 = vld [vmem:[%s1 + $0xf94] sm:$0xf]
    %v1029 = vld [vmem:[%s1 + $0xf98] sm:$0xf]
    %v1030 = vld [vmem:[%s1 + $0xf9c] sm:$0xf]
    %v1031 = vld [vmem:[%s1 + $0xfa0] sm:$0xf]
    %v1032 = vld [vmem:[%s1 + $0xfa4] sm:$0xf]
    %v1033 = vld [vmem:[%s1 + $0xfa8] sm:$0xf]
    %v1034 = vld [vmem:[%s1 + $0xfac] sm:$0xf]
    %v1035 = vld [vmem:[%s1 + $0xfb0] sm:$0xf]
    %v1036 = vld [vmem:[%s1 + $0xfb4] sm:$0xf]
    %v1037 = vld [vmem:[%s1 + $0xfb8] sm:$0xf]
    %v1038 = vld [vmem:[%s1 + $0xfbc] sm:$0xf]
    %v1039 = vld [vmem:[%s1 + $0xfc0] sm:$0xf]
    %v1040 = vld [vmem:[%s1 + $0xfc4] sm:$0xf]
    %v1041 = vld [vmem:[%s1 + $0xfc8] sm:$0xf]
    %v1042 = vld [vmem:[%s1 + $0xfcc] sm:$0xf]
    %v1043 = vld [vmem:[%s1 + $0xfd0] sm:$0xf]
    %v1044 = vld [vmem:[%s1 + $0xfd4] sm:$0xf]
    %v1045 = vld [vmem:[%s1 + $0xfd8] sm:$0xf]
    %v1046 = vld [vmem:[%s1 + $0xfdc] sm:$0xf]
    %v1047 = vld [vmem:[%s1 + $0xfe0] sm:$0xf]
    %v1048 = vld [vmem:[%s1 + $0xfe4] sm:$0xf]
    %v1049 = vld [vmem:[%s1 + $0xfe8] sm:$0xf]
    %v1050 = vld [vmem:[%s1 + $0xfec] sm:$0xf]
    %v1051 = vld [vmem:[%s1 + $0xff0] sm:$0xf]
    %v1052 = vld [vmem:[%s1 + $0xff4] sm:$0xf]
    %v1053 = vld [vmem:[%s1 + $0xff8] sm:$0xf]
    %v1054 = vld [vmem:[%s1 + $0xffc] sm:$0xf]
    %v1055 = vld [vmem:[%s1 + $0x1000] sm:$0xf]
    %v1056 = vld [vmem:[%s1 + $0x1004] sm:$0xf]
    %v1057 = vld [vmem:[%s1 + $0x1008] sm:$0xf]
    %v1058 = vld [vmem:[%s1 + $0x100c] sm:$0xf]
    %v1059 = vld [vmem:[%s1 + $0x1010] sm:$0xf]
    %v1060 = vld [vmem:[%s1 + $0x1014] sm:$0xf]
    %v1061 = vld [vmem:[%s1 + $0x1018] sm:$0xf]
    %v1062 = vld [vmem:[%s1 + $0x101c] sm:$0xf]
    %v1063 = vld [vmem:[%s1 + $0x1020] sm:$0xf]
    %v1064 = vld [vmem:[%s1 + $0x1024] sm:$0xf]
    %v1065 = vld [vmem:[%s1 + $0x1028] sm:$0xf]
    %v1066 = vld [vmem:[%s1 + $0x102c] sm:$0xf]
    %v1067 = vld [vmem:[%s1 + $0x1030] sm:$0xf]
    %v1068 = vld [vmem:[%s1 + $0x1034] sm:$0xf]
    %v1069 = vld [vmem:[%s1 + $0x1038] sm:$0xf]
    %v1070 = vld [vmem:[%s1 + $0x103c] sm:$0xf]
    %v1071 = vld [vmem:[%s1 + $0x1040] sm:$0xf]
    %v1072 = vld [vmem:[%s1 + $0x1044] sm:$0xf]
    %v1073 = vld [vmem:[%s1 + $0x1048] sm:$0xf]
    %v1074 = vld [vmem:[%s1 + $0x104c] sm:$0xf]
    %v1075 = vld [vmem:[%s1 + $0x1050] sm:$0xf]
    %v1076 = vld [vmem:[%s1 + $0x1054] sm:$0xf]
    %v1077 = vld [vmem:[%s1 + $0x1058] sm:$0xf]
    %v1078 = vld [vmem:[%s1 + $0x105c] sm:$0xf]
    %v1079 = vld [vmem:[%s1 + $0x1060] sm:$0xf]
    %v1080 = vld [vmem:[%s1 + $0x1064] sm:$0xf]
    %v1081 = vld [vmem:[%s1 + $0x1068] sm:$0xf]
    %v1082 = vld [vmem:[%s1 + $0x106c] sm:$0xf]
    %v1083 = vld [vmem:[%s1 + $0x1070] sm:$0xf]
    %v1084 = vld [vmem:[%s1 + $0x1074] sm:$0xf]
    %v1085 = vld [vmem:[%s1 + $0x1078] sm:$0xf]
    %v1086 = vld [vmem:[%s1 + $0x107c] sm:$0xf]
    %v1087 = vld [vmem:[%s1 + $0x1080] sm:$0xf]
    %v1088 = vld [vmem:[%s1 + $0x1084] sm:$0xf]
    %v1089 = vld [vmem:[%s1 + $0x1088] sm:$0xf]
    %v1090 = vld [vmem:[%s1 + $0x108c] sm:$0xf]
    %v1091 = vld [vmem:[%s1 + $0x1090] sm:$0xf]
    %v1092 = vld [vmem:[%s1 + $0x1094] sm:$0xf]
    %v1093 = vld [vmem:[%s1 + $0x1098] sm:$0xf]
    %v1094 = vld [vmem:[%s1 + $0x109c] sm:$0xf]
    %v1095 = vld [vmem:[%s1 + $0x10a0] sm:$0xf]
    %v1096 = vld [vmem:[%s1 + $0x10a4] sm:$0xf]
    %v1097 = vld [vmem:[%s1 + $0x10a8] sm:$0xf]
    %v1098 = vld [vmem:[%s1 + $0x10ac] sm:$0xf]
    %v1099 = vld [vmem:[%s1 + $0x10b0] sm:$0xf]
    %v1100 = vld [vmem:[%s1 + $0x10b4] sm:$0xf]
    %v1101 = vld [vmem:[%s1 + $0x10b8] sm:$0xf]
    %v1102 = vld [vmem:[%s1 + $0x10bc] sm:$0xf]
    %v1103 = vld [vmem:[%s1 + $0x10c0] sm:$0xf]
    %v1104 = vld [vmem:[%s1 + $0x10c4] sm:$0xf]
    %v1105 = vld [vmem:[%s1 + $0x10c8] sm:$0xf]
    %v1106 = vld [vmem:[%s1 + $0x10cc] sm:$0xf]
    %v1107 = vld [vmem:[%s1 + $0x10d0] sm:$0xf]
    %v1108 = vld [vmem:[%s1 + $0x10d4] sm:$0xf]
    %v1109 = vld [vmem:[%s1 + $0x10d8] sm:$0xf]
    %v1110 = vld [vmem:[%s1 + $0x10dc] sm:$0xf]
    %v1111 = vld [vmem:[%s1 + $0x10e0] sm:$0xf]
    %v1112 = vld [vmem:[%s1 + $0x10e4] sm:$0xf]
    %v1113 = vld [vmem:[%s1 + $0x10e8] sm:$0xf]
    %v1114 = vld [vmem:[%s1 + $0x10ec] sm:$0xf]
    %v1115 = vld [vmem:[%s1 + $0x10f0] sm:$0xf]
    %v1116 = vld [vmem:[%s1 + $0x10f4] sm:$0xf]
    %v1117 = vld [vmem:[%s1 + $0x10f8] sm:$0xf]
    %v1118 = vld [vmem:[%s1 + $0x10fc] sm:$0xf]
    %v1119 = vld [vmem:[%s1 + $0x1100] sm:$0xf]
    %v1120 = vld [vmem:[%s1 + $0x1104] sm:$0xf]
    %v1121 = vld [vmem:[%s1 + $0x1108] sm:$0xf]
    %v1122 = vld [vmem:[%s1 + $0x110c] sm:$0xf]
    %v1123 = vld [vmem:[%s1 + $0x1110] sm:$0xf]
    %v1124 = vld [vmem:[%s1 + $0x1114] sm:$0xf]
    %v1125 = vld [vmem:[%s1 + $0x1118] sm:$0xf]
    %v1126 = vld [vmem:[%s1 + $0x111c] sm:$0xf]
    %v1127 = vld [vmem:[%s1 + $0x1120] sm:$0xf]
    %v1128 = vld [vmem:[%s1 + $0x1124] sm:$0xf]
    %v1129 = vld [vmem:[%s1 + $0x1128] sm:$0xf]
    %v1130 = vld [vmem:[%s1 + $0x112c] sm:$0xf]
    %v1131 = vld [vmem:[%s1 + $0x1130] sm:$0xf]
    %v1132 = vld [vmem:[%s1 + $0x1134] sm:$0xf]
    %v1133 = vld [vmem:[%s1 + $0x1138] sm:$0xf]
    %v1134 = vld [vmem:[%s1 + $0x113c] sm:$0xf]
    %v1135 = vld [vmem:[%s1 + $0x1140] sm:$0xf]
    %v1136 = vld [vmem:[%s1 + $0x1144] sm:$0xf]
    %v1137 = vld [vmem:[%s1 + $0x1148] sm:$0xf]
    %v1138 = vld [vmem:[%s1 + $0x114c] sm:$0xf]
    %v1139 = vld [vmem:[%s1 + $0x1150] sm:$0xf]
    %v1140 = vld [vmem:[%s1 + $0x1154] sm:$0xf]
    %v1141 = vld [vmem:[%s1 + $0x1158] sm:$0xf]
    %v1142 = vld [vmem:[%s1 + $0x115c] sm:$0xf]
    %v1143 = vld [vmem:[%s1 + $0x1160] sm:$0xf]
    %v1144 = vld [vmem:[%s1 + $0x1164] sm:$0xf]
    %v1145 = vld [vmem:[%s1 + $0x1168] sm:$0xf]
    %v1146 = vld [vmem:[%s1 + $0x116c] sm:$0xf]
    %v1147 = vld [vmem:[%s1 + $0x1170] sm:$0xf]
    %v1148 = vld [vmem:[%s1 + $0x1174] sm:$0xf]
    %v1149 = vld [vmem:[%s1 + $0x1178] sm:$0xf]
    %v1150 = vld [vmem:[%s1 + $0x117c] sm:$0xf]
    %v1151 = vld [vmem:[%s1 + $0x1180] sm:$0xf]
    %v1152 = vld [vmem:[%s1 + $0x1184] sm:$0xf]
    %v1153 = vld [vmem:[%s1 + $0x1188] sm:$0xf]
    %v1154 = vld [vmem:[%s1 + $0x118c] sm:$0xf]
    %v1155 = vld [vmem:[%s1 + $0x1190] sm:$0xf]
    %v1156 = vld [vmem:[%s1 + $0x1194] sm:$0xf]
    %v1157 = vld [vmem:[%s1 + $0x1198] sm:$0xf]
    %v1158 = vld [vmem:[%s1 + $0x119c] sm:$0xf]
    %v1159 = vld [vmem:[%s1 + $0x11a0] sm:$0xf]
    %v1160 = vld [vmem:[%s1 + $0x11a4] sm:$0xf]
    %v1161 = vld [vmem:[%s1 + $0x11a8] sm:$0xf]
    %v1162 = vld [vmem:[%s1 + $0x11ac] sm:$0xf]
    %v1163 = vld [vmem:[%s1 + $0x11b0] sm:$0xf]
    %v1164 = vld [vmem:[%s1 + $0x11b4] sm:$0xf]
    %v1165 = vld [vmem:[%s1 + $0x11b8] sm:$0xf]
    %v1166 = vld [vmem:[%s1 + $0x11bc] sm:$0xf]
    %v1167 = vld [vmem:[%s1 + $0x11c0] sm:$0xf]
    %v1168 = vld [vmem:[%s1 + $0x11c4] sm:$0xf]
    %v1169 = vld [vmem:[%s1 + $0x11c8] sm:$0xf]
    %v1170 = vld [vmem:[%s1 + $0x11cc] sm:$0xf]
    %v1171 = vld [vmem:[%s1 + $0x11d0] sm:$0xf]
    %v1172 = vld [vmem:[%s1 + $0x11d4] sm:$0xf]
    %v1173 = vld [vmem:[%s1 + $0x11d8] sm:$0xf]
    %v1174 = vld [vmem:[%s1 + $0x11dc] sm:$0xf]
    %v1175 = vld [vmem:[%s1 + $0x11e0] sm:$0xf]
    %v1176 = vld [vmem:[%s1 + $0x11e4] sm:$0xf]
    %v1177 = vld [vmem:[%s1 + $0x11e8] sm:$0xf]
    %v1178 = vld [vmem:[%s1 + $0x11ec] sm:$0xf]
    %v1179 = vld [vmem:[%s1 + $0x11f0] sm:$0xf]
    %v1180 = vld [vmem:[%s1 + $0x11f4] sm:$0xf]
    %v1181 = vld [vmem:[%s1 + $0x11f8] sm:$0xf]
    %v1182 = vld [vmem:[%s1 + $0x11fc] sm:$0xf]
    %v1183 = vld [vmem:[%s2] sm:$0x1]
    %v1185 = vlaneseq
    %v1186 = vshrl.u32 %v1185, 7
    %v1187 = vsub.s32 0, %v1186
    %v1188 = vrot.slane %v1183, %v1187
    %v1199 = vcombine.high %v22, %v22
    %v1201 = vunpack.c.l.s4 1966171168
    %v1202 = vunpack.c.0.s8 %v1201
    %v1203 = vlaneseq
    %v1204 = vshrl.u32 %v1203, 7
    %v1205 = vsub.s32 %v1202, %v1204
    %v1206 = vrot.slane %v22, %v1205
    %v1208 = vunpack.c.l.s4 1966171168
    %v1209 = vunpack.c.0.s8 %v1208
    %v1210 = vlaneseq
    %v1211 = vshrl.u32 %v1210, 7
    %v1212 = vsub.s32 %v1209, %v1211
    %v1213 = vrot.slane %v1199, %v1212
    %v1214 = vcombine.high %v1206, %v1206
    %v1215 = vcombine.high %v1213, %v1213
    %v1217 = vunpack.c.l.s4 1966171168
    %v1218 = vunpack.c.0.s8 %v1217
    %v1219 = vlaneseq
    %v1220 = vshrl.u32 %v1219, 7
    %v1221 = vsub.s32 %v1218, %v1220
    %v1222 = vrot.slane %v1206, %v1221
    %v1224 = vunpack.c.l.s4 1966171168
    %v1225 = vunpack.c.0.s8 %v1224
    %v1226 = vlaneseq
    %v1227 = vshrl.u32 %v1226, 7
    %v1228 = vsub.s32 %v1225, %v1227
    %v1229 = vrot.slane %v1213, %v1228
    %v1231 = vunpack.c.l.s4 1966171168
    %v1232 = vunpack.c.0.s8 %v1231
    %v1233 = vlaneseq
    %v1234 = vshrl.u32 %v1233, 7
    %v1235 = vsub.s32 %v1232, %v1234
    %v1236 = vrot.slane %v1214, %v1235
    %v1238 = vunpack.c.l.s4 1966171168
    %v1239 = vunpack.c.0.s8 %v1238
    %v1240 = vlaneseq
    %v1241 = vshrl.u32 %v1240, 7
    %v1242 = vsub.s32 %v1239, %v1241
    %v1243 = vrot.slane %v1215, %v1242
    %v1244 = vcombine.high %v1222, %v1222
    %v1245 = vcombine.high %v1229, %v1229
    %v1246 = vcombine.high %v1236, %v1236
    %v1247 = vcombine.high %v1243, %v1243
    %v1248 = vcombine.high %v23, %v23
    %v1250 = vunpack.c.l.s4 1966171168
    %v1251 = vunpack.c.0.s8 %v1250
    %v1252 = vlaneseq
    %v1253 = vshrl.u32 %v1252, 7
    %v1254 = vsub.s32 %v1251, %v1253
    %v1255 = vrot.slane %v23, %v1254
    %v1257 = vunpack.c.l.s4 1966171168
    %v1258 = vunpack.c.0.s8 %v1257
    %v1259 = vlaneseq
    %v1260 = vshrl.u32 %v1259, 7
    %v1261 = vsub.s32 %v1258, %v1260
    %v1262 = vrot.slane %v1248, %v1261
    %v1263 = vcombine.high %v1255, %v1255
    %v1264 = vcombine.high %v1262, %v1262
    %v1266 = vunpack.c.l.s4 1966171168
    %v1267 = vunpack.c.0.s8 %v1266
    %v1268 = vlaneseq
    %v1269 = vshrl.u32 %v1268, 7
    %v1270 = vsub.s32 %v1267, %v1269
    %v1271 = vrot.slane %v1255, %v1270
    %v1273 = vunpack.c.l.s4 1966171168
    %v1274 = vunpack.c.0.s8 %v1273
    %v1275 = vlaneseq
    %v1276 = vshrl.u32 %v1275, 7
    %v1277 = vsub.s32 %v1274, %v1276
    %v1278 = vrot.slane %v1262, %v1277
    %v1280 = vunpack.c.l.s4 1966171168
    %v1281 = vunpack.c.0.s8 %v1280
    %v1282 = vlaneseq
    %v1283 = vshrl.u32 %v1282, 7
    %v1284 = vsub.s32 %v1281, %v1283
    %v1285 = vrot.slane %v1263, %v1284
    %v1287 = vunpack.c.l.s4 1966171168
    %v1288 = vunpack.c.0.s8 %v1287
    %v1289 = vlaneseq
    %v1290 = vshrl.u32 %v1289, 7
    %v1291 = vsub.s32 %v1288, %v1290
    %v1292 = vrot.slane %v1264, %v1291
    %v1293 = vcombine.high %v1271, %v1271
    %v1294 = vcombine.high %v1278, %v1278
    %v1295 = vcombine.high %v1285, %v1285
    %v1296 = vcombine.high %v1292, %v1292
    %v1297 = vcombine.high %v24, %v24
    %v1299 = vunpack.c.l.s4 1966171168
    %v1300 = vunpack.c.0.s8 %v1299
    %v1301 = vlaneseq
    %v1302 = vshrl.u32 %v1301, 7
    %v1303 = vsub.s32 %v1300, %v1302
    %v1304 = vrot.slane %v24, %v1303
    %v1306 = vunpack.c.l.s4 1966171168
    %v1307 = vunpack.c.0.s8 %v1306
    %v1308 = vlaneseq
    %v1309 = vshrl.u32 %v1308, 7
    %v1310 = vsub.s32 %v1307, %v1309
    %v1311 = vrot.slane %v1297, %v1310
    %v1312 = vcombine.high %v1304, %v1304
    %v1313 = vcombine.high %v1311, %v1311
    %v1315 = vunpack.c.l.s4 1966171168
    %v1316 = vunpack.c.0.s8 %v1315
    %v1317 = vlaneseq
    %v1318 = vshrl.u32 %v1317, 7
    %v1319 = vsub.s32 %v1316, %v1318
    %v1320 = vrot.slane %v1304, %v1319
    %v1322 = vunpack.c.l.s4 1966171168
    %v1323 = vunpack.c.0.s8 %v1322
    %v1324 = vlaneseq
    %v1325 = vshrl.u32 %v1324, 7
    %v1326 = vsub.s32 %v1323, %v1325
    %v1327 = vrot.slane %v1311, %v1326
    %v1329 = vunpack.c.l.s4 1966171168
    %v1330 = vunpack.c.0.s8 %v1329
    %v1331 = vlaneseq
    %v1332 = vshrl.u32 %v1331, 7
    %v1333 = vsub.s32 %v1330, %v1332
    %v1334 = vrot.slane %v1312, %v1333
    %v1336 = vunpack.c.l.s4 1966171168
    %v1337 = vunpack.c.0.s8 %v1336
    %v1338 = vlaneseq
    %v1339 = vshrl.u32 %v1338, 7
    %v1340 = vsub.s32 %v1337, %v1339
    %v1341 = vrot.slane %v1313, %v1340
    %v1342 = vcombine.high %v1320, %v1320
    %v1343 = vcombine.high %v1327, %v1327
    %v1344 = vcombine.high %v1334, %v1334
    %v1345 = vcombine.high %v1341, %v1341
    %v1346 = vcombine.high %v25, %v25
    %v1348 = vunpack.c.l.s4 1966171168
    %v1349 = vunpack.c.0.s8 %v1348
    %v1350 = vlaneseq
    %v1351 = vshrl.u32 %v1350, 7
    %v1352 = vsub.s32 %v1349, %v1351
    %v1353 = vrot.slane %v25, %v1352
    %v1355 = vunpack.c.l.s4 1966171168
    %v1356 = vunpack.c.0.s8 %v1355
    %v1357 = vlaneseq
    %v1358 = vshrl.u32 %v1357, 7
    %v1359 = vsub.s32 %v1356, %v1358
    %v1360 = vrot.slane %v1346, %v1359
    %v1361 = vcombine.high %v1353, %v1353
    %v1362 = vcombine.high %v1360, %v1360
    %v1364 = vunpack.c.l.s4 1966171168
    %v1365 = vunpack.c.0.s8 %v1364
    %v1366 = vlaneseq
    %v1367 = vshrl.u32 %v1366, 7
    %v1368 = vsub.s32 %v1365, %v1367
    %v1369 = vrot.slane %v1353, %v1368
    %v1371 = vunpack.c.l.s4 1966171168
    %v1372 = vunpack.c.0.s8 %v1371
    %v1373 = vlaneseq
    %v1374 = vshrl.u32 %v1373, 7
    %v1375 = vsub.s32 %v1372, %v1374
    %v1376 = vrot.slane %v1360, %v1375
    %v1378 = vunpack.c.l.s4 1966171168
    %v1379 = vunpack.c.0.s8 %v1378
    %v1380 = vlaneseq
    %v1381 = vshrl.u32 %v1380, 7
    %v1382 = vsub.s32 %v1379, %v1381
    %v1383 = vrot.slane %v1361, %v1382
    %v1385 = vunpack.c.l.s4 1966171168
    %v1386 = vunpack.c.0.s8 %v1385
    %v1387 = vlaneseq
    %v1388 = vshrl.u32 %v1387, 7
    %v1389 = vsub.s32 %v1386, %v1388
    %v1390 = vrot.slane %v1362, %v1389
    %v1391 = vcombine.high %v1369, %v1369
    %v1392 = vcombine.high %v1376, %v1376
    %v1393 = vcombine.high %v1383, %v1383
    %v1394 = vcombine.high %v1390, %v1390
    %v1395 = vcombine.high %v26, %v26
    %v1397 = vunpack.c.l.s4 1966171168
    %v1398 = vunpack.c.0.s8 %v1397
    %v1399 = vlaneseq
    %v1400 = vshrl.u32 %v1399, 7
    %v1401 = vsub.s32 %v1398, %v1400
    %v1402 = vrot.slane %v26, %v1401
    %v1404 = vunpack.c.l.s4 1966171168
    %v1405 = vunpack.c.0.s8 %v1404
    %v1406 = vlaneseq
    %v1407 = vshrl.u32 %v1406, 7
    %v1408 = vsub.s32 %v1405, %v1407
    %v1409 = vrot.slane %v1395, %v1408
    %v1410 = vcombine.high %v1402, %v1402
    %v1411 = vcombine.high %v1409, %v1409
    %v1413 = vunpack.c.l.s4 1966171168
    %v1414 = vunpack.c.0.s8 %v1413
    %v1415 = vlaneseq
    %v1416 = vshrl.u32 %v1415, 7
    %v1417 = vsub.s32 %v1414, %v1416
    %v1418 = vrot.slane %v1402, %v1417
    %v1420 = vunpack.c.l.s4 1966171168
    %v1421 = vunpack.c.0.s8 %v1420
    %v1422 = vlaneseq
    %v1423 = vshrl.u32 %v1422, 7
    %v1424 = vsub.s32 %v1421, %v1423
    %v1425 = vrot.slane %v1409, %v1424
    %v1427 = vunpack.c.l.s4 1966171168
    %v1428 = vunpack.c.0.s8 %v1427
    %v1429 = vlaneseq
    %v1430 = vshrl.u32 %v1429, 7
    %v1431 = vsub.s32 %v1428, %v1430
    %v1432 = vrot.slane %v1410, %v1431
    %v1434 = vunpack.c.l.s4 1966171168
    %v1435 = vunpack.c.0.s8 %v1434
    %v1436 = vlaneseq
    %v1437 = vshrl.u32 %v1436, 7
    %v1438 = vsub.s32 %v1435, %v1437
    %v1439 = vrot.slane %v1411, %v1438
    %v1440 = vcombine.high %v1418, %v1418
    %v1441 = vcombine.high %v1425, %v1425
    %v1442 = vcombine.high %v1432, %v1432
    %v1443 = vcombine.high %v1439, %v1439
    %v1444 = vcombine.high %v27, %v27
    %v1446 = vunpack.c.l.s4 1966171168
    %v1447 = vunpack.c.0.s8 %v1446
    %v1448 = vlaneseq
    %v1449 = vshrl.u32 %v1448, 7
    %v1450 = vsub.s32 %v1447, %v1449
    %v1451 = vrot.slane %v27, %v1450
    %v1453 = vunpack.c.l.s4 1966171168
    %v1454 = vunpack.c.0.s8 %v1453
    %v1455 = vlaneseq
    %v1456 = vshrl.u32 %v1455, 7
    %v1457 = vsub.s32 %v1454, %v1456
    %v1458 = vrot.slane %v1444, %v1457
    %v1459 = vcombine.high %v1451, %v1451
    %v1460 = vcombine.high %v1458, %v1458
    %v1462 = vunpack.c.l.s4 1966171168
    %v1463 = vunpack.c.0.s8 %v1462
    %v1464 = vlaneseq
    %v1465 = vshrl.u32 %v1464, 7
    %v1466 = vsub.s32 %v1463, %v1465
    %v1467 = vrot.slane %v1451, %v1466
    %v1469 = vunpack.c.l.s4 1966171168
    %v1470 = vunpack.c.0.s8 %v1469
    %v1471 = vlaneseq
    %v1472 = vshrl.u32 %v1471, 7
    %v1473 = vsub.s32 %v1470, %v1472
    %v1474 = vrot.slane %v1458, %v1473
    %v1476 = vunpack.c.l.s4 1966171168
    %v1477 = vunpack.c.0.s8 %v1476
    %v1478 = vlaneseq
    %v1479 = vshrl.u32 %v1478, 7
    %v1480 = vsub.s32 %v1477, %v1479
    %v1481 = vrot.slane %v1459, %v1480
    %v1483 = vunpack.c.l.s4 1966171168
    %v1484 = vunpack.c.0.s8 %v1483
    %v1485 = vlaneseq
    %v1486 = vshrl.u32 %v1485, 7
    %v1487 = vsub.s32 %v1484, %v1486
    %v1488 = vrot.slane %v1460, %v1487
    %v1489 = vcombine.high %v1467, %v1467
    %v1490 = vcombine.high %v1474, %v1474
    %v1491 = vcombine.high %v1481, %v1481
    %v1492 = vcombine.high %v1488, %v1488
    %v1493 = vcombine.high %v28, %v28
    %v1495 = vunpack.c.l.s4 1966171168
    %v1496 = vunpack.c.0.s8 %v1495
    %v1497 = vlaneseq
    %v1498 = vshrl.u32 %v1497, 7
    %v1499 = vsub.s32 %v1496, %v1498
    %v1500 = vrot.slane %v28, %v1499
    %v1502 = vunpack.c.l.s4 1966171168
    %v1503 = vunpack.c.0.s8 %v1502
    %v1504 = vlaneseq
    %v1505 = vshrl.u32 %v1504, 7
    %v1506 = vsub.s32 %v1503, %v1505
    %v1507 = vrot.slane %v1493, %v1506
    %v1508 = vcombine.high %v1500, %v1500
    %v1509 = vcombine.high %v1507, %v1507
    %v1511 = vunpack.c.l.s4 1966171168
    %v1512 = vunpack.c.0.s8 %v1511
    %v1513 = vlaneseq
    %v1514 = vshrl.u32 %v1513, 7
    %v1515 = vsub.s32 %v1512, %v1514
    %v1516 = vrot.slane %v1500, %v1515
    %v1518 = vunpack.c.l.s4 1966171168
    %v1519 = vunpack.c.0.s8 %v1518
    %v1520 = vlaneseq
    %v1521 = vshrl.u32 %v1520, 7
    %v1522 = vsub.s32 %v1519, %v1521
    %v1523 = vrot.slane %v1507, %v1522
    %v1525 = vunpack.c.l.s4 1966171168
    %v1526 = vunpack.c.0.s8 %v1525
    %v1527 = vlaneseq
    %v1528 = vshrl.u32 %v1527, 7
    %v1529 = vsub.s32 %v1526, %v1528
    %v1530 = vrot.slane %v1508, %v1529
    %v1532 = vunpack.c.l.s4 1966171168
    %v1533 = vunpack.c.0.s8 %v1532
    %v1534 = vlaneseq
    %v1535 = vshrl.u32 %v1534, 7
    %v1536 = vsub.s32 %v1533, %v1535
    %v1537 = vrot.slane %v1509, %v1536
    %v1538 = vcombine.high %v1516, %v1516
    %v1539 = vcombine.high %v1523, %v1523
    %v1540 = vcombine.high %v1530, %v1530
    %v1541 = vcombine.high %v1537, %v1537
    %v1542 = vcombine.high %v29, %v29
    %v1544 = vunpack.c.l.s4 1966171168
    %v1545 = vunpack.c.0.s8 %v1544
    %v1546 = vlaneseq
    %v1547 = vshrl.u32 %v1546, 7
    %v1548 = vsub.s32 %v1545, %v1547
    %v1549 = vrot.slane %v29, %v1548
    %v1551 = vunpack.c.l.s4 1966171168
    %v1552 = vunpack.c.0.s8 %v1551
    %v1553 = vlaneseq
    %v1554 = vshrl.u32 %v1553, 7
    %v1555 = vsub.s32 %v1552, %v1554
    %v1556 = vrot.slane %v1542, %v1555
    %v1557 = vcombine.high %v1549, %v1549
    %v1558 = vcombine.high %v1556, %v1556
    %v1560 = vunpack.c.l.s4 1966171168
    %v1561 = vunpack.c.0.s8 %v1560
    %v1562 = vlaneseq
    %v1563 = vshrl.u32 %v1562, 7
    %v1564 = vsub.s32 %v1561, %v1563
    %v1565 = vrot.slane %v1549, %v1564
    %v1567 = vunpack.c.l.s4 1966171168
    %v1568 = vunpack.c.0.s8 %v1567
    %v1569 = vlaneseq
    %v1570 = vshrl.u32 %v1569, 7
    %v1571 = vsub.s32 %v1568, %v1570
    %v1572 = vrot.slane %v1556, %v1571
    %v1574 = vunpack.c.l.s4 1966171168
    %v1575 = vunpack.c.0.s8 %v1574
    %v1576 = vlaneseq
    %v1577 = vshrl.u32 %v1576, 7
    %v1578 = vsub.s32 %v1575, %v1577
    %v1579 = vrot.slane %v1557, %v1578
    %v1581 = vunpack.c.l.s4 1966171168
    %v1582 = vunpack.c.0.s8 %v1581
    %v1583 = vlaneseq
    %v1584 = vshrl.u32 %v1583, 7
    %v1585 = vsub.s32 %v1582, %v1584
    %v1586 = vrot.slane %v1558, %v1585
    %v1587 = vcombine.high %v1565, %v1565
    %v1588 = vcombine.high %v1572, %v1572
    %v1589 = vcombine.high %v1579, %v1579
    %v1590 = vcombine.high %v1586, %v1586
    %v1591 = vcombine.high %v30, %v30
    %v1593 = vunpack.c.l.s4 1966171168
    %v1594 = vunpack.c.0.s8 %v1593
    %v1595 = vlaneseq
    %v1596 = vshrl.u32 %v1595, 7
    %v1597 = vsub.s32 %v1594, %v1596
    %v1598 = vrot.slane %v30, %v1597
    %v1600 = vunpack.c.l.s4 1966171168
    %v1601 = vunpack.c.0.s8 %v1600
    %v1602 = vlaneseq
    %v1603 = vshrl.u32 %v1602, 7
    %v1604 = vsub.s32 %v1601, %v1603
    %v1605 = vrot.slane %v1591, %v1604
    %v1606 = vcombine.high %v1598, %v1598
    %v1607 = vcombine.high %v1605, %v1605
    %v1609 = vunpack.c.l.s4 1966171168
    %v1610 = vunpack.c.0.s8 %v1609
    %v1611 = vlaneseq
    %v1612 = vshrl.u32 %v1611, 7
    %v1613 = vsub.s32 %v1610, %v1612
    %v1614 = vrot.slane %v1598, %v1613
    %v1616 = vunpack.c.l.s4 1966171168
    %v1617 = vunpack.c.0.s8 %v1616
    %v1618 = vlaneseq
    %v1619 = vshrl.u32 %v1618, 7
    %v1620 = vsub.s32 %v1617, %v1619
    %v1621 = vrot.slane %v1605, %v1620
    %v1623 = vunpack.c.l.s4 1966171168
    %v1624 = vunpack.c.0.s8 %v1623
    %v1625 = vlaneseq
    %v1626 = vshrl.u32 %v1625, 7
    %v1627 = vsub.s32 %v1624, %v1626
    %v1628 = vrot.slane %v1606, %v1627
    %v1630 = vunpack.c.l.s4 1966171168
    %v1631 = vunpack.c.0.s8 %v1630
    %v1632 = vlaneseq
    %v1633 = vshrl.u32 %v1632, 7
    %v1634 = vsub.s32 %v1631, %v1633
    %v1635 = vrot.slane %v1607, %v1634
    %v1636 = vcombine.high %v1614, %v1614
    %v1637 = vcombine.high %v1621, %v1621
    %v1638 = vcombine.high %v1628, %v1628
    %v1639 = vcombine.high %v1635, %v1635
    %v2864 = vunpack.c.l.b16 %v31
    %v2865 = vunpack.c.l.b16 %v32
    %v2866 = vunpack.c.l.b16 %v33
    %v2867 = vunpack.c.l.b16 %v34
    %v2868 = vunpack.c.l.b16 %v35
    %v2869 = vunpack.c.l.b16 %v36
    %v2870 = vunpack.c.l.b16 %v37
    %v2871 = vunpack.c.l.b16 %v38
    %v2872 = vunpack.c.l.b16 %v39
    %v2873 = vunpack.c.l.b16 %v40
    %v2874 = vunpack.c.l.b16 %v41
    %v2875 = vunpack.c.l.b16 %v42
    %v2876 = vunpack.c.l.b16 %v43
    %v2877 = vunpack.c.l.b16 %v44
    %v2878 = vunpack.c.l.b16 %v45
    %v2879 = vunpack.c.l.b16 %v46
    %v2880 = vunpack.c.l.b16 %v47
    %v2881 = vunpack.c.l.b16 %v48
    %v2882 = vunpack.c.l.b16 %v49
    %v2883 = vunpack.c.l.b16 %v50
    %v2884 = vunpack.c.l.b16 %v51
    %v2885 = vunpack.c.l.b16 %v52
    %v2886 = vunpack.c.l.b16 %v53
    %v2887 = vunpack.c.l.b16 %v54
    %v2888 = vunpack.c.l.b16 %v55
    %v2889 = vunpack.c.l.b16 %v56
    %v2890 = vunpack.c.l.b16 %v57
    %v2891 = vunpack.c.l.b16 %v58
    %v2892 = vunpack.c.l.b16 %v59
    %v2893 = vunpack.c.l.b16 %v60
    %v2894 = vunpack.c.l.b16 %v61
    %v2895 = vunpack.c.l.b16 %v62
    %v2896 = vunpack.c.l.b16 %v63
    %v2897 = vunpack.c.l.b16 %v64
    %v2898 = vunpack.c.l.b16 %v65
    %v2899 = vunpack.c.l.b16 %v66
    %v2900 = vunpack.c.l.b16 %v67
    %v2901 = vunpack.c.l.b16 %v68
    %v2902 = vunpack.c.l.b16 %v69
    %v2903 = vunpack.c.l.b16 %v70
    %v2904 = vunpack.c.l.b16 %v71
    %v2905 = vunpack.c.l.b16 %v72
    %v2906 = vunpack.c.l.b16 %v73
    %v2907 = vunpack.c.l.b16 %v74
    %v2908 = vunpack.c.l.b16 %v75
    %v2909 = vunpack.c.l.b16 %v76
    %v2910 = vunpack.c.l.b16 %v77
    %v2911 = vunpack.c.l.b16 %v78
    %v2912 = vunpack.c.l.b16 %v79
    %v2913 = vunpack.c.l.b16 %v80
    %v2914 = vunpack.c.l.b16 %v81
    %v2915 = vunpack.c.l.b16 %v82
    %v2916 = vunpack.c.l.b16 %v83
    %v2917 = vunpack.c.l.b16 %v84
    %v2918 = vunpack.c.l.b16 %v85
    %v2919 = vunpack.c.l.b16 %v86
    %v2920 = vunpack.c.l.b16 %v87
    %v2921 = vunpack.c.l.b16 %v88
    %v2922 = vunpack.c.l.b16 %v89
    %v2923 = vunpack.c.l.b16 %v90
    %v2924 = vunpack.c.l.b16 %v91
    %v2925 = vunpack.c.l.b16 %v92
    %v2926 = vunpack.c.l.b16 %v93
    %v2927 = vunpack.c.l.b16 %v94
    %v2928 = vunpack.c.l.b16 %v95
    %v2929 = vunpack.c.l.b16 %v96
    %v2930 = vunpack.c.l.b16 %v97
    %v2931 = vunpack.c.l.b16 %v98
    %v2932 = vunpack.c.l.b16 %v99
    %v2933 = vunpack.c.l.b16 %v100
    %v2934 = vunpack.c.l.b16 %v101
    %v2935 = vunpack.c.l.b16 %v102
    %v2936 = vunpack.c.l.b16 %v103
    %v2937 = vunpack.c.l.b16 %v104
    %v2938 = vunpack.c.l.b16 %v105
    %v2939 = vunpack.c.l.b16 %v106
    %v2940 = vunpack.c.l.b16 %v107
    %v2941 = vunpack.c.l.b16 %v108
    %v2942 = vunpack.c.l.b16 %v109
    %v2943 = vunpack.c.l.b16 %v110
    %v2944 = vunpack.c.l.b16 %v111
    %v2945 = vunpack.c.l.b16 %v112
    %v2946 = vunpack.c.l.b16 %v113
    %v2947 = vunpack.c.l.b16 %v114
    %v2948 = vunpack.c.l.b16 %v115
    %v2949 = vunpack.c.l.b16 %v116
    %v2950 = vunpack.c.l.b16 %v117
    %v2951 = vunpack.c.l.b16 %v118
    %v2952 = vunpack.c.l.b16 %v119
    %v2953 = vunpack.c.l.b16 %v120
    %v2954 = vunpack.c.l.b16 %v121
    %v2955 = vunpack.c.l.b16 %v122
    %v2956 = vunpack.c.l.b16 %v123
    %v2957 = vunpack.c.l.b16 %v124
    %v2958 = vunpack.c.l.b16 %v125
    %v2959 = vunpack.c.l.b16 %v126
    %v2960 = vunpack.c.l.b16 %v127
    %v2961 = vunpack.c.l.b16 %v128
    %v2962 = vunpack.c.l.b16 %v129
    %v2963 = vunpack.c.l.b16 %v130
    %v2964 = vunpack.c.l.b16 %v131
    %v2965 = vunpack.c.l.b16 %v132
    %v2966 = vunpack.c.l.b16 %v133
    %v2967 = vunpack.c.l.b16 %v134
    %v2968 = vunpack.c.l.b16 %v135
    %v2969 = vunpack.c.l.b16 %v136
    %v2970 = vunpack.c.l.b16 %v137
    %v2971 = vunpack.c.l.b16 %v138
    %v2972 = vunpack.c.l.b16 %v139
    %v2973 = vunpack.c.l.b16 %v140
    %v2974 = vunpack.c.l.b16 %v141
    %v2975 = vunpack.c.l.b16 %v142
    %v2976 = vunpack.c.l.b16 %v143
    %v2977 = vunpack.c.l.b16 %v144
    %v2978 = vunpack.c.l.b16 %v145
    %v2979 = vunpack.c.l.b16 %v146
    %v2980 = vunpack.c.l.b16 %v147
    %v2981 = vunpack.c.l.b16 %v148
    %v2982 = vunpack.c.l.b16 %v149
    %v2983 = vunpack.c.l.b16 %v150
    %v2984 = vunpack.c.l.b16 %v151
    %v2985 = vunpack.c.l.b16 %v152
    %v2986 = vunpack.c.l.b16 %v153
    %v2987 = vunpack.c.l.b16 %v154
    %v2988 = vunpack.c.l.b16 %v155
    %v2989 = vunpack.c.l.b16 %v156
    %v2990 = vunpack.c.l.b16 %v157
    %v2991 = vunpack.c.l.b16 %v158
    %v2992 = vunpack.c.l.b16 %v159
    %v2993 = vunpack.c.l.b16 %v160
    %v2994 = vunpack.c.l.b16 %v161
    %v2995 = vunpack.c.l.b16 %v162
    %v2996 = vunpack.c.l.b16 %v163
    %v2997 = vunpack.c.l.b16 %v164
    %v2998 = vunpack.c.l.b16 %v165
    %v2999 = vunpack.c.l.b16 %v166
    %v3000 = vunpack.c.l.b16 %v167
    %v3001 = vunpack.c.l.b16 %v168
    %v3002 = vunpack.c.l.b16 %v169
    %v3003 = vunpack.c.l.b16 %v170
    %v3004 = vunpack.c.l.b16 %v171
    %v3005 = vunpack.c.l.b16 %v172
    %v3006 = vunpack.c.l.b16 %v173
    %v3007 = vunpack.c.l.b16 %v174
    %v3008 = vunpack.c.l.b16 %v175
    %v3009 = vunpack.c.l.b16 %v176
    %v3010 = vunpack.c.l.b16 %v177
    %v3011 = vunpack.c.l.b16 %v178
    %v3012 = vunpack.c.l.b16 %v179
    %v3013 = vunpack.c.l.b16 %v180
    %v3014 = vunpack.c.l.b16 %v181
    %v3015 = vunpack.c.l.b16 %v182
    %v3016 = vunpack.c.l.b16 %v183
    %v3017 = vunpack.c.l.b16 %v184
    %v3018 = vunpack.c.l.b16 %v185
    %v3019 = vunpack.c.l.b16 %v186
    %v3020 = vunpack.c.l.b16 %v187
    %v3021 = vunpack.c.l.b16 %v188
    %v3022 = vunpack.c.l.b16 %v189
    %v3023 = vunpack.c.l.b16 %v190
    %v3024 = vunpack.c.l.b16 %v191
    %v3025 = vunpack.c.l.b16 %v192
    %v3026 = vunpack.c.l.b16 %v193
    %v3027 = vunpack.c.l.b16 %v194
    %v3028 = vunpack.c.l.b16 %v195
    %v3029 = vunpack.c.l.b16 %v196
    %v3030 = vunpack.c.l.b16 %v197
    %v3031 = vunpack.c.l.b16 %v198
    %v3032 = vunpack.c.l.b16 %v199
    %v3033 = vunpack.c.l.b16 %v200
    %v3034 = vunpack.c.l.b16 %v201
    %v3035 = vunpack.c.l.b16 %v202
    %v3036 = vunpack.c.l.b16 %v203
    %v3037 = vunpack.c.l.b16 %v204
    %v3038 = vunpack.c.l.b16 %v205
    %v3039 = vunpack.c.l.b16 %v206
    %v3040 = vunpack.c.l.b16 %v207
    %v3041 = vunpack.c.l.b16 %v208
    %v3042 = vunpack.c.l.b16 %v209
    %v3043 = vunpack.c.l.b16 %v210
    %v3044 = vunpack.c.l.b16 %v211
    %v3045 = vunpack.c.l.b16 %v212
    %v3046 = vunpack.c.l.b16 %v213
    %v3047 = vunpack.c.l.b16 %v214
    %v3048 = vunpack.c.l.b16 %v215
    %v3049 = vunpack.c.l.b16 %v216
    %v3050 = vunpack.c.l.b16 %v217
    %v3051 = vunpack.c.l.b16 %v218
    %v3052 = vunpack.c.l.b16 %v219
    %v3053 = vunpack.c.l.b16 %v220
    %v3054 = vunpack.c.l.b16 %v221
    %v3055 = vunpack.c.l.b16 %v222
    %v3056 = vunpack.c.l.b16 %v223
    %v3057 = vunpack.c.l.b16 %v224
    %v3058 = vunpack.c.l.b16 %v225
    %v3059 = vunpack.c.l.b16 %v226
    %v3060 = vunpack.c.l.b16 %v227
    %v3061 = vunpack.c.l.b16 %v228
    %v3062 = vunpack.c.l.b16 %v229
    %v3063 = vunpack.c.l.b16 %v230
    %v3064 = vunpack.c.l.b16 %v231
    %v3065 = vunpack.c.l.b16 %v232
    %v3066 = vunpack.c.l.b16 %v233
    %v3067 = vunpack.c.l.b16 %v234
    %v3068 = vunpack.c.l.b16 %v235
    %v3069 = vunpack.c.l.b16 %v236
    %v3070 = vunpack.c.l.b16 %v237
    %v3071 = vunpack.c.l.b16 %v238
    %v3072 = vunpack.c.l.b16 %v239
    %v3073 = vunpack.c.l.b16 %v240
    %v3074 = vunpack.c.l.b16 %v241
    %v3075 = vunpack.c.l.b16 %v242
    %v3076 = vunpack.c.l.b16 %v243
    %v3077 = vunpack.c.l.b16 %v244
    %v3078 = vunpack.c.l.b16 %v245
    %v3079 = vunpack.c.l.b16 %v246
    %v3080 = vunpack.c.l.b16 %v247
    %v3081 = vunpack.c.l.b16 %v248
    %v3082 = vunpack.c.l.b16 %v249
    %v3083 = vunpack.c.l.b16 %v250
    %v3084 = vunpack.c.l.b16 %v251
    %v3085 = vunpack.c.l.b16 %v252
    %v3086 = vunpack.c.l.b16 %v253
    %v3087 = vunpack.c.l.b16 %v254
    %v3088 = vunpack.c.l.b16 %v255
    %v3089 = vunpack.c.l.b16 %v256
    %v3090 = vunpack.c.l.b16 %v257
    %v3091 = vunpack.c.l.b16 %v258
    %v3092 = vunpack.c.l.b16 %v259
    %v3093 = vunpack.c.l.b16 %v260
    %v3094 = vunpack.c.l.b16 %v261
    %v3095 = vunpack.c.l.b16 %v262
    %v3096 = vunpack.c.l.b16 %v263
    %v3097 = vunpack.c.l.b16 %v264
    %v3098 = vunpack.c.l.b16 %v265
    %v3099 = vunpack.c.l.b16 %v266
    %v3100 = vunpack.c.l.b16 %v267
    %v3101 = vunpack.c.l.b16 %v268
    %v3102 = vunpack.c.l.b16 %v269
    %v3103 = vunpack.c.l.b16 %v270
    %v3104 = vunpack.c.l.b16 %v271
    %v3105 = vunpack.c.l.b16 %v272
    %v3106 = vunpack.c.l.b16 %v273
    %v3107 = vunpack.c.l.b16 %v274
    %v3108 = vunpack.c.l.b16 %v275
    %v3109 = vunpack.c.l.b16 %v276
    %v3110 = vunpack.c.l.b16 %v277
    %v3111 = vunpack.c.l.b16 %v278
    %v3112 = vunpack.c.l.b16 %v279
    %v3113 = vunpack.c.l.b16 %v280
    %v3114 = vunpack.c.l.b16 %v281
    %v3115 = vunpack.c.l.b16 %v282
    %v3116 = vunpack.c.l.b16 %v283
    %v3117 = vunpack.c.l.b16 %v284
    %v3118 = vunpack.c.l.b16 %v285
    %v3119 = vunpack.c.l.b16 %v286
    %v3120 = vunpack.c.l.b16 %v287
    %v3121 = vunpack.c.l.b16 %v288
    %v3122 = vunpack.c.l.b16 %v289
    %v3123 = vunpack.c.l.b16 %v290
    %v3124 = vunpack.c.l.b16 %v291
    %v3125 = vunpack.c.l.b16 %v292
    %v3126 = vunpack.c.l.b16 %v293
    %v3127 = vunpack.c.l.b16 %v294
    %v3128 = vunpack.c.l.b16 %v295
    %v3129 = vunpack.c.l.b16 %v296
    %v3130 = vunpack.c.l.b16 %v297
    %v3131 = vunpack.c.l.b16 %v298
    %v3132 = vunpack.c.l.b16 %v299
    %v3133 = vunpack.c.l.b16 %v300
    %v3134 = vunpack.c.l.b16 %v301
    %v3135 = vunpack.c.l.b16 %v302
    %v3136 = vunpack.c.l.b16 %v303
    %v3137 = vunpack.c.l.b16 %v304
    %v3138 = vunpack.c.l.b16 %v305
    %v3139 = vunpack.c.l.b16 %v306
    %v3140 = vunpack.c.l.b16 %v307
    %v3141 = vunpack.c.l.b16 %v308
    %v3142 = vunpack.c.l.b16 %v309
    %v3143 = vunpack.c.l.b16 %v310
    %v3144 = vunpack.c.l.b16 %v311
    %v3145 = vunpack.c.l.b16 %v312
    %v3146 = vunpack.c.l.b16 %v313
    %v3147 = vunpack.c.l.b16 %v314
    %v3148 = vunpack.c.l.b16 %v315
    %v3149 = vunpack.c.l.b16 %v316
    %v3150 = vunpack.c.l.b16 %v317
    %v3151 = vunpack.c.l.b16 %v318
    %v3152 = vunpack.c.l.b16 %v319
    %v3153 = vunpack.c.l.b16 %v320
    %v3154 = vunpack.c.l.b16 %v321
    %v3155 = vunpack.c.l.b16 %v322
    %v3156 = vunpack.c.l.b16 %v323
    %v3157 = vunpack.c.l.b16 %v324
    %v3158 = vunpack.c.l.b16 %v325
    %v3159 = vunpack.c.l.b16 %v326
    %v3160 = vunpack.c.l.b16 %v327
    %v3161 = vunpack.c.l.b16 %v328
    %v3162 = vunpack.c.l.b16 %v329
    %v3163 = vunpack.c.l.b16 %v330
    %v3164 = vunpack.c.l.b16 %v331
    %v3165 = vunpack.c.l.b16 %v332
    %v3166 = vunpack.c.l.b16 %v333
    %v3167 = vunpack.c.l.b16 %v334
    %v3168 = vunpack.c.l.b16 %v335
    %v3169 = vunpack.c.l.b16 %v336
    %v3170 = vunpack.c.l.b16 %v337
    %v3171 = vunpack.c.l.b16 %v338
    %v3172 = vunpack.c.l.b16 %v339
    %v3173 = vunpack.c.l.b16 %v340
    %v3174 = vunpack.c.l.b16 %v341
    %v3175 = vunpack.c.l.b16 %v342
    %v3176 = vunpack.c.l.b16 %v343
    %v3177 = vunpack.c.l.b16 %v344
    %v3178 = vunpack.c.l.b16 %v345
    %v3179 = vunpack.c.l.b16 %v346
    %v3180 = vunpack.c.l.b16 %v347
    %v3181 = vunpack.c.l.b16 %v348
    %v3182 = vunpack.c.l.b16 %v349
    %v3183 = vunpack.c.l.b16 %v350
    %v3184 = vunpack.c.l.b16 %v351
    %v3185 = vunpack.c.l.b16 %v352
    %v3186 = vunpack.c.l.b16 %v353
    %v3187 = vunpack.c.l.b16 %v354
    %v3188 = vunpack.c.l.b16 %v355
    %v3189 = vunpack.c.l.b16 %v356
    %v3190 = vunpack.c.l.b16 %v357
    %v3191 = vunpack.c.l.b16 %v358
    %v3192 = vunpack.c.l.b16 %v359
    %v3193 = vunpack.c.l.b16 %v360
    %v3194 = vunpack.c.l.b16 %v361
    %v3195 = vunpack.c.l.b16 %v362
    %v3196 = vunpack.c.l.b16 %v363
    %v3197 = vunpack.c.l.b16 %v364
    %v3198 = vunpack.c.l.b16 %v365
    %v3199 = vunpack.c.l.b16 %v366
    %v3200 = vunpack.c.l.b16 %v367
    %v3201 = vunpack.c.l.b16 %v368
    %v3202 = vunpack.c.l.b16 %v369
    %v3203 = vunpack.c.l.b16 %v370
    %v3204 = vunpack.c.l.b16 %v371
    %v3205 = vunpack.c.l.b16 %v372
    %v3206 = vunpack.c.l.b16 %v373
    %v3207 = vunpack.c.l.b16 %v374
    %v3208 = vunpack.c.l.b16 %v375
    %v3209 = vunpack.c.l.b16 %v376
    %v3210 = vunpack.c.l.b16 %v377
    %v3211 = vunpack.c.l.b16 %v378
    %v3212 = vunpack.c.l.b16 %v379
    %v3213 = vunpack.c.l.b16 %v380
    %v3214 = vunpack.c.l.b16 %v381
    %v3215 = vunpack.c.l.b16 %v382
    %v3216 = vunpack.c.l.b16 %v383
    %v3217 = vunpack.c.l.b16 %v384
    %v3218 = vunpack.c.l.b16 %v385
    %v3219 = vunpack.c.l.b16 %v386
    %v3220 = vunpack.c.l.b16 %v387
    %v3221 = vunpack.c.l.b16 %v388
    %v3222 = vunpack.c.l.b16 %v389
    %v3223 = vunpack.c.l.b16 %v390
    %v3224 = vunpack.c.l.b16 %v391
    %v3225 = vunpack.c.l.b16 %v392
    %v3226 = vunpack.c.l.b16 %v393
    %v3227 = vunpack.c.l.b16 %v394
    %v3228 = vunpack.c.l.b16 %v395
    %v3229 = vunpack.c.l.b16 %v396
    %v3230 = vunpack.c.l.b16 %v397
    %v3231 = vunpack.c.l.b16 %v398
    %v3232 = vunpack.c.l.b16 %v399
    %v3233 = vunpack.c.l.b16 %v400
    %v3234 = vunpack.c.l.b16 %v401
    %v3235 = vunpack.c.l.b16 %v402
    %v3236 = vunpack.c.l.b16 %v403
    %v3237 = vunpack.c.l.b16 %v404
    %v3238 = vunpack.c.l.b16 %v405
    %v3239 = vunpack.c.l.b16 %v406
    %v3240 = vunpack.c.l.b16 %v407
    %v3241 = vunpack.c.l.b16 %v408
    %v3242 = vunpack.c.l.b16 %v409
    %v3243 = vunpack.c.l.b16 %v410
    %v3244 = vunpack.c.l.b16 %v411
    %v3245 = vunpack.c.l.b16 %v412
    %v3246 = vunpack.c.l.b16 %v413
    %v3247 = vunpack.c.l.b16 %v414
    %v3248 = vunpack.c.l.b16 %v415
    %v3249 = vunpack.c.l.b16 %v416
    %v3250 = vunpack.c.l.b16 %v417
    %v3251 = vunpack.c.l.b16 %v418
    %v3252 = vunpack.c.l.b16 %v419
    %v3253 = vunpack.c.l.b16 %v420
    %v3254 = vunpack.c.l.b16 %v421
    %v3255 = vunpack.c.l.b16 %v422
    %v3256 = vunpack.c.l.b16 %v423
    %v3257 = vunpack.c.l.b16 %v424
    %v3258 = vunpack.c.l.b16 %v425
    %v3259 = vunpack.c.l.b16 %v426
    %v3260 = vunpack.c.l.b16 %v427
    %v3261 = vunpack.c.l.b16 %v428
    %v3262 = vunpack.c.l.b16 %v429
    %v3263 = vunpack.c.l.b16 %v430
    %v3264 = vunpack.c.l.b16 %v431
    %v3265 = vunpack.c.l.b16 %v432
    %v3266 = vunpack.c.l.b16 %v433
    %v3267 = vunpack.c.l.b16 %v434
    %v3268 = vunpack.c.l.b16 %v435
    %v3269 = vunpack.c.l.b16 %v436
    %v3270 = vunpack.c.l.b16 %v437
    %v3271 = vunpack.c.l.b16 %v438
    %v3272 = vunpack.c.l.b16 %v439
    %v3273 = vunpack.c.l.b16 %v440
    %v3274 = vunpack.c.l.b16 %v441
    %v3275 = vunpack.c.l.b16 %v442
    %v3276 = vunpack.c.l.b16 %v443
    %v3277 = vunpack.c.l.b16 %v444
    %v3278 = vunpack.c.l.b16 %v445
    %v3279 = vunpack.c.l.b16 %v446
    %v3280 = vunpack.c.l.b16 %v447
    %v3281 = vunpack.c.l.b16 %v448
    %v3282 = vunpack.c.l.b16 %v449
    %v3283 = vunpack.c.l.b16 %v450
    %v3284 = vunpack.c.l.b16 %v451
    %v3285 = vunpack.c.l.b16 %v452
    %v3286 = vunpack.c.l.b16 %v453
    %v3287 = vunpack.c.l.b16 %v454
    %v3288 = vunpack.c.l.b16 %v455
    %v3289 = vunpack.c.l.b16 %v456
    %v3290 = vunpack.c.l.b16 %v457
    %v3291 = vunpack.c.l.b16 %v458
    %v3292 = vunpack.c.l.b16 %v459
    %v3293 = vunpack.c.l.b16 %v460
    %v3294 = vunpack.c.l.b16 %v461
    %v3295 = vunpack.c.l.b16 %v462
    %v3296 = vunpack.c.l.b16 %v463
    %v3297 = vunpack.c.l.b16 %v464
    %v3298 = vunpack.c.l.b16 %v465
    %v3299 = vunpack.c.l.b16 %v466
    %v3300 = vunpack.c.l.b16 %v467
    %v3301 = vunpack.c.l.b16 %v468
    %v3302 = vunpack.c.l.b16 %v469
    %v3303 = vunpack.c.l.b16 %v470
    %v3304 = vunpack.c.l.b16 %v471
    %v3305 = vunpack.c.l.b16 %v472
    %v3306 = vunpack.c.l.b16 %v473
    %v3307 = vunpack.c.l.b16 %v474
    %v3308 = vunpack.c.l.b16 %v475
    %v3309 = vunpack.c.l.b16 %v476
    %v3310 = vunpack.c.l.b16 %v477
    %v3311 = vunpack.c.l.b16 %v478
    %v3312 = vunpack.c.l.b16 %v479
    %v3313 = vunpack.c.l.b16 %v480
    %v3314 = vunpack.c.l.b16 %v481
    %v3315 = vunpack.c.l.b16 %v482
    %v3316 = vunpack.c.l.b16 %v483
    %v3317 = vunpack.c.l.b16 %v484
    %v3318 = vunpack.c.l.b16 %v485
    %v3319 = vunpack.c.l.b16 %v486
    %v3320 = vunpack.c.l.b16 %v487
    %v3321 = vunpack.c.l.b16 %v488
    %v3322 = vunpack.c.l.b16 %v489
    %v3323 = vunpack.c.l.b16 %v490
    %v3324 = vunpack.c.l.b16 %v491
    %v3325 = vunpack.c.l.b16 %v492
    %v3326 = vunpack.c.l.b16 %v493
    %v3327 = vunpack.c.l.b16 %v494
    %v3328 = vunpack.c.l.b16 %v495
    %v3329 = vunpack.c.l.b16 %v496
    %v3330 = vunpack.c.l.b16 %v497
    %v3331 = vunpack.c.l.b16 %v498
    %v3332 = vunpack.c.l.b16 %v499
    %v3333 = vunpack.c.l.b16 %v500
    %v3334 = vunpack.c.l.b16 %v501
    %v3335 = vunpack.c.l.b16 %v502
    %v3336 = vunpack.c.l.b16 %v503
    %v3337 = vunpack.c.l.b16 %v504
    %v3338 = vunpack.c.l.b16 %v505
    %v3339 = vunpack.c.l.b16 %v506
    %v3340 = vunpack.c.l.b16 %v507
    %v3341 = vunpack.c.l.b16 %v508
    %v3342 = vunpack.c.l.b16 %v509
    %v3343 = vunpack.c.l.b16 %v510
    %v3344 = vunpack.c.l.b16 %v511
    %v3345 = vunpack.c.l.b16 %v512
    %v3346 = vunpack.c.l.b16 %v513
    %v3347 = vunpack.c.l.b16 %v514
    %v3348 = vunpack.c.l.b16 %v515
    %v3349 = vunpack.c.l.b16 %v516
    %v3350 = vunpack.c.l.b16 %v517
    %v3351 = vunpack.c.l.b16 %v518
    %v3352 = vunpack.c.l.b16 %v519
    %v3353 = vunpack.c.l.b16 %v520
    %v3354 = vunpack.c.l.b16 %v521
    %v3355 = vunpack.c.l.b16 %v522
    %v3356 = vunpack.c.l.b16 %v523
    %v3357 = vunpack.c.l.b16 %v524
    %v3358 = vunpack.c.l.b16 %v525
    %v3359 = vunpack.c.l.b16 %v526
    %v3360 = vunpack.c.l.b16 %v527
    %v3361 = vunpack.c.l.b16 %v528
    %v3362 = vunpack.c.l.b16 %v529
    %v3363 = vunpack.c.l.b16 %v530
    %v3364 = vunpack.c.l.b16 %v531
    %v3365 = vunpack.c.l.b16 %v532
    %v3366 = vunpack.c.l.b16 %v533
    %v3367 = vunpack.c.l.b16 %v534
    %v3368 = vunpack.c.l.b16 %v535
    %v3369 = vunpack.c.l.b16 %v536
    %v3370 = vunpack.c.l.b16 %v537
    %v3371 = vunpack.c.l.b16 %v538
    %v3372 = vunpack.c.l.b16 %v539
    %v3373 = vunpack.c.l.b16 %v540
    %v3374 = vunpack.c.l.b16 %v541
    %v3375 = vunpack.c.l.b16 %v542
    %v3376 = vunpack.c.l.b16 %v543
    %v3377 = vunpack.c.l.b16 %v544
    %v3378 = vunpack.c.l.b16 %v545
    %v3379 = vunpack.c.l.b16 %v546
    %v3380 = vunpack.c.l.b16 %v547
    %v3381 = vunpack.c.l.b16 %v548
    %v3382 = vunpack.c.l.b16 %v549
    %v3383 = vunpack.c.l.b16 %v550
    %v3384 = vunpack.c.l.b16 %v551
    %v3385 = vunpack.c.l.b16 %v552
    %v3386 = vunpack.c.l.b16 %v553
    %v3387 = vunpack.c.l.b16 %v554
    %v3388 = vunpack.c.l.b16 %v555
    %v3389 = vunpack.c.l.b16 %v556
    %v3390 = vunpack.c.l.b16 %v557
    %v3391 = vunpack.c.l.b16 %v558
    %v3392 = vunpack.c.l.b16 %v559
    %v3393 = vunpack.c.l.b16 %v560
    %v3394 = vunpack.c.l.b16 %v561
    %v3395 = vunpack.c.l.b16 %v562
    %v3396 = vunpack.c.l.b16 %v563
    %v3397 = vunpack.c.l.b16 %v564
    %v3398 = vunpack.c.l.b16 %v565
    %v3399 = vunpack.c.l.b16 %v566
    %v3400 = vunpack.c.l.b16 %v567
    %v3401 = vunpack.c.l.b16 %v568
    %v3402 = vunpack.c.l.b16 %v569
    %v3403 = vunpack.c.l.b16 %v570
    %v3404 = vunpack.c.l.b16 %v571
    %v3405 = vunpack.c.l.b16 %v572
    %v3406 = vunpack.c.l.b16 %v573
    %v3407 = vunpack.c.l.b16 %v574
    %v3408 = vunpack.c.l.b16 %v575
    %v3409 = vunpack.c.l.b16 %v576
    %v3410 = vunpack.c.l.b16 %v577
    %v3411 = vunpack.c.l.b16 %v578
    %v3412 = vunpack.c.l.b16 %v579
    %v3413 = vunpack.c.l.b16 %v580
    %v3414 = vunpack.c.l.b16 %v581
    %v3415 = vunpack.c.l.b16 %v582
    %v3416 = vunpack.c.l.b16 %v583
    %v3417 = vunpack.c.l.b16 %v584
    %v3418 = vunpack.c.l.b16 %v585
    %v3419 = vunpack.c.l.b16 %v586
    %v3420 = vunpack.c.l.b16 %v587
    %v3421 = vunpack.c.l.b16 %v588
    %v3422 = vunpack.c.l.b16 %v589
    %v3423 = vunpack.c.l.b16 %v590
    %v3424 = vunpack.c.l.b16 %v591
    %v3425 = vunpack.c.l.b16 %v592
    %v3426 = vunpack.c.l.b16 %v593
    %v3427 = vunpack.c.l.b16 %v594
    %v3428 = vunpack.c.l.b16 %v595
    %v3429 = vunpack.c.l.b16 %v596
    %v3430 = vunpack.c.l.b16 %v597
    %v3431 = vunpack.c.l.b16 %v598
    %v3432 = vunpack.c.l.b16 %v599
    %v3433 = vunpack.c.l.b16 %v600
    %v3434 = vunpack.c.l.b16 %v601
    %v3435 = vunpack.c.l.b16 %v602
    %v3436 = vunpack.c.l.b16 %v603
    %v3437 = vunpack.c.l.b16 %v604
    %v3438 = vunpack.c.l.b16 %v605
    %v3439 = vunpack.c.l.b16 %v606
    %v3440 = vunpack.c.l.b16 %v607
    %v3441 = vunpack.c.l.b16 %v608
    %v3442 = vunpack.c.l.b16 %v609
    %v3443 = vunpack.c.l.b16 %v610
    %v3444 = vunpack.c.l.b16 %v611
    %v3445 = vunpack.c.l.b16 %v612
    %v3446 = vunpack.c.l.b16 %v613
    %v3447 = vunpack.c.l.b16 %v614
    %v3448 = vunpack.c.l.b16 %v615
    %v3449 = vunpack.c.l.b16 %v616
    %v3450 = vunpack.c.l.b16 %v617
    %v3451 = vunpack.c.l.b16 %v618
    %v3452 = vunpack.c.l.b16 %v619
    %v3453 = vunpack.c.l.b16 %v620
    %v3454 = vunpack.c.l.b16 %v621
    %v3455 = vunpack.c.l.b16 %v622
    %v3456 = vunpack.c.l.b16 %v623
    %v3457 = vunpack.c.l.b16 %v624
    %v3458 = vunpack.c.l.b16 %v625
    %v3459 = vunpack.c.l.b16 %v626
    %v3460 = vunpack.c.l.b16 %v627
    %v3461 = vunpack.c.l.b16 %v628
    %v3462 = vunpack.c.l.b16 %v629
    %v3463 = vunpack.c.l.b16 %v630
    %v3464 = vunpack.c.l.b16 %v631
    %v3465 = vunpack.c.l.b16 %v632
    %v3466 = vunpack.c.l.b16 %v633
    %v3467 = vunpack.c.l.b16 %v634
    %v3468 = vunpack.c.l.b16 %v635
    %v3469 = vunpack.c.l.b16 %v636
    %v3470 = vunpack.c.l.b16 %v637
    %v3471 = vunpack.c.l.b16 %v638
    %v3472 = vunpack.c.l.b16 %v639
    %v3473 = vunpack.c.l.b16 %v640
    %v3474 = vunpack.c.l.b16 %v641
    %v3475 = vunpack.c.l.b16 %v642
    %v3476 = vunpack.c.l.b16 %v643
    %v3477 = vunpack.c.l.b16 %v644
    %v3478 = vunpack.c.l.b16 %v645
    %v3479 = vunpack.c.l.b16 %v646
    %v3480 = vunpack.c.l.b16 %v647
    %v3481 = vunpack.c.l.b16 %v648
    %v3482 = vunpack.c.l.b16 %v649
    %v3483 = vunpack.c.l.b16 %v650
    %v3484 = vunpack.c.l.b16 %v651
    %v3485 = vunpack.c.l.b16 %v652
    %v3486 = vunpack.c.l.b16 %v653
    %v3487 = vunpack.c.l.b16 %v654
    %v3488 = vunpack.c.l.b16 %v655
    %v3489 = vunpack.c.l.b16 %v656
    %v3490 = vunpack.c.l.b16 %v657
    %v3491 = vunpack.c.l.b16 %v658
    %v3492 = vunpack.c.l.b16 %v659
    %v3493 = vunpack.c.l.b16 %v660
    %v3494 = vunpack.c.l.b16 %v661
    %v3495 = vunpack.c.l.b16 %v662
    %v3496 = vunpack.c.l.b16 %v663
    %v3497 = vunpack.c.l.b16 %v664
    %v3498 = vunpack.c.l.b16 %v665
    %v3499 = vunpack.c.l.b16 %v666
    %v3500 = vunpack.c.l.b16 %v667
    %v3501 = vunpack.c.l.b16 %v668
    %v3502 = vunpack.c.l.b16 %v669
    %v3503 = vunpack.c.l.b16 %v670
    %v3504 = vunpack.c.l.b16 %v671
    %v3505 = vunpack.c.l.b16 %v672
    %v3506 = vunpack.c.l.b16 %v673
    %v3507 = vunpack.c.l.b16 %v674
    %v3508 = vunpack.c.l.b16 %v675
    %v3509 = vunpack.c.l.b16 %v676
    %v3510 = vunpack.c.l.b16 %v677
    %v3511 = vunpack.c.l.b16 %v678
    %v3512 = vunpack.c.l.b16 %v679
    %v3513 = vunpack.c.l.b16 %v680
    %v3514 = vunpack.c.l.b16 %v681
    %v3515 = vunpack.c.l.b16 %v682
    %v3516 = vunpack.c.l.b16 %v683
    %v3517 = vunpack.c.l.b16 %v684
    %v3518 = vunpack.c.l.b16 %v685
    %v3519 = vunpack.c.l.b16 %v686
    %v3520 = vunpack.c.l.b16 %v687
    %v3521 = vunpack.c.l.b16 %v688
    %v3522 = vunpack.c.l.b16 %v689
    %v3523 = vunpack.c.l.b16 %v690
    %v3524 = vunpack.c.l.b16 %v691
    %v3525 = vunpack.c.l.b16 %v692
    %v3526 = vunpack.c.l.b16 %v693
    %v3527 = vunpack.c.l.b16 %v694
    %v3528 = vunpack.c.l.b16 %v695
    %v3529 = vunpack.c.l.b16 %v696
    %v3530 = vunpack.c.l.b16 %v697
    %v3531 = vunpack.c.l.b16 %v698
    %v3532 = vunpack.c.l.b16 %v699
    %v3533 = vunpack.c.l.b16 %v700
    %v3534 = vunpack.c.l.b16 %v701
    %v3535 = vunpack.c.l.b16 %v702
    %v3536 = vunpack.c.l.b16 %v703
    %v3537 = vunpack.c.l.b16 %v704
    %v3538 = vunpack.c.l.b16 %v705
    %v3539 = vunpack.c.l.b16 %v706
    %v3540 = vunpack.c.l.b16 %v707
    %v3541 = vunpack.c.l.b16 %v708
    %v3542 = vunpack.c.l.b16 %v709
    %v3543 = vunpack.c.l.b16 %v710
    %v3544 = vunpack.c.l.b16 %v711
    %v3545 = vunpack.c.l.b16 %v712
    %v3546 = vunpack.c.l.b16 %v713
    %v3547 = vunpack.c.l.b16 %v714
    %v3548 = vunpack.c.l.b16 %v715
    %v3549 = vunpack.c.l.b16 %v716
    %v3550 = vunpack.c.l.b16 %v717
    %v3551 = vunpack.c.l.b16 %v718
    %v3552 = vunpack.c.l.b16 %v719
    %v3553 = vunpack.c.l.b16 %v720
    %v3554 = vunpack.c.l.b16 %v721
    %v3555 = vunpack.c.l.b16 %v722
    %v3556 = vunpack.c.l.b16 %v723
    %v3557 = vunpack.c.l.b16 %v724
    %v3558 = vunpack.c.l.b16 %v725
    %v3559 = vunpack.c.l.b16 %v726
    %v3560 = vunpack.c.l.b16 %v727
    %v3561 = vunpack.c.l.b16 %v728
    %v3562 = vunpack.c.l.b16 %v729
    %v3563 = vunpack.c.l.b16 %v730
    %v3564 = vunpack.c.l.b16 %v731
    %v3565 = vunpack.c.l.b16 %v732
    %v3566 = vunpack.c.l.b16 %v733
    %v3567 = vunpack.c.l.b16 %v734
    %v3568 = vunpack.c.l.b16 %v735
    %v3569 = vunpack.c.l.b16 %v736
    %v3570 = vunpack.c.l.b16 %v737
    %v3571 = vunpack.c.l.b16 %v738
    %v3572 = vunpack.c.l.b16 %v739
    %v3573 = vunpack.c.l.b16 %v740
    %v3574 = vunpack.c.l.b16 %v741
    %v3575 = vunpack.c.l.b16 %v742
    %v3576 = vunpack.c.l.b16 %v743
    %v3577 = vunpack.c.l.b16 %v744
    %v3578 = vunpack.c.l.b16 %v745
    %v3579 = vunpack.c.l.b16 %v746
    %v3580 = vunpack.c.l.b16 %v747
    %v3581 = vunpack.c.l.b16 %v748
    %v3582 = vunpack.c.l.b16 %v749
    %v3583 = vunpack.c.l.b16 %v750
    %v3584 = vunpack.c.l.b16 %v751
    %v3585 = vunpack.c.l.b16 %v752
    %v3586 = vunpack.c.l.b16 %v753
    %v3587 = vunpack.c.l.b16 %v754
    %v3588 = vunpack.c.l.b16 %v755
    %v3589 = vunpack.c.l.b16 %v756
    %v3590 = vunpack.c.l.b16 %v757
    %v3591 = vunpack.c.l.b16 %v758
    %v3592 = vunpack.c.l.b16 %v759
    %v3593 = vunpack.c.l.b16 %v760
    %v3594 = vunpack.c.l.b16 %v761
    %v3595 = vunpack.c.l.b16 %v762
    %v3596 = vunpack.c.l.b16 %v763
    %v3597 = vunpack.c.l.b16 %v764
    %v3598 = vunpack.c.l.b16 %v765
    %v3599 = vunpack.c.l.b16 %v766
    %v3600 = vunpack.c.l.b16 %v767
    %v3601 = vunpack.c.l.b16 %v768
    %v3602 = vunpack.c.l.b16 %v769
    %v3603 = vunpack.c.l.b16 %v770
    %v3604 = vunpack.c.l.b16 %v771
    %v3605 = vunpack.c.l.b16 %v772
    %v3606 = vunpack.c.l.b16 %v773
    %v3607 = vunpack.c.l.b16 %v774
    %v3608 = vunpack.c.l.b16 %v775
    %v3609 = vunpack.c.l.b16 %v776
    %v3610 = vunpack.c.l.b16 %v777
    %v3611 = vunpack.c.l.b16 %v778
    %v3612 = vunpack.c.l.b16 %v779
    %v3613 = vunpack.c.l.b16 %v780
    %v3614 = vunpack.c.l.b16 %v781
    %v3615 = vunpack.c.l.b16 %v782
    %v3616 = vunpack.c.l.b16 %v783
    %v3617 = vunpack.c.l.b16 %v784
    %v3618 = vunpack.c.l.b16 %v785
    %v3619 = vunpack.c.l.b16 %v786
    %v3620 = vunpack.c.l.b16 %v787
    %v3621 = vunpack.c.l.b16 %v788
    %v3622 = vunpack.c.l.b16 %v789
    %v3623 = vunpack.c.l.b16 %v790
    %v3624 = vunpack.c.l.b16 %v791
    %v3625 = vunpack.c.l.b16 %v792
    %v3626 = vunpack.c.l.b16 %v793
    %v3627 = vunpack.c.l.b16 %v794
    %v3628 = vunpack.c.l.b16 %v795
    %v3629 = vunpack.c.l.b16 %v796
    %v3630 = vunpack.c.l.b16 %v797
    %v3631 = vunpack.c.l.b16 %v798
    %v3632 = vunpack.c.l.b16 %v799
    %v3633 = vunpack.c.l.b16 %v800
    %v3634 = vunpack.c.l.b16 %v801
    %v3635 = vunpack.c.l.b16 %v802
    %v3636 = vunpack.c.l.b16 %v803
    %v3637 = vunpack.c.l.b16 %v804
    %v3638 = vunpack.c.l.b16 %v805
    %v3639 = vunpack.c.l.b16 %v806
    %v3640 = vunpack.c.l.b16 %v807
    %v3641 = vunpack.c.l.b16 %v808
    %v3642 = vunpack.c.l.b16 %v809
    %v3643 = vunpack.c.l.b16 %v810
    %v3644 = vunpack.c.l.b16 %v811
    %v3645 = vunpack.c.l.b16 %v812
    %v3646 = vunpack.c.l.b16 %v813
    %v3647 = vunpack.c.l.b16 %v814
    %v3648 = vunpack.c.l.b16 %v815
    %v3649 = vunpack.c.l.b16 %v816
    %v3650 = vunpack.c.l.b16 %v817
    %v3651 = vunpack.c.l.b16 %v818
    %v3652 = vunpack.c.l.b16 %v819
    %v3653 = vunpack.c.l.b16 %v820
    %v3654 = vunpack.c.l.b16 %v821
    %v3655 = vunpack.c.l.b16 %v822
    %v3656 = vunpack.c.l.b16 %v823
    %v3657 = vunpack.c.l.b16 %v824
    %v3658 = vunpack.c.l.b16 %v825
    %v3659 = vunpack.c.l.b16 %v826
    %v3660 = vunpack.c.l.b16 %v827
    %v3661 = vunpack.c.l.b16 %v828
    %v3662 = vunpack.c.l.b16 %v829
    %v3663 = vunpack.c.l.b16 %v830
    %v3664 = vunpack.c.l.b16 %v831
    %v3665 = vunpack.c.l.b16 %v832
    %v3666 = vunpack.c.l.b16 %v833
    %v3667 = vunpack.c.l.b16 %v834
    %v3668 = vunpack.c.l.b16 %v835
    %v3669 = vunpack.c.l.b16 %v836
    %v3670 = vunpack.c.l.b16 %v837
    %v3671 = vunpack.c.l.b16 %v838
    %v3672 = vunpack.c.l.b16 %v839
    %v3673 = vunpack.c.l.b16 %v840
    %v3674 = vunpack.c.l.b16 %v841
    %v3675 = vunpack.c.l.b16 %v842
    %v3676 = vunpack.c.l.b16 %v843
    %v3677 = vunpack.c.l.b16 %v844
    %v3678 = vunpack.c.l.b16 %v845
    %v3679 = vunpack.c.l.b16 %v846
    %v3680 = vunpack.c.l.b16 %v847
    %v3681 = vunpack.c.l.b16 %v848
    %v3682 = vunpack.c.l.b16 %v849
    %v3683 = vunpack.c.l.b16 %v850
    %v3684 = vunpack.c.l.b16 %v851
    %v3685 = vunpack.c.l.b16 %v852
    %v3686 = vunpack.c.l.b16 %v853
    %v3687 = vunpack.c.l.b16 %v854
    %v3688 = vunpack.c.l.b16 %v855
    %v3689 = vunpack.c.l.b16 %v856
    %v3690 = vunpack.c.l.b16 %v857
    %v3691 = vunpack.c.l.b16 %v858
    %v3692 = vunpack.c.l.b16 %v859
    %v3693 = vunpack.c.l.b16 %v860
    %v3694 = vunpack.c.l.b16 %v861
    %v3695 = vunpack.c.l.b16 %v862
    %v3696 = vunpack.c.l.b16 %v863
    %v3697 = vunpack.c.l.b16 %v864
    %v3698 = vunpack.c.l.b16 %v865
    %v3699 = vunpack.c.l.b16 %v866
    %v3700 = vunpack.c.l.b16 %v867
    %v3701 = vunpack.c.l.b16 %v868
    %v3702 = vunpack.c.l.b16 %v869
    %v3703 = vunpack.c.l.b16 %v870
    %v3704 = vunpack.c.l.b16 %v871
    %v3705 = vunpack.c.l.b16 %v872
    %v3706 = vunpack.c.l.b16 %v873
    %v3707 = vunpack.c.l.b16 %v874
    %v3708 = vunpack.c.l.b16 %v875
    %v3709 = vunpack.c.l.b16 %v876
    %v3710 = vunpack.c.l.b16 %v877
    %v3711 = vunpack.c.l.b16 %v878
    %v3712 = vunpack.c.l.b16 %v879
    %v3713 = vunpack.c.l.b16 %v880
    %v3714 = vunpack.c.l.b16 %v881
    %v3715 = vunpack.c.l.b16 %v882
    %v3716 = vunpack.c.l.b16 %v883
    %v3717 = vunpack.c.l.b16 %v884
    %v3718 = vunpack.c.l.b16 %v885
    %v3719 = vunpack.c.l.b16 %v886
    %v3720 = vunpack.c.l.b16 %v887
    %v3721 = vunpack.c.l.b16 %v888
    %v3722 = vunpack.c.l.b16 %v889
    %v3723 = vunpack.c.l.b16 %v890
    %v3724 = vunpack.c.l.b16 %v891
    %v3725 = vunpack.c.l.b16 %v892
    %v3726 = vunpack.c.l.b16 %v893
    %v3727 = vunpack.c.l.b16 %v894
    %v3728 = vunpack.c.l.b16 %v895
    %v3729 = vunpack.c.l.b16 %v896
    %v3730 = vunpack.c.l.b16 %v897
    %v3731 = vunpack.c.l.b16 %v898
    %v3732 = vunpack.c.l.b16 %v899
    %v3733 = vunpack.c.l.b16 %v900
    %v3734 = vunpack.c.l.b16 %v901
    %v3735 = vunpack.c.l.b16 %v902
    %v3736 = vunpack.c.l.b16 %v903
    %v3737 = vunpack.c.l.b16 %v904
    %v3738 = vunpack.c.l.b16 %v905
    %v3739 = vunpack.c.l.b16 %v906
    %v3740 = vunpack.c.l.b16 %v907
    %v3741 = vunpack.c.l.b16 %v908
    %v3742 = vunpack.c.l.b16 %v909
    %v3743 = vunpack.c.l.b16 %v910
    %v3744 = vunpack.c.l.b16 %v911
    %v3745 = vunpack.c.l.b16 %v912
    %v3746 = vunpack.c.l.b16 %v913
    %v3747 = vunpack.c.l.b16 %v914
    %v3748 = vunpack.c.l.b16 %v915
    %v3749 = vunpack.c.l.b16 %v916
    %v3750 = vunpack.c.l.b16 %v917
    %v3751 = vunpack.c.l.b16 %v918
    %v3752 = vunpack.c.l.b16 %v919
    %v3753 = vunpack.c.l.b16 %v920
    %v3754 = vunpack.c.l.b16 %v921
    %v3755 = vunpack.c.l.b16 %v922
    %v3756 = vunpack.c.l.b16 %v923
    %v3757 = vunpack.c.l.b16 %v924
    %v3758 = vunpack.c.l.b16 %v925
    %v3759 = vunpack.c.l.b16 %v926
    %v3760 = vunpack.c.l.b16 %v927
    %v3761 = vunpack.c.l.b16 %v928
    %v3762 = vunpack.c.l.b16 %v929
    %v3763 = vunpack.c.l.b16 %v930
    %v3764 = vunpack.c.l.b16 %v931
    %v3765 = vunpack.c.l.b16 %v932
    %v3766 = vunpack.c.l.b16 %v933
    %v3767 = vunpack.c.l.b16 %v934
    %v3768 = vunpack.c.l.b16 %v935
    %v3769 = vunpack.c.l.b16 %v936
    %v3770 = vunpack.c.l.b16 %v937
    %v3771 = vunpack.c.l.b16 %v938
    %v3772 = vunpack.c.l.b16 %v939
    %v3773 = vunpack.c.l.b16 %v940
    %v3774 = vunpack.c.l.b16 %v941
    %v3775 = vunpack.c.l.b16 %v942
    %v3776 = vunpack.c.l.b16 %v943
    %v3777 = vunpack.c.l.b16 %v944
    %v3778 = vunpack.c.l.b16 %v945
    %v3779 = vunpack.c.l.b16 %v946
    %v3780 = vunpack.c.l.b16 %v947
    %v3781 = vunpack.c.l.b16 %v948
    %v3782 = vunpack.c.l.b16 %v949
    %v3783 = vunpack.c.l.b16 %v950
    %v3784 = vunpack.c.l.b16 %v951
    %v3785 = vunpack.c.l.b16 %v952
    %v3786 = vunpack.c.l.b16 %v953
    %v3787 = vunpack.c.l.b16 %v954
    %v3788 = vunpack.c.l.b16 %v955
    %v3789 = vunpack.c.l.b16 %v956
    %v3790 = vunpack.c.l.b16 %v957
    %v3791 = vunpack.c.l.b16 %v958
    %v3792 = vunpack.c.l.b16 %v959
    %v3793 = vunpack.c.l.b16 %v960
    %v3794 = vunpack.c.l.b16 %v961
    %v3795 = vunpack.c.l.b16 %v962
    %v3796 = vunpack.c.l.b16 %v963
    %v3797 = vunpack.c.l.b16 %v964
    %v3798 = vunpack.c.l.b16 %v965
    %v3799 = vunpack.c.l.b16 %v966
    %v3800 = vunpack.c.l.b16 %v967
    %v3801 = vunpack.c.l.b16 %v968
    %v3802 = vunpack.c.l.b16 %v969
    %v3803 = vunpack.c.l.b16 %v970
    %v3804 = vunpack.c.l.b16 %v971
    %v3805 = vunpack.c.l.b16 %v972
    %v3806 = vunpack.c.l.b16 %v973
    %v3807 = vunpack.c.l.b16 %v974
    %v3808 = vunpack.c.l.b16 %v975
    %v3809 = vunpack.c.l.b16 %v976
    %v3810 = vunpack.c.l.b16 %v977
    %v3811 = vunpack.c.l.b16 %v978
    %v3812 = vunpack.c.l.b16 %v979
    %v3813 = vunpack.c.l.b16 %v980
    %v3814 = vunpack.c.l.b16 %v981
    %v3815 = vunpack.c.l.b16 %v982
    %v3816 = vunpack.c.l.b16 %v983
    %v3817 = vunpack.c.l.b16 %v984
    %v3818 = vunpack.c.l.b16 %v985
    %v3819 = vunpack.c.l.b16 %v986
    %v3820 = vunpack.c.l.b16 %v987
    %v3821 = vunpack.c.l.b16 %v988
    %v3822 = vunpack.c.l.b16 %v989
    %v3823 = vunpack.c.l.b16 %v990
    %v3824 = vunpack.c.l.b16 %v991
    %v3825 = vunpack.c.l.b16 %v992
    %v3826 = vunpack.c.l.b16 %v993
    %v3827 = vunpack.c.l.b16 %v994
    %v3828 = vunpack.c.l.b16 %v995
    %v3829 = vunpack.c.l.b16 %v996
    %v3830 = vunpack.c.l.b16 %v997
    %v3831 = vunpack.c.l.b16 %v998
    %v3832 = vunpack.c.l.b16 %v999
    %v3833 = vunpack.c.l.b16 %v1000
    %v3834 = vunpack.c.l.b16 %v1001
    %v3835 = vunpack.c.l.b16 %v1002
    %v3836 = vunpack.c.l.b16 %v1003
    %v3837 = vunpack.c.l.b16 %v1004
    %v3838 = vunpack.c.l.b16 %v1005
    %v3839 = vunpack.c.l.b16 %v1006
    %v3840 = vunpack.c.l.b16 %v1007
    %v3841 = vunpack.c.l.b16 %v1008
    %v3842 = vunpack.c.l.b16 %v1009
    %v3843 = vunpack.c.l.b16 %v1010
    %v3844 = vunpack.c.l.b16 %v1011
    %v3845 = vunpack.c.l.b16 %v1012
    %v3846 = vunpack.c.l.b16 %v1013
    %v3847 = vunpack.c.l.b16 %v1014
    %v3848 = vunpack.c.l.b16 %v1015
    %v3849 = vunpack.c.l.b16 %v1016
    %v3850 = vunpack.c.l.b16 %v1017
    %v3851 = vunpack.c.l.b16 %v1018
    %v3852 = vunpack.c.l.b16 %v1019
    %v3853 = vunpack.c.l.b16 %v1020
    %v3854 = vunpack.c.l.b16 %v1021
    %v3855 = vunpack.c.l.b16 %v1022
    %v3856 = vunpack.c.l.b16 %v1023
    %v3857 = vunpack.c.l.b16 %v1024
    %v3858 = vunpack.c.l.b16 %v1025
    %v3859 = vunpack.c.l.b16 %v1026
    %v3860 = vunpack.c.l.b16 %v1027
    %v3861 = vunpack.c.l.b16 %v1028
    %v3862 = vunpack.c.l.b16 %v1029
    %v3863 = vunpack.c.l.b16 %v1030
    %v3864 = vunpack.c.l.b16 %v1031
    %v3865 = vunpack.c.l.b16 %v1032
    %v3866 = vunpack.c.l.b16 %v1033
    %v3867 = vunpack.c.l.b16 %v1034
    %v3868 = vunpack.c.l.b16 %v1035
    %v3869 = vunpack.c.l.b16 %v1036
    %v3870 = vunpack.c.l.b16 %v1037
    %v3871 = vunpack.c.l.b16 %v1038
    %v3872 = vunpack.c.l.b16 %v1039
    %v3873 = vunpack.c.l.b16 %v1040
    %v3874 = vunpack.c.l.b16 %v1041
    %v3875 = vunpack.c.l.b16 %v1042
    %v3876 = vunpack.c.l.b16 %v1043
    %v3877 = vunpack.c.l.b16 %v1044
    %v3878 = vunpack.c.l.b16 %v1045
    %v3879 = vunpack.c.l.b16 %v1046
    %v3880 = vunpack.c.l.b16 %v1047
    %v3881 = vunpack.c.l.b16 %v1048
    %v3882 = vunpack.c.l.b16 %v1049
    %v3883 = vunpack.c.l.b16 %v1050
    %v3884 = vunpack.c.l.b16 %v1051
    %v3885 = vunpack.c.l.b16 %v1052
    %v3886 = vunpack.c.l.b16 %v1053
    %v3887 = vunpack.c.l.b16 %v1054
    %v3888 = vunpack.c.l.b16 %v1055
    %v3889 = vunpack.c.l.b16 %v1056
    %v3890 = vunpack.c.l.b16 %v1057
    %v3891 = vunpack.c.l.b16 %v1058
    %v3892 = vunpack.c.l.b16 %v1059
    %v3893 = vunpack.c.l.b16 %v1060
    %v3894 = vunpack.c.l.b16 %v1061
    %v3895 = vunpack.c.l.b16 %v1062
    %v3896 = vunpack.c.l.b16 %v1063
    %v3897 = vunpack.c.l.b16 %v1064
    %v3898 = vunpack.c.l.b16 %v1065
    %v3899 = vunpack.c.l.b16 %v1066
    %v3900 = vunpack.c.l.b16 %v1067
    %v3901 = vunpack.c.l.b16 %v1068
    %v3902 = vunpack.c.l.b16 %v1069
    %v3903 = vunpack.c.l.b16 %v1070
    %v3904 = vunpack.c.l.b16 %v1071
    %v3905 = vunpack.c.l.b16 %v1072
    %v3906 = vunpack.c.l.b16 %v1073
    %v3907 = vunpack.c.l.b16 %v1074
    %v3908 = vunpack.c.l.b16 %v1075
    %v3909 = vunpack.c.l.b16 %v1076
    %v3910 = vunpack.c.l.b16 %v1077
    %v3911 = vunpack.c.l.b16 %v1078
    %v3912 = vunpack.c.l.b16 %v1079
    %v3913 = vunpack.c.l.b16 %v1080
    %v3914 = vunpack.c.l.b16 %v1081
    %v3915 = vunpack.c.l.b16 %v1082
    %v3916 = vunpack.c.l.b16 %v1083
    %v3917 = vunpack.c.l.b16 %v1084
    %v3918 = vunpack.c.l.b16 %v1085
    %v3919 = vunpack.c.l.b16 %v1086
    %v3920 = vunpack.c.l.b16 %v1087
    %v3921 = vunpack.c.l.b16 %v1088
    %v3922 = vunpack.c.l.b16 %v1089
    %v3923 = vunpack.c.l.b16 %v1090
    %v3924 = vunpack.c.l.b16 %v1091
    %v3925 = vunpack.c.l.b16 %v1092
    %v3926 = vunpack.c.l.b16 %v1093
    %v3927 = vunpack.c.l.b16 %v1094
    %v3928 = vunpack.c.l.b16 %v1095
    %v3929 = vunpack.c.l.b16 %v1096
    %v3930 = vunpack.c.l.b16 %v1097
    %v3931 = vunpack.c.l.b16 %v1098
    %v3932 = vunpack.c.l.b16 %v1099
    %v3933 = vunpack.c.l.b16 %v1100
    %v3934 = vunpack.c.l.b16 %v1101
    %v3935 = vunpack.c.l.b16 %v1102
    %v3936 = vunpack.c.l.b16 %v1103
    %v3937 = vunpack.c.l.b16 %v1104
    %v3938 = vunpack.c.l.b16 %v1105
    %v3939 = vunpack.c.l.b16 %v1106
    %v3940 = vunpack.c.l.b16 %v1107
    %v3941 = vunpack.c.l.b16 %v1108
    %v3942 = vunpack.c.l.b16 %v1109
    %v3943 = vunpack.c.l.b16 %v1110
    %v3944 = vunpack.c.l.b16 %v1111
    %v3945 = vunpack.c.l.b16 %v1112
    %v3946 = vunpack.c.l.b16 %v1113
    %v3947 = vunpack.c.l.b16 %v1114
    %v3948 = vunpack.c.l.b16 %v1115
    %v3949 = vunpack.c.l.b16 %v1116
    %v3950 = vunpack.c.l.b16 %v1117
    %v3951 = vunpack.c.l.b16 %v1118
    %v3952 = vunpack.c.l.b16 %v1119
    %v3953 = vunpack.c.l.b16 %v1120
    %v3954 = vunpack.c.l.b16 %v1121
    %v3955 = vunpack.c.l.b16 %v1122
    %v3956 = vunpack.c.l.b16 %v1123
    %v3957 = vunpack.c.l.b16 %v1124
    %v3958 = vunpack.c.l.b16 %v1125
    %v3959 = vunpack.c.l.b16 %v1126
    %v3960 = vunpack.c.l.b16 %v1127
    %v3961 = vunpack.c.l.b16 %v1128
    %v3962 = vunpack.c.l.b16 %v1129
    %v3963 = vunpack.c.l.b16 %v1130
    %v3964 = vunpack.c.l.b16 %v1131
    %v3965 = vunpack.c.l.b16 %v1132
    %v3966 = vunpack.c.l.b16 %v1133
    %v3967 = vunpack.c.l.b16 %v1134
    %v3968 = vunpack.c.l.b16 %v1135
    %v3969 = vunpack.c.l.b16 %v1136
    %v3970 = vunpack.c.l.b16 %v1137
    %v3971 = vunpack.c.l.b16 %v1138
    %v3972 = vunpack.c.l.b16 %v1139
    %v3973 = vunpack.c.l.b16 %v1140
    %v3974 = vunpack.c.l.b16 %v1141
    %v3975 = vunpack.c.l.b16 %v1142
    %v3976 = vunpack.c.l.b16 %v1143
    %v3977 = vunpack.c.l.b16 %v1144
    %v3978 = vunpack.c.l.b16 %v1145
    %v3979 = vunpack.c.l.b16 %v1146
    %v3980 = vunpack.c.l.b16 %v1147
    %v3981 = vunpack.c.l.b16 %v1148
    %v3982 = vunpack.c.l.b16 %v1149
    %v3983 = vunpack.c.l.b16 %v1150
    %v3984 = vunpack.c.l.b16 %v1151
    %v3985 = vunpack.c.l.b16 %v1152
    %v3986 = vunpack.c.l.b16 %v1153
    %v3987 = vunpack.c.l.b16 %v1154
    %v3988 = vunpack.c.l.b16 %v1155
    %v3989 = vunpack.c.l.b16 %v1156
    %v3990 = vunpack.c.l.b16 %v1157
    %v3991 = vunpack.c.l.b16 %v1158
    %v3992 = vunpack.c.l.b16 %v1159
    %v3993 = vunpack.c.l.b16 %v1160
    %v3994 = vunpack.c.l.b16 %v1161
    %v3995 = vunpack.c.l.b16 %v1162
    %v3996 = vunpack.c.l.b16 %v1163
    %v3997 = vunpack.c.l.b16 %v1164
    %v3998 = vunpack.c.l.b16 %v1165
    %v3999 = vunpack.c.l.b16 %v1166
    %v4000 = vunpack.c.l.b16 %v1167
    %v4001 = vunpack.c.l.b16 %v1168
    %v4002 = vunpack.c.l.b16 %v1169
    %v4003 = vunpack.c.l.b16 %v1170
    %v4004 = vunpack.c.l.b16 %v1171
    %v4005 = vunpack.c.l.b16 %v1172
    %v4006 = vunpack.c.l.b16 %v1173
    %v4007 = vunpack.c.l.b16 %v1174
    %v4008 = vunpack.c.l.b16 %v1175
    %v4009 = vunpack.c.l.b16 %v1176
    %v4010 = vunpack.c.l.b16 %v1177
    %v4011 = vunpack.c.l.b16 %v1178
    %v4012 = vunpack.c.l.b16 %v1179
    %v4013 = vunpack.c.l.b16 %v1180
    %v4014 = vunpack.c.l.b16 %v1181
    %v4015 = vunpack.c.l.b16 %v1182
    %v4016 = vpack.c.b16 %v2865, %v2864
    %v4017 = vpack.c.b16 %v2867, %v2866
    %v4018 = vpack.c.b16 %v2869, %v2868
    %v4019 = vpack.c.b16 %v2871, %v2870
    %v4020 = vpack.c.b16 %v2873, %v2872
    %v4021 = vpack.c.b16 %v2875, %v2874
    %v4022 = vpack.c.b16 %v2877, %v2876
    %v4023 = vpack.c.b16 %v2879, %v2878
    %v4024 = vpack.c.b16 %v2881, %v2880
    %v4025 = vpack.c.b16 %v2883, %v2882
    %v4026 = vpack.c.b16 %v2885, %v2884
    %v4027 = vpack.c.b16 %v2887, %v2886
    %v4028 = vpack.c.b16 %v2889, %v2888
    %v4029 = vpack.c.b16 %v2891, %v2890
    %v4030 = vpack.c.b16 %v2893, %v2892
    %v4031 = vpack.c.b16 %v2895, %v2894
    %v4032 = vpack.c.b16 %v2897, %v2896
    %v4033 = vpack.c.b16 %v2899, %v2898
    %v4034 = vpack.c.b16 %v2901, %v2900
    %v4035 = vpack.c.b16 %v2903, %v2902
    %v4036 = vpack.c.b16 %v2905, %v2904
    %v4037 = vpack.c.b16 %v2907, %v2906
    %v4038 = vpack.c.b16 %v2909, %v2908
    %v4039 = vpack.c.b16 %v2911, %v2910
    %v4040 = vpack.c.b16 %v2913, %v2912
    %v4041 = vpack.c.b16 %v2915, %v2914
    %v4042 = vpack.c.b16 %v2917, %v2916
    %v4043 = vpack.c.b16 %v2919, %v2918
    %v4044 = vpack.c.b16 %v2921, %v2920
    %v4045 = vpack.c.b16 %v2923, %v2922
    %v4046 = vpack.c.b16 %v2925, %v2924
    %v4047 = vpack.c.b16 %v2927, %v2926
    %v4048 = vpack.c.b16 %v2929, %v2928
    %v4049 = vpack.c.b16 %v2931, %v2930
    %v4050 = vpack.c.b16 %v2933, %v2932
    %v4051 = vpack.c.b16 %v2935, %v2934
    %v4052 = vpack.c.b16 %v2937, %v2936
    %v4053 = vpack.c.b16 %v2939, %v2938
    %v4054 = vpack.c.b16 %v2941, %v2940
    %v4055 = vpack.c.b16 %v2943, %v2942
    %v4056 = vpack.c.b16 %v2945, %v2944
    %v4057 = vpack.c.b16 %v2947, %v2946
    %v4058 = vpack.c.b16 %v2949, %v2948
    %v4059 = vpack.c.b16 %v2951, %v2950
    %v4060 = vpack.c.b16 %v2953, %v2952
    %v4061 = vpack.c.b16 %v2955, %v2954
    %v4062 = vpack.c.b16 %v2957, %v2956
    %v4063 = vpack.c.b16 %v2959, %v2958
    %v4064 = vpack.c.b16 %v2961, %v2960
    %v4065 = vpack.c.b16 %v2963, %v2962
    %v4066 = vpack.c.b16 %v2965, %v2964
    %v4067 = vpack.c.b16 %v2967, %v2966
    %v4068 = vpack.c.b16 %v2969, %v2968
    %v4069 = vpack.c.b16 %v2971, %v2970
    %v4070 = vpack.c.b16 %v2973, %v2972
    %v4071 = vpack.c.b16 %v2975, %v2974
    %v4072 = vpack.c.b16 %v2977, %v2976
    %v4073 = vpack.c.b16 %v2979, %v2978
    %v4074 = vpack.c.b16 %v2981, %v2980
    %v4075 = vpack.c.b16 %v2983, %v2982
    %v4076 = vpack.c.b16 %v2985, %v2984
    %v4077 = vpack.c.b16 %v2987, %v2986
    %v4078 = vpack.c.b16 %v2989, %v2988
    %v4079 = vpack.c.b16 %v2991, %v2990
    %v4080 = vpack.c.b16 %v2993, %v2992
    %v4081 = vpack.c.b16 %v2995, %v2994
    %v4082 = vpack.c.b16 %v2997, %v2996
    %v4083 = vpack.c.b16 %v2999, %v2998
    %v4084 = vpack.c.b16 %v3001, %v3000
    %v4085 = vpack.c.b16 %v3003, %v3002
    %v4086 = vpack.c.b16 %v3005, %v3004
    %v4087 = vpack.c.b16 %v3007, %v3006
    %v4088 = vpack.c.b16 %v3009, %v3008
    %v4089 = vpack.c.b16 %v3011, %v3010
    %v4090 = vpack.c.b16 %v3013, %v3012
    %v4091 = vpack.c.b16 %v3015, %v3014
    %v4092 = vpack.c.b16 %v3017, %v3016
    %v4093 = vpack.c.b16 %v3019, %v3018
    %v4094 = vpack.c.b16 %v3021, %v3020
    %v4095 = vpack.c.b16 %v3023, %v3022
    %v4096 = vpack.c.b16 %v3025, %v3024
    %v4097 = vpack.c.b16 %v3027, %v3026
    %v4098 = vpack.c.b16 %v3029, %v3028
    %v4099 = vpack.c.b16 %v3031, %v3030
    %v4100 = vpack.c.b16 %v3033, %v3032
    %v4101 = vpack.c.b16 %v3035, %v3034
    %v4102 = vpack.c.b16 %v3037, %v3036
    %v4103 = vpack.c.b16 %v3039, %v3038
    %v4104 = vpack.c.b16 %v3041, %v3040
    %v4105 = vpack.c.b16 %v3043, %v3042
    %v4106 = vpack.c.b16 %v3045, %v3044
    %v4107 = vpack.c.b16 %v3047, %v3046
    %v4108 = vpack.c.b16 %v3049, %v3048
    %v4109 = vpack.c.b16 %v3051, %v3050
    %v4110 = vpack.c.b16 %v3053, %v3052
    %v4111 = vpack.c.b16 %v3055, %v3054
    %v4112 = vpack.c.b16 %v3057, %v3056
    %v4113 = vpack.c.b16 %v3059, %v3058
    %v4114 = vpack.c.b16 %v3061, %v3060
    %v4115 = vpack.c.b16 %v3063, %v3062
    %v4116 = vpack.c.b16 %v3065, %v3064
    %v4117 = vpack.c.b16 %v3067, %v3066
    %v4118 = vpack.c.b16 %v3069, %v3068
    %v4119 = vpack.c.b16 %v3071, %v3070
    %v4120 = vpack.c.b16 %v3073, %v3072
    %v4121 = vpack.c.b16 %v3075, %v3074
    %v4122 = vpack.c.b16 %v3077, %v3076
    %v4123 = vpack.c.b16 %v3079, %v3078
    %v4124 = vpack.c.b16 %v3081, %v3080
    %v4125 = vpack.c.b16 %v3083, %v3082
    %v4126 = vpack.c.b16 %v3085, %v3084
    %v4127 = vpack.c.b16 %v3087, %v3086
    %v4128 = vpack.c.b16 %v3089, %v3088
    %v4129 = vpack.c.b16 %v3091, %v3090
    %v4130 = vpack.c.b16 %v3093, %v3092
    %v4131 = vpack.c.b16 %v3095, %v3094
    %v4132 = vpack.c.b16 %v3097, %v3096
    %v4133 = vpack.c.b16 %v3099, %v3098
    %v4134 = vpack.c.b16 %v3101, %v3100
    %v4135 = vpack.c.b16 %v3103, %v3102
    %v4136 = vpack.c.b16 %v3105, %v3104
    %v4137 = vpack.c.b16 %v3107, %v3106
    %v4138 = vpack.c.b16 %v3109, %v3108
    %v4139 = vpack.c.b16 %v3111, %v3110
    %v4140 = vpack.c.b16 %v3113, %v3112
    %v4141 = vpack.c.b16 %v3115, %v3114
    %v4142 = vpack.c.b16 %v3117, %v3116
    %v4143 = vpack.c.b16 %v3119, %v3118
    %v4144 = vpack.c.b16 %v3121, %v3120
    %v4145 = vpack.c.b16 %v3123, %v3122
    %v4146 = vpack.c.b16 %v3125, %v3124
    %v4147 = vpack.c.b16 %v3127, %v3126
    %v4148 = vpack.c.b16 %v3129, %v3128
    %v4149 = vpack.c.b16 %v3131, %v3130
    %v4150 = vpack.c.b16 %v3133, %v3132
    %v4151 = vpack.c.b16 %v3135, %v3134
    %v4152 = vpack.c.b16 %v3137, %v3136
    %v4153 = vpack.c.b16 %v3139, %v3138
    %v4154 = vpack.c.b16 %v3141, %v3140
    %v4155 = vpack.c.b16 %v3143, %v3142
    %v4156 = vpack.c.b16 %v3145, %v3144
    %v4157 = vpack.c.b16 %v3147, %v3146
    %v4158 = vpack.c.b16 %v3149, %v3148
    %v4159 = vpack.c.b16 %v3151, %v3150
    %v4160 = vpack.c.b16 %v3153, %v3152
    %v4161 = vpack.c.b16 %v3155, %v3154
    %v4162 = vpack.c.b16 %v3157, %v3156
    %v4163 = vpack.c.b16 %v3159, %v3158
    %v4164 = vpack.c.b16 %v3161, %v3160
    %v4165 = vpack.c.b16 %v3163, %v3162
    %v4166 = vpack.c.b16 %v3165, %v3164
    %v4167 = vpack.c.b16 %v3167, %v3166
    %v4168 = vpack.c.b16 %v3169, %v3168
    %v4169 = vpack.c.b16 %v3171, %v3170
    %v4170 = vpack.c.b16 %v3173, %v3172
    %v4171 = vpack.c.b16 %v3175, %v3174
    %v4172 = vpack.c.b16 %v3177, %v3176
    %v4173 = vpack.c.b16 %v3179, %v3178
    %v4174 = vpack.c.b16 %v3181, %v3180
    %v4175 = vpack.c.b16 %v3183, %v3182
    %v4176 = vpack.c.b16 %v3185, %v3184
    %v4177 = vpack.c.b16 %v3187, %v3186
    %v4178 = vpack.c.b16 %v3189, %v3188
    %v4179 = vpack.c.b16 %v3191, %v3190
    %v4180 = vpack.c.b16 %v3193, %v3192
    %v4181 = vpack.c.b16 %v3195, %v3194
    %v4182 = vpack.c.b16 %v3197, %v3196
    %v4183 = vpack.c.b16 %v3199, %v3198
    %v4184 = vpack.c.b16 %v3201, %v3200
    %v4185 = vpack.c.b16 %v3203, %v3202
    %v4186 = vpack.c.b16 %v3205, %v3204
    %v4187 = vpack.c.b16 %v3207, %v3206
    %v4188 = vpack.c.b16 %v3209, %v3208
    %v4189 = vpack.c.b16 %v3211, %v3210
    %v4190 = vpack.c.b16 %v3213, %v3212
    %v4191 = vpack.c.b16 %v3215, %v3214
    %v4192 = vpack.c.b16 %v3217, %v3216
    %v4193 = vpack.c.b16 %v3219, %v3218
    %v4194 = vpack.c.b16 %v3221, %v3220
    %v4195 = vpack.c.b16 %v3223, %v3222
    %v4196 = vpack.c.b16 %v3225, %v3224
    %v4197 = vpack.c.b16 %v3227, %v3226
    %v4198 = vpack.c.b16 %v3229, %v3228
    %v4199 = vpack.c.b16 %v3231, %v3230
    %v4200 = vpack.c.b16 %v3233, %v3232
    %v4201 = vpack.c.b16 %v3235, %v3234
    %v4202 = vpack.c.b16 %v3237, %v3236
    %v4203 = vpack.c.b16 %v3239, %v3238
    %v4204 = vpack.c.b16 %v3241, %v3240
    %v4205 = vpack.c.b16 %v3243, %v3242
    %v4206 = vpack.c.b16 %v3245, %v3244
    %v4207 = vpack.c.b16 %v3247, %v3246
    %v4208 = vpack.c.b16 %v3249, %v3248
    %v4209 = vpack.c.b16 %v3251, %v3250
    %v4210 = vpack.c.b16 %v3253, %v3252
    %v4211 = vpack.c.b16 %v3255, %v3254
    %v4212 = vpack.c.b16 %v3257, %v3256
    %v4213 = vpack.c.b16 %v3259, %v3258
    %v4214 = vpack.c.b16 %v3261, %v3260
    %v4215 = vpack.c.b16 %v3263, %v3262
    %v4216 = vpack.c.b16 %v3265, %v3264
    %v4217 = vpack.c.b16 %v3267, %v3266
    %v4218 = vpack.c.b16 %v3269, %v3268
    %v4219 = vpack.c.b16 %v3271, %v3270
    %v4220 = vpack.c.b16 %v3273, %v3272
    %v4221 = vpack.c.b16 %v3275, %v3274
    %v4222 = vpack.c.b16 %v3277, %v3276
    %v4223 = vpack.c.b16 %v3279, %v3278
    %v4224 = vpack.c.b16 %v3281, %v3280
    %v4225 = vpack.c.b16 %v3283, %v3282
    %v4226 = vpack.c.b16 %v3285, %v3284
    %v4227 = vpack.c.b16 %v3287, %v3286
    %v4228 = vpack.c.b16 %v3289, %v3288
    %v4229 = vpack.c.b16 %v3291, %v3290
    %v4230 = vpack.c.b16 %v3293, %v3292
    %v4231 = vpack.c.b16 %v3295, %v3294
    %v4232 = vpack.c.b16 %v3297, %v3296
    %v4233 = vpack.c.b16 %v3299, %v3298
    %v4234 = vpack.c.b16 %v3301, %v3300
    %v4235 = vpack.c.b16 %v3303, %v3302
    %v4236 = vpack.c.b16 %v3305, %v3304
    %v4237 = vpack.c.b16 %v3307, %v3306
    %v4238 = vpack.c.b16 %v3309, %v3308
    %v4239 = vpack.c.b16 %v3311, %v3310
    %v4240 = vpack.c.b16 %v3313, %v3312
    %v4241 = vpack.c.b16 %v3315, %v3314
    %v4242 = vpack.c.b16 %v3317, %v3316
    %v4243 = vpack.c.b16 %v3319, %v3318
    %v4244 = vpack.c.b16 %v3321, %v3320
    %v4245 = vpack.c.b16 %v3323, %v3322
    %v4246 = vpack.c.b16 %v3325, %v3324
    %v4247 = vpack.c.b16 %v3327, %v3326
    %v4248 = vpack.c.b16 %v3329, %v3328
    %v4249 = vpack.c.b16 %v3331, %v3330
    %v4250 = vpack.c.b16 %v3333, %v3332
    %v4251 = vpack.c.b16 %v3335, %v3334
    %v4252 = vpack.c.b16 %v3337, %v3336
    %v4253 = vpack.c.b16 %v3339, %v3338
    %v4254 = vpack.c.b16 %v3341, %v3340
    %v4255 = vpack.c.b16 %v3343, %v3342
    %v4256 = vpack.c.b16 %v3345, %v3344
    %v4257 = vpack.c.b16 %v3347, %v3346
    %v4258 = vpack.c.b16 %v3349, %v3348
    %v4259 = vpack.c.b16 %v3351, %v3350
    %v4260 = vpack.c.b16 %v3353, %v3352
    %v4261 = vpack.c.b16 %v3355, %v3354
    %v4262 = vpack.c.b16 %v3357, %v3356
    %v4263 = vpack.c.b16 %v3359, %v3358
    %v4264 = vpack.c.b16 %v3361, %v3360
    %v4265 = vpack.c.b16 %v3363, %v3362
    %v4266 = vpack.c.b16 %v3365, %v3364
    %v4267 = vpack.c.b16 %v3367, %v3366
    %v4268 = vpack.c.b16 %v3369, %v3368
    %v4269 = vpack.c.b16 %v3371, %v3370
    %v4270 = vpack.c.b16 %v3373, %v3372
    %v4271 = vpack.c.b16 %v3375, %v3374
    %v4272 = vpack.c.b16 %v3377, %v3376
    %v4273 = vpack.c.b16 %v3379, %v3378
    %v4274 = vpack.c.b16 %v3381, %v3380
    %v4275 = vpack.c.b16 %v3383, %v3382
    %v4276 = vpack.c.b16 %v3385, %v3384
    %v4277 = vpack.c.b16 %v3387, %v3386
    %v4278 = vpack.c.b16 %v3389, %v3388
    %v4279 = vpack.c.b16 %v3391, %v3390
    %v4280 = vpack.c.b16 %v3393, %v3392
    %v4281 = vpack.c.b16 %v3395, %v3394
    %v4282 = vpack.c.b16 %v3397, %v3396
    %v4283 = vpack.c.b16 %v3399, %v3398
    %v4284 = vpack.c.b16 %v3401, %v3400
    %v4285 = vpack.c.b16 %v3403, %v3402
    %v4286 = vpack.c.b16 %v3405, %v3404
    %v4287 = vpack.c.b16 %v3407, %v3406
    %v4288 = vpack.c.b16 %v3409, %v3408
    %v4289 = vpack.c.b16 %v3411, %v3410
    %v4290 = vpack.c.b16 %v3413, %v3412
    %v4291 = vpack.c.b16 %v3415, %v3414
    %v4292 = vpack.c.b16 %v3417, %v3416
    %v4293 = vpack.c.b16 %v3419, %v3418
    %v4294 = vpack.c.b16 %v3421, %v3420
    %v4295 = vpack.c.b16 %v3423, %v3422
    %v4296 = vpack.c.b16 %v3425, %v3424
    %v4297 = vpack.c.b16 %v3427, %v3426
    %v4298 = vpack.c.b16 %v3429, %v3428
    %v4299 = vpack.c.b16 %v3431, %v3430
    %v4300 = vpack.c.b16 %v3433, %v3432
    %v4301 = vpack.c.b16 %v3435, %v3434
    %v4302 = vpack.c.b16 %v3437, %v3436
    %v4303 = vpack.c.b16 %v3439, %v3438
    %v4304 = vpack.c.b16 %v3441, %v3440
    %v4305 = vpack.c.b16 %v3443, %v3442
    %v4306 = vpack.c.b16 %v3445, %v3444
    %v4307 = vpack.c.b16 %v3447, %v3446
    %v4308 = vpack.c.b16 %v3449, %v3448
    %v4309 = vpack.c.b16 %v3451, %v3450
    %v4310 = vpack.c.b16 %v3453, %v3452
    %v4311 = vpack.c.b16 %v3455, %v3454
    %v4312 = vpack.c.b16 %v3457, %v3456
    %v4313 = vpack.c.b16 %v3459, %v3458
    %v4314 = vpack.c.b16 %v3461, %v3460
    %v4315 = vpack.c.b16 %v3463, %v3462
    %v4316 = vpack.c.b16 %v3465, %v3464
    %v4317 = vpack.c.b16 %v3467, %v3466
    %v4318 = vpack.c.b16 %v3469, %v3468
    %v4319 = vpack.c.b16 %v3471, %v3470
    %v4320 = vpack.c.b16 %v3473, %v3472
    %v4321 = vpack.c.b16 %v3475, %v3474
    %v4322 = vpack.c.b16 %v3477, %v3476
    %v4323 = vpack.c.b16 %v3479, %v3478
    %v4324 = vpack.c.b16 %v3481, %v3480
    %v4325 = vpack.c.b16 %v3483, %v3482
    %v4326 = vpack.c.b16 %v3485, %v3484
    %v4327 = vpack.c.b16 %v3487, %v3486
    %v4328 = vpack.c.b16 %v3489, %v3488
    %v4329 = vpack.c.b16 %v3491, %v3490
    %v4330 = vpack.c.b16 %v3493, %v3492
    %v4331 = vpack.c.b16 %v3495, %v3494
    %v4332 = vpack.c.b16 %v3497, %v3496
    %v4333 = vpack.c.b16 %v3499, %v3498
    %v4334 = vpack.c.b16 %v3501, %v3500
    %v4335 = vpack.c.b16 %v3503, %v3502
    %v4336 = vpack.c.b16 %v3505, %v3504
    %v4337 = vpack.c.b16 %v3507, %v3506
    %v4338 = vpack.c.b16 %v3509, %v3508
    %v4339 = vpack.c.b16 %v3511, %v3510
    %v4340 = vpack.c.b16 %v3513, %v3512
    %v4341 = vpack.c.b16 %v3515, %v3514
    %v4342 = vpack.c.b16 %v3517, %v3516
    %v4343 = vpack.c.b16 %v3519, %v3518
    %v4344 = vpack.c.b16 %v3521, %v3520
    %v4345 = vpack.c.b16 %v3523, %v3522
    %v4346 = vpack.c.b16 %v3525, %v3524
    %v4347 = vpack.c.b16 %v3527, %v3526
    %v4348 = vpack.c.b16 %v3529, %v3528
    %v4349 = vpack.c.b16 %v3531, %v3530
    %v4350 = vpack.c.b16 %v3533, %v3532
    %v4351 = vpack.c.b16 %v3535, %v3534
    %v4352 = vpack.c.b16 %v3537, %v3536
    %v4353 = vpack.c.b16 %v3539, %v3538
    %v4354 = vpack.c.b16 %v3541, %v3540
    %v4355 = vpack.c.b16 %v3543, %v3542
    %v4356 = vpack.c.b16 %v3545, %v3544
    %v4357 = vpack.c.b16 %v3547, %v3546
    %v4358 = vpack.c.b16 %v3549, %v3548
    %v4359 = vpack.c.b16 %v3551, %v3550
    %v4360 = vpack.c.b16 %v3553, %v3552
    %v4361 = vpack.c.b16 %v3555, %v3554
    %v4362 = vpack.c.b16 %v3557, %v3556
    %v4363 = vpack.c.b16 %v3559, %v3558
    %v4364 = vpack.c.b16 %v3561, %v3560
    %v4365 = vpack.c.b16 %v3563, %v3562
    %v4366 = vpack.c.b16 %v3565, %v3564
    %v4367 = vpack.c.b16 %v3567, %v3566
    %v4368 = vpack.c.b16 %v3569, %v3568
    %v4369 = vpack.c.b16 %v3571, %v3570
    %v4370 = vpack.c.b16 %v3573, %v3572
    %v4371 = vpack.c.b16 %v3575, %v3574
    %v4372 = vpack.c.b16 %v3577, %v3576
    %v4373 = vpack.c.b16 %v3579, %v3578
    %v4374 = vpack.c.b16 %v3581, %v3580
    %v4375 = vpack.c.b16 %v3583, %v3582
    %v4376 = vpack.c.b16 %v3585, %v3584
    %v4377 = vpack.c.b16 %v3587, %v3586
    %v4378 = vpack.c.b16 %v3589, %v3588
    %v4379 = vpack.c.b16 %v3591, %v3590
    %v4380 = vpack.c.b16 %v3593, %v3592
    %v4381 = vpack.c.b16 %v3595, %v3594
    %v4382 = vpack.c.b16 %v3597, %v3596
    %v4383 = vpack.c.b16 %v3599, %v3598
    %v4384 = vpack.c.b16 %v3601, %v3600
    %v4385 = vpack.c.b16 %v3603, %v3602
    %v4386 = vpack.c.b16 %v3605, %v3604
    %v4387 = vpack.c.b16 %v3607, %v3606
    %v4388 = vpack.c.b16 %v3609, %v3608
    %v4389 = vpack.c.b16 %v3611, %v3610
    %v4390 = vpack.c.b16 %v3613, %v3612
    %v4391 = vpack.c.b16 %v3615, %v3614
    %v4392 = vpack.c.b16 %v3617, %v3616
    %v4393 = vpack.c.b16 %v3619, %v3618
    %v4394 = vpack.c.b16 %v3621, %v3620
    %v4395 = vpack.c.b16 %v3623, %v3622
    %v4396 = vpack.c.b16 %v3625, %v3624
    %v4397 = vpack.c.b16 %v3627, %v3626
    %v4398 = vpack.c.b16 %v3629, %v3628
    %v4399 = vpack.c.b16 %v3631, %v3630
    %v4400 = vpack.c.b16 %v3633, %v3632
    %v4401 = vpack.c.b16 %v3635, %v3634
    %v4402 = vpack.c.b16 %v3637, %v3636
    %v4403 = vpack.c.b16 %v3639, %v3638
    %v4404 = vpack.c.b16 %v3641, %v3640
    %v4405 = vpack.c.b16 %v3643, %v3642
    %v4406 = vpack.c.b16 %v3645, %v3644
    %v4407 = vpack.c.b16 %v3647, %v3646
    %v4408 = vpack.c.b16 %v3649, %v3648
    %v4409 = vpack.c.b16 %v3651, %v3650
    %v4410 = vpack.c.b16 %v3653, %v3652
    %v4411 = vpack.c.b16 %v3655, %v3654
    %v4412 = vpack.c.b16 %v3657, %v3656
    %v4413 = vpack.c.b16 %v3659, %v3658
    %v4414 = vpack.c.b16 %v3661, %v3660
    %v4415 = vpack.c.b16 %v3663, %v3662
    %v4416 = vpack.c.b16 %v3665, %v3664
    %v4417 = vpack.c.b16 %v3667, %v3666
    %v4418 = vpack.c.b16 %v3669, %v3668
    %v4419 = vpack.c.b16 %v3671, %v3670
    %v4420 = vpack.c.b16 %v3673, %v3672
    %v4421 = vpack.c.b16 %v3675, %v3674
    %v4422 = vpack.c.b16 %v3677, %v3676
    %v4423 = vpack.c.b16 %v3679, %v3678
    %v4424 = vpack.c.b16 %v3681, %v3680
    %v4425 = vpack.c.b16 %v3683, %v3682
    %v4426 = vpack.c.b16 %v3685, %v3684
    %v4427 = vpack.c.b16 %v3687, %v3686
    %v4428 = vpack.c.b16 %v3689, %v3688
    %v4429 = vpack.c.b16 %v3691, %v3690
    %v4430 = vpack.c.b16 %v3693, %v3692
    %v4431 = vpack.c.b16 %v3695, %v3694
    %v4432 = vpack.c.b16 %v3697, %v3696
    %v4433 = vpack.c.b16 %v3699, %v3698
    %v4434 = vpack.c.b16 %v3701, %v3700
    %v4435 = vpack.c.b16 %v3703, %v3702
    %v4436 = vpack.c.b16 %v3705, %v3704
    %v4437 = vpack.c.b16 %v3707, %v3706
    %v4438 = vpack.c.b16 %v3709, %v3708
    %v4439 = vpack.c.b16 %v3711, %v3710
    %v4440 = vpack.c.b16 %v3713, %v3712
    %v4441 = vpack.c.b16 %v3715, %v3714
    %v4442 = vpack.c.b16 %v3717, %v3716
    %v4443 = vpack.c.b16 %v3719, %v3718
    %v4444 = vpack.c.b16 %v3721, %v3720
    %v4445 = vpack.c.b16 %v3723, %v3722
    %v4446 = vpack.c.b16 %v3725, %v3724
    %v4447 = vpack.c.b16 %v3727, %v3726
    %v4448 = vpack.c.b16 %v3729, %v3728
    %v4449 = vpack.c.b16 %v3731, %v3730
    %v4450 = vpack.c.b16 %v3733, %v3732
    %v4451 = vpack.c.b16 %v3735, %v3734
    %v4452 = vpack.c.b16 %v3737, %v3736
    %v4453 = vpack.c.b16 %v3739, %v3738
    %v4454 = vpack.c.b16 %v3741, %v3740
    %v4455 = vpack.c.b16 %v3743, %v3742
    %v4456 = vpack.c.b16 %v3745, %v3744
    %v4457 = vpack.c.b16 %v3747, %v3746
    %v4458 = vpack.c.b16 %v3749, %v3748
    %v4459 = vpack.c.b16 %v3751, %v3750
    %v4460 = vpack.c.b16 %v3753, %v3752
    %v4461 = vpack.c.b16 %v3755, %v3754
    %v4462 = vpack.c.b16 %v3757, %v3756
    %v4463 = vpack.c.b16 %v3759, %v3758
    %v4464 = vpack.c.b16 %v3761, %v3760
    %v4465 = vpack.c.b16 %v3763, %v3762
    %v4466 = vpack.c.b16 %v3765, %v3764
    %v4467 = vpack.c.b16 %v3767, %v3766
    %v4468 = vpack.c.b16 %v3769, %v3768
    %v4469 = vpack.c.b16 %v3771, %v3770
    %v4470 = vpack.c.b16 %v3773, %v3772
    %v4471 = vpack.c.b16 %v3775, %v3774
    %v4472 = vpack.c.b16 %v3777, %v3776
    %v4473 = vpack.c.b16 %v3779, %v3778
    %v4474 = vpack.c.b16 %v3781, %v3780
    %v4475 = vpack.c.b16 %v3783, %v3782
    %v4476 = vpack.c.b16 %v3785, %v3784
    %v4477 = vpack.c.b16 %v3787, %v3786
    %v4478 = vpack.c.b16 %v3789, %v3788
    %v4479 = vpack.c.b16 %v3791, %v3790
    %v4480 = vpack.c.b16 %v3793, %v3792
    %v4481 = vpack.c.b16 %v3795, %v3794
    %v4482 = vpack.c.b16 %v3797, %v3796
    %v4483 = vpack.c.b16 %v3799, %v3798
    %v4484 = vpack.c.b16 %v3801, %v3800
    %v4485 = vpack.c.b16 %v3803, %v3802
    %v4486 = vpack.c.b16 %v3805, %v3804
    %v4487 = vpack.c.b16 %v3807, %v3806
    %v4488 = vpack.c.b16 %v3809, %v3808
    %v4489 = vpack.c.b16 %v3811, %v3810
    %v4490 = vpack.c.b16 %v3813, %v3812
    %v4491 = vpack.c.b16 %v3815, %v3814
    %v4492 = vpack.c.b16 %v3817, %v3816
    %v4493 = vpack.c.b16 %v3819, %v3818
    %v4494 = vpack.c.b16 %v3821, %v3820
    %v4495 = vpack.c.b16 %v3823, %v3822
    %v4496 = vpack.c.b16 %v3825, %v3824
    %v4497 = vpack.c.b16 %v3827, %v3826
    %v4498 = vpack.c.b16 %v3829, %v3828
    %v4499 = vpack.c.b16 %v3831, %v3830
    %v4500 = vpack.c.b16 %v3833, %v3832
    %v4501 = vpack.c.b16 %v3835, %v3834
    %v4502 = vpack.c.b16 %v3837, %v3836
    %v4503 = vpack.c.b16 %v3839, %v3838
    %v4504 = vpack.c.b16 %v3841, %v3840
    %v4505 = vpack.c.b16 %v3843, %v3842
    %v4506 = vpack.c.b16 %v3845, %v3844
    %v4507 = vpack.c.b16 %v3847, %v3846
    %v4508 = vpack.c.b16 %v3849, %v3848
    %v4509 = vpack.c.b16 %v3851, %v3850
    %v4510 = vpack.c.b16 %v3853, %v3852
    %v4511 = vpack.c.b16 %v3855, %v3854
    %v4512 = vpack.c.b16 %v3857, %v3856
    %v4513 = vpack.c.b16 %v3859, %v3858
    %v4514 = vpack.c.b16 %v3861, %v3860
    %v4515 = vpack.c.b16 %v3863, %v3862
    %v4516 = vpack.c.b16 %v3865, %v3864
    %v4517 = vpack.c.b16 %v3867, %v3866
    %v4518 = vpack.c.b16 %v3869, %v3868
    %v4519 = vpack.c.b16 %v3871, %v3870
    %v4520 = vpack.c.b16 %v3873, %v3872
    %v4521 = vpack.c.b16 %v3875, %v3874
    %v4522 = vpack.c.b16 %v3877, %v3876
    %v4523 = vpack.c.b16 %v3879, %v3878
    %v4524 = vpack.c.b16 %v3881, %v3880
    %v4525 = vpack.c.b16 %v3883, %v3882
    %v4526 = vpack.c.b16 %v3885, %v3884
    %v4527 = vpack.c.b16 %v3887, %v3886
    %v4528 = vpack.c.b16 %v3889, %v3888
    %v4529 = vpack.c.b16 %v3891, %v3890
    %v4530 = vpack.c.b16 %v3893, %v3892
    %v4531 = vpack.c.b16 %v3895, %v3894
    %v4532 = vpack.c.b16 %v3897, %v3896
    %v4533 = vpack.c.b16 %v3899, %v3898
    %v4534 = vpack.c.b16 %v3901, %v3900
    %v4535 = vpack.c.b16 %v3903, %v3902
    %v4536 = vpack.c.b16 %v3905, %v3904
    %v4537 = vpack.c.b16 %v3907, %v3906
    %v4538 = vpack.c.b16 %v3909, %v3908
    %v4539 = vpack.c.b16 %v3911, %v3910
    %v4540 = vpack.c.b16 %v3913, %v3912
    %v4541 = vpack.c.b16 %v3915, %v3914
    %v4542 = vpack.c.b16 %v3917, %v3916
    %v4543 = vpack.c.b16 %v3919, %v3918
    %v4544 = vpack.c.b16 %v3921, %v3920
    %v4545 = vpack.c.b16 %v3923, %v3922
    %v4546 = vpack.c.b16 %v3925, %v3924
    %v4547 = vpack.c.b16 %v3927, %v3926
    %v4548 = vpack.c.b16 %v3929, %v3928
    %v4549 = vpack.c.b16 %v3931, %v3930
    %v4550 = vpack.c.b16 %v3933, %v3932
    %v4551 = vpack.c.b16 %v3935, %v3934
    %v4552 = vpack.c.b16 %v3937, %v3936
    %v4553 = vpack.c.b16 %v3939, %v3938
    %v4554 = vpack.c.b16 %v3941, %v3940
    %v4555 = vpack.c.b16 %v3943, %v3942
    %v4556 = vpack.c.b16 %v3945, %v3944
    %v4557 = vpack.c.b16 %v3947, %v3946
    %v4558 = vpack.c.b16 %v3949, %v3948
    %v4559 = vpack.c.b16 %v3951, %v3950
    %v4560 = vpack.c.b16 %v3953, %v3952
    %v4561 = vpack.c.b16 %v3955, %v3954
    %v4562 = vpack.c.b16 %v3957, %v3956
    %v4563 = vpack.c.b16 %v3959, %v3958
    %v4564 = vpack.c.b16 %v3961, %v3960
    %v4565 = vpack.c.b16 %v3963, %v3962
    %v4566 = vpack.c.b16 %v3965, %v3964
    %v4567 = vpack.c.b16 %v3967, %v3966
    %v4568 = vpack.c.b16 %v3969, %v3968
    %v4569 = vpack.c.b16 %v3971, %v3970
    %v4570 = vpack.c.b16 %v3973, %v3972
    %v4571 = vpack.c.b16 %v3975, %v3974
    %v4572 = vpack.c.b16 %v3977, %v3976
    %v4573 = vpack.c.b16 %v3979, %v3978
    %v4574 = vpack.c.b16 %v3981, %v3980
    %v4575 = vpack.c.b16 %v3983, %v3982
    %v4576 = vpack.c.b16 %v3985, %v3984
    %v4577 = vpack.c.b16 %v3987, %v3986
    %v4578 = vpack.c.b16 %v3989, %v3988
    %v4579 = vpack.c.b16 %v3991, %v3990
    %v4580 = vpack.c.b16 %v3993, %v3992
    %v4581 = vpack.c.b16 %v3995, %v3994
    %v4582 = vpack.c.b16 %v3997, %v3996
    %v4583 = vpack.c.b16 %v3999, %v3998
    %v4584 = vpack.c.b16 %v4001, %v4000
    %v4585 = vpack.c.b16 %v4003, %v4002
    %v4586 = vpack.c.b16 %v4005, %v4004
    %v4587 = vpack.c.b16 %v4007, %v4006
    %v4588 = vpack.c.b16 %v4009, %v4008
    %v4589 = vpack.c.b16 %v4011, %v4010
    %v4590 = vpack.c.b16 %v4013, %v4012
    %v4591 = vpack.c.b16 %v4015, %v4014
    %5168 = vmatprep.subr.bf16.mxu0 0
    %5169 = vmatpush1.bf16.msra.mxu0 %v4023
    %5170 = vmatprep.subr.bf16.mxu0 0
    %5171 = vmatpush1.bf16.msra.mxu0 %v4022
    %5172 = vmatprep.subr.bf16.mxu0 0
    %5173 = vmatpush1.bf16.msra.mxu0 %v4021
    %5174 = vmatprep.subr.bf16.mxu0 0
    %5175 = vmatpush1.bf16.msra.mxu0 %v4020
    %5176 = vmatprep.subr.bf16.mxu0 0
    %5177 = vmatpush1.bf16.msra.mxu0 %v4019
    %5178 = vmatprep.subr.bf16.mxu0 0
    %5179 = vmatpush1.bf16.msra.mxu0 %v4018
    %5180 = vmatprep.subr.bf16.mxu0 0
    %5181 = vmatpush1.bf16.msra.mxu0 %v4017
    %5182 = vmatprep.subr.bf16.mxu0 0
    %5183 = vmatpush1.bf16.msra.mxu0 %v4016
    %5184 = vmatprep.subr.bf16.mxu0 0
    %5185 = vmatpush2.bf16.msra.mxu0 %v4031
    %5186 = vmatprep.subr.bf16.mxu0 0
    %5187 = vmatpush2.bf16.msra.mxu0 %v4030
    %5188 = vmatprep.subr.bf16.mxu0 0
    %5189 = vmatpush2.bf16.msra.mxu0 %v4029
    %5190 = vmatprep.subr.bf16.mxu0 0
    %5191 = vmatpush2.bf16.msra.mxu0 %v4028
    %5192 = vmatprep.subr.bf16.mxu0 0
    %5193 = vmatpush2.bf16.msra.mxu0 %v4027
    %5194 = vmatprep.subr.bf16.mxu0 0
    %5195 = vmatpush2.bf16.msra.mxu0 %v4026
    %5196 = vmatprep.subr.bf16.mxu0 0
    %5197 = vmatpush2.bf16.msra.mxu0 %v4025
    %5198 = vmatprep.subr.bf16.mxu0 0
    %5199 = vmatpush2.bf16.msra.mxu0 %v4024
    %5200 = vmatprep.mubr.bf16.mxu0 %v1236
    %5201 = vmatmul.mubr.bf16.gmra.mxu0 %v1222
    %v5202 = vpop.f32.mrf.mxu0
    %v5203 = vadd.f32 %v1188, %v5202
    %v5204 = vpop.f32.mrf.mxu0
    %v5205 = vpop.f32.mrf.mxu0
    %v5206 = vpop.f32.mrf.mxu0
    %5207 = vdwg.mxu0
    %5208 = vmatprep.subr.bf16.mxu0 0
    %5209 = vmatpush1.bf16.msra.mxu0 %v4039
    %5210 = vmatprep.subr.bf16.mxu0 0
    %5211 = vmatpush1.bf16.msra.mxu0 %v4038
    %5212 = vmatprep.subr.bf16.mxu0 0
    %5213 = vmatpush1.bf16.msra.mxu0 %v4037
    %5214 = vmatprep.subr.bf16.mxu0 0
    %5215 = vmatpush1.bf16.msra.mxu0 %v4036
    %5216 = vmatprep.subr.bf16.mxu0 0
    %5217 = vmatpush1.bf16.msra.mxu0 %v4035
    %5218 = vmatprep.subr.bf16.mxu0 0
    %5219 = vmatpush1.bf16.msra.mxu0 %v4034
    %5220 = vmatprep.subr.bf16.mxu0 0
    %5221 = vmatpush1.bf16.msra.mxu0 %v4033
    %5222 = vmatprep.subr.bf16.mxu0 0
    %5223 = vmatpush1.bf16.msra.mxu0 %v4032
    %5224 = vmatprep.subr.bf16.mxu0 0
    %5225 = vmatpush2.bf16.msra.mxu0 %v4047
    %5226 = vmatprep.subr.bf16.mxu0 0
    %5227 = vmatpush2.bf16.msra.mxu0 %v4046
    %5228 = vmatprep.subr.bf16.mxu0 0
    %5229 = vmatpush2.bf16.msra.mxu0 %v4045
    %5230 = vmatprep.subr.bf16.mxu0 0
    %5231 = vmatpush2.bf16.msra.mxu0 %v4044
    %5232 = vmatprep.subr.bf16.mxu0 0
    %5233 = vmatpush2.bf16.msra.mxu0 %v4043
    %5234 = vmatprep.subr.bf16.mxu0 0
    %5235 = vmatpush2.bf16.msra.mxu0 %v4042
    %5236 = vmatprep.subr.bf16.mxu0 0
    %5237 = vmatpush2.bf16.msra.mxu0 %v4041
    %5238 = vmatprep.subr.bf16.mxu0 0
    %5239 = vmatpush2.bf16.msra.mxu0 %v4040
    %5240 = vmatprep.mubr.bf16.mxu0 %v1246
    %5241 = vmatmul.mubr.bf16.gmra.mxu0 %v1244
    %v5242 = vpop.f32.mrf.mxu0
    %v5243 = vadd.f32 %v5203, %v5242
    %v5244 = vpop.f32.mrf.mxu0
    %v5245 = vpop.f32.mrf.mxu0
    %v5246 = vpop.f32.mrf.mxu0
    %5247 = vdwg.mxu0
    %5248 = vmatprep.subr.bf16.mxu0 0
    %5249 = vmatpush1.bf16.msra.mxu0 %v4055
    %5250 = vmatprep.subr.bf16.mxu0 0
    %5251 = vmatpush1.bf16.msra.mxu0 %v4054
    %5252 = vmatprep.subr.bf16.mxu0 0
    %5253 = vmatpush1.bf16.msra.mxu0 %v4053
    %5254 = vmatprep.subr.bf16.mxu0 0
    %5255 = vmatpush1.bf16.msra.mxu0 %v4052
    %5256 = vmatprep.subr.bf16.mxu0 0
    %5257 = vmatpush1.bf16.msra.mxu0 %v4051
    %5258 = vmatprep.subr.bf16.mxu0 0
    %5259 = vmatpush1.bf16.msra.mxu0 %v4050
    %5260 = vmatprep.subr.bf16.mxu0 0
    %5261 = vmatpush1.bf16.msra.mxu0 %v4049
    %5262 = vmatprep.subr.bf16.mxu0 0
    %5263 = vmatpush1.bf16.msra.mxu0 %v4048
    %5264 = vmatprep.subr.bf16.mxu0 0
    %5265 = vmatpush2.bf16.msra.mxu0 %v4063
    %5266 = vmatprep.subr.bf16.mxu0 0
    %5267 = vmatpush2.bf16.msra.mxu0 %v4062
    %5268 = vmatprep.subr.bf16.mxu0 0
    %5269 = vmatpush2.bf16.msra.mxu0 %v4061
    %5270 = vmatprep.subr.bf16.mxu0 0
    %5271 = vmatpush2.bf16.msra.mxu0 %v4060
    %5272 = vmatprep.subr.bf16.mxu0 0
    %5273 = vmatpush2.bf16.msra.mxu0 %v4059
    %5274 = vmatprep.subr.bf16.mxu0 0
    %5275 = vmatpush2.bf16.msra.mxu0 %v4058
    %5276 = vmatprep.subr.bf16.mxu0 0
    %5277 = vmatpush2.bf16.msra.mxu0 %v4057
    %5278 = vmatprep.subr.bf16.mxu0 0
    %5279 = vmatpush2.bf16.msra.mxu0 %v4056
    %5280 = vmatprep.mubr.bf16.mxu0 %v1243
    %5281 = vmatmul.mubr.bf16.gmra.mxu0 %v1229
    %v5282 = vpop.f32.mrf.mxu0
    %v5283 = vadd.f32 %v5243, %v5282
    %v5284 = vpop.f32.mrf.mxu0
    %v5285 = vpop.f32.mrf.mxu0
    %v5286 = vpop.f32.mrf.mxu0
    %5287 = vdwg.mxu0
    %5288 = vmatprep.subr.bf16.mxu0 0
    %5289 = vmatpush1.bf16.msra.mxu0 %v4071
    %5290 = vmatprep.subr.bf16.mxu0 0
    %5291 = vmatpush1.bf16.msra.mxu0 %v4070
    %5292 = vmatprep.subr.bf16.mxu0 0
    %5293 = vmatpush1.bf16.msra.mxu0 %v4069
    %5294 = vmatprep.subr.bf16.mxu0 0
    %5295 = vmatpush1.bf16.msra.mxu0 %v4068
    %5296 = vmatprep.subr.bf16.mxu0 0
    %5297 = vmatpush1.bf16.msra.mxu0 %v4067
    %5298 = vmatprep.subr.bf16.mxu0 0
    %5299 = vmatpush1.bf16.msra.mxu0 %v4066
    %5300 = vmatprep.subr.bf16.mxu0 0
    %5301 = vmatpush1.bf16.msra.mxu0 %v4065
    %5302 = vmatprep.subr.bf16.mxu0 0
    %5303 = vmatpush1.bf16.msra.mxu0 %v4064
    %5304 = vmatprep.subr.bf16.mxu0 0
    %5305 = vmatpush2.bf16.msra.mxu0 %v4079
    %5306 = vmatprep.subr.bf16.mxu0 0
    %5307 = vmatpush2.bf16.msra.mxu0 %v4078
    %5308 = vmatprep.subr.bf16.mxu0 0
    %5309 = vmatpush2.bf16.msra.mxu0 %v4077
    %5310 = vmatprep.subr.bf16.mxu0 0
    %5311 = vmatpush2.bf16.msra.mxu0 %v4076
    %5312 = vmatprep.subr.bf16.mxu0 0
    %5313 = vmatpush2.bf16.msra.mxu0 %v4075
    %5314 = vmatprep.subr.bf16.mxu0 0
    %5315 = vmatpush2.bf16.msra.mxu0 %v4074
    %5316 = vmatprep.subr.bf16.mxu0 0
    %5317 = vmatpush2.bf16.msra.mxu0 %v4073
    %5318 = vmatprep.subr.bf16.mxu0 0
    %5319 = vmatpush2.bf16.msra.mxu0 %v4072
    %5320 = vmatprep.mubr.bf16.mxu0 %v1247
    %5321 = vmatmul.mubr.bf16.gmra.mxu0 %v1245
    %v5322 = vpop.f32.mrf.mxu0
    %v5323 = vadd.f32 %v5283, %v5322
    %v5324 = vpop.f32.mrf.mxu0
    %v5325 = vpop.f32.mrf.mxu0
    %v5326 = vpop.f32.mrf.mxu0
    %5327 = vdwg.mxu0
    %5328 = vmatprep.subr.bf16.mxu0 0
    %5329 = vmatpush1.bf16.msra.mxu0 %v4087
    %5330 = vmatprep.subr.bf16.mxu0 0
    %5331 = vmatpush1.bf16.msra.mxu0 %v4086
    %5332 = vmatprep.subr.bf16.mxu0 0
    %5333 = vmatpush1.bf16.msra.mxu0 %v4085
    %5334 = vmatprep.subr.bf16.mxu0 0
    %5335 = vmatpush1.bf16.msra.mxu0 %v4084
    %5336 = vmatprep.subr.bf16.mxu0 0
    %5337 = vmatpush1.bf16.msra.mxu0 %v4083
    %5338 = vmatprep.subr.bf16.mxu0 0
    %5339 = vmatpush1.bf16.msra.mxu0 %v4082
    %5340 = vmatprep.subr.bf16.mxu0 0
    %5341 = vmatpush1.bf16.msra.mxu0 %v4081
    %5342 = vmatprep.subr.bf16.mxu0 0
    %5343 = vmatpush1.bf16.msra.mxu0 %v4080
    %5344 = vmatprep.subr.bf16.mxu0 0
    %5345 = vmatpush2.bf16.msra.mxu0 %v4095
    %5346 = vmatprep.subr.bf16.mxu0 0
    %5347 = vmatpush2.bf16.msra.mxu0 %v4094
    %5348 = vmatprep.subr.bf16.mxu0 0
    %5349 = vmatpush2.bf16.msra.mxu0 %v4093
    %5350 = vmatprep.subr.bf16.mxu0 0
    %5351 = vmatpush2.bf16.msra.mxu0 %v4092
    %5352 = vmatprep.subr.bf16.mxu0 0
    %5353 = vmatpush2.bf16.msra.mxu0 %v4091
    %5354 = vmatprep.subr.bf16.mxu0 0
    %5355 = vmatpush2.bf16.msra.mxu0 %v4090
    %5356 = vmatprep.subr.bf16.mxu0 0
    %5357 = vmatpush2.bf16.msra.mxu0 %v4089
    %5358 = vmatprep.subr.bf16.mxu0 0
    %5359 = vmatpush2.bf16.msra.mxu0 %v4088
    %5360 = vmatprep.mubr.bf16.mxu0 %v1285
    %5361 = vmatmul.mubr.bf16.gmra.mxu0 %v1271
    %v5362 = vpop.f32.mrf.mxu0
    %v5363 = vadd.f32 %v5323, %v5362
    %v5364 = vpop.f32.mrf.mxu0
    %v5365 = vpop.f32.mrf.mxu0
    %v5366 = vpop.f32.mrf.mxu0
    %5367 = vdwg.mxu0
    %5368 = vmatprep.subr.bf16.mxu0 0
    %5369 = vmatpush1.bf16.msra.mxu0 %v4103
    %5370 = vmatprep.subr.bf16.mxu0 0
    %5371 = vmatpush1.bf16.msra.mxu0 %v4102
    %5372 = vmatprep.subr.bf16.mxu0 0
    %5373 = vmatpush1.bf16.msra.mxu0 %v4101
    %5374 = vmatprep.subr.bf16.mxu0 0
    %5375 = vmatpush1.bf16.msra.mxu0 %v4100
    %5376 = vmatprep.subr.bf16.mxu0 0
    %5377 = vmatpush1.bf16.msra.mxu0 %v4099
    %5378 = vmatprep.subr.bf16.mxu0 0
    %5379 = vmatpush1.bf16.msra.mxu0 %v4098
    %5380 = vmatprep.subr.bf16.mxu0 0
    %5381 = vmatpush1.bf16.msra.mxu0 %v4097
    %5382 = vmatprep.subr.bf16.mxu0 0
    %5383 = vmatpush1.bf16.msra.mxu0 %v4096
    %5384 = vmatprep.subr.bf16.mxu0 0
    %5385 = vmatpush2.bf16.msra.mxu0 %v4111
    %5386 = vmatprep.subr.bf16.mxu0 0
    %5387 = vmatpush2.bf16.msra.mxu0 %v4110
    %5388 = vmatprep.subr.bf16.mxu0 0
    %5389 = vmatpush2.bf16.msra.mxu0 %v4109
    %5390 = vmatprep.subr.bf16.mxu0 0
    %5391 = vmatpush2.bf16.msra.mxu0 %v4108
    %5392 = vmatprep.subr.bf16.mxu0 0
    %5393 = vmatpush2.bf16.msra.mxu0 %v4107
    %5394 = vmatprep.subr.bf16.mxu0 0
    %5395 = vmatpush2.bf16.msra.mxu0 %v4106
    %5396 = vmatprep.subr.bf16.mxu0 0
    %5397 = vmatpush2.bf16.msra.mxu0 %v4105
    %5398 = vmatprep.subr.bf16.mxu0 0
    %5399 = vmatpush2.bf16.msra.mxu0 %v4104
    %5400 = vmatprep.mubr.bf16.mxu0 %v1295
    %5401 = vmatmul.mubr.bf16.gmra.mxu0 %v1293
    %v5402 = vpop.f32.mrf.mxu0
    %v5403 = vadd.f32 %v5363, %v5402
    %v5404 = vpop.f32.mrf.mxu0
    %v5405 = vpop.f32.mrf.mxu0
    %v5406 = vpop.f32.mrf.mxu0
    %5407 = vdwg.mxu0
    %5408 = vmatprep.subr.bf16.mxu0 0
    %5409 = vmatpush1.bf16.msra.mxu0 %v4119
    %5410 = vmatprep.subr.bf16.mxu0 0
    %5411 = vmatpush1.bf16.msra.mxu0 %v4118
    %5412 = vmatprep.subr.bf16.mxu0 0
    %5413 = vmatpush1.bf16.msra.mxu0 %v4117
    %5414 = vmatprep.subr.bf16.mxu0 0
    %5415 = vmatpush1.bf16.msra.mxu0 %v4116
    %5416 = vmatprep.subr.bf16.mxu0 0
    %5417 = vmatpush1.bf16.msra.mxu0 %v4115
    %5418 = vmatprep.subr.bf16.mxu0 0
    %5419 = vmatpush1.bf16.msra.mxu0 %v4114
    %5420 = vmatprep.subr.bf16.mxu0 0
    %5421 = vmatpush1.bf16.msra.mxu0 %v4113
    %5422 = vmatprep.subr.bf16.mxu0 0
    %5423 = vmatpush1.bf16.msra.mxu0 %v4112
    %5424 = vmatprep.subr.bf16.mxu0 0
    %5425 = vmatpush2.bf16.msra.mxu0 %v4127
    %5426 = vmatprep.subr.bf16.mxu0 0
    %5427 = vmatpush2.bf16.msra.mxu0 %v4126
    %5428 = vmatprep.subr.bf16.mxu0 0
    %5429 = vmatpush2.bf16.msra.mxu0 %v4125
    %5430 = vmatprep.subr.bf16.mxu0 0
    %5431 = vmatpush2.bf16.msra.mxu0 %v4124
    %5432 = vmatprep.subr.bf16.mxu0 0
    %5433 = vmatpush2.bf16.msra.mxu0 %v4123
    %5434 = vmatprep.subr.bf16.mxu0 0
    %5435 = vmatpush2.bf16.msra.mxu0 %v4122
    %5436 = vmatprep.subr.bf16.mxu0 0
    %5437 = vmatpush2.bf16.msra.mxu0 %v4121
    %5438 = vmatprep.subr.bf16.mxu0 0
    %5439 = vmatpush2.bf16.msra.mxu0 %v4120
    %5440 = vmatprep.mubr.bf16.mxu0 %v1292
    %5441 = vmatmul.mubr.bf16.gmra.mxu0 %v1278
    %v5442 = vpop.f32.mrf.mxu0
    %v5443 = vadd.f32 %v5403, %v5442
    %v5444 = vpop.f32.mrf.mxu0
    %v5445 = vpop.f32.mrf.mxu0
    %v5446 = vpop.f32.mrf.mxu0
    %5447 = vdwg.mxu0
    %5448 = vmatprep.subr.bf16.mxu0 0
    %5449 = vmatpush1.bf16.msra.mxu0 %v4135
    %5450 = vmatprep.subr.bf16.mxu0 0
    %5451 = vmatpush1.bf16.msra.mxu0 %v4134
    %5452 = vmatprep.subr.bf16.mxu0 0
    %5453 = vmatpush1.bf16.msra.mxu0 %v4133
    %5454 = vmatprep.subr.bf16.mxu0 0
    %5455 = vmatpush1.bf16.msra.mxu0 %v4132
    %5456 = vmatprep.subr.bf16.mxu0 0
    %5457 = vmatpush1.bf16.msra.mxu0 %v4131
    %5458 = vmatprep.subr.bf16.mxu0 0
    %5459 = vmatpush1.bf16.msra.mxu0 %v4130
    %5460 = vmatprep.subr.bf16.mxu0 0
    %5461 = vmatpush1.bf16.msra.mxu0 %v4129
    %5462 = vmatprep.subr.bf16.mxu0 0
    %5463 = vmatpush1.bf16.msra.mxu0 %v4128
    %5464 = vmatprep.subr.bf16.mxu0 0
    %5465 = vmatpush2.bf16.msra.mxu0 %v4143
    %5466 = vmatprep.subr.bf16.mxu0 0
    %5467 = vmatpush2.bf16.msra.mxu0 %v4142
    %5468 = vmatprep.subr.bf16.mxu0 0
    %5469 = vmatpush2.bf16.msra.mxu0 %v4141
    %5470 = vmatprep.subr.bf16.mxu0 0
    %5471 = vmatpush2.bf16.msra.mxu0 %v4140
    %5472 = vmatprep.subr.bf16.mxu0 0
    %5473 = vmatpush2.bf16.msra.mxu0 %v4139
    %5474 = vmatprep.subr.bf16.mxu0 0
    %5475 = vmatpush2.bf16.msra.mxu0 %v4138
    %5476 = vmatprep.subr.bf16.mxu0 0
    %5477 = vmatpush2.bf16.msra.mxu0 %v4137
    %5478 = vmatprep.subr.bf16.mxu0 0
    %5479 = vmatpush2.bf16.msra.mxu0 %v4136
    %5480 = vmatprep.mubr.bf16.mxu0 %v1296
    %5481 = vmatmul.mubr.bf16.gmra.mxu0 %v1294
    %v5482 = vpop.f32.mrf.mxu0
    %v5483 = vadd.f32 %v5443, %v5482
    %v5484 = vpop.f32.mrf.mxu0
    %v5485 = vpop.f32.mrf.mxu0
    %v5486 = vpop.f32.mrf.mxu0
    %5487 = vdwg.mxu0
    %5488 = vmatprep.subr.bf16.mxu0 0
    %5489 = vmatpush1.bf16.msra.mxu0 %v4151
    %5490 = vmatprep.subr.bf16.mxu0 0
    %5491 = vmatpush1.bf16.msra.mxu0 %v4150
    %5492 = vmatprep.subr.bf16.mxu0 0
    %5493 = vmatpush1.bf16.msra.mxu0 %v4149
    %5494 = vmatprep.subr.bf16.mxu0 0
    %5495 = vmatpush1.bf16.msra.mxu0 %v4148
    %5496 = vmatprep.subr.bf16.mxu0 0
    %5497 = vmatpush1.bf16.msra.mxu0 %v4147
    %5498 = vmatprep.subr.bf16.mxu0 0
    %5499 = vmatpush1.bf16.msra.mxu0 %v4146
    %5500 = vmatprep.subr.bf16.mxu0 0
    %5501 = vmatpush1.bf16.msra.mxu0 %v4145
    %5502 = vmatprep.subr.bf16.mxu0 0
    %5503 = vmatpush1.bf16.msra.mxu0 %v4144
    %5504 = vmatprep.subr.bf16.mxu0 0
    %5505 = vmatpush2.bf16.msra.mxu0 %v4159
    %5506 = vmatprep.subr.bf16.mxu0 0
    %5507 = vmatpush2.bf16.msra.mxu0 %v4158
    %5508 = vmatprep.subr.bf16.mxu0 0
    %5509 = vmatpush2.bf16.msra.mxu0 %v4157
    %5510 = vmatprep.subr.bf16.mxu0 0
    %5511 = vmatpush2.bf16.msra.mxu0 %v4156
    %5512 = vmatprep.subr.bf16.mxu0 0
    %5513 = vmatpush2.bf16.msra.mxu0 %v4155
    %5514 = vmatprep.subr.bf16.mxu0 0
    %5515 = vmatpush2.bf16.msra.mxu0 %v4154
    %5516 = vmatprep.subr.bf16.mxu0 0
    %5517 = vmatpush2.bf16.msra.mxu0 %v4153
    %5518 = vmatprep.subr.bf16.mxu0 0
    %5519 = vmatpush2.bf16.msra.mxu0 %v4152
    %5520 = vmatprep.mubr.bf16.mxu0 %v1334
    %5521 = vmatmul.mubr.bf16.gmra.mxu0 %v1320
    %v5522 = vpop.f32.mrf.mxu0
    %v5523 = vadd.f32 %v5483, %v5522
    %v5524 = vpop.f32.mrf.mxu0
    %v5525 = vpop.f32.mrf.mxu0
    %v5526 = vpop.f32.mrf.mxu0
    %5527 = vdwg.mxu0
    %5528 = vmatprep.subr.bf16.mxu0 0
    %5529 = vmatpush1.bf16.msra.mxu0 %v4167
    %5530 = vmatprep.subr.bf16.mxu0 0
    %5531 = vmatpush1.bf16.msra.mxu0 %v4166
    %5532 = vmatprep.subr.bf16.mxu0 0
    %5533 = vmatpush1.bf16.msra.mxu0 %v4165
    %5534 = vmatprep.subr.bf16.mxu0 0
    %5535 = vmatpush1.bf16.msra.mxu0 %v4164
    %5536 = vmatprep.subr.bf16.mxu0 0
    %5537 = vmatpush1.bf16.msra.mxu0 %v4163
    %5538 = vmatprep.subr.bf16.mxu0 0
    %5539 = vmatpush1.bf16.msra.mxu0 %v4162
    %5540 = vmatprep.subr.bf16.mxu0 0
    %5541 = vmatpush1.bf16.msra.mxu0 %v4161
    %5542 = vmatprep.subr.bf16.mxu0 0
    %5543 = vmatpush1.bf16.msra.mxu0 %v4160
    %5544 = vmatprep.subr.bf16.mxu0 0
    %5545 = vmatpush2.bf16.msra.mxu0 %v4175
    %5546 = vmatprep.subr.bf16.mxu0 0
    %5547 = vmatpush2.bf16.msra.mxu0 %v4174
    %5548 = vmatprep.subr.bf16.mxu0 0
    %5549 = vmatpush2.bf16.msra.mxu0 %v4173
    %5550 = vmatprep.subr.bf16.mxu0 0
    %5551 = vmatpush2.bf16.msra.mxu0 %v4172
    %5552 = vmatprep.subr.bf16.mxu0 0
    %5553 = vmatpush2.bf16.msra.mxu0 %v4171
    %5554 = vmatprep.subr.bf16.mxu0 0
    %5555 = vmatpush2.bf16.msra.mxu0 %v4170
    %5556 = vmatprep.subr.bf16.mxu0 0
    %5557 = vmatpush2.bf16.msra.mxu0 %v4169
    %5558 = vmatprep.subr.bf16.mxu0 0
    %5559 = vmatpush2.bf16.msra.mxu0 %v4168
    %5560 = vmatprep.mubr.bf16.mxu0 %v1344
    %5561 = vmatmul.mubr.bf16.gmra.mxu0 %v1342
    %v5562 = vpop.f32.mrf.mxu0
    %v5563 = vadd.f32 %v5523, %v5562
    %v5564 = vpop.f32.mrf.mxu0
    %v5565 = vpop.f32.mrf.mxu0
    %v5566 = vpop.f32.mrf.mxu0
    %5567 = vdwg.mxu0
    %5568 = vmatprep.subr.bf16.mxu0 0
    %5569 = vmatpush1.bf16.msra.mxu0 %v4183
    %5570 = vmatprep.subr.bf16.mxu0 0
    %5571 = vmatpush1.bf16.msra.mxu0 %v4182
    %5572 = vmatprep.subr.bf16.mxu0 0
    %5573 = vmatpush1.bf16.msra.mxu0 %v4181
    %5574 = vmatprep.subr.bf16.mxu0 0
    %5575 = vmatpush1.bf16.msra.mxu0 %v4180
    %5576 = vmatprep.subr.bf16.mxu0 0
    %5577 = vmatpush1.bf16.msra.mxu0 %v4179
    %5578 = vmatprep.subr.bf16.mxu0 0
    %5579 = vmatpush1.bf16.msra.mxu0 %v4178
    %5580 = vmatprep.subr.bf16.mxu0 0
    %5581 = vmatpush1.bf16.msra.mxu0 %v4177
    %5582 = vmatprep.subr.bf16.mxu0 0
    %5583 = vmatpush1.bf16.msra.mxu0 %v4176
    %5584 = vmatprep.subr.bf16.mxu0 0
    %5585 = vmatpush2.bf16.msra.mxu0 %v4191
    %5586 = vmatprep.subr.bf16.mxu0 0
    %5587 = vmatpush2.bf16.msra.mxu0 %v4190
    %5588 = vmatprep.subr.bf16.mxu0 0
    %5589 = vmatpush2.bf16.msra.mxu0 %v4189
    %5590 = vmatprep.subr.bf16.mxu0 0
    %5591 = vmatpush2.bf16.msra.mxu0 %v4188
    %5592 = vmatprep.subr.bf16.mxu0 0
    %5593 = vmatpush2.bf16.msra.mxu0 %v4187
    %5594 = vmatprep.subr.bf16.mxu0 0
    %5595 = vmatpush2.bf16.msra.mxu0 %v4186
    %5596 = vmatprep.subr.bf16.mxu0 0
    %5597 = vmatpush2.bf16.msra.mxu0 %v4185
    %5598 = vmatprep.subr.bf16.mxu0 0
    %5599 = vmatpush2.bf16.msra.mxu0 %v4184
    %5600 = vmatprep.mubr.bf16.mxu0 %v1341
    %5601 = vmatmul.mubr.bf16.gmra.mxu0 %v1327
    %v5602 = vpop.f32.mrf.mxu0
    %v5603 = vadd.f32 %v5563, %v5602
    %v5604 = vpop.f32.mrf.mxu0
    %v5605 = vpop.f32.mrf.mxu0
    %v5606 = vpop.f32.mrf.mxu0
    %5607 = vdwg.mxu0
    %5608 = vmatprep.subr.bf16.mxu0 0
    %5609 = vmatpush1.bf16.msra.mxu0 %v4199
    %5610 = vmatprep.subr.bf16.mxu0 0
    %5611 = vmatpush1.bf16.msra.mxu0 %v4198
    %5612 = vmatprep.subr.bf16.mxu0 0
    %5613 = vmatpush1.bf16.msra.mxu0 %v4197
    %5614 = vmatprep.subr.bf16.mxu0 0
    %5615 = vmatpush1.bf16.msra.mxu0 %v4196
    %5616 = vmatprep.subr.bf16.mxu0 0
    %5617 = vmatpush1.bf16.msra.mxu0 %v4195
    %5618 = vmatprep.subr.bf16.mxu0 0
    %5619 = vmatpush1.bf16.msra.mxu0 %v4194
    %5620 = vmatprep.subr.bf16.mxu0 0
    %5621 = vmatpush1.bf16.msra.mxu0 %v4193
    %5622 = vmatprep.subr.bf16.mxu0 0
    %5623 = vmatpush1.bf16.msra.mxu0 %v4192
    %5624 = vmatprep.subr.bf16.mxu0 0
    %5625 = vmatpush2.bf16.msra.mxu0 %v4207
    %5626 = vmatprep.subr.bf16.mxu0 0
    %5627 = vmatpush2.bf16.msra.mxu0 %v4206
    %5628 = vmatprep.subr.bf16.mxu0 0
    %5629 = vmatpush2.bf16.msra.mxu0 %v4205
    %5630 = vmatprep.subr.bf16.mxu0 0
    %5631 = vmatpush2.bf16.msra.mxu0 %v4204
    %5632 = vmatprep.subr.bf16.mxu0 0
    %5633 = vmatpush2.bf16.msra.mxu0 %v4203
    %5634 = vmatprep.subr.bf16.mxu0 0
    %5635 = vmatpush2.bf16.msra.mxu0 %v4202
    %5636 = vmatprep.subr.bf16.mxu0 0
    %5637 = vmatpush2.bf16.msra.mxu0 %v4201
    %5638 = vmatprep.subr.bf16.mxu0 0
    %5639 = vmatpush2.bf16.msra.mxu0 %v4200
    %5640 = vmatprep.mubr.bf16.mxu0 %v1345
    %5641 = vmatmul.mubr.bf16.gmra.mxu0 %v1343
    %v5642 = vpop.f32.mrf.mxu0
    %v5643 = vadd.f32 %v5603, %v5642
    %v5644 = vpop.f32.mrf.mxu0
    %v5645 = vpop.f32.mrf.mxu0
    %v5646 = vpop.f32.mrf.mxu0
    %5647 = vdwg.mxu0
    %5648 = vmatprep.subr.bf16.mxu0 0
    %5649 = vmatpush1.bf16.msra.mxu0 %v4215
    %5650 = vmatprep.subr.bf16.mxu0 0
    %5651 = vmatpush1.bf16.msra.mxu0 %v4214
    %5652 = vmatprep.subr.bf16.mxu0 0
    %5653 = vmatpush1.bf16.msra.mxu0 %v4213
    %5654 = vmatprep.subr.bf16.mxu0 0
    %5655 = vmatpush1.bf16.msra.mxu0 %v4212
    %5656 = vmatprep.subr.bf16.mxu0 0
    %5657 = vmatpush1.bf16.msra.mxu0 %v4211
    %5658 = vmatprep.subr.bf16.mxu0 0
    %5659 = vmatpush1.bf16.msra.mxu0 %v4210
    %5660 = vmatprep.subr.bf16.mxu0 0
    %5661 = vmatpush1.bf16.msra.mxu0 %v4209
    %5662 = vmatprep.subr.bf16.mxu0 0
    %5663 = vmatpush1.bf16.msra.mxu0 %v4208
    %5664 = vmatprep.subr.bf16.mxu0 0
    %5665 = vmatpush2.bf16.msra.mxu0 %v4223
    %5666 = vmatprep.subr.bf16.mxu0 0
    %5667 = vmatpush2.bf16.msra.mxu0 %v4222
    %5668 = vmatprep.subr.bf16.mxu0 0
    %5669 = vmatpush2.bf16.msra.mxu0 %v4221
    %5670 = vmatprep.subr.bf16.mxu0 0
    %5671 = vmatpush2.bf16.msra.mxu0 %v4220
    %5672 = vmatprep.subr.bf16.mxu0 0
    %5673 = vmatpush2.bf16.msra.mxu0 %v4219
    %5674 = vmatprep.subr.bf16.mxu0 0
    %5675 = vmatpush2.bf16.msra.mxu0 %v4218
    %5676 = vmatprep.subr.bf16.mxu0 0
    %5677 = vmatpush2.bf16.msra.mxu0 %v4217
    %5678 = vmatprep.subr.bf16.mxu0 0
    %5679 = vmatpush2.bf16.msra.mxu0 %v4216
    %5680 = vmatprep.mubr.bf16.mxu0 %v1383
    %5681 = vmatmul.mubr.bf16.gmra.mxu0 %v1369
    %v5682 = vpop.f32.mrf.mxu0
    %v5683 = vadd.f32 %v5643, %v5682
    %v5684 = vpop.f32.mrf.mxu0
    %v5685 = vpop.f32.mrf.mxu0
    %v5686 = vpop.f32.mrf.mxu0
    %5687 = vdwg.mxu0
    %5688 = vmatprep.subr.bf16.mxu0 0
    %5689 = vmatpush1.bf16.msra.mxu0 %v4231
    %5690 = vmatprep.subr.bf16.mxu0 0
    %5691 = vmatpush1.bf16.msra.mxu0 %v4230
    %5692 = vmatprep.subr.bf16.mxu0 0
    %5693 = vmatpush1.bf16.msra.mxu0 %v4229
    %5694 = vmatprep.subr.bf16.mxu0 0
    %5695 = vmatpush1.bf16.msra.mxu0 %v4228
    %5696 = vmatprep.subr.bf16.mxu0 0
    %5697 = vmatpush1.bf16.msra.mxu0 %v4227
    %5698 = vmatprep.subr.bf16.mxu0 0
    %5699 = vmatpush1.bf16.msra.mxu0 %v4226
    %5700 = vmatprep.subr.bf16.mxu0 0
    %5701 = vmatpush1.bf16.msra.mxu0 %v4225
    %5702 = vmatprep.subr.bf16.mxu0 0
    %5703 = vmatpush1.bf16.msra.mxu0 %v4224
    %5704 = vmatprep.subr.bf16.mxu0 0
    %5705 = vmatpush2.bf16.msra.mxu0 %v4239
    %5706 = vmatprep.subr.bf16.mxu0 0
    %5707 = vmatpush2.bf16.msra.mxu0 %v4238
    %5708 = vmatprep.subr.bf16.mxu0 0
    %5709 = vmatpush2.bf16.msra.mxu0 %v4237
    %5710 = vmatprep.subr.bf16.mxu0 0
    %5711 = vmatpush2.bf16.msra.mxu0 %v4236
    %5712 = vmatprep.subr.bf16.mxu0 0
    %5713 = vmatpush2.bf16.msra.mxu0 %v4235
    %5714 = vmatprep.subr.bf16.mxu0 0
    %5715 = vmatpush2.bf16.msra.mxu0 %v4234
    %5716 = vmatprep.subr.bf16.mxu0 0
    %5717 = vmatpush2.bf16.msra.mxu0 %v4233
    %5718 = vmatprep.subr.bf16.mxu0 0
    %5719 = vmatpush2.bf16.msra.mxu0 %v4232
    %5720 = vmatprep.mubr.bf16.mxu0 %v1393
    %5721 = vmatmul.mubr.bf16.gmra.mxu0 %v1391
    %v5722 = vpop.f32.mrf.mxu0
    %v5723 = vadd.f32 %v5683, %v5722
    %v5724 = vpop.f32.mrf.mxu0
    %v5725 = vpop.f32.mrf.mxu0
    %v5726 = vpop.f32.mrf.mxu0
    %5727 = vdwg.mxu0
    %5728 = vmatprep.subr.bf16.mxu0 0
    %5729 = vmatpush1.bf16.msra.mxu0 %v4247
    %5730 = vmatprep.subr.bf16.mxu0 0
    %5731 = vmatpush1.bf16.msra.mxu0 %v4246
    %5732 = vmatprep.subr.bf16.mxu0 0
    %5733 = vmatpush1.bf16.msra.mxu0 %v4245
    %5734 = vmatprep.subr.bf16.mxu0 0
    %5735 = vmatpush1.bf16.msra.mxu0 %v4244
    %5736 = vmatprep.subr.bf16.mxu0 0
    %5737 = vmatpush1.bf16.msra.mxu0 %v4243
    %5738 = vmatprep.subr.bf16.mxu0 0
    %5739 = vmatpush1.bf16.msra.mxu0 %v4242
    %5740 = vmatprep.subr.bf16.mxu0 0
    %5741 = vmatpush1.bf16.msra.mxu0 %v4241
    %5742 = vmatprep.subr.bf16.mxu0 0
    %5743 = vmatpush1.bf16.msra.mxu0 %v4240
    %5744 = vmatprep.subr.bf16.mxu0 0
    %5745 = vmatpush2.bf16.msra.mxu0 %v4255
    %5746 = vmatprep.subr.bf16.mxu0 0
    %5747 = vmatpush2.bf16.msra.mxu0 %v4254
    %5748 = vmatprep.subr.bf16.mxu0 0
    %5749 = vmatpush2.bf16.msra.mxu0 %v4253
    %5750 = vmatprep.subr.bf16.mxu0 0
    %5751 = vmatpush2.bf16.msra.mxu0 %v4252
    %5752 = vmatprep.subr.bf16.mxu0 0
    %5753 = vmatpush2.bf16.msra.mxu0 %v4251
    %5754 = vmatprep.subr.bf16.mxu0 0
    %5755 = vmatpush2.bf16.msra.mxu0 %v4250
    %5756 = vmatprep.subr.bf16.mxu0 0
    %5757 = vmatpush2.bf16.msra.mxu0 %v4249
    %5758 = vmatprep.subr.bf16.mxu0 0
    %5759 = vmatpush2.bf16.msra.mxu0 %v4248
    %5760 = vmatprep.mubr.bf16.mxu0 %v1390
    %5761 = vmatmul.mubr.bf16.gmra.mxu0 %v1376
    %v5762 = vpop.f32.mrf.mxu0
    %v5763 = vadd.f32 %v5723, %v5762
    %v5764 = vpop.f32.mrf.mxu0
    %v5765 = vpop.f32.mrf.mxu0
    %v5766 = vpop.f32.mrf.mxu0
    %5767 = vdwg.mxu0
    %5768 = vmatprep.subr.bf16.mxu0 0
    %5769 = vmatpush1.bf16.msra.mxu0 %v4263
    %5770 = vmatprep.subr.bf16.mxu0 0
    %5771 = vmatpush1.bf16.msra.mxu0 %v4262
    %5772 = vmatprep.subr.bf16.mxu0 0
    %5773 = vmatpush1.bf16.msra.mxu0 %v4261
    %5774 = vmatprep.subr.bf16.mxu0 0
    %5775 = vmatpush1.bf16.msra.mxu0 %v4260
    %5776 = vmatprep.subr.bf16.mxu0 0
    %5777 = vmatpush1.bf16.msra.mxu0 %v4259
    %5778 = vmatprep.subr.bf16.mxu0 0
    %5779 = vmatpush1.bf16.msra.mxu0 %v4258
    %5780 = vmatprep.subr.bf16.mxu0 0
    %5781 = vmatpush1.bf16.msra.mxu0 %v4257
    %5782 = vmatprep.subr.bf16.mxu0 0
    %5783 = vmatpush1.bf16.msra.mxu0 %v4256
    %5784 = vmatprep.subr.bf16.mxu0 0
    %5785 = vmatpush2.bf16.msra.mxu0 %v4271
    %5786 = vmatprep.subr.bf16.mxu0 0
    %5787 = vmatpush2.bf16.msra.mxu0 %v4270
    %5788 = vmatprep.subr.bf16.mxu0 0
    %5789 = vmatpush2.bf16.msra.mxu0 %v4269
    %5790 = vmatprep.subr.bf16.mxu0 0
    %5791 = vmatpush2.bf16.msra.mxu0 %v4268
    %5792 = vmatprep.subr.bf16.mxu0 0
    %5793 = vmatpush2.bf16.msra.mxu0 %v4267
    %5794 = vmatprep.subr.bf16.mxu0 0
    %5795 = vmatpush2.bf16.msra.mxu0 %v4266
    %5796 = vmatprep.subr.bf16.mxu0 0
    %5797 = vmatpush2.bf16.msra.mxu0 %v4265
    %5798 = vmatprep.subr.bf16.mxu0 0
    %5799 = vmatpush2.bf16.msra.mxu0 %v4264
    %5800 = vmatprep.mubr.bf16.mxu0 %v1394
    %5801 = vmatmul.mubr.bf16.gmra.mxu0 %v1392
    %v5802 = vpop.f32.mrf.mxu0
    %v5803 = vadd.f32 %v5763, %v5802
    %v5804 = vpop.f32.mrf.mxu0
    %v5805 = vpop.f32.mrf.mxu0
    %v5806 = vpop.f32.mrf.mxu0
    %5807 = vdwg.mxu0
    %5808 = vmatprep.subr.bf16.mxu0 0
    %5809 = vmatpush1.bf16.msra.mxu0 %v4279
    %5810 = vmatprep.subr.bf16.mxu0 0
    %5811 = vmatpush1.bf16.msra.mxu0 %v4278
    %5812 = vmatprep.subr.bf16.mxu0 0
    %5813 = vmatpush1.bf16.msra.mxu0 %v4277
    %5814 = vmatprep.subr.bf16.mxu0 0
    %5815 = vmatpush1.bf16.msra.mxu0 %v4276
    %5816 = vmatprep.subr.bf16.mxu0 0
    %5817 = vmatpush1.bf16.msra.mxu0 %v4275
    %5818 = vmatprep.subr.bf16.mxu0 0
    %5819 = vmatpush1.bf16.msra.mxu0 %v4274
    %5820 = vmatprep.subr.bf16.mxu0 0
    %5821 = vmatpush1.bf16.msra.mxu0 %v4273
    %5822 = vmatprep.subr.bf16.mxu0 0
    %5823 = vmatpush1.bf16.msra.mxu0 %v4272
    %5824 = vmatprep.subr.bf16.mxu0 0
    %5825 = vmatpush2.bf16.msra.mxu0 %v4287
    %5826 = vmatprep.subr.bf16.mxu0 0
    %5827 = vmatpush2.bf16.msra.mxu0 %v4286
    %5828 = vmatprep.subr.bf16.mxu0 0
    %5829 = vmatpush2.bf16.msra.mxu0 %v4285
    %5830 = vmatprep.subr.bf16.mxu0 0
    %5831 = vmatpush2.bf16.msra.mxu0 %v4284
    %5832 = vmatprep.subr.bf16.mxu0 0
    %5833 = vmatpush2.bf16.msra.mxu0 %v4283
    %5834 = vmatprep.subr.bf16.mxu0 0
    %5835 = vmatpush2.bf16.msra.mxu0 %v4282
    %5836 = vmatprep.subr.bf16.mxu0 0
    %5837 = vmatpush2.bf16.msra.mxu0 %v4281
    %5838 = vmatprep.subr.bf16.mxu0 0
    %5839 = vmatpush2.bf16.msra.mxu0 %v4280
    %5840 = vmatprep.mubr.bf16.mxu0 %v1432
    %5841 = vmatmul.mubr.bf16.gmra.mxu0 %v1418
    %v5842 = vpop.f32.mrf.mxu0
    %v5843 = vadd.f32 %v5803, %v5842
    %v5844 = vpop.f32.mrf.mxu0
    %v5845 = vpop.f32.mrf.mxu0
    %v5846 = vpop.f32.mrf.mxu0
    %5847 = vdwg.mxu0
    %5848 = vmatprep.subr.bf16.mxu0 0
    %5849 = vmatpush1.bf16.msra.mxu0 %v4295
    %5850 = vmatprep.subr.bf16.mxu0 0
    %5851 = vmatpush1.bf16.msra.mxu0 %v4294
    %5852 = vmatprep.subr.bf16.mxu0 0
    %5853 = vmatpush1.bf16.msra.mxu0 %v4293
    %5854 = vmatprep.subr.bf16.mxu0 0
    %5855 = vmatpush1.bf16.msra.mxu0 %v4292
    %5856 = vmatprep.subr.bf16.mxu0 0
    %5857 = vmatpush1.bf16.msra.mxu0 %v4291
    %5858 = vmatprep.subr.bf16.mxu0 0
    %5859 = vmatpush1.bf16.msra.mxu0 %v4290
    %5860 = vmatprep.subr.bf16.mxu0 0
    %5861 = vmatpush1.bf16.msra.mxu0 %v4289
    %5862 = vmatprep.subr.bf16.mxu0 0
    %5863 = vmatpush1.bf16.msra.mxu0 %v4288
    %5864 = vmatprep.subr.bf16.mxu0 0
    %5865 = vmatpush2.bf16.msra.mxu0 %v4303
    %5866 = vmatprep.subr.bf16.mxu0 0
    %5867 = vmatpush2.bf16.msra.mxu0 %v4302
    %5868 = vmatprep.subr.bf16.mxu0 0
    %5869 = vmatpush2.bf16.msra.mxu0 %v4301
    %5870 = vmatprep.subr.bf16.mxu0 0
    %5871 = vmatpush2.bf16.msra.mxu0 %v4300
    %5872 = vmatprep.subr.bf16.mxu0 0
    %5873 = vmatpush2.bf16.msra.mxu0 %v4299
    %5874 = vmatprep.subr.bf16.mxu0 0
    %5875 = vmatpush2.bf16.msra.mxu0 %v4298
    %5876 = vmatprep.subr.bf16.mxu0 0
    %5877 = vmatpush2.bf16.msra.mxu0 %v4297
    %5878 = vmatprep.subr.bf16.mxu0 0
    %5879 = vmatpush2.bf16.msra.mxu0 %v4296
    %5880 = vmatprep.mubr.bf16.mxu0 %v1442
    %5881 = vmatmul.mubr.bf16.gmra.mxu0 %v1440
    %v5882 = vpop.f32.mrf.mxu0
    %v5883 = vadd.f32 %v5843, %v5882
    %v5884 = vpop.f32.mrf.mxu0
    %v5885 = vpop.f32.mrf.mxu0
    %v5886 = vpop.f32.mrf.mxu0
    %5887 = vdwg.mxu0
    %5888 = vmatprep.subr.bf16.mxu0 0
    %5889 = vmatpush1.bf16.msra.mxu0 %v4311
    %5890 = vmatprep.subr.bf16.mxu0 0
    %5891 = vmatpush1.bf16.msra.mxu0 %v4310
    %5892 = vmatprep.subr.bf16.mxu0 0
    %5893 = vmatpush1.bf16.msra.mxu0 %v4309
    %5894 = vmatprep.subr.bf16.mxu0 0
    %5895 = vmatpush1.bf16.msra.mxu0 %v4308
    %5896 = vmatprep.subr.bf16.mxu0 0
    %5897 = vmatpush1.bf16.msra.mxu0 %v4307
    %5898 = vmatprep.subr.bf16.mxu0 0
    %5899 = vmatpush1.bf16.msra.mxu0 %v4306
    %5900 = vmatprep.subr.bf16.mxu0 0
    %5901 = vmatpush1.bf16.msra.mxu0 %v4305
    %5902 = vmatprep.subr.bf16.mxu0 0
    %5903 = vmatpush1.bf16.msra.mxu0 %v4304
    %5904 = vmatprep.subr.bf16.mxu0 0
    %5905 = vmatpush2.bf16.msra.mxu0 %v4319
    %5906 = vmatprep.subr.bf16.mxu0 0
    %5907 = vmatpush2.bf16.msra.mxu0 %v4318
    %5908 = vmatprep.subr.bf16.mxu0 0
    %5909 = vmatpush2.bf16.msra.mxu0 %v4317
    %5910 = vmatprep.subr.bf16.mxu0 0
    %5911 = vmatpush2.bf16.msra.mxu0 %v4316
    %5912 = vmatprep.subr.bf16.mxu0 0
    %5913 = vmatpush2.bf16.msra.mxu0 %v4315
    %5914 = vmatprep.subr.bf16.mxu0 0
    %5915 = vmatpush2.bf16.msra.mxu0 %v4314
    %5916 = vmatprep.subr.bf16.mxu0 0
    %5917 = vmatpush2.bf16.msra.mxu0 %v4313
    %5918 = vmatprep.subr.bf16.mxu0 0
    %5919 = vmatpush2.bf16.msra.mxu0 %v4312
    %5920 = vmatprep.mubr.bf16.mxu0 %v1439
    %5921 = vmatmul.mubr.bf16.gmra.mxu0 %v1425
    %v5922 = vpop.f32.mrf.mxu0
    %v5923 = vadd.f32 %v5883, %v5922
    %v5924 = vpop.f32.mrf.mxu0
    %v5925 = vpop.f32.mrf.mxu0
    %v5926 = vpop.f32.mrf.mxu0
    %5927 = vdwg.mxu0
    %5928 = vmatprep.subr.bf16.mxu0 0
    %5929 = vmatpush1.bf16.msra.mxu0 %v4327
    %5930 = vmatprep.subr.bf16.mxu0 0
    %5931 = vmatpush1.bf16.msra.mxu0 %v4326
    %5932 = vmatprep.subr.bf16.mxu0 0
    %5933 = vmatpush1.bf16.msra.mxu0 %v4325
    %5934 = vmatprep.subr.bf16.mxu0 0
    %5935 = vmatpush1.bf16.msra.mxu0 %v4324
    %5936 = vmatprep.subr.bf16.mxu0 0
    %5937 = vmatpush1.bf16.msra.mxu0 %v4323
    %5938 = vmatprep.subr.bf16.mxu0 0
    %5939 = vmatpush1.bf16.msra.mxu0 %v4322
    %5940 = vmatprep.subr.bf16.mxu0 0
    %5941 = vmatpush1.bf16.msra.mxu0 %v4321
    %5942 = vmatprep.subr.bf16.mxu0 0
    %5943 = vmatpush1.bf16.msra.mxu0 %v4320
    %5944 = vmatprep.subr.bf16.mxu0 0
    %5945 = vmatpush2.bf16.msra.mxu0 %v4335
    %5946 = vmatprep.subr.bf16.mxu0 0
    %5947 = vmatpush2.bf16.msra.mxu0 %v4334
    %5948 = vmatprep.subr.bf16.mxu0 0
    %5949 = vmatpush2.bf16.msra.mxu0 %v4333
    %5950 = vmatprep.subr.bf16.mxu0 0
    %5951 = vmatpush2.bf16.msra.mxu0 %v4332
    %5952 = vmatprep.subr.bf16.mxu0 0
    %5953 = vmatpush2.bf16.msra.mxu0 %v4331
    %5954 = vmatprep.subr.bf16.mxu0 0
    %5955 = vmatpush2.bf16.msra.mxu0 %v4330
    %5956 = vmatprep.subr.bf16.mxu0 0
    %5957 = vmatpush2.bf16.msra.mxu0 %v4329
    %5958 = vmatprep.subr.bf16.mxu0 0
    %5959 = vmatpush2.bf16.msra.mxu0 %v4328
    %5960 = vmatprep.mubr.bf16.mxu0 %v1443
    %5961 = vmatmul.mubr.bf16.gmra.mxu0 %v1441
    %v5962 = vpop.f32.mrf.mxu0
    %v5963 = vadd.f32 %v5923, %v5962
    %v5964 = vpop.f32.mrf.mxu0
    %v5965 = vpop.f32.mrf.mxu0
    %v5966 = vpop.f32.mrf.mxu0
    %5967 = vdwg.mxu0
    %5968 = vmatprep.subr.bf16.mxu0 0
    %5969 = vmatpush1.bf16.msra.mxu0 %v4343
    %5970 = vmatprep.subr.bf16.mxu0 0
    %5971 = vmatpush1.bf16.msra.mxu0 %v4342
    %5972 = vmatprep.subr.bf16.mxu0 0
    %5973 = vmatpush1.bf16.msra.mxu0 %v4341
    %5974 = vmatprep.subr.bf16.mxu0 0
    %5975 = vmatpush1.bf16.msra.mxu0 %v4340
    %5976 = vmatprep.subr.bf16.mxu0 0
    %5977 = vmatpush1.bf16.msra.mxu0 %v4339
    %5978 = vmatprep.subr.bf16.mxu0 0
    %5979 = vmatpush1.bf16.msra.mxu0 %v4338
    %5980 = vmatprep.subr.bf16.mxu0 0
    %5981 = vmatpush1.bf16.msra.mxu0 %v4337
    %5982 = vmatprep.subr.bf16.mxu0 0
    %5983 = vmatpush1.bf16.msra.mxu0 %v4336
    %5984 = vmatprep.subr.bf16.mxu0 0
    %5985 = vmatpush2.bf16.msra.mxu0 %v4351
    %5986 = vmatprep.subr.bf16.mxu0 0
    %5987 = vmatpush2.bf16.msra.mxu0 %v4350
    %5988 = vmatprep.subr.bf16.mxu0 0
    %5989 = vmatpush2.bf16.msra.mxu0 %v4349
    %5990 = vmatprep.subr.bf16.mxu0 0
    %5991 = vmatpush2.bf16.msra.mxu0 %v4348
    %5992 = vmatprep.subr.bf16.mxu0 0
    %5993 = vmatpush2.bf16.msra.mxu0 %v4347
    %5994 = vmatprep.subr.bf16.mxu0 0
    %5995 = vmatpush2.bf16.msra.mxu0 %v4346
    %5996 = vmatprep.subr.bf16.mxu0 0
    %5997 = vmatpush2.bf16.msra.mxu0 %v4345
    %5998 = vmatprep.subr.bf16.mxu0 0
    %5999 = vmatpush2.bf16.msra.mxu0 %v4344
    %6000 = vmatprep.mubr.bf16.mxu0 %v1481
    %6001 = vmatmul.mubr.bf16.gmra.mxu0 %v1467
    %v6002 = vpop.f32.mrf.mxu0
    %v6003 = vadd.f32 %v5963, %v6002
    %v6004 = vpop.f32.mrf.mxu0
    %v6005 = vpop.f32.mrf.mxu0
    %v6006 = vpop.f32.mrf.mxu0
    %6007 = vdwg.mxu0
    %6008 = vmatprep.subr.bf16.mxu0 0
    %6009 = vmatpush1.bf16.msra.mxu0 %v4359
    %6010 = vmatprep.subr.bf16.mxu0 0
    %6011 = vmatpush1.bf16.msra.mxu0 %v4358
    %6012 = vmatprep.subr.bf16.mxu0 0
    %6013 = vmatpush1.bf16.msra.mxu0 %v4357
    %6014 = vmatprep.subr.bf16.mxu0 0
    %6015 = vmatpush1.bf16.msra.mxu0 %v4356
    %6016 = vmatprep.subr.bf16.mxu0 0
    %6017 = vmatpush1.bf16.msra.mxu0 %v4355
    %6018 = vmatprep.subr.bf16.mxu0 0
    %6019 = vmatpush1.bf16.msra.mxu0 %v4354
    %6020 = vmatprep.subr.bf16.mxu0 0
    %6021 = vmatpush1.bf16.msra.mxu0 %v4353
    %6022 = vmatprep.subr.bf16.mxu0 0
    %6023 = vmatpush1.bf16.msra.mxu0 %v4352
    %6024 = vmatprep.subr.bf16.mxu0 0
    %6025 = vmatpush2.bf16.msra.mxu0 %v4367
    %6026 = vmatprep.subr.bf16.mxu0 0
    %6027 = vmatpush2.bf16.msra.mxu0 %v4366
    %6028 = vmatprep.subr.bf16.mxu0 0
    %6029 = vmatpush2.bf16.msra.mxu0 %v4365
    %6030 = vmatprep.subr.bf16.mxu0 0
    %6031 = vmatpush2.bf16.msra.mxu0 %v4364
    %6032 = vmatprep.subr.bf16.mxu0 0
    %6033 = vmatpush2.bf16.msra.mxu0 %v4363
    %6034 = vmatprep.subr.bf16.mxu0 0
    %6035 = vmatpush2.bf16.msra.mxu0 %v4362
    %6036 = vmatprep.subr.bf16.mxu0 0
    %6037 = vmatpush2.bf16.msra.mxu0 %v4361
    %6038 = vmatprep.subr.bf16.mxu0 0
    %6039 = vmatpush2.bf16.msra.mxu0 %v4360
    %6040 = vmatprep.mubr.bf16.mxu0 %v1491
    %6041 = vmatmul.mubr.bf16.gmra.mxu0 %v1489
    %v6042 = vpop.f32.mrf.mxu0
    %v6043 = vadd.f32 %v6003, %v6042
    %v6044 = vpop.f32.mrf.mxu0
    %v6045 = vpop.f32.mrf.mxu0
    %v6046 = vpop.f32.mrf.mxu0
    %6047 = vdwg.mxu0
    %6048 = vmatprep.subr.bf16.mxu0 0
    %6049 = vmatpush1.bf16.msra.mxu0 %v4375
    %6050 = vmatprep.subr.bf16.mxu0 0
    %6051 = vmatpush1.bf16.msra.mxu0 %v4374
    %6052 = vmatprep.subr.bf16.mxu0 0
    %6053 = vmatpush1.bf16.msra.mxu0 %v4373
    %6054 = vmatprep.subr.bf16.mxu0 0
    %6055 = vmatpush1.bf16.msra.mxu0 %v4372
    %6056 = vmatprep.subr.bf16.mxu0 0
    %6057 = vmatpush1.bf16.msra.mxu0 %v4371
    %6058 = vmatprep.subr.bf16.mxu0 0
    %6059 = vmatpush1.bf16.msra.mxu0 %v4370
    %6060 = vmatprep.subr.bf16.mxu0 0
    %6061 = vmatpush1.bf16.msra.mxu0 %v4369
    %6062 = vmatprep.subr.bf16.mxu0 0
    %6063 = vmatpush1.bf16.msra.mxu0 %v4368
    %6064 = vmatprep.subr.bf16.mxu0 0
    %6065 = vmatpush2.bf16.msra.mxu0 %v4383
    %6066 = vmatprep.subr.bf16.mxu0 0
    %6067 = vmatpush2.bf16.msra.mxu0 %v4382
    %6068 = vmatprep.subr.bf16.mxu0 0
    %6069 = vmatpush2.bf16.msra.mxu0 %v4381
    %6070 = vmatprep.subr.bf16.mxu0 0
    %6071 = vmatpush2.bf16.msra.mxu0 %v4380
    %6072 = vmatprep.subr.bf16.mxu0 0
    %6073 = vmatpush2.bf16.msra.mxu0 %v4379
    %6074 = vmatprep.subr.bf16.mxu0 0
    %6075 = vmatpush2.bf16.msra.mxu0 %v4378
    %6076 = vmatprep.subr.bf16.mxu0 0
    %6077 = vmatpush2.bf16.msra.mxu0 %v4377
    %6078 = vmatprep.subr.bf16.mxu0 0
    %6079 = vmatpush2.bf16.msra.mxu0 %v4376
    %6080 = vmatprep.mubr.bf16.mxu0 %v1488
    %6081 = vmatmul.mubr.bf16.gmra.mxu0 %v1474
    %v6082 = vpop.f32.mrf.mxu0
    %v6083 = vadd.f32 %v6043, %v6082
    %v6084 = vpop.f32.mrf.mxu0
    %v6085 = vpop.f32.mrf.mxu0
    %v6086 = vpop.f32.mrf.mxu0
    %6087 = vdwg.mxu0
    %6088 = vmatprep.subr.bf16.mxu0 0
    %6089 = vmatpush1.bf16.msra.mxu0 %v4391
    %6090 = vmatprep.subr.bf16.mxu0 0
    %6091 = vmatpush1.bf16.msra.mxu0 %v4390
    %6092 = vmatprep.subr.bf16.mxu0 0
    %6093 = vmatpush1.bf16.msra.mxu0 %v4389
    %6094 = vmatprep.subr.bf16.mxu0 0
    %6095 = vmatpush1.bf16.msra.mxu0 %v4388
    %6096 = vmatprep.subr.bf16.mxu0 0
    %6097 = vmatpush1.bf16.msra.mxu0 %v4387
    %6098 = vmatprep.subr.bf16.mxu0 0
    %6099 = vmatpush1.bf16.msra.mxu0 %v4386
    %6100 = vmatprep.subr.bf16.mxu0 0
    %6101 = vmatpush1.bf16.msra.mxu0 %v4385
    %6102 = vmatprep.subr.bf16.mxu0 0
    %6103 = vmatpush1.bf16.msra.mxu0 %v4384
    %6104 = vmatprep.subr.bf16.mxu0 0
    %6105 = vmatpush2.bf16.msra.mxu0 %v4399
    %6106 = vmatprep.subr.bf16.mxu0 0
    %6107 = vmatpush2.bf16.msra.mxu0 %v4398
    %6108 = vmatprep.subr.bf16.mxu0 0
    %6109 = vmatpush2.bf16.msra.mxu0 %v4397
    %6110 = vmatprep.subr.bf16.mxu0 0
    %6111 = vmatpush2.bf16.msra.mxu0 %v4396
    %6112 = vmatprep.subr.bf16.mxu0 0
    %6113 = vmatpush2.bf16.msra.mxu0 %v4395
    %6114 = vmatprep.subr.bf16.mxu0 0
    %6115 = vmatpush2.bf16.msra.mxu0 %v4394
    %6116 = vmatprep.subr.bf16.mxu0 0
    %6117 = vmatpush2.bf16.msra.mxu0 %v4393
    %6118 = vmatprep.subr.bf16.mxu0 0
    %6119 = vmatpush2.bf16.msra.mxu0 %v4392
    %6120 = vmatprep.mubr.bf16.mxu0 %v1492
    %6121 = vmatmul.mubr.bf16.gmra.mxu0 %v1490
    %v6122 = vpop.f32.mrf.mxu0
    %v6123 = vadd.f32 %v6083, %v6122
    %v6124 = vpop.f32.mrf.mxu0
    %v6125 = vpop.f32.mrf.mxu0
    %v6126 = vpop.f32.mrf.mxu0
    %6127 = vdwg.mxu0
    %6128 = vmatprep.subr.bf16.mxu0 0
    %6129 = vmatpush1.bf16.msra.mxu0 %v4407
    %6130 = vmatprep.subr.bf16.mxu0 0
    %6131 = vmatpush1.bf16.msra.mxu0 %v4406
    %6132 = vmatprep.subr.bf16.mxu0 0
    %6133 = vmatpush1.bf16.msra.mxu0 %v4405
    %6134 = vmatprep.subr.bf16.mxu0 0
    %6135 = vmatpush1.bf16.msra.mxu0 %v4404
    %6136 = vmatprep.subr.bf16.mxu0 0
    %6137 = vmatpush1.bf16.msra.mxu0 %v4403
    %6138 = vmatprep.subr.bf16.mxu0 0
    %6139 = vmatpush1.bf16.msra.mxu0 %v4402
    %6140 = vmatprep.subr.bf16.mxu0 0
    %6141 = vmatpush1.bf16.msra.mxu0 %v4401
    %6142 = vmatprep.subr.bf16.mxu0 0
    %6143 = vmatpush1.bf16.msra.mxu0 %v4400
    %6144 = vmatprep.subr.bf16.mxu0 0
    %6145 = vmatpush2.bf16.msra.mxu0 %v4415
    %6146 = vmatprep.subr.bf16.mxu0 0
    %6147 = vmatpush2.bf16.msra.mxu0 %v4414
    %6148 = vmatprep.subr.bf16.mxu0 0
    %6149 = vmatpush2.bf16.msra.mxu0 %v4413
    %6150 = vmatprep.subr.bf16.mxu0 0
    %6151 = vmatpush2.bf16.msra.mxu0 %v4412
    %6152 = vmatprep.subr.bf16.mxu0 0
    %6153 = vmatpush2.bf16.msra.mxu0 %v4411
    %6154 = vmatprep.subr.bf16.mxu0 0
    %6155 = vmatpush2.bf16.msra.mxu0 %v4410
    %6156 = vmatprep.subr.bf16.mxu0 0
    %6157 = vmatpush2.bf16.msra.mxu0 %v4409
    %6158 = vmatprep.subr.bf16.mxu0 0
    %6159 = vmatpush2.bf16.msra.mxu0 %v4408
    %6160 = vmatprep.mubr.bf16.mxu0 %v1530
    %6161 = vmatmul.mubr.bf16.gmra.mxu0 %v1516
    %v6162 = vpop.f32.mrf.mxu0
    %v6163 = vadd.f32 %v6123, %v6162
    %v6164 = vpop.f32.mrf.mxu0
    %v6165 = vpop.f32.mrf.mxu0
    %v6166 = vpop.f32.mrf.mxu0
    %6167 = vdwg.mxu0
    %6168 = vmatprep.subr.bf16.mxu0 0
    %6169 = vmatpush1.bf16.msra.mxu0 %v4423
    %6170 = vmatprep.subr.bf16.mxu0 0
    %6171 = vmatpush1.bf16.msra.mxu0 %v4422
    %6172 = vmatprep.subr.bf16.mxu0 0
    %6173 = vmatpush1.bf16.msra.mxu0 %v4421
    %6174 = vmatprep.subr.bf16.mxu0 0
    %6175 = vmatpush1.bf16.msra.mxu0 %v4420
    %6176 = vmatprep.subr.bf16.mxu0 0
    %6177 = vmatpush1.bf16.msra.mxu0 %v4419
    %6178 = vmatprep.subr.bf16.mxu0 0
    %6179 = vmatpush1.bf16.msra.mxu0 %v4418
    %6180 = vmatprep.subr.bf16.mxu0 0
    %6181 = vmatpush1.bf16.msra.mxu0 %v4417
    %6182 = vmatprep.subr.bf16.mxu0 0
    %6183 = vmatpush1.bf16.msra.mxu0 %v4416
    %6184 = vmatprep.subr.bf16.mxu0 0
    %6185 = vmatpush2.bf16.msra.mxu0 %v4431
    %6186 = vmatprep.subr.bf16.mxu0 0
    %6187 = vmatpush2.bf16.msra.mxu0 %v4430
    %6188 = vmatprep.subr.bf16.mxu0 0
    %6189 = vmatpush2.bf16.msra.mxu0 %v4429
    %6190 = vmatprep.subr.bf16.mxu0 0
    %6191 = vmatpush2.bf16.msra.mxu0 %v4428
    %6192 = vmatprep.subr.bf16.mxu0 0
    %6193 = vmatpush2.bf16.msra.mxu0 %v4427
    %6194 = vmatprep.subr.bf16.mxu0 0
    %6195 = vmatpush2.bf16.msra.mxu0 %v4426
    %6196 = vmatprep.subr.bf16.mxu0 0
    %6197 = vmatpush2.bf16.msra.mxu0 %v4425
    %6198 = vmatprep.subr.bf16.mxu0 0
    %6199 = vmatpush2.bf16.msra.mxu0 %v4424
    %6200 = vmatprep.mubr.bf16.mxu0 %v1540
    %6201 = vmatmul.mubr.bf16.gmra.mxu0 %v1538
    %v6202 = vpop.f32.mrf.mxu0
    %v6203 = vadd.f32 %v6163, %v6202
    %v6204 = vpop.f32.mrf.mxu0
    %v6205 = vpop.f32.mrf.mxu0
    %v6206 = vpop.f32.mrf.mxu0
    %6207 = vdwg.mxu0
    %6208 = vmatprep.subr.bf16.mxu0 0
    %6209 = vmatpush1.bf16.msra.mxu0 %v4439
    %6210 = vmatprep.subr.bf16.mxu0 0
    %6211 = vmatpush1.bf16.msra.mxu0 %v4438
    %6212 = vmatprep.subr.bf16.mxu0 0
    %6213 = vmatpush1.bf16.msra.mxu0 %v4437
    %6214 = vmatprep.subr.bf16.mxu0 0
    %6215 = vmatpush1.bf16.msra.mxu0 %v4436
    %6216 = vmatprep.subr.bf16.mxu0 0
    %6217 = vmatpush1.bf16.msra.mxu0 %v4435
    %6218 = vmatprep.subr.bf16.mxu0 0
    %6219 = vmatpush1.bf16.msra.mxu0 %v4434
    %6220 = vmatprep.subr.bf16.mxu0 0
    %6221 = vmatpush1.bf16.msra.mxu0 %v4433
    %6222 = vmatprep.subr.bf16.mxu0 0
    %6223 = vmatpush1.bf16.msra.mxu0 %v4432
    %6224 = vmatprep.subr.bf16.mxu0 0
    %6225 = vmatpush2.bf16.msra.mxu0 %v4447
    %6226 = vmatprep.subr.bf16.mxu0 0
    %6227 = vmatpush2.bf16.msra.mxu0 %v4446
    %6228 = vmatprep.subr.bf16.mxu0 0
    %6229 = vmatpush2.bf16.msra.mxu0 %v4445
    %6230 = vmatprep.subr.bf16.mxu0 0
    %6231 = vmatpush2.bf16.msra.mxu0 %v4444
    %6232 = vmatprep.subr.bf16.mxu0 0
    %6233 = vmatpush2.bf16.msra.mxu0 %v4443
    %6234 = vmatprep.subr.bf16.mxu0 0
    %6235 = vmatpush2.bf16.msra.mxu0 %v4442
    %6236 = vmatprep.subr.bf16.mxu0 0
    %6237 = vmatpush2.bf16.msra.mxu0 %v4441
    %6238 = vmatprep.subr.bf16.mxu0 0
    %6239 = vmatpush2.bf16.msra.mxu0 %v4440
    %6240 = vmatprep.mubr.bf16.mxu0 %v1537
    %6241 = vmatmul.mubr.bf16.gmra.mxu0 %v1523
    %v6242 = vpop.f32.mrf.mxu0
    %v6243 = vadd.f32 %v6203, %v6242
    %v6244 = vpop.f32.mrf.mxu0
    %v6245 = vpop.f32.mrf.mxu0
    %v6246 = vpop.f32.mrf.mxu0
    %6247 = vdwg.mxu0
    %6248 = vmatprep.subr.bf16.mxu0 0
    %6249 = vmatpush1.bf16.msra.mxu0 %v4455
    %6250 = vmatprep.subr.bf16.mxu0 0
    %6251 = vmatpush1.bf16.msra.mxu0 %v4454
    %6252 = vmatprep.subr.bf16.mxu0 0
    %6253 = vmatpush1.bf16.msra.mxu0 %v4453
    %6254 = vmatprep.subr.bf16.mxu0 0
    %6255 = vmatpush1.bf16.msra.mxu0 %v4452
    %6256 = vmatprep.subr.bf16.mxu0 0
    %6257 = vmatpush1.bf16.msra.mxu0 %v4451
    %6258 = vmatprep.subr.bf16.mxu0 0
    %6259 = vmatpush1.bf16.msra.mxu0 %v4450
    %6260 = vmatprep.subr.bf16.mxu0 0
    %6261 = vmatpush1.bf16.msra.mxu0 %v4449
    %6262 = vmatprep.subr.bf16.mxu0 0
    %6263 = vmatpush1.bf16.msra.mxu0 %v4448
    %6264 = vmatprep.subr.bf16.mxu0 0
    %6265 = vmatpush2.bf16.msra.mxu0 %v4463
    %6266 = vmatprep.subr.bf16.mxu0 0
    %6267 = vmatpush2.bf16.msra.mxu0 %v4462
    %6268 = vmatprep.subr.bf16.mxu0 0
    %6269 = vmatpush2.bf16.msra.mxu0 %v4461
    %6270 = vmatprep.subr.bf16.mxu0 0
    %6271 = vmatpush2.bf16.msra.mxu0 %v4460
    %6272 = vmatprep.subr.bf16.mxu0 0
    %6273 = vmatpush2.bf16.msra.mxu0 %v4459
    %6274 = vmatprep.subr.bf16.mxu0 0
    %6275 = vmatpush2.bf16.msra.mxu0 %v4458
    %6276 = vmatprep.subr.bf16.mxu0 0
    %6277 = vmatpush2.bf16.msra.mxu0 %v4457
    %6278 = vmatprep.subr.bf16.mxu0 0
    %6279 = vmatpush2.bf16.msra.mxu0 %v4456
    %6280 = vmatprep.mubr.bf16.mxu0 %v1541
    %6281 = vmatmul.mubr.bf16.gmra.mxu0 %v1539
    %v6282 = vpop.f32.mrf.mxu0
    %v6283 = vadd.f32 %v6243, %v6282
    %v6284 = vpop.f32.mrf.mxu0
    %v6285 = vpop.f32.mrf.mxu0
    %v6286 = vpop.f32.mrf.mxu0
    %6287 = vdwg.mxu0
    %6288 = vmatprep.subr.bf16.mxu0 0
    %6289 = vmatpush1.bf16.msra.mxu0 %v4471
    %6290 = vmatprep.subr.bf16.mxu0 0
    %6291 = vmatpush1.bf16.msra.mxu0 %v4470
    %6292 = vmatprep.subr.bf16.mxu0 0
    %6293 = vmatpush1.bf16.msra.mxu0 %v4469
    %6294 = vmatprep.subr.bf16.mxu0 0
    %6295 = vmatpush1.bf16.msra.mxu0 %v4468
    %6296 = vmatprep.subr.bf16.mxu0 0
    %6297 = vmatpush1.bf16.msra.mxu0 %v4467
    %6298 = vmatprep.subr.bf16.mxu0 0
    %6299 = vmatpush1.bf16.msra.mxu0 %v4466
    %6300 = vmatprep.subr.bf16.mxu0 0
    %6301 = vmatpush1.bf16.msra.mxu0 %v4465
    %6302 = vmatprep.subr.bf16.mxu0 0
    %6303 = vmatpush1.bf16.msra.mxu0 %v4464
    %6304 = vmatprep.subr.bf16.mxu0 0
    %6305 = vmatpush2.bf16.msra.mxu0 %v4479
    %6306 = vmatprep.subr.bf16.mxu0 0
    %6307 = vmatpush2.bf16.msra.mxu0 %v4478
    %6308 = vmatprep.subr.bf16.mxu0 0
    %6309 = vmatpush2.bf16.msra.mxu0 %v4477
    %6310 = vmatprep.subr.bf16.mxu0 0
    %6311 = vmatpush2.bf16.msra.mxu0 %v4476
    %6312 = vmatprep.subr.bf16.mxu0 0
    %6313 = vmatpush2.bf16.msra.mxu0 %v4475
    %6314 = vmatprep.subr.bf16.mxu0 0
    %6315 = vmatpush2.bf16.msra.mxu0 %v4474
    %6316 = vmatprep.subr.bf16.mxu0 0
    %6317 = vmatpush2.bf16.msra.mxu0 %v4473
    %6318 = vmatprep.subr.bf16.mxu0 0
    %6319 = vmatpush2.bf16.msra.mxu0 %v4472
    %6320 = vmatprep.mubr.bf16.mxu0 %v1579
    %6321 = vmatmul.mubr.bf16.gmra.mxu0 %v1565
    %v6322 = vpop.f32.mrf.mxu0
    %v6323 = vadd.f32 %v6283, %v6322
    %v6324 = vpop.f32.mrf.mxu0
    %v6325 = vpop.f32.mrf.mxu0
    %v6326 = vpop.f32.mrf.mxu0
    %6327 = vdwg.mxu0
    %6328 = vmatprep.subr.bf16.mxu0 0
    %6329 = vmatpush1.bf16.msra.mxu0 %v4487
    %6330 = vmatprep.subr.bf16.mxu0 0
    %6331 = vmatpush1.bf16.msra.mxu0 %v4486
    %6332 = vmatprep.subr.bf16.mxu0 0
    %6333 = vmatpush1.bf16.msra.mxu0 %v4485
    %6334 = vmatprep.subr.bf16.mxu0 0
    %6335 = vmatpush1.bf16.msra.mxu0 %v4484
    %6336 = vmatprep.subr.bf16.mxu0 0
    %6337 = vmatpush1.bf16.msra.mxu0 %v4483
    %6338 = vmatprep.subr.bf16.mxu0 0
    %6339 = vmatpush1.bf16.msra.mxu0 %v4482
    %6340 = vmatprep.subr.bf16.mxu0 0
    %6341 = vmatpush1.bf16.msra.mxu0 %v4481
    %6342 = vmatprep.subr.bf16.mxu0 0
    %6343 = vmatpush1.bf16.msra.mxu0 %v4480
    %6344 = vmatprep.subr.bf16.mxu0 0
    %6345 = vmatpush2.bf16.msra.mxu0 %v4495
    %6346 = vmatprep.subr.bf16.mxu0 0
    %6347 = vmatpush2.bf16.msra.mxu0 %v4494
    %6348 = vmatprep.subr.bf16.mxu0 0
    %6349 = vmatpush2.bf16.msra.mxu0 %v4493
    %6350 = vmatprep.subr.bf16.mxu0 0
    %6351 = vmatpush2.bf16.msra.mxu0 %v4492
    %6352 = vmatprep.subr.bf16.mxu0 0
    %6353 = vmatpush2.bf16.msra.mxu0 %v4491
    %6354 = vmatprep.subr.bf16.mxu0 0
    %6355 = vmatpush2.bf16.msra.mxu0 %v4490
    %6356 = vmatprep.subr.bf16.mxu0 0
    %6357 = vmatpush2.bf16.msra.mxu0 %v4489
    %6358 = vmatprep.subr.bf16.mxu0 0
    %6359 = vmatpush2.bf16.msra.mxu0 %v4488
    %6360 = vmatprep.mubr.bf16.mxu0 %v1589
    %6361 = vmatmul.mubr.bf16.gmra.mxu0 %v1587
    %v6362 = vpop.f32.mrf.mxu0
    %v6363 = vadd.f32 %v6323, %v6362
    %v6364 = vpop.f32.mrf.mxu0
    %v6365 = vpop.f32.mrf.mxu0
    %v6366 = vpop.f32.mrf.mxu0
    %6367 = vdwg.mxu0
    %6368 = vmatprep.subr.bf16.mxu0 0
    %6369 = vmatpush1.bf16.msra.mxu0 %v4503
    %6370 = vmatprep.subr.bf16.mxu0 0
    %6371 = vmatpush1.bf16.msra.mxu0 %v4502
    %6372 = vmatprep.subr.bf16.mxu0 0
    %6373 = vmatpush1.bf16.msra.mxu0 %v4501
    %6374 = vmatprep.subr.bf16.mxu0 0
    %6375 = vmatpush1.bf16.msra.mxu0 %v4500
    %6376 = vmatprep.subr.bf16.mxu0 0
    %6377 = vmatpush1.bf16.msra.mxu0 %v4499
    %6378 = vmatprep.subr.bf16.mxu0 0
    %6379 = vmatpush1.bf16.msra.mxu0 %v4498
    %6380 = vmatprep.subr.bf16.mxu0 0
    %6381 = vmatpush1.bf16.msra.mxu0 %v4497
    %6382 = vmatprep.subr.bf16.mxu0 0
    %6383 = vmatpush1.bf16.msra.mxu0 %v4496
    %6384 = vmatprep.subr.bf16.mxu0 0
    %6385 = vmatpush2.bf16.msra.mxu0 %v4511
    %6386 = vmatprep.subr.bf16.mxu0 0
    %6387 = vmatpush2.bf16.msra.mxu0 %v4510
    %6388 = vmatprep.subr.bf16.mxu0 0
    %6389 = vmatpush2.bf16.msra.mxu0 %v4509
    %6390 = vmatprep.subr.bf16.mxu0 0
    %6391 = vmatpush2.bf16.msra.mxu0 %v4508
    %6392 = vmatprep.subr.bf16.mxu0 0
    %6393 = vmatpush2.bf16.msra.mxu0 %v4507
    %6394 = vmatprep.subr.bf16.mxu0 0
    %6395 = vmatpush2.bf16.msra.mxu0 %v4506
    %6396 = vmatprep.subr.bf16.mxu0 0
    %6397 = vmatpush2.bf16.msra.mxu0 %v4505
    %6398 = vmatprep.subr.bf16.mxu0 0
    %6399 = vmatpush2.bf16.msra.mxu0 %v4504
    %6400 = vmatprep.mubr.bf16.mxu0 %v1586
    %6401 = vmatmul.mubr.bf16.gmra.mxu0 %v1572
    %v6402 = vpop.f32.mrf.mxu0
    %v6403 = vadd.f32 %v6363, %v6402
    %v6404 = vpop.f32.mrf.mxu0
    %v6405 = vpop.f32.mrf.mxu0
    %v6406 = vpop.f32.mrf.mxu0
    %6407 = vdwg.mxu0
    %6408 = vmatprep.subr.bf16.mxu0 0
    %6409 = vmatpush1.bf16.msra.mxu0 %v4519
    %6410 = vmatprep.subr.bf16.mxu0 0
    %6411 = vmatpush1.bf16.msra.mxu0 %v4518
    %6412 = vmatprep.subr.bf16.mxu0 0
    %6413 = vmatpush1.bf16.msra.mxu0 %v4517
    %6414 = vmatprep.subr.bf16.mxu0 0
    %6415 = vmatpush1.bf16.msra.mxu0 %v4516
    %6416 = vmatprep.subr.bf16.mxu0 0
    %6417 = vmatpush1.bf16.msra.mxu0 %v4515
    %6418 = vmatprep.subr.bf16.mxu0 0
    %6419 = vmatpush1.bf16.msra.mxu0 %v4514
    %6420 = vmatprep.subr.bf16.mxu0 0
    %6421 = vmatpush1.bf16.msra.mxu0 %v4513
    %6422 = vmatprep.subr.bf16.mxu0 0
    %6423 = vmatpush1.bf16.msra.mxu0 %v4512
    %6424 = vmatprep.subr.bf16.mxu0 0
    %6425 = vmatpush2.bf16.msra.mxu0 %v4527
    %6426 = vmatprep.subr.bf16.mxu0 0
    %6427 = vmatpush2.bf16.msra.mxu0 %v4526
    %6428 = vmatprep.subr.bf16.mxu0 0
    %6429 = vmatpush2.bf16.msra.mxu0 %v4525
    %6430 = vmatprep.subr.bf16.mxu0 0
    %6431 = vmatpush2.bf16.msra.mxu0 %v4524
    %6432 = vmatprep.subr.bf16.mxu0 0
    %6433 = vmatpush2.bf16.msra.mxu0 %v4523
    %6434 = vmatprep.subr.bf16.mxu0 0
    %6435 = vmatpush2.bf16.msra.mxu0 %v4522
    %6436 = vmatprep.subr.bf16.mxu0 0
    %6437 = vmatpush2.bf16.msra.mxu0 %v4521
    %6438 = vmatprep.subr.bf16.mxu0 0
    %6439 = vmatpush2.bf16.msra.mxu0 %v4520
    %6440 = vmatprep.mubr.bf16.mxu0 %v1590
    %6441 = vmatmul.mubr.bf16.gmra.mxu0 %v1588
    %v6442 = vpop.f32.mrf.mxu0
    %v6443 = vadd.f32 %v6403, %v6442
    %v6444 = vpop.f32.mrf.mxu0
    %v6445 = vpop.f32.mrf.mxu0
    %v6446 = vpop.f32.mrf.mxu0
    %6447 = vdwg.mxu0
    %6448 = vmatprep.subr.bf16.mxu0 0
    %6449 = vmatpush1.bf16.msra.mxu0 %v4535
    %6450 = vmatprep.subr.bf16.mxu0 0
    %6451 = vmatpush1.bf16.msra.mxu0 %v4534
    %6452 = vmatprep.subr.bf16.mxu0 0
    %6453 = vmatpush1.bf16.msra.mxu0 %v4533
    %6454 = vmatprep.subr.bf16.mxu0 0
    %6455 = vmatpush1.bf16.msra.mxu0 %v4532
    %6456 = vmatprep.subr.bf16.mxu0 0
    %6457 = vmatpush1.bf16.msra.mxu0 %v4531
    %6458 = vmatprep.subr.bf16.mxu0 0
    %6459 = vmatpush1.bf16.msra.mxu0 %v4530
    %6460 = vmatprep.subr.bf16.mxu0 0
    %6461 = vmatpush1.bf16.msra.mxu0 %v4529
    %6462 = vmatprep.subr.bf16.mxu0 0
    %6463 = vmatpush1.bf16.msra.mxu0 %v4528
    %6464 = vmatprep.subr.bf16.mxu0 0
    %6465 = vmatpush2.bf16.msra.mxu0 %v4543
    %6466 = vmatprep.subr.bf16.mxu0 0
    %6467 = vmatpush2.bf16.msra.mxu0 %v4542
    %6468 = vmatprep.subr.bf16.mxu0 0
    %6469 = vmatpush2.bf16.msra.mxu0 %v4541
    %6470 = vmatprep.subr.bf16.mxu0 0
    %6471 = vmatpush2.bf16.msra.mxu0 %v4540
    %6472 = vmatprep.subr.bf16.mxu0 0
    %6473 = vmatpush2.bf16.msra.mxu0 %v4539
    %6474 = vmatprep.subr.bf16.mxu0 0
    %6475 = vmatpush2.bf16.msra.mxu0 %v4538
    %6476 = vmatprep.subr.bf16.mxu0 0
    %6477 = vmatpush2.bf16.msra.mxu0 %v4537
    %6478 = vmatprep.subr.bf16.mxu0 0
    %6479 = vmatpush2.bf16.msra.mxu0 %v4536
    %6480 = vmatprep.mubr.bf16.mxu0 %v1628
    %6481 = vmatmul.mubr.bf16.gmra.mxu0 %v1614
    %v6482 = vpop.f32.mrf.mxu0
    %v6483 = vadd.f32 %v6443, %v6482
    %v6484 = vpop.f32.mrf.mxu0
    %v6485 = vpop.f32.mrf.mxu0
    %v6486 = vpop.f32.mrf.mxu0
    %6487 = vdwg.mxu0
    %6488 = vmatprep.subr.bf16.mxu0 0
    %6489 = vmatpush1.bf16.msra.mxu0 %v4551
    %6490 = vmatprep.subr.bf16.mxu0 0
    %6491 = vmatpush1.bf16.msra.mxu0 %v4550
    %6492 = vmatprep.subr.bf16.mxu0 0
    %6493 = vmatpush1.bf16.msra.mxu0 %v4549
    %6494 = vmatprep.subr.bf16.mxu0 0
    %6495 = vmatpush1.bf16.msra.mxu0 %v4548
    %6496 = vmatprep.subr.bf16.mxu0 0
    %6497 = vmatpush1.bf16.msra.mxu0 %v4547
    %6498 = vmatprep.subr.bf16.mxu0 0
    %6499 = vmatpush1.bf16.msra.mxu0 %v4546
    %6500 = vmatprep.subr.bf16.mxu0 0
    %6501 = vmatpush1.bf16.msra.mxu0 %v4545
    %6502 = vmatprep.subr.bf16.mxu0 0
    %6503 = vmatpush1.bf16.msra.mxu0 %v4544
    %6504 = vmatprep.subr.bf16.mxu0 0
    %6505 = vmatpush2.bf16.msra.mxu0 %v4559
    %6506 = vmatprep.subr.bf16.mxu0 0
    %6507 = vmatpush2.bf16.msra.mxu0 %v4558
    %6508 = vmatprep.subr.bf16.mxu0 0
    %6509 = vmatpush2.bf16.msra.mxu0 %v4557
    %6510 = vmatprep.subr.bf16.mxu0 0
    %6511 = vmatpush2.bf16.msra.mxu0 %v4556
    %6512 = vmatprep.subr.bf16.mxu0 0
    %6513 = vmatpush2.bf16.msra.mxu0 %v4555
    %6514 = vmatprep.subr.bf16.mxu0 0
    %6515 = vmatpush2.bf16.msra.mxu0 %v4554
    %6516 = vmatprep.subr.bf16.mxu0 0
    %6517 = vmatpush2.bf16.msra.mxu0 %v4553
    %6518 = vmatprep.subr.bf16.mxu0 0
    %6519 = vmatpush2.bf16.msra.mxu0 %v4552
    %6520 = vmatprep.mubr.bf16.mxu0 %v1638
    %6521 = vmatmul.mubr.bf16.gmra.mxu0 %v1636
    %v6522 = vpop.f32.mrf.mxu0
    %v6523 = vadd.f32 %v6483, %v6522
    %v6524 = vpop.f32.mrf.mxu0
    %v6525 = vpop.f32.mrf.mxu0
    %v6526 = vpop.f32.mrf.mxu0
    %6527 = vdwg.mxu0
    %6528 = vmatprep.subr.bf16.mxu0 0
    %6529 = vmatpush1.bf16.msra.mxu0 %v4567
    %6530 = vmatprep.subr.bf16.mxu0 0
    %6531 = vmatpush1.bf16.msra.mxu0 %v4566
    %6532 = vmatprep.subr.bf16.mxu0 0
    %6533 = vmatpush1.bf16.msra.mxu0 %v4565
    %6534 = vmatprep.subr.bf16.mxu0 0
    %6535 = vmatpush1.bf16.msra.mxu0 %v4564
    %6536 = vmatprep.subr.bf16.mxu0 0
    %6537 = vmatpush1.bf16.msra.mxu0 %v4563
    %6538 = vmatprep.subr.bf16.mxu0 0
    %6539 = vmatpush1.bf16.msra.mxu0 %v4562
    %6540 = vmatprep.subr.bf16.mxu0 0
    %6541 = vmatpush1.bf16.msra.mxu0 %v4561
    %6542 = vmatprep.subr.bf16.mxu0 0
    %6543 = vmatpush1.bf16.msra.mxu0 %v4560
    %6544 = vmatprep.subr.bf16.mxu0 0
    %6545 = vmatpush2.bf16.msra.mxu0 %v4575
    %6546 = vmatprep.subr.bf16.mxu0 0
    %6547 = vmatpush2.bf16.msra.mxu0 %v4574
    %6548 = vmatprep.subr.bf16.mxu0 0
    %6549 = vmatpush2.bf16.msra.mxu0 %v4573
    %6550 = vmatprep.subr.bf16.mxu0 0
    %6551 = vmatpush2.bf16.msra.mxu0 %v4572
    %6552 = vmatprep.subr.bf16.mxu0 0
    %6553 = vmatpush2.bf16.msra.mxu0 %v4571
    %6554 = vmatprep.subr.bf16.mxu0 0
    %6555 = vmatpush2.bf16.msra.mxu0 %v4570
    %6556 = vmatprep.subr.bf16.mxu0 0
    %6557 = vmatpush2.bf16.msra.mxu0 %v4569
    %6558 = vmatprep.subr.bf16.mxu0 0
    %6559 = vmatpush2.bf16.msra.mxu0 %v4568
    %6560 = vmatprep.mubr.bf16.mxu0 %v1635
    %6561 = vmatmul.mubr.bf16.gmra.mxu0 %v1621
    %v6562 = vpop.f32.mrf.mxu0
    %v6563 = vadd.f32 %v6523, %v6562
    %v6564 = vpop.f32.mrf.mxu0
    %v6565 = vpop.f32.mrf.mxu0
    %v6566 = vpop.f32.mrf.mxu0
    %6567 = vdwg.mxu0
    %6568 = vmatprep.subr.bf16.mxu0 0
    %6569 = vmatpush1.bf16.msra.mxu0 %v4583
    %6570 = vmatprep.subr.bf16.mxu0 0
    %6571 = vmatpush1.bf16.msra.mxu0 %v4582
    %6572 = vmatprep.subr.bf16.mxu0 0
    %6573 = vmatpush1.bf16.msra.mxu0 %v4581
    %6574 = vmatprep.subr.bf16.mxu0 0
    %6575 = vmatpush1.bf16.msra.mxu0 %v4580
    %6576 = vmatprep.subr.bf16.mxu0 0
    %6577 = vmatpush1.bf16.msra.mxu0 %v4579
    %6578 = vmatprep.subr.bf16.mxu0 0
    %6579 = vmatpush1.bf16.msra.mxu0 %v4578
    %6580 = vmatprep.subr.bf16.mxu0 0
    %6581 = vmatpush1.bf16.msra.mxu0 %v4577
    %6582 = vmatprep.subr.bf16.mxu0 0
    %6583 = vmatpush1.bf16.msra.mxu0 %v4576
    %6584 = vmatprep.subr.bf16.mxu0 0
    %6585 = vmatpush2.bf16.msra.mxu0 %v4591
    %6586 = vmatprep.subr.bf16.mxu0 0
    %6587 = vmatpush2.bf16.msra.mxu0 %v4590
    %6588 = vmatprep.subr.bf16.mxu0 0
    %6589 = vmatpush2.bf16.msra.mxu0 %v4589
    %6590 = vmatprep.subr.bf16.mxu0 0
    %6591 = vmatpush2.bf16.msra.mxu0 %v4588
    %6592 = vmatprep.subr.bf16.mxu0 0
    %6593 = vmatpush2.bf16.msra.mxu0 %v4587
    %6594 = vmatprep.subr.bf16.mxu0 0
    %6595 = vmatpush2.bf16.msra.mxu0 %v4586
    %6596 = vmatprep.subr.bf16.mxu0 0
    %6597 = vmatpush2.bf16.msra.mxu0 %v4585
    %6598 = vmatprep.subr.bf16.mxu0 0
    %6599 = vmatpush2.bf16.msra.mxu0 %v4584
    %6600 = vmatprep.mubr.bf16.mxu0 %v1639
    %6601 = vmatmul.mubr.bf16.gmra.mxu0 %v1637
    %v6602 = vpop.f32.mrf.mxu0
    %v6603 = vadd.f32 %v6563, %v6602
    %v6604 = vpop.f32.mrf.mxu0
    %v6605 = vpop.f32.mrf.mxu0
    %v6606 = vpop.f32.mrf.mxu0
    %6607 = vdwg.mxu0
    %v6608 = vmax.f32 %v6603, 0.0
    %v6609 = vpack.c.bf16 %v6608, %v6608
    %v6610 = vld [vmem:[%s3] sm:$0xf]
    %v6611 = vld [vmem:[%s3 + $0x4] sm:$0xf]
    %v6612 = vld [vmem:[%s3 + $0x8] sm:$0xf]
    %v6613 = vld [vmem:[%s3 + $0xc] sm:$0xf]
    %v6614 = vld [vmem:[%s3 + $0x10] sm:$0xf]
    %v6615 = vld [vmem:[%s3 + $0x14] sm:$0xf]
    %v6616 = vld [vmem:[%s3 + $0x18] sm:$0xf]
    %v6617 = vld [vmem:[%s3 + $0x1c] sm:$0xf]
    %v6618 = vld [vmem:[%s3 + $0x20] sm:$0xf]
    %v6619 = vld [vmem:[%s3 + $0x24] sm:$0xf]
    %v6620 = vld [vmem:[%s3 + $0x28] sm:$0xf]
    %v6621 = vld [vmem:[%s3 + $0x2c] sm:$0xf]
    %v6622 = vld [vmem:[%s3 + $0x30] sm:$0xf]
    %v6623 = vld [vmem:[%s3 + $0x34] sm:$0xf]
    %v6624 = vld [vmem:[%s3 + $0x38] sm:$0xf]
    %v6625 = vld [vmem:[%s3 + $0x3c] sm:$0xf]
    %v6626 = vld [vmem:[%s4] sm:$0x1]
    %v6628 = vlaneseq
    %v6629 = vshrl.u32 %v6628, 7
    %v6630 = vsub.s32 0, %v6629
    %v6631 = vrot.slane %v6626, %v6630
    %v6649 = vunpack.c.l.b16 %v6610
    %v6650 = vunpack.c.l.b16 %v6611
    %v6651 = vunpack.c.l.b16 %v6612
    %v6652 = vunpack.c.l.b16 %v6613
    %v6653 = vunpack.c.l.b16 %v6614
    %v6654 = vunpack.c.l.b16 %v6615
    %v6655 = vunpack.c.l.b16 %v6616
    %v6656 = vunpack.c.l.b16 %v6617
    %v6657 = vunpack.c.l.b16 %v6618
    %v6658 = vunpack.c.l.b16 %v6619
    %v6659 = vunpack.c.l.b16 %v6620
    %v6660 = vunpack.c.l.b16 %v6621
    %v6661 = vunpack.c.l.b16 %v6622
    %v6662 = vunpack.c.l.b16 %v6623
    %v6663 = vunpack.c.l.b16 %v6624
    %v6664 = vunpack.c.l.b16 %v6625
    %v6665 = vpack.c.b16 %v6650, %v6649
    %v6666 = vpack.c.b16 %v6652, %v6651
    %v6667 = vpack.c.b16 %v6654, %v6653
    %v6668 = vpack.c.b16 %v6656, %v6655
    %v6669 = vpack.c.b16 %v6658, %v6657
    %v6670 = vpack.c.b16 %v6660, %v6659
    %v6671 = vpack.c.b16 %v6662, %v6661
    %v6672 = vpack.c.b16 %v6664, %v6663
    %6681 = vmatprep.subr.bf16.mxu0 0
    %6682 = vmatpush1.bf16.msra.mxu0 %v6672
    %6683 = vmatprep.subr.bf16.mxu0 0
    %6684 = vmatpush1.bf16.msra.mxu0 %v6671
    %6685 = vmatprep.subr.bf16.mxu0 0
    %6686 = vmatpush1.bf16.msra.mxu0 %v6670
    %6687 = vmatprep.subr.bf16.mxu0 0
    %6688 = vmatpush1.bf16.msra.mxu0 %v6669
    %6689 = vmatprep.subr.bf16.mxu0 0
    %6690 = vmatpush1.bf16.msra.mxu0 %v6668
    %6691 = vmatprep.subr.bf16.mxu0 0
    %6692 = vmatpush1.bf16.msra.mxu0 %v6667
    %6693 = vmatprep.subr.bf16.mxu0 0
    %6694 = vmatpush1.bf16.msra.mxu0 %v6666
    %6695 = vmatprep.subr.bf16.mxu0 0
    %6696 = vmatpush1.bf16.msra.mxu0 %v6665
    %6697 = vmatprep.subr.bf16.mxu0 0
    %6698 = vmatpush2.bf16.msra.mxu0 0
    %6699 = vmatprep.subr.bf16.mxu0 0
    %6700 = vmatpush2.bf16.msra.mxu0 0
    %6701 = vmatprep.subr.bf16.mxu0 0
    %6702 = vmatpush2.bf16.msra.mxu0 0
    %6703 = vmatprep.subr.bf16.mxu0 0
    %6704 = vmatpush2.bf16.msra.mxu0 0
    %6705 = vmatprep.subr.bf16.mxu0 0
    %6706 = vmatpush2.bf16.msra.mxu0 0
    %6707 = vmatprep.subr.bf16.mxu0 0
    %6708 = vmatpush2.bf16.msra.mxu0 0
    %6709 = vmatprep.subr.bf16.mxu0 0
    %6710 = vmatpush2.bf16.msra.mxu0 0
    %6711 = vmatprep.subr.bf16.mxu0 0
    %6712 = vmatpush2.bf16.msra.mxu0 0
    %6713 = vmatprep.mubr.bf16.mxu0 0
    %6714 = vmatmul.mubr.bf16.gmra.mxu0 %v6609
    %v6715 = vpop.f32.mrf.mxu0
    %v6716 = vadd.f32 %v6631, %v6715
    %v6717 = vpop.f32.mrf.mxu0
    %v6718 = vpop.f32.mrf.mxu0
    %v6719 = vpop.f32.mrf.mxu0
    %6720 = vdwg.mxu0
    %vm6721 = vcmask 74752
    %6722 = vst.msk [vmem:[#allocation2] sm:$0x3] %vm6721, %v6716
    // Predicated region
    $region22: #{simple_cnn_forward.3} parent=1 // pred_check
      _
    $region23: #{simple_cnn_forward.3} parent=1 // pred_check_branch
      %6724 = sbr.rel (0) target = $region25
    $region24: #{simple_cnn_forward.3} parent=1 // pred_region
      %s6726 = ssub.s32 32, 32
      %6727 = vsyncadd [#allocation3], %s6726
      %s6729 = sshll.u32 [#allocation2], 4
      %s6730 = int_to_ptr.vmem [resolvable:$true] %s6729
      %6732 = dma.vmem_to_hbm [thread:$0]  %s6730, 32, %s5, [#allocation3]
    $region25: #{simple_cnn_forward.3} parent=1 // pred_fallthru
      _
    // Predicated region
    $region26: #{simple_cnn_forward.3} parent=1 // pred_check
      _
    $region27: #{simple_cnn_forward.3} parent=1 // pred_check_branch
      %6734 = sbr.rel (0) target = $region29
    $region28: #{simple_cnn_forward.3} parent=1 // pred_region
      %6735 = dma.done [#allocation3], 32
    $region29: #{simple_cnn_forward.3} parent=1 // pred_fallthru
      _
    %6736 = vsyncpa [#allocation3], 1

</llo_original>
